<compile_context>
chip_gen: v7x
topology: tpu7x:2x2x1
jax: 0.10.0
libtpu: 0.0.40
codegen_flags: <defaults>
</compile_context>

<pallas_src>
import functools

import jax
import jax.numpy as jnp
from jax import lax
from jax.experimental import pallas as pl
from jax.experimental.pallas import tpu as pltpu


def _round_up(x, m):
    return (x + m - 1) // m * m


def _lstm_icd_kernel(n_layer, seq_len, batch_p, hidden_p, n_out_p, unroll_time,
                     zs_ref, w_ref, b_ref, wout_ref, bout_ref,
                     out_ref, gates_ref, hseq_ref):
    """Single-TensorCore multi-layer LSTM + even-timestep readout.

    zs_ref    : (T, Bp, Hg)      f32  interleaved (y, x) inputs, tile-padded
    w_ref     : (2L, Hg, 4Hg)    mm   [2l] = W_ih^T, [2l+1] = W_hh^T (gate-lane padded)
    b_ref     : (L, 1, 4Hg)      f32  b_ih + b_hh (gate-lane padded)
    wout_ref  : (Hg, Np)         mm   W_out^T, zero-padded
    bout_ref  : (1, Np)          f32
    out_ref   : (P*Bp, Np)       f32  logits for even timesteps (lane-dense)
    gates_ref : (T, Bp, 4Hg)     f32  scratch: input-projected gates
    hseq_ref  : (T, Bp, Hg)      f32  scratch: current layer's output sequence
    """
    T, Bp, Hg = seq_len, batch_p, hidden_p
    P = T // 2
    f32 = jnp.float32

    for l in range(n_layer):
        wih = w_ref[2 * l]                       # (Hg, 4Hg), hoisted
        whh = w_ref[2 * l + 1]                   # (Hg, 4Hg), hoisted
        bias = b_ref[l].astype(f32)              # (1, 4Hg)
        mm_dtype = wih.dtype

        # Batched input projection over ALL timesteps: one MXU matmul per
        # layer, (b_ih + b_hh) folded in, result parked in VMEM scratch.
        x_all = (zs_ref[...] if l == 0 else hseq_ref[...])
        x_all = x_all.reshape(T * Bp, Hg).astype(mm_dtype)
        gates_in = jnp.dot(x_all, wih, preferred_element_type=f32) + bias
        gates_ref[...] = gates_in.reshape(T, Bp, 4 * Hg)

        def step(t, carry):
            h, c = carry
            # Only the unavoidable recurrent matmul stays on the serial chain.
            g = gates_ref[t] + jnp.dot(h.astype(mm_dtype), whh,
                                       preferred_element_type=f32)   # (Bp, 4Hg)
            # Lane-aligned gate slices; element-wise math in f32 (v5e-safe).
            i_g = jax.nn.sigmoid(g[:, 0 * Hg:1 * Hg])
            f_g = jax.nn.sigmoid(g[:, 1 * Hg:2 * Hg])
            g_g = jnp.tanh(g[:, 2 * Hg:3 * Hg])
            o_g = jax.nn.sigmoid(g[:, 3 * Hg:4 * Hg])
            c = f_g * c + i_g * g_g
            h = o_g * jnp.tanh(c)
            hseq_ref[t] = h                      # full-tile, unmasked store
            return h, c

        carry = (jnp.zeros((Bp, Hg), f32), jnp.zeros((Bp, Hg), f32))
        if T <= unroll_time:
            for t in range(T):                   # small T: static unroll
                carry = step(t, carry)
        else:                                    # large T: bounded live ranges
            lax.fori_loop(0, T, step, carry, unroll=4)

    # Fused readout over the even timesteps (the rows forward() returns):
    # one MXU matmul, one lane-dense store.
    h_all = hseq_ref[...]                                      # (T, Bp, Hg)
    h_even = h_all.reshape(P, 2, Bp, Hg)[:, 0, :, :]           # t = 0, 2, 4, ...
    h_even = h_even.reshape(P * Bp, Hg).astype(wout_ref.dtype)
    logits = jnp.dot(h_even, wout_ref[...], preferred_element_type=f32)
    out_ref[...] = (logits + bout_ref[...].astype(f32)).astype(out_ref.dtype)


def combine(xs, ys):
    """JAX port of SeqModelForICD._combine: [y_0, x_0, y_1, x_1, ...]."""
    B, P, dim = ys.shape
    x_size = xs.shape[2]
    xs_wide = jnp.concatenate(
        [xs, jnp.zeros((B, P, dim - x_size), xs.dtype)], axis=2)
    return jnp.stack([ys, xs_wide], axis=2).reshape(B, 2 * P, dim)


def init_params(key, n_dims, n_embd, n_layer, n_dims_out):
    """Deterministic synthetic init (mirrors PyTorch LSTM/Linear shapes & init)."""
    H = n_embd
    scale = 1.0 / float(jnp.sqrt(jnp.float32(H)))
    layers = []
    for l in range(n_layer):
        din = n_dims if l == 0 else H
        key, k1, k2, k3, k4 = jax.random.split(key, 5)
        w_ih = jax.random.uniform(k1, (4 * H, din), jnp.float32, -scale, scale)
        w_hh = jax.random.uniform(k2, (4 * H, H), jnp.float32, -scale, scale)
        b_ih = jax.random.uniform(k3, (4 * H,), jnp.float32, -scale, scale)
        b_hh = jax.random.uniform(k4, (4 * H,), jnp.float32, -scale, scale)
        layers.append((w_ih, w_hh, b_ih, b_hh))
    key, k1, k2 = jax.random.split(key, 3)
    w_out = jax.random.uniform(k1, (n_dims_out, H), jnp.float32, -scale, scale)
    b_out = jax.random.uniform(k2, (n_dims_out,), jnp.float32, -scale, scale)
    return {"layers": layers, "readout": (w_out, b_out)}


def seq_model_icd_forward(xs, ys, params, n_embd, param_dtype=jnp.float32,
                          unroll_time=64):
    """Forward pass of SeqModelForICD (LSTM backbone).

    param_dtype=jnp.bfloat16 is valid on v5e, v6e and v7x alike (the MXU
    consumes bf16 natively on all three; only gate element-wise math needs
    f32, which this kernel always uses).  Expect small drift vs f32.
    """
    zs = combine(xs, ys)                                  # (B, T, n_dims)
    B, T, D = zs.shape
    assert T % 2 == 0, "combined sequence length must be even"
    P = T // 2
    H = n_embd
    layers = params["layers"]
    n_layer = len(layers)
    w_out, b_out = params["readout"]
    n_out = w_out.shape[0]

    Hg = _round_up(H, 128)      # lane-aligned per-gate width
    Bp = _round_up(B, 8)        # sublane-aligned batch
    Np = _round_up(n_out, 128)  # lane-dense readout width
    assert D <= Hg, "parameter packing assumes n_dims <= padded hidden width"

    # ---- Pack all parameters into 4 buffers (few, large DMAs). ------------
    w_all = jnp.zeros((2 * n_layer, Hg, 4 * Hg), param_dtype)
    b_all = jnp.zeros((n_layer, 1, 4 * Hg), jnp.float32)
    for l, (w_ih, w_hh, b_ih, b_hh) in enumerate(layers):
        din = w_ih.shape[1]
        wih_t = jnp.transpose(w_ih).astype(param_dtype)   # (din, 4H)
        whh_t = jnp.transpose(w_hh).astype(param_dtype)   # (H,   4H)
        bias = (b_ih + b_hh).astype(jnp.float32)          # (4H,)
        for g in range(4):                                # gate-lane alignment
            w_all = w_all.at[2 * l, :din, g * Hg:g * Hg + H].set(
                wih_t[:, g * H:(g + 1) * H])
            w_all = w_all.at[2 * l + 1, :H, g * Hg:g * Hg + H].set(
                whh_t[:, g * H:(g + 1) * H])
            b_all = b_all.at[l, 0, g * Hg:g * Hg + H].set(
                bias[g * H:(g + 1) * H])
    wout_p = jnp.zeros((Hg, Np), param_dtype).at[:H, :n_out].set(
        jnp.transpose(w_out).astype(param_dtype))
    bout_p = jnp.zeros((1, Np), jnp.float32).at[0, :n_out].set(
        b_out.astype(jnp.float32))

    # Time-major, tile-padded input: (T, Bp, Hg); real data in [:, :B, :D].
    zs_p = jnp.zeros((T, Bp, Hg), jnp.float32).at[:, :B, :D].set(
        jnp.transpose(zs, (1, 0, 2)).astype(jnp.float32))

    kernel = functools.partial(_lstm_icd_kernel, n_layer, T, Bp, Hg, Np,
                               unroll_time)

    # VMEM limit sized to the actual footprint (inputs + output + scratch),
    # with 2x headroom — stays far below v5e's 16 MiB scoped default.
    p_bytes = jnp.dtype(param_dtype).itemsize
    footprint = (zs_p.size * 4 + w_all.size * p_bytes + b_all.size * 4 +
                 wout_p.size * p_bytes + bout_p.size * 4 +
                 P * Bp * Np * 4 +            # output
                 T * Bp * 4 * Hg * 4 +        # gates scratch
                 T * Bp * Hg * 4)             # hseq scratch
    vmem_limit = int(max(4 * 1024 * 1024, 2 * footprint))

    out_flat = pl.pallas_call(
        kernel,
        out_shape=jax.ShapeDtypeStruct((P * Bp, Np), jnp.float32),
        in_specs=[pl.BlockSpec(memory_space=pltpu.MemorySpace.VMEM)] * 5,
        out_specs=pl.BlockSpec(memory_space=pltpu.MemorySpace.VMEM),
        scratch_shapes=[
            pltpu.VMEM((T, Bp, 4 * Hg), jnp.float32),  # input-projected gates
            pltpu.VMEM((T, Bp, Hg), jnp.float32),      # layer output sequence
        ],
        compiler_params=pltpu.CompilerParams(vmem_limit_bytes=vmem_limit),
    )(zs_p, w_all, b_all, wout_p, bout_p)

    # Un-pad outside the kernel: rows are (p*Bp + b).
    out = out_flat.reshape(P, Bp, Np)[:, :B, :n_out]
    return jnp.transpose(out, (1, 0, 2))                  # (B, P, n_out)


def reference_forward(xs, ys, params):
    """Pure-JAX f32 reference (mirrors the PyTorch module) for a sanity check."""
    x = combine(xs, ys)
    for (w_ih, w_hh, b_ih, b_hh) in params["layers"]:
        H = w_hh.shape[1]
        B, T, _ = x.shape
        h = jnp.zeros((B, H), jnp.float32)
        c = jnp.zeros((B, H), jnp.float32)
        outs = []
        for t in range(T):
            gates = x[:, t, :] @ w_ih.T + b_ih + h @ w_hh.T + b_hh
            i = jax.nn.sigmoid(gates[:, :H])
            f = jax.nn.sigmoid(gates[:, H:2 * H])
            g = jnp.tanh(gates[:, 2 * H:3 * H])
            o = jax.nn.sigmoid(gates[:, 3 * H:])
            c = f * c + i * g
            h = o * jnp.tanh(c)
            outs.append(h)
        x = jnp.stack(outs, axis=1)
    w_out, b_out = params["readout"]
    logits = x @ w_out.T + b_out
    return logits[:, ::2, :]


if __name__ == "__main__":
    # Small config consistent with the module: n_dims=8, n_embd=32, n_layer=2,
    # n_dims_out=1, batch=2, 8 (x, y) points -> combined sequence length 16.
    n_dims, n_embd, n_layer, n_dims_out = 8, 32, 2, 1
    B, points, x_size = 2, 8, 4

    key = jax.random.PRNGKey(0)
    kx, ky, kp = jax.random.split(key, 3)
    xs = jax.random.normal(kx, (B, points, x_size), jnp.float32)
    ys = jax.random.normal(ky, (B, points, n_dims), jnp.float32)
    params = init_params(kp, n_dims, n_embd, n_layer, n_dims_out)

    ref = reference_forward(xs, ys, params)

    # f32 path: preserves the PyTorch module's numerics.
    out = jax.block_until_ready(seq_model_icd_forward(xs, ys, params, n_embd))
    assert out.shape == (B, points, n_dims_out), out.shape
    if not jnp.allclose(out, ref, atol=1e-3, rtol=1e-3):
        raise AssertionError("Pallas kernel (f32) does not match JAX reference")

    # bf16 weight path (MXU-native on v5e/v6e/v7x; f32 accumulation & gates),
    # validated with a looser tolerance.
    out_bf16 = jax.block_until_ready(
        seq_model_icd_forward(xs, ys, params, n_embd, param_dtype=jnp.bfloat16))
    if not jnp.allclose(out_bf16, ref, atol=0.15, rtol=0.1):
        raise AssertionError("Pallas kernel (bf16) drifted too far from reference")

    print("KERNEL_OK")
</pallas_src>

<mosaic_0001>
module attributes {stable_mosaic.version = 11 : i64} {
  func.func @_lstm_icd_kernel(%arg0: memref<16x8x128xf32, #tpu.memory_space<vmem>>, %arg1: memref<4x128x512xf32, #tpu.memory_space<vmem>>, %arg2: memref<2x1x512xf32, #tpu.memory_space<vmem>>, %arg3: memref<128x128xf32, #tpu.memory_space<vmem>>, %arg4: memref<1x128xf32, #tpu.memory_space<vmem>>, %arg5: memref<64x128xf32, #tpu.memory_space<vmem>>, %arg6: memref<16x8x512xf32, #tpu.memory_space<vmem>>, %arg7: memref<16x8x128xf32, #tpu.memory_space<vmem>>) attributes {dimension_semantics = [], scalar_prefetch = 0 : i64, scratch_operands = 2 : i64, tpu.core_type = #tpu.core_type<tc>} {
    %c0 = arith.constant 0 : index
    %c0_0 = arith.constant 0 : index
    %c0_1 = arith.constant 0 : index
    %0 = vector.load %arg1[%c0, %c0_0, %c0_1] : memref<4x128x512xf32, #tpu.memory_space<vmem>>, vector<1x128x512xf32>
    %1 = vector.shape_cast %0 : vector<1x128x512xf32> to vector<128x512xf32>
    %c1 = arith.constant 1 : index
    %c0_2 = arith.constant 0 : index
    %c0_3 = arith.constant 0 : index
    %2 = vector.load %arg1[%c1, %c0_2, %c0_3] : memref<4x128x512xf32, #tpu.memory_space<vmem>>, vector<1x128x512xf32>
    %3 = vector.shape_cast %2 : vector<1x128x512xf32> to vector<128x512xf32>
    %c0_4 = arith.constant 0 : index
    %c0_5 = arith.constant 0 : index
    %c0_6 = arith.constant 0 : index
    %4 = vector.load %arg2[%c0_4, %c0_5, %c0_6] : memref<2x1x512xf32, #tpu.memory_space<vmem>>, vector<1x1x512xf32>
    %5 = vector.shape_cast %4 : vector<1x1x512xf32> to vector<1x512xf32>
    %c0_7 = arith.constant 0 : index
    %c0_8 = arith.constant 0 : index
    %c0_9 = arith.constant 0 : index
    %6 = vector.load %arg0[%c0_7, %c0_8, %c0_9] : memref<16x8x128xf32, #tpu.memory_space<vmem>>, vector<16x8x128xf32>
    %7 = vector.shape_cast %6 : vector<16x8x128xf32> to vector<128x128xf32>
    %cst = arith.constant dense<0.000000e+00> : vector<128x512xf32>
    %8 = tpu.matmul %7, %1, %cst {dimension_numbers = #tpu.dot_dimension_numbers<[1], [0], [0], [1], [0, 0, 1, 1], [], []>} : vector<128x128xf32>, vector<128x512xf32>, vector<128x512xf32> -> vector<128x512xf32>
    %9 = vector.broadcast %5 : vector<1x512xf32> to vector<128x512xf32>
    %10 = arith.addf %8, %9 : vector<128x512xf32>
    %11 = vector.shape_cast %10 : vector<128x512xf32> to vector<16x8x512xf32>
    %c0_10 = arith.constant 0 : index
    %c0_11 = arith.constant 0 : index
    %c0_12 = arith.constant 0 : index
    %12 = vector.load %arg6[%c0_10, %c0_11, %c0_12] : memref<16x8x512xf32, #tpu.memory_space<vmem>>, vector<16x8x512xf32>
    tpu.vector_store %arg6[%c0_10, %c0_11, %c0_12], %11 {strides = array<i32>} : memref<16x8x512xf32, #tpu.memory_space<vmem>>, vector<16x8x512xf32>,
    %cst_13 = arith.constant 0.000000e+00 : f32
    %13 = vector.broadcast %cst_13 : f32 to vector<8x128xf32>
    %cst_14 = arith.constant 0.000000e+00 : f32
    %14 = vector.broadcast %cst_14 : f32 to vector<8x128xf32>
    %c0_15 = arith.constant 0 : index
    %c0_16 = arith.constant 0 : index
    %c0_17 = arith.constant 0 : index
    %15 = vector.load %arg6[%c0_15, %c0_16, %c0_17] : memref<16x8x512xf32, #tpu.memory_space<vmem>>, vector<1x8x512xf32>
    %16 = vector.shape_cast %15 : vector<1x8x512xf32> to vector<8x512xf32>
    %cst_18 = arith.constant dense<0.000000e+00> : vector<8x512xf32>
    %17 = tpu.matmul %13, %3, %cst_18 {dimension_numbers = #tpu.dot_dimension_numbers<[1], [0], [0], [1], [0, 0, 1, 1], [], []>} : vector<8x128xf32>, vector<128x512xf32>, vector<8x512xf32> -> vector<8x512xf32>
    %18 = arith.addf %16, %17 : vector<8x512xf32>
    %19 = vector.extract_strided_slice %18 {offsets = [0, 0], sizes = [8, 128], strides = [1, 1]} : vector<8x512xf32> to vector<8x128xf32>
    %20 = arith.negf %19 : vector<8x128xf32>
    %21 = math.exp %20 : vector<8x128xf32>
    %cst_19 = arith.constant 1.000000e+00 : f32
    %22 = vector.broadcast %cst_19 : f32 to vector<8x128xf32>
    %23 = arith.addf %22, %21 : vector<8x128xf32>
    %24 = arith.divf %22, %23 : vector<8x128xf32>
    %25 = vector.extract_strided_slice %18 {offsets = [0, 128], sizes = [8, 128], strides = [1, 1]} : vector<8x512xf32> to vector<8x128xf32>
    %26 = arith.negf %25 : vector<8x128xf32>
    %27 = math.exp %26 : vector<8x128xf32>
    %cst_20 = arith.constant 1.000000e+00 : f32
    %28 = vector.broadcast %cst_20 : f32 to vector<8x128xf32>
    %29 = arith.addf %28, %27 : vector<8x128xf32>
    %30 = arith.divf %28, %29 : vector<8x128xf32>
    %31 = vector.extract_strided_slice %18 {offsets = [0, 256], sizes = [8, 128], strides = [1, 1]} : vector<8x512xf32> to vector<8x128xf32>
    %32 = math.tanh %31 : vector<8x128xf32>
    %33 = vector.extract_strided_slice %18 {offsets = [0, 384], sizes = [8, 128], strides = [1, 1]} : vector<8x512xf32> to vector<8x128xf32>
    %34 = arith.negf %33 : vector<8x128xf32>
    %35 = math.exp %34 : vector<8x128xf32>
    %cst_21 = arith.constant 1.000000e+00 : f32
    %36 = vector.broadcast %cst_21 : f32 to vector<8x128xf32>
    %37 = arith.addf %36, %35 : vector<8x128xf32>
    %38 = arith.divf %36, %37 : vector<8x128xf32>
    %39 = arith.mulf %30, %14 : vector<8x128xf32>
    %40 = arith.mulf %24, %32 : vector<8x128xf32>
    %41 = arith.addf %39, %40 : vector<8x128xf32>
    %42 = math.tanh %41 : vector<8x128xf32>
    %43 = arith.mulf %38, %42 : vector<8x128xf32>
    %c0_22 = arith.constant 0 : index
    %c0_23 = arith.constant 0 : index
    %c0_24 = arith.constant 0 : index
    %44 = vector.load %arg7[%c0_22, %c0_23, %c0_24] : memref<16x8x128xf32, #tpu.memory_space<vmem>>, vector<1x8x128xf32>
    %45 = vector.shape_cast %44 : vector<1x8x128xf32> to vector<8x128xf32>
    %46 = vector.shape_cast %43 : vector<8x128xf32> to vector<1x8x128xf32>
    tpu.vector_store %arg7[%c0_22, %c0_23, %c0_24], %46 {strides = array<i32>} : memref<16x8x128xf32, #tpu.memory_space<vmem>>, vector<1x8x128xf32>,
    %c1_25 = arith.constant 1 : index
    %c0_26 = arith.constant 0 : index
    %c0_27 = arith.constant 0 : index
    %47 = vector.load %arg6[%c1_25, %c0_26, %c0_27] : memref<16x8x512xf32, #tpu.memory_space<vmem>>, vector<1x8x512xf32>
    %48 = vector.shape_cast %47 : vector<1x8x512xf32> to vector<8x512xf32>
    %cst_28 = arith.constant dense<0.000000e+00> : vector<8x512xf32>
    %49 = tpu.matmul %43, %3, %cst_28 {dimension_numbers = #tpu.dot_dimension_numbers<[1], [0], [0], [1], [0, 0, 1, 1], [], []>} : vector<8x128xf32>, vector<128x512xf32>, vector<8x512xf32> -> vector<8x512xf32>
    %50 = arith.addf %48, %49 : vector<8x512xf32>
    %51 = vector.extract_strided_slice %50 {offsets = [0, 0], sizes = [8, 128], strides = [1, 1]} : vector<8x512xf32> to vector<8x128xf32>
    %52 = arith.negf %51 : vector<8x128xf32>
    %53 = math.exp %52 : vector<8x128xf32>
    %cst_29 = arith.constant 1.000000e+00 : f32
    %54 = vector.broadcast %cst_29 : f32 to vector<8x128xf32>
    %55 = arith.addf %54, %53 : vector<8x128xf32>
    %56 = arith.divf %54, %55 : vector<8x128xf32>
    %57 = vector.extract_strided_slice %50 {offsets = [0, 128], sizes = [8, 128], strides = [1, 1]} : vector<8x512xf32> to vector<8x128xf32>
    %58 = arith.negf %57 : vector<8x128xf32>
    %59 = math.exp %58 : vector<8x128xf32>
    %cst_30 = arith.constant 1.000000e+00 : f32
    %60 = vector.broadcast %cst_30 : f32 to vector<8x128xf32>
    %61 = arith.addf %60, %59 : vector<8x128xf32>
    %62 = arith.divf %60, %61 : vector<8x128xf32>
    %63 = vector.extract_strided_slice %50 {offsets = [0, 256], sizes = [8, 128], strides = [1, 1]} : vector<8x512xf32> to vector<8x128xf32>
    %64 = math.tanh %63 : vector<8x128xf32>
    %65 = vector.extract_strided_slice %50 {offsets = [0, 384], sizes = [8, 128], strides = [1, 1]} : vector<8x512xf32> to vector<8x128xf32>
    %66 = arith.negf %65 : vector<8x128xf32>
    %67 = math.exp %66 : vector<8x128xf32>
    %cst_31 = arith.constant 1.000000e+00 : f32
    %68 = vector.broadcast %cst_31 : f32 to vector<8x128xf32>
    %69 = arith.addf %68, %67 : vector<8x128xf32>
    %70 = arith.divf %68, %69 : vector<8x128xf32>
    %71 = arith.mulf %62, %41 : vector<8x128xf32>
    %72 = arith.mulf %56, %64 : vector<8x128xf32>
    %73 = arith.addf %71, %72 : vector<8x128xf32>
    %74 = math.tanh %73 : vector<8x128xf32>
    %75 = arith.mulf %70, %74 : vector<8x128xf32>
    %c1_32 = arith.constant 1 : index
    %c0_33 = arith.constant 0 : index
    %c0_34 = arith.constant 0 : index
    %76 = vector.load %arg7[%c1_32, %c0_33, %c0_34] : memref<16x8x128xf32, #tpu.memory_space<vmem>>, vector<1x8x128xf32>
    %77 = vector.shape_cast %76 : vector<1x8x128xf32> to vector<8x128xf32>
    %78 = vector.shape_cast %75 : vector<8x128xf32> to vector<1x8x128xf32>
    tpu.vector_store %arg7[%c1_32, %c0_33, %c0_34], %78 {strides = array<i32>} : memref<16x8x128xf32, #tpu.memory_space<vmem>>, vector<1x8x128xf32>,
    %c2 = arith.constant 2 : index
    %c0_35 = arith.constant 0 : index
    %c0_36 = arith.constant 0 : index
    %79 = vector.load %arg6[%c2, %c0_35, %c0_36] : memref<16x8x512xf32, #tpu.memory_space<vmem>>, vector<1x8x512xf32>
    %80 = vector.shape_cast %79 : vector<1x8x512xf32> to vector<8x512xf32>
    %cst_37 = arith.constant dense<0.000000e+00> : vector<8x512xf32>
    %81 = tpu.matmul %75, %3, %cst_37 {dimension_numbers = #tpu.dot_dimension_numbers<[1], [0], [0], [1], [0, 0, 1, 1], [], []>} : vector<8x128xf32>, vector<128x512xf32>, vector<8x512xf32> -> vector<8x512xf32>
    %82 = arith.addf %80, %81 : vector<8x512xf32>
    %83 = vector.extract_strided_slice %82 {offsets = [0, 0], sizes = [8, 128], strides = [1, 1]} : vector<8x512xf32> to vector<8x128xf32>
    %84 = arith.negf %83 : vector<8x128xf32>
    %85 = math.exp %84 : vector<8x128xf32>
    %cst_38 = arith.constant 1.000000e+00 : f32
    %86 = vector.broadcast %cst_38 : f32 to vector<8x128xf32>
    %87 = arith.addf %86, %85 : vector<8x128xf32>
    %88 = arith.divf %86, %87 : vector<8x128xf32>
    %89 = vector.extract_strided_slice %82 {offsets = [0, 128], sizes = [8, 128], strides = [1, 1]} : vector<8x512xf32> to vector<8x128xf32>
    %90 = arith.negf %89 : vector<8x128xf32>
    %91 = math.exp %90 : vector<8x128xf32>
    %cst_39 = arith.constant 1.000000e+00 : f32
    %92 = vector.broadcast %cst_39 : f32 to vector<8x128xf32>
    %93 = arith.addf %92, %91 : vector<8x128xf32>
    %94 = arith.divf %92, %93 : vector<8x128xf32>
    %95 = vector.extract_strided_slice %82 {offsets = [0, 256], sizes = [8, 128], strides = [1, 1]} : vector<8x512xf32> to vector<8x128xf32>
    %96 = math.tanh %95 : vector<8x128xf32>
    %97 = vector.extract_strided_slice %82 {offsets = [0, 384], sizes = [8, 128], strides = [1, 1]} : vector<8x512xf32> to vector<8x128xf32>
    %98 = arith.negf %97 : vector<8x128xf32>
    %99 = math.exp %98 : vector<8x128xf32>
    %cst_40 = arith.constant 1.000000e+00 : f32
    %100 = vector.broadcast %cst_40 : f32 to vector<8x128xf32>
    %101 = arith.addf %100, %99 : vector<8x128xf32>
    %102 = arith.divf %100, %101 : vector<8x128xf32>
    %103 = arith.mulf %94, %73 : vector<8x128xf32>
    %104 = arith.mulf %88, %96 : vector<8x128xf32>
    %105 = arith.addf %103, %104 : vector<8x128xf32>
    %106 = math.tanh %105 : vector<8x128xf32>
    %107 = arith.mulf %102, %106 : vector<8x128xf32>
    %c2_41 = arith.constant 2 : index
    %c0_42 = arith.constant 0 : index
    %c0_43 = arith.constant 0 : index
    %108 = vector.load %arg7[%c2_41, %c0_42, %c0_43] : memref<16x8x128xf32, #tpu.memory_space<vmem>>, vector<1x8x128xf32>
    %109 = vector.shape_cast %108 : vector<1x8x128xf32> to vector<8x128xf32>
    %110 = vector.shape_cast %107 : vector<8x128xf32> to vector<1x8x128xf32>
    tpu.vector_store %arg7[%c2_41, %c0_42, %c0_43], %110 {strides = array<i32>} : memref<16x8x128xf32, #tpu.memory_space<vmem>>, vector<1x8x128xf32>,
    %c3 = arith.constant 3 : index
    %c0_44 = arith.constant 0 : index
    %c0_45 = arith.constant 0 : index
    %111 = vector.load %arg6[%c3, %c0_44, %c0_45] : memref<16x8x512xf32, #tpu.memory_space<vmem>>, vector<1x8x512xf32>
    %112 = vector.shape_cast %111 : vector<1x8x512xf32> to vector<8x512xf32>
    %cst_46 = arith.constant dense<0.000000e+00> : vector<8x512xf32>
    %113 = tpu.matmul %107, %3, %cst_46 {dimension_numbers = #tpu.dot_dimension_numbers<[1], [0], [0], [1], [0, 0, 1, 1], [], []>} : vector<8x128xf32>, vector<128x512xf32>, vector<8x512xf32> -> vector<8x512xf32>
    %114 = arith.addf %112, %113 : vector<8x512xf32>
    %115 = vector.extract_strided_slice %114 {offsets = [0, 0], sizes = [8, 128], strides = [1, 1]} : vector<8x512xf32> to vector<8x128xf32>
    %116 = arith.negf %115 : vector<8x128xf32>
    %117 = math.exp %116 : vector<8x128xf32>
    %cst_47 = arith.constant 1.000000e+00 : f32
    %118 = vector.broadcast %cst_47 : f32 to vector<8x128xf32>
    %119 = arith.addf %118, %117 : vector<8x128xf32>
    %120 = arith.divf %118, %119 : vector<8x128xf32>
    %121 = vector.extract_strided_slice %114 {offsets = [0, 128], sizes = [8, 128], strides = [1, 1]} : vector<8x512xf32> to vector<8x128xf32>
    %122 = arith.negf %121 : vector<8x128xf32>
    %123 = math.exp %122 : vector<8x128xf32>
    %cst_48 = arith.constant 1.000000e+00 : f32
    %124 = vector.broadcast %cst_48 : f32 to vector<8x128xf32>
    %125 = arith.addf %124, %123 : vector<8x128xf32>
    %126 = arith.divf %124, %125 : vector<8x128xf32>
    %127 = vector.extract_strided_slice %114 {offsets = [0, 256], sizes = [8, 128], strides = [1, 1]} : vector<8x512xf32> to vector<8x128xf32>
    %128 = math.tanh %127 : vector<8x128xf32>
    %129 = vector.extract_strided_slice %114 {offsets = [0, 384], sizes = [8, 128], strides = [1, 1]} : vector<8x512xf32> to vector<8x128xf32>
    %130 = arith.negf %129 : vector<8x128xf32>
    %131 = math.exp %130 : vector<8x128xf32>
    %cst_49 = arith.constant 1.000000e+00 : f32
    %132 = vector.broadcast %cst_49 : f32 to vector<8x128xf32>
    %133 = arith.addf %132, %131 : vector<8x128xf32>
    %134 = arith.divf %132, %133 : vector<8x128xf32>
    %135 = arith.mulf %126, %105 : vector<8x128xf32>
    %136 = arith.mulf %120, %128 : vector<8x128xf32>
    %137 = arith.addf %135, %136 : vector<8x128xf32>
    %138 = math.tanh %137 : vector<8x128xf32>
    %139 = arith.mulf %134, %138 : vector<8x128xf32>
    %c3_50 = arith.constant 3 : index
    %c0_51 = arith.constant 0 : index
    %c0_52 = arith.constant 0 : index
    %140 = vector.load %arg7[%c3_50, %c0_51, %c0_52] : memref<16x8x128xf32, #tpu.memory_space<vmem>>, vector<1x8x128xf32>
    %141 = vector.shape_cast %140 : vector<1x8x128xf32> to vector<8x128xf32>
    %142 = vector.shape_cast %139 : vector<8x128xf32> to vector<1x8x128xf32>
    tpu.vector_store %arg7[%c3_50, %c0_51, %c0_52], %142 {strides = array<i32>} : memref<16x8x128xf32, #tpu.memory_space<vmem>>, vector<1x8x128xf32>,
    %c4 = arith.constant 4 : index
    %c0_53 = arith.constant 0 : index
    %c0_54 = arith.constant 0 : index
    %143 = vector.load %arg6[%c4, %c0_53, %c0_54] : memref<16x8x512xf32, #tpu.memory_space<vmem>>, vector<1x8x512xf32>
    %144 = vector.shape_cast %143 : vector<1x8x512xf32> to vector<8x512xf32>
    %cst_55 = arith.constant dense<0.000000e+00> : vector<8x512xf32>
    %145 = tpu.matmul %139, %3, %cst_55 {dimension_numbers = #tpu.dot_dimension_numbers<[1], [0], [0], [1], [0, 0, 1, 1], [], []>} : vector<8x128xf32>, vector<128x512xf32>, vector<8x512xf32> -> vector<8x512xf32>
    %146 = arith.addf %144, %145 : vector<8x512xf32>
    %147 = vector.extract_strided_slice %146 {offsets = [0, 0], sizes = [8, 128], strides = [1, 1]} : vector<8x512xf32> to vector<8x128xf32>
    %148 = arith.negf %147 : vector<8x128xf32>
    %149 = math.exp %148 : vector<8x128xf32>
    %cst_56 = arith.constant 1.000000e+00 : f32
    %150 = vector.broadcast %cst_56 : f32 to vector<8x128xf32>
    %151 = arith.addf %150, %149 : vector<8x128xf32>
    %152 = arith.divf %150, %151 : vector<8x128xf32>
    %153 = vector.extract_strided_slice %146 {offsets = [0, 128], sizes = [8, 128], strides = [1, 1]} : vector<8x512xf32> to vector<8x128xf32>
    %154 = arith.negf %153 : vector<8x128xf32>
    %155 = math.exp %154 : vector<8x128xf32>
    %cst_57 = arith.constant 1.000000e+00 : f32
    %156 = vector.broadcast %cst_57 : f32 to vector<8x128xf32>
    %157 = arith.addf %156, %155 : vector<8x128xf32>
    %158 = arith.divf %156, %157 : vector<8x128xf32>
    %159 = vector.extract_strided_slice %146 {offsets = [0, 256], sizes = [8, 128], strides = [1, 1]} : vector<8x512xf32> to vector<8x128xf32>
    %160 = math.tanh %159 : vector<8x128xf32>
    %161 = vector.extract_strided_slice %146 {offsets = [0, 384], sizes = [8, 128], strides = [1, 1]} : vector<8x512xf32> to vector<8x128xf32>
    %162 = arith.negf %161 : vector<8x128xf32>
    %163 = math.exp %162 : vector<8x128xf32>
    %cst_58 = arith.constant 1.000000e+00 : f32
    %164 = vector.broadcast %cst_58 : f32 to vector<8x128xf32>
    %165 = arith.addf %164, %163 : vector<8x128xf32>
    %166 = arith.divf %164, %165 : vector<8x128xf32>
    %167 = arith.mulf %158, %137 : vector<8x128xf32>
    %168 = arith.mulf %152, %160 : vector<8x128xf32>
    %169 = arith.addf %167, %168 : vector<8x128xf32>
    %170 = math.tanh %169 : vector<8x128xf32>
    %171 = arith.mulf %166, %170 : vector<8x128xf32>
    %c4_59 = arith.constant 4 : index
    %c0_60 = arith.constant 0 : index
    %c0_61 = arith.constant 0 : index
    %172 = vector.load %arg7[%c4_59, %c0_60, %c0_61] : memref<16x8x128xf32, #tpu.memory_space<vmem>>, vector<1x8x128xf32>
    %173 = vector.shape_cast %172 : vector<1x8x128xf32> to vector<8x128xf32>
    %174 = vector.shape_cast %171 : vector<8x128xf32> to vector<1x8x128xf32>
    tpu.vector_store %arg7[%c4_59, %c0_60, %c0_61], %174 {strides = array<i32>} : memref<16x8x128xf32, #tpu.memory_space<vmem>>, vector<1x8x128xf32>,
    %c5 = arith.constant 5 : index
    %c0_62 = arith.constant 0 : index
    %c0_63 = arith.constant 0 : index
    %175 = vector.load %arg6[%c5, %c0_62, %c0_63] : memref<16x8x512xf32, #tpu.memory_space<vmem>>, vector<1x8x512xf32>
    %176 = vector.shape_cast %175 : vector<1x8x512xf32> to vector<8x512xf32>
    %cst_64 = arith.constant dense<0.000000e+00> : vector<8x512xf32>
    %177 = tpu.matmul %171, %3, %cst_64 {dimension_numbers = #tpu.dot_dimension_numbers<[1], [0], [0], [1], [0, 0, 1, 1], [], []>} : vector<8x128xf32>, vector<128x512xf32>, vector<8x512xf32> -> vector<8x512xf32>
    %178 = arith.addf %176, %177 : vector<8x512xf32>
    %179 = vector.extract_strided_slice %178 {offsets = [0, 0], sizes = [8, 128], strides = [1, 1]} : vector<8x512xf32> to vector<8x128xf32>
    %180 = arith.negf %179 : vector<8x128xf32>
    %181 = math.exp %180 : vector<8x128xf32>
    %cst_65 = arith.constant 1.000000e+00 : f32
    %182 = vector.broadcast %cst_65 : f32 to vector<8x128xf32>
    %183 = arith.addf %182, %181 : vector<8x128xf32>
    %184 = arith.divf %182, %183 : vector<8x128xf32>
    %185 = vector.extract_strided_slice %178 {offsets = [0, 128], sizes = [8, 128], strides = [1, 1]} : vector<8x512xf32> to vector<8x128xf32>
    %186 = arith.negf %185 : vector<8x128xf32>
    %187 = math.exp %186 : vector<8x128xf32>
    %cst_66 = arith.constant 1.000000e+00 : f32
    %188 = vector.broadcast %cst_66 : f32 to vector<8x128xf32>
    %189 = arith.addf %188, %187 : vector<8x128xf32>
    %190 = arith.divf %188, %189 : vector<8x128xf32>
    %191 = vector.extract_strided_slice %178 {offsets = [0, 256], sizes = [8, 128], strides = [1, 1]} : vector<8x512xf32> to vector<8x128xf32>
    %192 = math.tanh %191 : vector<8x128xf32>
    %193 = vector.extract_strided_slice %178 {offsets = [0, 384], sizes = [8, 128], strides = [1, 1]} : vector<8x512xf32> to vector<8x128xf32>
    %194 = arith.negf %193 : vector<8x128xf32>
    %195 = math.exp %194 : vector<8x128xf32>
    %cst_67 = arith.constant 1.000000e+00 : f32
    %196 = vector.broadcast %cst_67 : f32 to vector<8x128xf32>
    %197 = arith.addf %196, %195 : vector<8x128xf32>
    %198 = arith.divf %196, %197 : vector<8x128xf32>
    %199 = arith.mulf %190, %169 : vector<8x128xf32>
    %200 = arith.mulf %184, %192 : vector<8x128xf32>
    %201 = arith.addf %199, %200 : vector<8x128xf32>
    %202 = math.tanh %201 : vector<8x128xf32>
    %203 = arith.mulf %198, %202 : vector<8x128xf32>
    %c5_68 = arith.constant 5 : index
    %c0_69 = arith.constant 0 : index
    %c0_70 = arith.constant 0 : index
    %204 = vector.load %arg7[%c5_68, %c0_69, %c0_70] : memref<16x8x128xf32, #tpu.memory_space<vmem>>, vector<1x8x128xf32>
    %205 = vector.shape_cast %204 : vector<1x8x128xf32> to vector<8x128xf32>
    %206 = vector.shape_cast %203 : vector<8x128xf32> to vector<1x8x128xf32>
    tpu.vector_store %arg7[%c5_68, %c0_69, %c0_70], %206 {strides = array<i32>} : memref<16x8x128xf32, #tpu.memory_space<vmem>>, vector<1x8x128xf32>,
    %c6 = arith.constant 6 : index
    %c0_71 = arith.constant 0 : index
    %c0_72 = arith.constant 0 : index
    %207 = vector.load %arg6[%c6, %c0_71, %c0_72] : memref<16x8x512xf32, #tpu.memory_space<vmem>>, vector<1x8x512xf32>
    %208 = vector.shape_cast %207 : vector<1x8x512xf32> to vector<8x512xf32>
    %cst_73 = arith.constant dense<0.000000e+00> : vector<8x512xf32>
    %209 = tpu.matmul %203, %3, %cst_73 {dimension_numbers = #tpu.dot_dimension_numbers<[1], [0], [0], [1], [0, 0, 1, 1], [], []>} : vector<8x128xf32>, vector<128x512xf32>, vector<8x512xf32> -> vector<8x512xf32>
    %210 = arith.addf %208, %209 : vector<8x512xf32>
    %211 = vector.extract_strided_slice %210 {offsets = [0, 0], sizes = [8, 128], strides = [1, 1]} : vector<8x512xf32> to vector<8x128xf32>
    %212 = arith.negf %211 : vector<8x128xf32>
    %213 = math.exp %212 : vector<8x128xf32>
    %cst_74 = arith.constant 1.000000e+00 : f32
    %214 = vector.broadcast %cst_74 : f32 to vector<8x128xf32>
    %215 = arith.addf %214, %213 : vector<8x128xf32>
    %216 = arith.divf %214, %215 : vector<8x128xf32>
    %217 = vector.extract_strided_slice %210 {offsets = [0, 128], sizes = [8, 128], strides = [1, 1]} : vector<8x512xf32> to vector<8x128xf32>
    %218 = arith.negf %217 : vector<8x128xf32>
    %219 = math.exp %218 : vector<8x128xf32>
    %cst_75 = arith.constant 1.000000e+00 : f32
    %220 = vector.broadcast %cst_75 : f32 to vector<8x128xf32>
    %221 = arith.addf %220, %219 : vector<8x128xf32>
    %222 = arith.divf %220, %221 : vector<8x128xf32>
    %223 = vector.extract_strided_slice %210 {offsets = [0, 256], sizes = [8, 128], strides = [1, 1]} : vector<8x512xf32> to vector<8x128xf32>
    %224 = math.tanh %223 : vector<8x128xf32>
    %225 = vector.extract_strided_slice %210 {offsets = [0, 384], sizes = [8, 128], strides = [1, 1]} : vector<8x512xf32> to vector<8x128xf32>
    %226 = arith.negf %225 : vector<8x128xf32>
    %227 = math.exp %226 : vector<8x128xf32>
    %cst_76 = arith.constant 1.000000e+00 : f32
    %228 = vector.broadcast %cst_76 : f32 to vector<8x128xf32>
    %229 = arith.addf %228, %227 : vector<8x128xf32>
    %230 = arith.divf %228, %229 : vector<8x128xf32>
    %231 = arith.mulf %222, %201 : vector<8x128xf32>
    %232 = arith.mulf %216, %224 : vector<8x128xf32>
    %233 = arith.addf %231, %232 : vector<8x128xf32>
    %234 = math.tanh %233 : vector<8x128xf32>
    %235 = arith.mulf %230, %234 : vector<8x128xf32>
    %c6_77 = arith.constant 6 : index
    %c0_78 = arith.constant 0 : index
    %c0_79 = arith.constant 0 : index
    %236 = vector.load %arg7[%c6_77, %c0_78, %c0_79] : memref<16x8x128xf32, #tpu.memory_space<vmem>>, vector<1x8x128xf32>
    %237 = vector.shape_cast %236 : vector<1x8x128xf32> to vector<8x128xf32>
    %238 = vector.shape_cast %235 : vector<8x128xf32> to vector<1x8x128xf32>
    tpu.vector_store %arg7[%c6_77, %c0_78, %c0_79], %238 {strides = array<i32>} : memref<16x8x128xf32, #tpu.memory_space<vmem>>, vector<1x8x128xf32>,
    %c7 = arith.constant 7 : index
    %c0_80 = arith.constant 0 : index
    %c0_81 = arith.constant 0 : index
    %239 = vector.load %arg6[%c7, %c0_80, %c0_81] : memref<16x8x512xf32, #tpu.memory_space<vmem>>, vector<1x8x512xf32>
    %240 = vector.shape_cast %239 : vector<1x8x512xf32> to vector<8x512xf32>
    %cst_82 = arith.constant dense<0.000000e+00> : vector<8x512xf32>
    %241 = tpu.matmul %235, %3, %cst_82 {dimension_numbers = #tpu.dot_dimension_numbers<[1], [0], [0], [1], [0, 0, 1, 1], [], []>} : vector<8x128xf32>, vector<128x512xf32>, vector<8x512xf32> -> vector<8x512xf32>
    %242 = arith.addf %240, %241 : vector<8x512xf32>
    %243 = vector.extract_strided_slice %242 {offsets = [0, 0], sizes = [8, 128], strides = [1, 1]} : vector<8x512xf32> to vector<8x128xf32>
    %244 = arith.negf %243 : vector<8x128xf32>
    %245 = math.exp %244 : vector<8x128xf32>
    %cst_83 = arith.constant 1.000000e+00 : f32
    %246 = vector.broadcast %cst_83 : f32 to vector<8x128xf32>
    %247 = arith.addf %246, %245 : vector<8x128xf32>
    %248 = arith.divf %246, %247 : vector<8x128xf32>
    %249 = vector.extract_strided_slice %242 {offsets = [0, 128], sizes = [8, 128], strides = [1, 1]} : vector<8x512xf32> to vector<8x128xf32>
    %250 = arith.negf %249 : vector<8x128xf32>
    %251 = math.exp %250 : vector<8x128xf32>
    %cst_84 = arith.constant 1.000000e+00 : f32
    %252 = vector.broadcast %cst_84 : f32 to vector<8x128xf32>
    %253 = arith.addf %252, %251 : vector<8x128xf32>
    %254 = arith.divf %252, %253 : vector<8x128xf32>
    %255 = vector.extract_strided_slice %242 {offsets = [0, 256], sizes = [8, 128], strides = [1, 1]} : vector<8x512xf32> to vector<8x128xf32>
    %256 = math.tanh %255 : vector<8x128xf32>
    %257 = vector.extract_strided_slice %242 {offsets = [0, 384], sizes = [8, 128], strides = [1, 1]} : vector<8x512xf32> to vector<8x128xf32>
    %258 = arith.negf %257 : vector<8x128xf32>
    %259 = math.exp %258 : vector<8x128xf32>
    %cst_85 = arith.constant 1.000000e+00 : f32
    %260 = vector.broadcast %cst_85 : f32 to vector<8x128xf32>
    %261 = arith.addf %260, %259 : vector<8x128xf32>
    %262 = arith.divf %260, %261 : vector<8x128xf32>
    %263 = arith.mulf %254, %233 : vector<8x128xf32>
    %264 = arith.mulf %248, %256 : vector<8x128xf32>
    %265 = arith.addf %263, %264 : vector<8x128xf32>
    %266 = math.tanh %265 : vector<8x128xf32>
    %267 = arith.mulf %262, %266 : vector<8x128xf32>
    %c7_86 = arith.constant 7 : index
    %c0_87 = arith.constant 0 : index
    %c0_88 = arith.constant 0 : index
    %268 = vector.load %arg7[%c7_86, %c0_87, %c0_88] : memref<16x8x128xf32, #tpu.memory_space<vmem>>, vector<1x8x128xf32>
    %269 = vector.shape_cast %268 : vector<1x8x128xf32> to vector<8x128xf32>
    %270 = vector.shape_cast %267 : vector<8x128xf32> to vector<1x8x128xf32>
    tpu.vector_store %arg7[%c7_86, %c0_87, %c0_88], %270 {strides = array<i32>} : memref<16x8x128xf32, #tpu.memory_space<vmem>>, vector<1x8x128xf32>,
    %c8 = arith.constant 8 : index
    %c0_89 = arith.constant 0 : index
    %c0_90 = arith.constant 0 : index
    %271 = vector.load %arg6[%c8, %c0_89, %c0_90] : memref<16x8x512xf32, #tpu.memory_space<vmem>>, vector<1x8x512xf32>
    %272 = vector.shape_cast %271 : vector<1x8x512xf32> to vector<8x512xf32>
    %cst_91 = arith.constant dense<0.000000e+00> : vector<8x512xf32>
    %273 = tpu.matmul %267, %3, %cst_91 {dimension_numbers = #tpu.dot_dimension_numbers<[1], [0], [0], [1], [0, 0, 1, 1], [], []>} : vector<8x128xf32>, vector<128x512xf32>, vector<8x512xf32> -> vector<8x512xf32>
    %274 = arith.addf %272, %273 : vector<8x512xf32>
    %275 = vector.extract_strided_slice %274 {offsets = [0, 0], sizes = [8, 128], strides = [1, 1]} : vector<8x512xf32> to vector<8x128xf32>
    %276 = arith.negf %275 : vector<8x128xf32>
    %277 = math.exp %276 : vector<8x128xf32>
    %cst_92 = arith.constant 1.000000e+00 : f32
    %278 = vector.broadcast %cst_92 : f32 to vector<8x128xf32>
    %279 = arith.addf %278, %277 : vector<8x128xf32>
    %280 = arith.divf %278, %279 : vector<8x128xf32>
    %281 = vector.extract_strided_slice %274 {offsets = [0, 128], sizes = [8, 128], strides = [1, 1]} : vector<8x512xf32> to vector<8x128xf32>
    %282 = arith.negf %281 : vector<8x128xf32>
    %283 = math.exp %282 : vector<8x128xf32>
    %cst_93 = arith.constant 1.000000e+00 : f32
    %284 = vector.broadcast %cst_93 : f32 to vector<8x128xf32>
    %285 = arith.addf %284, %283 : vector<8x128xf32>
    %286 = arith.divf %284, %285 : vector<8x128xf32>
    %287 = vector.extract_strided_slice %274 {offsets = [0, 256], sizes = [8, 128], strides = [1, 1]} : vector<8x512xf32> to vector<8x128xf32>
    %288 = math.tanh %287 : vector<8x128xf32>
    %289 = vector.extract_strided_slice %274 {offsets = [0, 384], sizes = [8, 128], strides = [1, 1]} : vector<8x512xf32> to vector<8x128xf32>
    %290 = arith.negf %289 : vector<8x128xf32>
    %291 = math.exp %290 : vector<8x128xf32>
    %cst_94 = arith.constant 1.000000e+00 : f32
    %292 = vector.broadcast %cst_94 : f32 to vector<8x128xf32>
    %293 = arith.addf %292, %291 : vector<8x128xf32>
    %294 = arith.divf %292, %293 : vector<8x128xf32>
    %295 = arith.mulf %286, %265 : vector<8x128xf32>
    %296 = arith.mulf %280, %288 : vector<8x128xf32>
    %297 = arith.addf %295, %296 : vector<8x128xf32>
    %298 = math.tanh %297 : vector<8x128xf32>
    %299 = arith.mulf %294, %298 : vector<8x128xf32>
    %c8_95 = arith.constant 8 : index
    %c0_96 = arith.constant 0 : index
    %c0_97 = arith.constant 0 : index
    %300 = vector.load %arg7[%c8_95, %c0_96, %c0_97] : memref<16x8x128xf32, #tpu.memory_space<vmem>>, vector<1x8x128xf32>
    %301 = vector.shape_cast %300 : vector<1x8x128xf32> to vector<8x128xf32>
    %302 = vector.shape_cast %299 : vector<8x128xf32> to vector<1x8x128xf32>
    tpu.vector_store %arg7[%c8_95, %c0_96, %c0_97], %302 {strides = array<i32>} : memref<16x8x128xf32, #tpu.memory_space<vmem>>, vector<1x8x128xf32>,
    %c9 = arith.constant 9 : index
    %c0_98 = arith.constant 0 : index
    %c0_99 = arith.constant 0 : index
    %303 = vector.load %arg6[%c9, %c0_98, %c0_99] : memref<16x8x512xf32, #tpu.memory_space<vmem>>, vector<1x8x512xf32>
    %304 = vector.shape_cast %303 : vector<1x8x512xf32> to vector<8x512xf32>
    %cst_100 = arith.constant dense<0.000000e+00> : vector<8x512xf32>
    %305 = tpu.matmul %299, %3, %cst_100 {dimension_numbers = #tpu.dot_dimension_numbers<[1], [0], [0], [1], [0, 0, 1, 1], [], []>} : vector<8x128xf32>, vector<128x512xf32>, vector<8x512xf32> -> vector<8x512xf32>
    %306 = arith.addf %304, %305 : vector<8x512xf32>
    %307 = vector.extract_strided_slice %306 {offsets = [0, 0], sizes = [8, 128], strides = [1, 1]} : vector<8x512xf32> to vector<8x128xf32>
    %308 = arith.negf %307 : vector<8x128xf32>
    %309 = math.exp %308 : vector<8x128xf32>
    %cst_101 = arith.constant 1.000000e+00 : f32
    %310 = vector.broadcast %cst_101 : f32 to vector<8x128xf32>
    %311 = arith.addf %310, %309 : vector<8x128xf32>
    %312 = arith.divf %310, %311 : vector<8x128xf32>
    %313 = vector.extract_strided_slice %306 {offsets = [0, 128], sizes = [8, 128], strides = [1, 1]} : vector<8x512xf32> to vector<8x128xf32>
    %314 = arith.negf %313 : vector<8x128xf32>
    %315 = math.exp %314 : vector<8x128xf32>
    %cst_102 = arith.constant 1.000000e+00 : f32
    %316 = vector.broadcast %cst_102 : f32 to vector<8x128xf32>
    %317 = arith.addf %316, %315 : vector<8x128xf32>
    %318 = arith.divf %316, %317 : vector<8x128xf32>
    %319 = vector.extract_strided_slice %306 {offsets = [0, 256], sizes = [8, 128], strides = [1, 1]} : vector<8x512xf32> to vector<8x128xf32>
    %320 = math.tanh %319 : vector<8x128xf32>
    %321 = vector.extract_strided_slice %306 {offsets = [0, 384], sizes = [8, 128], strides = [1, 1]} : vector<8x512xf32> to vector<8x128xf32>
    %322 = arith.negf %321 : vector<8x128xf32>
    %323 = math.exp %322 : vector<8x128xf32>
    %cst_103 = arith.constant 1.000000e+00 : f32
    %324 = vector.broadcast %cst_103 : f32 to vector<8x128xf32>
    %325 = arith.addf %324, %323 : vector<8x128xf32>
    %326 = arith.divf %324, %325 : vector<8x128xf32>
    %327 = arith.mulf %318, %297 : vector<8x128xf32>
    %328 = arith.mulf %312, %320 : vector<8x128xf32>
    %329 = arith.addf %327, %328 : vector<8x128xf32>
    %330 = math.tanh %329 : vector<8x128xf32>
    %331 = arith.mulf %326, %330 : vector<8x128xf32>
    %c9_104 = arith.constant 9 : index
    %c0_105 = arith.constant 0 : index
    %c0_106 = arith.constant 0 : index
    %332 = vector.load %arg7[%c9_104, %c0_105, %c0_106] : memref<16x8x128xf32, #tpu.memory_space<vmem>>, vector<1x8x128xf32>
    %333 = vector.shape_cast %332 : vector<1x8x128xf32> to vector<8x128xf32>
    %334 = vector.shape_cast %331 : vector<8x128xf32> to vector<1x8x128xf32>
    tpu.vector_store %arg7[%c9_104, %c0_105, %c0_106], %334 {strides = array<i32>} : memref<16x8x128xf32, #tpu.memory_space<vmem>>, vector<1x8x128xf32>,
    %c10 = arith.constant 10 : index
    %c0_107 = arith.constant 0 : index
    %c0_108 = arith.constant 0 : index
    %335 = vector.load %arg6[%c10, %c0_107, %c0_108] : memref<16x8x512xf32, #tpu.memory_space<vmem>>, vector<1x8x512xf32>
    %336 = vector.shape_cast %335 : vector<1x8x512xf32> to vector<8x512xf32>
    %cst_109 = arith.constant dense<0.000000e+00> : vector<8x512xf32>
    %337 = tpu.matmul %331, %3, %cst_109 {dimension_numbers = #tpu.dot_dimension_numbers<[1], [0], [0], [1], [0, 0, 1, 1], [], []>} : vector<8x128xf32>, vector<128x512xf32>, vector<8x512xf32> -> vector<8x512xf32>
    %338 = arith.addf %336, %337 : vector<8x512xf32>
    %339 = vector.extract_strided_slice %338 {offsets = [0, 0], sizes = [8, 128], strides = [1, 1]} : vector<8x512xf32> to vector<8x128xf32>
    %340 = arith.negf %339 : vector<8x128xf32>
    %341 = math.exp %340 : vector<8x128xf32>
    %cst_110 = arith.constant 1.000000e+00 : f32
    %342 = vector.broadcast %cst_110 : f32 to vector<8x128xf32>
    %343 = arith.addf %342, %341 : vector<8x128xf32>
    %344 = arith.divf %342, %343 : vector<8x128xf32>
    %345 = vector.extract_strided_slice %338 {offsets = [0, 128], sizes = [8, 128], strides = [1, 1]} : vector<8x512xf32> to vector<8x128xf32>
    %346 = arith.negf %345 : vector<8x128xf32>
    %347 = math.exp %346 : vector<8x128xf32>
    %cst_111 = arith.constant 1.000000e+00 : f32
    %348 = vector.broadcast %cst_111 : f32 to vector<8x128xf32>
    %349 = arith.addf %348, %347 : vector<8x128xf32>
    %350 = arith.divf %348, %349 : vector<8x128xf32>
    %351 = vector.extract_strided_slice %338 {offsets = [0, 256], sizes = [8, 128], strides = [1, 1]} : vector<8x512xf32> to vector<8x128xf32>
    %352 = math.tanh %351 : vector<8x128xf32>
    %353 = vector.extract_strided_slice %338 {offsets = [0, 384], sizes = [8, 128], strides = [1, 1]} : vector<8x512xf32> to vector<8x128xf32>
    %354 = arith.negf %353 : vector<8x128xf32>
    %355 = math.exp %354 : vector<8x128xf32>
    %cst_112 = arith.constant 1.000000e+00 : f32
    %356 = vector.broadcast %cst_112 : f32 to vector<8x128xf32>
    %357 = arith.addf %356, %355 : vector<8x128xf32>
    %358 = arith.divf %356, %357 : vector<8x128xf32>
    %359 = arith.mulf %350, %329 : vector<8x128xf32>
    %360 = arith.mulf %344, %352 : vector<8x128xf32>
    %361 = arith.addf %359, %360 : vector<8x128xf32>
    %362 = math.tanh %361 : vector<8x128xf32>
    %363 = arith.mulf %358, %362 : vector<8x128xf32>
    %c10_113 = arith.constant 10 : index
    %c0_114 = arith.constant 0 : index
    %c0_115 = arith.constant 0 : index
    %364 = vector.load %arg7[%c10_113, %c0_114, %c0_115] : memref<16x8x128xf32, #tpu.memory_space<vmem>>, vector<1x8x128xf32>
    %365 = vector.shape_cast %364 : vector<1x8x128xf32> to vector<8x128xf32>
    %366 = vector.shape_cast %363 : vector<8x128xf32> to vector<1x8x128xf32>
    tpu.vector_store %arg7[%c10_113, %c0_114, %c0_115], %366 {strides = array<i32>} : memref<16x8x128xf32, #tpu.memory_space<vmem>>, vector<1x8x128xf32>,
    %c11 = arith.constant 11 : index
    %c0_116 = arith.constant 0 : index
    %c0_117 = arith.constant 0 : index
    %367 = vector.load %arg6[%c11, %c0_116, %c0_117] : memref<16x8x512xf32, #tpu.memory_space<vmem>>, vector<1x8x512xf32>
    %368 = vector.shape_cast %367 : vector<1x8x512xf32> to vector<8x512xf32>
    %cst_118 = arith.constant dense<0.000000e+00> : vector<8x512xf32>
    %369 = tpu.matmul %363, %3, %cst_118 {dimension_numbers = #tpu.dot_dimension_numbers<[1], [0], [0], [1], [0, 0, 1, 1], [], []>} : vector<8x128xf32>, vector<128x512xf32>, vector<8x512xf32> -> vector<8x512xf32>
    %370 = arith.addf %368, %369 : vector<8x512xf32>
    %371 = vector.extract_strided_slice %370 {offsets = [0, 0], sizes = [8, 128], strides = [1, 1]} : vector<8x512xf32> to vector<8x128xf32>
    %372 = arith.negf %371 : vector<8x128xf32>
    %373 = math.exp %372 : vector<8x128xf32>
    %cst_119 = arith.constant 1.000000e+00 : f32
    %374 = vector.broadcast %cst_119 : f32 to vector<8x128xf32>
    %375 = arith.addf %374, %373 : vector<8x128xf32>
    %376 = arith.divf %374, %375 : vector<8x128xf32>
    %377 = vector.extract_strided_slice %370 {offsets = [0, 128], sizes = [8, 128], strides = [1, 1]} : vector<8x512xf32> to vector<8x128xf32>
    %378 = arith.negf %377 : vector<8x128xf32>
    %379 = math.exp %378 : vector<8x128xf32>
    %cst_120 = arith.constant 1.000000e+00 : f32
    %380 = vector.broadcast %cst_120 : f32 to vector<8x128xf32>
    %381 = arith.addf %380, %379 : vector<8x128xf32>
    %382 = arith.divf %380, %381 : vector<8x128xf32>
    %383 = vector.extract_strided_slice %370 {offsets = [0, 256], sizes = [8, 128], strides = [1, 1]} : vector<8x512xf32> to vector<8x128xf32>
    %384 = math.tanh %383 : vector<8x128xf32>
    %385 = vector.extract_strided_slice %370 {offsets = [0, 384], sizes = [8, 128], strides = [1, 1]} : vector<8x512xf32> to vector<8x128xf32>
    %386 = arith.negf %385 : vector<8x128xf32>
    %387 = math.exp %386 : vector<8x128xf32>
    %cst_121 = arith.constant 1.000000e+00 : f32
    %388 = vector.broadcast %cst_121 : f32 to vector<8x128xf32>
    %389 = arith.addf %388, %387 : vector<8x128xf32>
    %390 = arith.divf %388, %389 : vector<8x128xf32>
    %391 = arith.mulf %382, %361 : vector<8x128xf32>
    %392 = arith.mulf %376, %384 : vector<8x128xf32>
    %393 = arith.addf %391, %392 : vector<8x128xf32>
    %394 = math.tanh %393 : vector<8x128xf32>
    %395 = arith.mulf %390, %394 : vector<8x128xf32>
    %c11_122 = arith.constant 11 : index
    %c0_123 = arith.constant 0 : index
    %c0_124 = arith.constant 0 : index
    %396 = vector.load %arg7[%c11_122, %c0_123, %c0_124] : memref<16x8x128xf32, #tpu.memory_space<vmem>>, vector<1x8x128xf32>
    %397 = vector.shape_cast %396 : vector<1x8x128xf32> to vector<8x128xf32>
    %398 = vector.shape_cast %395 : vector<8x128xf32> to vector<1x8x128xf32>
    tpu.vector_store %arg7[%c11_122, %c0_123, %c0_124], %398 {strides = array<i32>} : memref<16x8x128xf32, #tpu.memory_space<vmem>>, vector<1x8x128xf32>,
    %c12 = arith.constant 12 : index
    %c0_125 = arith.constant 0 : index
    %c0_126 = arith.constant 0 : index
    %399 = vector.load %arg6[%c12, %c0_125, %c0_126] : memref<16x8x512xf32, #tpu.memory_space<vmem>>, vector<1x8x512xf32>
    %400 = vector.shape_cast %399 : vector<1x8x512xf32> to vector<8x512xf32>
    %cst_127 = arith.constant dense<0.000000e+00> : vector<8x512xf32>
    %401 = tpu.matmul %395, %3, %cst_127 {dimension_numbers = #tpu.dot_dimension_numbers<[1], [0], [0], [1], [0, 0, 1, 1], [], []>} : vector<8x128xf32>, vector<128x512xf32>, vector<8x512xf32> -> vector<8x512xf32>
    %402 = arith.addf %400, %401 : vector<8x512xf32>
    %403 = vector.extract_strided_slice %402 {offsets = [0, 0], sizes = [8, 128], strides = [1, 1]} : vector<8x512xf32> to vector<8x128xf32>
    %404 = arith.negf %403 : vector<8x128xf32>
    %405 = math.exp %404 : vector<8x128xf32>
    %cst_128 = arith.constant 1.000000e+00 : f32
    %406 = vector.broadcast %cst_128 : f32 to vector<8x128xf32>
    %407 = arith.addf %406, %405 : vector<8x128xf32>
    %408 = arith.divf %406, %407 : vector<8x128xf32>
    %409 = vector.extract_strided_slice %402 {offsets = [0, 128], sizes = [8, 128], strides = [1, 1]} : vector<8x512xf32> to vector<8x128xf32>
    %410 = arith.negf %409 : vector<8x128xf32>
    %411 = math.exp %410 : vector<8x128xf32>
    %cst_129 = arith.constant 1.000000e+00 : f32
    %412 = vector.broadcast %cst_129 : f32 to vector<8x128xf32>
    %413 = arith.addf %412, %411 : vector<8x128xf32>
    %414 = arith.divf %412, %413 : vector<8x128xf32>
    %415 = vector.extract_strided_slice %402 {offsets = [0, 256], sizes = [8, 128], strides = [1, 1]} : vector<8x512xf32> to vector<8x128xf32>
    %416 = math.tanh %415 : vector<8x128xf32>
    %417 = vector.extract_strided_slice %402 {offsets = [0, 384], sizes = [8, 128], strides = [1, 1]} : vector<8x512xf32> to vector<8x128xf32>
    %418 = arith.negf %417 : vector<8x128xf32>
    %419 = math.exp %418 : vector<8x128xf32>
    %cst_130 = arith.constant 1.000000e+00 : f32
    %420 = vector.broadcast %cst_130 : f32 to vector<8x128xf32>
    %421 = arith.addf %420, %419 : vector<8x128xf32>
    %422 = arith.divf %420, %421 : vector<8x128xf32>
    %423 = arith.mulf %414, %393 : vector<8x128xf32>
    %424 = arith.mulf %408, %416 : vector<8x128xf32>
    %425 = arith.addf %423, %424 : vector<8x128xf32>
    %426 = math.tanh %425 : vector<8x128xf32>
    %427 = arith.mulf %422, %426 : vector<8x128xf32>
    %c12_131 = arith.constant 12 : index
    %c0_132 = arith.constant 0 : index
    %c0_133 = arith.constant 0 : index
    %428 = vector.load %arg7[%c12_131, %c0_132, %c0_133] : memref<16x8x128xf32, #tpu.memory_space<vmem>>, vector<1x8x128xf32>
    %429 = vector.shape_cast %428 : vector<1x8x128xf32> to vector<8x128xf32>
    %430 = vector.shape_cast %427 : vector<8x128xf32> to vector<1x8x128xf32>
    tpu.vector_store %arg7[%c12_131, %c0_132, %c0_133], %430 {strides = array<i32>} : memref<16x8x128xf32, #tpu.memory_space<vmem>>, vector<1x8x128xf32>,
    %c13 = arith.constant 13 : index
    %c0_134 = arith.constant 0 : index
    %c0_135 = arith.constant 0 : index
    %431 = vector.load %arg6[%c13, %c0_134, %c0_135] : memref<16x8x512xf32, #tpu.memory_space<vmem>>, vector<1x8x512xf32>
    %432 = vector.shape_cast %431 : vector<1x8x512xf32> to vector<8x512xf32>
    %cst_136 = arith.constant dense<0.000000e+00> : vector<8x512xf32>
    %433 = tpu.matmul %427, %3, %cst_136 {dimension_numbers = #tpu.dot_dimension_numbers<[1], [0], [0], [1], [0, 0, 1, 1], [], []>} : vector<8x128xf32>, vector<128x512xf32>, vector<8x512xf32> -> vector<8x512xf32>
    %434 = arith.addf %432, %433 : vector<8x512xf32>
    %435 = vector.extract_strided_slice %434 {offsets = [0, 0], sizes = [8, 128], strides = [1, 1]} : vector<8x512xf32> to vector<8x128xf32>
    %436 = arith.negf %435 : vector<8x128xf32>
    %437 = math.exp %436 : vector<8x128xf32>
    %cst_137 = arith.constant 1.000000e+00 : f32
    %438 = vector.broadcast %cst_137 : f32 to vector<8x128xf32>
    %439 = arith.addf %438, %437 : vector<8x128xf32>
    %440 = arith.divf %438, %439 : vector<8x128xf32>
    %441 = vector.extract_strided_slice %434 {offsets = [0, 128], sizes = [8, 128], strides = [1, 1]} : vector<8x512xf32> to vector<8x128xf32>
    %442 = arith.negf %441 : vector<8x128xf32>
    %443 = math.exp %442 : vector<8x128xf32>
    %cst_138 = arith.constant 1.000000e+00 : f32
    %444 = vector.broadcast %cst_138 : f32 to vector<8x128xf32>
    %445 = arith.addf %444, %443 : vector<8x128xf32>
    %446 = arith.divf %444, %445 : vector<8x128xf32>
    %447 = vector.extract_strided_slice %434 {offsets = [0, 256], sizes = [8, 128], strides = [1, 1]} : vector<8x512xf32> to vector<8x128xf32>
    %448 = math.tanh %447 : vector<8x128xf32>
    %449 = vector.extract_strided_slice %434 {offsets = [0, 384], sizes = [8, 128], strides = [1, 1]} : vector<8x512xf32> to vector<8x128xf32>
    %450 = arith.negf %449 : vector<8x128xf32>
    %451 = math.exp %450 : vector<8x128xf32>
    %cst_139 = arith.constant 1.000000e+00 : f32
    %452 = vector.broadcast %cst_139 : f32 to vector<8x128xf32>
    %453 = arith.addf %452, %451 : vector<8x128xf32>
    %454 = arith.divf %452, %453 : vector<8x128xf32>
    %455 = arith.mulf %446, %425 : vector<8x128xf32>
    %456 = arith.mulf %440, %448 : vector<8x128xf32>
    %457 = arith.addf %455, %456 : vector<8x128xf32>
    %458 = math.tanh %457 : vector<8x128xf32>
    %459 = arith.mulf %454, %458 : vector<8x128xf32>
    %c13_140 = arith.constant 13 : index
    %c0_141 = arith.constant 0 : index
    %c0_142 = arith.constant 0 : index
    %460 = vector.load %arg7[%c13_140, %c0_141, %c0_142] : memref<16x8x128xf32, #tpu.memory_space<vmem>>, vector<1x8x128xf32>
    %461 = vector.shape_cast %460 : vector<1x8x128xf32> to vector<8x128xf32>
    %462 = vector.shape_cast %459 : vector<8x128xf32> to vector<1x8x128xf32>
    tpu.vector_store %arg7[%c13_140, %c0_141, %c0_142], %462 {strides = array<i32>} : memref<16x8x128xf32, #tpu.memory_space<vmem>>, vector<1x8x128xf32>,
    %c14 = arith.constant 14 : index
    %c0_143 = arith.constant 0 : index
    %c0_144 = arith.constant 0 : index
    %463 = vector.load %arg6[%c14, %c0_143, %c0_144] : memref<16x8x512xf32, #tpu.memory_space<vmem>>, vector<1x8x512xf32>
    %464 = vector.shape_cast %463 : vector<1x8x512xf32> to vector<8x512xf32>
    %cst_145 = arith.constant dense<0.000000e+00> : vector<8x512xf32>
    %465 = tpu.matmul %459, %3, %cst_145 {dimension_numbers = #tpu.dot_dimension_numbers<[1], [0], [0], [1], [0, 0, 1, 1], [], []>} : vector<8x128xf32>, vector<128x512xf32>, vector<8x512xf32> -> vector<8x512xf32>
    %466 = arith.addf %464, %465 : vector<8x512xf32>
    %467 = vector.extract_strided_slice %466 {offsets = [0, 0], sizes = [8, 128], strides = [1, 1]} : vector<8x512xf32> to vector<8x128xf32>
    %468 = arith.negf %467 : vector<8x128xf32>
    %469 = math.exp %468 : vector<8x128xf32>
    %cst_146 = arith.constant 1.000000e+00 : f32
    %470 = vector.broadcast %cst_146 : f32 to vector<8x128xf32>
    %471 = arith.addf %470, %469 : vector<8x128xf32>
    %472 = arith.divf %470, %471 : vector<8x128xf32>
    %473 = vector.extract_strided_slice %466 {offsets = [0, 128], sizes = [8, 128], strides = [1, 1]} : vector<8x512xf32> to vector<8x128xf32>
    %474 = arith.negf %473 : vector<8x128xf32>
    %475 = math.exp %474 : vector<8x128xf32>
    %cst_147 = arith.constant 1.000000e+00 : f32
    %476 = vector.broadcast %cst_147 : f32 to vector<8x128xf32>
    %477 = arith.addf %476, %475 : vector<8x128xf32>
    %478 = arith.divf %476, %477 : vector<8x128xf32>
    %479 = vector.extract_strided_slice %466 {offsets = [0, 256], sizes = [8, 128], strides = [1, 1]} : vector<8x512xf32> to vector<8x128xf32>
    %480 = math.tanh %479 : vector<8x128xf32>
    %481 = vector.extract_strided_slice %466 {offsets = [0, 384], sizes = [8, 128], strides = [1, 1]} : vector<8x512xf32> to vector<8x128xf32>
    %482 = arith.negf %481 : vector<8x128xf32>
    %483 = math.exp %482 : vector<8x128xf32>
    %cst_148 = arith.constant 1.000000e+00 : f32
    %484 = vector.broadcast %cst_148 : f32 to vector<8x128xf32>
    %485 = arith.addf %484, %483 : vector<8x128xf32>
    %486 = arith.divf %484, %485 : vector<8x128xf32>
    %487 = arith.mulf %478, %457 : vector<8x128xf32>
    %488 = arith.mulf %472, %480 : vector<8x128xf32>
    %489 = arith.addf %487, %488 : vector<8x128xf32>
    %490 = math.tanh %489 : vector<8x128xf32>
    %491 = arith.mulf %486, %490 : vector<8x128xf32>
    %c14_149 = arith.constant 14 : index
    %c0_150 = arith.constant 0 : index
    %c0_151 = arith.constant 0 : index
    %492 = vector.load %arg7[%c14_149, %c0_150, %c0_151] : memref<16x8x128xf32, #tpu.memory_space<vmem>>, vector<1x8x128xf32>
    %493 = vector.shape_cast %492 : vector<1x8x128xf32> to vector<8x128xf32>
    %494 = vector.shape_cast %491 : vector<8x128xf32> to vector<1x8x128xf32>
    tpu.vector_store %arg7[%c14_149, %c0_150, %c0_151], %494 {strides = array<i32>} : memref<16x8x128xf32, #tpu.memory_space<vmem>>, vector<1x8x128xf32>,
    %c15 = arith.constant 15 : index
    %c0_152 = arith.constant 0 : index
    %c0_153 = arith.constant 0 : index
    %495 = vector.load %arg6[%c15, %c0_152, %c0_153] : memref<16x8x512xf32, #tpu.memory_space<vmem>>, vector<1x8x512xf32>
    %496 = vector.shape_cast %495 : vector<1x8x512xf32> to vector<8x512xf32>
    %cst_154 = arith.constant dense<0.000000e+00> : vector<8x512xf32>
    %497 = tpu.matmul %491, %3, %cst_154 {dimension_numbers = #tpu.dot_dimension_numbers<[1], [0], [0], [1], [0, 0, 1, 1], [], []>} : vector<8x128xf32>, vector<128x512xf32>, vector<8x512xf32> -> vector<8x512xf32>
    %498 = arith.addf %496, %497 : vector<8x512xf32>
    %499 = vector.extract_strided_slice %498 {offsets = [0, 0], sizes = [8, 128], strides = [1, 1]} : vector<8x512xf32> to vector<8x128xf32>
    %500 = arith.negf %499 : vector<8x128xf32>
    %501 = math.exp %500 : vector<8x128xf32>
    %cst_155 = arith.constant 1.000000e+00 : f32
    %502 = vector.broadcast %cst_155 : f32 to vector<8x128xf32>
    %503 = arith.addf %502, %501 : vector<8x128xf32>
    %504 = arith.divf %502, %503 : vector<8x128xf32>
    %505 = vector.extract_strided_slice %498 {offsets = [0, 128], sizes = [8, 128], strides = [1, 1]} : vector<8x512xf32> to vector<8x128xf32>
    %506 = arith.negf %505 : vector<8x128xf32>
    %507 = math.exp %506 : vector<8x128xf32>
    %cst_156 = arith.constant 1.000000e+00 : f32
    %508 = vector.broadcast %cst_156 : f32 to vector<8x128xf32>
    %509 = arith.addf %508, %507 : vector<8x128xf32>
    %510 = arith.divf %508, %509 : vector<8x128xf32>
    %511 = vector.extract_strided_slice %498 {offsets = [0, 256], sizes = [8, 128], strides = [1, 1]} : vector<8x512xf32> to vector<8x128xf32>
    %512 = math.tanh %511 : vector<8x128xf32>
    %513 = vector.extract_strided_slice %498 {offsets = [0, 384], sizes = [8, 128], strides = [1, 1]} : vector<8x512xf32> to vector<8x128xf32>
    %514 = arith.negf %513 : vector<8x128xf32>
    %515 = math.exp %514 : vector<8x128xf32>
    %cst_157 = arith.constant 1.000000e+00 : f32
    %516 = vector.broadcast %cst_157 : f32 to vector<8x128xf32>
    %517 = arith.addf %516, %515 : vector<8x128xf32>
    %518 = arith.divf %516, %517 : vector<8x128xf32>
    %519 = arith.mulf %510, %489 : vector<8x128xf32>
    %520 = arith.mulf %504, %512 : vector<8x128xf32>
    %521 = arith.addf %519, %520 : vector<8x128xf32>
    %522 = math.tanh %521 : vector<8x128xf32>
    %523 = arith.mulf %518, %522 : vector<8x128xf32>
    %c15_158 = arith.constant 15 : index
    %c0_159 = arith.constant 0 : index
    %c0_160 = arith.constant 0 : index
    %524 = vector.load %arg7[%c15_158, %c0_159, %c0_160] : memref<16x8x128xf32, #tpu.memory_space<vmem>>, vector<1x8x128xf32>
    %525 = vector.shape_cast %524 : vector<1x8x128xf32> to vector<8x128xf32>
    %526 = vector.shape_cast %523 : vector<8x128xf32> to vector<1x8x128xf32>
    tpu.vector_store %arg7[%c15_158, %c0_159, %c0_160], %526 {strides = array<i32>} : memref<16x8x128xf32, #tpu.memory_space<vmem>>, vector<1x8x128xf32>,
    %c2_161 = arith.constant 2 : index
    %c0_162 = arith.constant 0 : index
    %c0_163 = arith.constant 0 : index
    %527 = vector.load %arg1[%c2_161, %c0_162, %c0_163] : memref<4x128x512xf32, #tpu.memory_space<vmem>>, vector<1x128x512xf32>
    %528 = vector.shape_cast %527 : vector<1x128x512xf32> to vector<128x512xf32>
    %c3_164 = arith.constant 3 : index
    %c0_165 = arith.constant 0 : index
    %c0_166 = arith.constant 0 : index
    %529 = vector.load %arg1[%c3_164, %c0_165, %c0_166] : memref<4x128x512xf32, #tpu.memory_space<vmem>>, vector<1x128x512xf32>
    %530 = vector.shape_cast %529 : vector<1x128x512xf32> to vector<128x512xf32>
    %c1_167 = arith.constant 1 : index
    %c0_168 = arith.constant 0 : index
    %c0_169 = arith.constant 0 : index
    %531 = vector.load %arg2[%c1_167, %c0_168, %c0_169] : memref<2x1x512xf32, #tpu.memory_space<vmem>>, vector<1x1x512xf32>
    %532 = vector.shape_cast %531 : vector<1x1x512xf32> to vector<1x512xf32>
    %c0_170 = arith.constant 0 : index
    %c0_171 = arith.constant 0 : index
    %c0_172 = arith.constant 0 : index
    %533 = vector.load %arg7[%c0_170, %c0_171, %c0_172] : memref<16x8x128xf32, #tpu.memory_space<vmem>>, vector<16x8x128xf32>
    %534 = vector.shape_cast %533 : vector<16x8x128xf32> to vector<128x128xf32>
    %cst_173 = arith.constant dense<0.000000e+00> : vector<128x512xf32>
    %535 = tpu.matmul %534, %528, %cst_173 {dimension_numbers = #tpu.dot_dimension_numbers<[1], [0], [0], [1], [0, 0, 1, 1], [], []>} : vector<128x128xf32>, vector<128x512xf32>, vector<128x512xf32> -> vector<128x512xf32>
    %536 = vector.broadcast %532 : vector<1x512xf32> to vector<128x512xf32>
    %537 = arith.addf %535, %536 : vector<128x512xf32>
    %538 = vector.shape_cast %537 : vector<128x512xf32> to vector<16x8x512xf32>
    %c0_174 = arith.constant 0 : index
    %c0_175 = arith.constant 0 : index
    %c0_176 = arith.constant 0 : index
    %539 = vector.load %arg6[%c0_174, %c0_175, %c0_176] : memref<16x8x512xf32, #tpu.memory_space<vmem>>, vector<16x8x512xf32>
    tpu.vector_store %arg6[%c0_174, %c0_175, %c0_176], %538 {strides = array<i32>} : memref<16x8x512xf32, #tpu.memory_space<vmem>>, vector<16x8x512xf32>,
    %cst_177 = arith.constant 0.000000e+00 : f32
    %540 = vector.broadcast %cst_177 : f32 to vector<8x128xf32>
    %cst_178 = arith.constant 0.000000e+00 : f32
    %541 = vector.broadcast %cst_178 : f32 to vector<8x128xf32>
    %c0_179 = arith.constant 0 : index
    %c0_180 = arith.constant 0 : index
    %c0_181 = arith.constant 0 : index
    %542 = vector.load %arg6[%c0_179, %c0_180, %c0_181] : memref<16x8x512xf32, #tpu.memory_space<vmem>>, vector<1x8x512xf32>
    %543 = vector.shape_cast %542 : vector<1x8x512xf32> to vector<8x512xf32>
    %cst_182 = arith.constant dense<0.000000e+00> : vector<8x512xf32>
    %544 = tpu.matmul %540, %530, %cst_182 {dimension_numbers = #tpu.dot_dimension_numbers<[1], [0], [0], [1], [0, 0, 1, 1], [], []>} : vector<8x128xf32>, vector<128x512xf32>, vector<8x512xf32> -> vector<8x512xf32>
    %545 = arith.addf %543, %544 : vector<8x512xf32>
    %546 = vector.extract_strided_slice %545 {offsets = [0, 0], sizes = [8, 128], strides = [1, 1]} : vector<8x512xf32> to vector<8x128xf32>
    %547 = arith.negf %546 : vector<8x128xf32>
    %548 = math.exp %547 : vector<8x128xf32>
    %cst_183 = arith.constant 1.000000e+00 : f32
    %549 = vector.broadcast %cst_183 : f32 to vector<8x128xf32>
    %550 = arith.addf %549, %548 : vector<8x128xf32>
    %551 = arith.divf %549, %550 : vector<8x128xf32>
    %552 = vector.extract_strided_slice %545 {offsets = [0, 128], sizes = [8, 128], strides = [1, 1]} : vector<8x512xf32> to vector<8x128xf32>
    %553 = arith.negf %552 : vector<8x128xf32>
    %554 = math.exp %553 : vector<8x128xf32>
    %cst_184 = arith.constant 1.000000e+00 : f32
    %555 = vector.broadcast %cst_184 : f32 to vector<8x128xf32>
    %556 = arith.addf %555, %554 : vector<8x128xf32>
    %557 = arith.divf %555, %556 : vector<8x128xf32>
    %558 = vector.extract_strided_slice %545 {offsets = [0, 256], sizes = [8, 128], strides = [1, 1]} : vector<8x512xf32> to vector<8x128xf32>
    %559 = math.tanh %558 : vector<8x128xf32>
    %560 = vector.extract_strided_slice %545 {offsets = [0, 384], sizes = [8, 128], strides = [1, 1]} : vector<8x512xf32> to vector<8x128xf32>
    %561 = arith.negf %560 : vector<8x128xf32>
    %562 = math.exp %561 : vector<8x128xf32>
    %cst_185 = arith.constant 1.000000e+00 : f32
    %563 = vector.broadcast %cst_185 : f32 to vector<8x128xf32>
    %564 = arith.addf %563, %562 : vector<8x128xf32>
    %565 = arith.divf %563, %564 : vector<8x128xf32>
    %566 = arith.mulf %557, %541 : vector<8x128xf32>
    %567 = arith.mulf %551, %559 : vector<8x128xf32>
    %568 = arith.addf %566, %567 : vector<8x128xf32>
    %569 = math.tanh %568 : vector<8x128xf32>
    %570 = arith.mulf %565, %569 : vector<8x128xf32>
    %c0_186 = arith.constant 0 : index
    %c0_187 = arith.constant 0 : index
    %c0_188 = arith.constant 0 : index
    %571 = vector.load %arg7[%c0_186, %c0_187, %c0_188] : memref<16x8x128xf32, #tpu.memory_space<vmem>>, vector<1x8x128xf32>
    %572 = vector.shape_cast %571 : vector<1x8x128xf32> to vector<8x128xf32>
    %573 = vector.shape_cast %570 : vector<8x128xf32> to vector<1x8x128xf32>
    tpu.vector_store %arg7[%c0_186, %c0_187, %c0_188], %573 {strides = array<i32>} : memref<16x8x128xf32, #tpu.memory_space<vmem>>, vector<1x8x128xf32>,
    %c1_189 = arith.constant 1 : index
    %c0_190 = arith.constant 0 : index
    %c0_191 = arith.constant 0 : index
    %574 = vector.load %arg6[%c1_189, %c0_190, %c0_191] : memref<16x8x512xf32, #tpu.memory_space<vmem>>, vector<1x8x512xf32>
    %575 = vector.shape_cast %574 : vector<1x8x512xf32> to vector<8x512xf32>
    %cst_192 = arith.constant dense<0.000000e+00> : vector<8x512xf32>
    %576 = tpu.matmul %570, %530, %cst_192 {dimension_numbers = #tpu.dot_dimension_numbers<[1], [0], [0], [1], [0, 0, 1, 1], [], []>} : vector<8x128xf32>, vector<128x512xf32>, vector<8x512xf32> -> vector<8x512xf32>
    %577 = arith.addf %575, %576 : vector<8x512xf32>
    %578 = vector.extract_strided_slice %577 {offsets = [0, 0], sizes = [8, 128], strides = [1, 1]} : vector<8x512xf32> to vector<8x128xf32>
    %579 = arith.negf %578 : vector<8x128xf32>
    %580 = math.exp %579 : vector<8x128xf32>
    %cst_193 = arith.constant 1.000000e+00 : f32
    %581 = vector.broadcast %cst_193 : f32 to vector<8x128xf32>
    %582 = arith.addf %581, %580 : vector<8x128xf32>
    %583 = arith.divf %581, %582 : vector<8x128xf32>
    %584 = vector.extract_strided_slice %577 {offsets = [0, 128], sizes = [8, 128], strides = [1, 1]} : vector<8x512xf32> to vector<8x128xf32>
    %585 = arith.negf %584 : vector<8x128xf32>
    %586 = math.exp %585 : vector<8x128xf32>
    %cst_194 = arith.constant 1.000000e+00 : f32
    %587 = vector.broadcast %cst_194 : f32 to vector<8x128xf32>
    %588 = arith.addf %587, %586 : vector<8x128xf32>
    %589 = arith.divf %587, %588 : vector<8x128xf32>
    %590 = vector.extract_strided_slice %577 {offsets = [0, 256], sizes = [8, 128], strides = [1, 1]} : vector<8x512xf32> to vector<8x128xf32>
    %591 = math.tanh %590 : vector<8x128xf32>
    %592 = vector.extract_strided_slice %577 {offsets = [0, 384], sizes = [8, 128], strides = [1, 1]} : vector<8x512xf32> to vector<8x128xf32>
    %593 = arith.negf %592 : vector<8x128xf32>
    %594 = math.exp %593 : vector<8x128xf32>
    %cst_195 = arith.constant 1.000000e+00 : f32
    %595 = vector.broadcast %cst_195 : f32 to vector<8x128xf32>
    %596 = arith.addf %595, %594 : vector<8x128xf32>
    %597 = arith.divf %595, %596 : vector<8x128xf32>
    %598 = arith.mulf %589, %568 : vector<8x128xf32>
    %599 = arith.mulf %583, %591 : vector<8x128xf32>
    %600 = arith.addf %598, %599 : vector<8x128xf32>
    %601 = math.tanh %600 : vector<8x128xf32>
    %602 = arith.mulf %597, %601 : vector<8x128xf32>
    %c1_196 = arith.constant 1 : index
    %c0_197 = arith.constant 0 : index
    %c0_198 = arith.constant 0 : index
    %603 = vector.load %arg7[%c1_196, %c0_197, %c0_198] : memref<16x8x128xf32, #tpu.memory_space<vmem>>, vector<1x8x128xf32>
    %604 = vector.shape_cast %603 : vector<1x8x128xf32> to vector<8x128xf32>
    %605 = vector.shape_cast %602 : vector<8x128xf32> to vector<1x8x128xf32>
    tpu.vector_store %arg7[%c1_196, %c0_197, %c0_198], %605 {strides = array<i32>} : memref<16x8x128xf32, #tpu.memory_space<vmem>>, vector<1x8x128xf32>,
    %c2_199 = arith.constant 2 : index
    %c0_200 = arith.constant 0 : index
    %c0_201 = arith.constant 0 : index
    %606 = vector.load %arg6[%c2_199, %c0_200, %c0_201] : memref<16x8x512xf32, #tpu.memory_space<vmem>>, vector<1x8x512xf32>
    %607 = vector.shape_cast %606 : vector<1x8x512xf32> to vector<8x512xf32>
    %cst_202 = arith.constant dense<0.000000e+00> : vector<8x512xf32>
    %608 = tpu.matmul %602, %530, %cst_202 {dimension_numbers = #tpu.dot_dimension_numbers<[1], [0], [0], [1], [0, 0, 1, 1], [], []>} : vector<8x128xf32>, vector<128x512xf32>, vector<8x512xf32> -> vector<8x512xf32>
    %609 = arith.addf %607, %608 : vector<8x512xf32>
    %610 = vector.extract_strided_slice %609 {offsets = [0, 0], sizes = [8, 128], strides = [1, 1]} : vector<8x512xf32> to vector<8x128xf32>
    %611 = arith.negf %610 : vector<8x128xf32>
    %612 = math.exp %611 : vector<8x128xf32>
    %cst_203 = arith.constant 1.000000e+00 : f32
    %613 = vector.broadcast %cst_203 : f32 to vector<8x128xf32>
    %614 = arith.addf %613, %612 : vector<8x128xf32>
    %615 = arith.divf %613, %614 : vector<8x128xf32>
    %616 = vector.extract_strided_slice %609 {offsets = [0, 128], sizes = [8, 128], strides = [1, 1]} : vector<8x512xf32> to vector<8x128xf32>
    %617 = arith.negf %616 : vector<8x128xf32>
    %618 = math.exp %617 : vector<8x128xf32>
    %cst_204 = arith.constant 1.000000e+00 : f32
    %619 = vector.broadcast %cst_204 : f32 to vector<8x128xf32>
    %620 = arith.addf %619, %618 : vector<8x128xf32>
    %621 = arith.divf %619, %620 : vector<8x128xf32>
    %622 = vector.extract_strided_slice %609 {offsets = [0, 256], sizes = [8, 128], strides = [1, 1]} : vector<8x512xf32> to vector<8x128xf32>
    %623 = math.tanh %622 : vector<8x128xf32>
    %624 = vector.extract_strided_slice %609 {offsets = [0, 384], sizes = [8, 128], strides = [1, 1]} : vector<8x512xf32> to vector<8x128xf32>
    %625 = arith.negf %624 : vector<8x128xf32>
    %626 = math.exp %625 : vector<8x128xf32>
    %cst_205 = arith.constant 1.000000e+00 : f32
    %627 = vector.broadcast %cst_205 : f32 to vector<8x128xf32>
    %628 = arith.addf %627, %626 : vector<8x128xf32>
    %629 = arith.divf %627, %628 : vector<8x128xf32>
    %630 = arith.mulf %621, %600 : vector<8x128xf32>
    %631 = arith.mulf %615, %623 : vector<8x128xf32>
    %632 = arith.addf %630, %631 : vector<8x128xf32>
    %633 = math.tanh %632 : vector<8x128xf32>
    %634 = arith.mulf %629, %633 : vector<8x128xf32>
    %c2_206 = arith.constant 2 : index
    %c0_207 = arith.constant 0 : index
    %c0_208 = arith.constant 0 : index
    %635 = vector.load %arg7[%c2_206, %c0_207, %c0_208] : memref<16x8x128xf32, #tpu.memory_space<vmem>>, vector<1x8x128xf32>
    %636 = vector.shape_cast %635 : vector<1x8x128xf32> to vector<8x128xf32>
    %637 = vector.shape_cast %634 : vector<8x128xf32> to vector<1x8x128xf32>
    tpu.vector_store %arg7[%c2_206, %c0_207, %c0_208], %637 {strides = array<i32>} : memref<16x8x128xf32, #tpu.memory_space<vmem>>, vector<1x8x128xf32>,
    %c3_209 = arith.constant 3 : index
    %c0_210 = arith.constant 0 : index
    %c0_211 = arith.constant 0 : index
    %638 = vector.load %arg6[%c3_209, %c0_210, %c0_211] : memref<16x8x512xf32, #tpu.memory_space<vmem>>, vector<1x8x512xf32>
    %639 = vector.shape_cast %638 : vector<1x8x512xf32> to vector<8x512xf32>
    %cst_212 = arith.constant dense<0.000000e+00> : vector<8x512xf32>
    %640 = tpu.matmul %634, %530, %cst_212 {dimension_numbers = #tpu.dot_dimension_numbers<[1], [0], [0], [1], [0, 0, 1, 1], [], []>} : vector<8x128xf32>, vector<128x512xf32>, vector<8x512xf32> -> vector<8x512xf32>
    %641 = arith.addf %639, %640 : vector<8x512xf32>
    %642 = vector.extract_strided_slice %641 {offsets = [0, 0], sizes = [8, 128], strides = [1, 1]} : vector<8x512xf32> to vector<8x128xf32>
    %643 = arith.negf %642 : vector<8x128xf32>
    %644 = math.exp %643 : vector<8x128xf32>
    %cst_213 = arith.constant 1.000000e+00 : f32
    %645 = vector.broadcast %cst_213 : f32 to vector<8x128xf32>
    %646 = arith.addf %645, %644 : vector<8x128xf32>
    %647 = arith.divf %645, %646 : vector<8x128xf32>
    %648 = vector.extract_strided_slice %641 {offsets = [0, 128], sizes = [8, 128], strides = [1, 1]} : vector<8x512xf32> to vector<8x128xf32>
    %649 = arith.negf %648 : vector<8x128xf32>
    %650 = math.exp %649 : vector<8x128xf32>
    %cst_214 = arith.constant 1.000000e+00 : f32
    %651 = vector.broadcast %cst_214 : f32 to vector<8x128xf32>
    %652 = arith.addf %651, %650 : vector<8x128xf32>
    %653 = arith.divf %651, %652 : vector<8x128xf32>
    %654 = vector.extract_strided_slice %641 {offsets = [0, 256], sizes = [8, 128], strides = [1, 1]} : vector<8x512xf32> to vector<8x128xf32>
    %655 = math.tanh %654 : vector<8x128xf32>
    %656 = vector.extract_strided_slice %641 {offsets = [0, 384], sizes = [8, 128], strides = [1, 1]} : vector<8x512xf32> to vector<8x128xf32>
    %657 = arith.negf %656 : vector<8x128xf32>
    %658 = math.exp %657 : vector<8x128xf32>
    %cst_215 = arith.constant 1.000000e+00 : f32
    %659 = vector.broadcast %cst_215 : f32 to vector<8x128xf32>
    %660 = arith.addf %659, %658 : vector<8x128xf32>
    %661 = arith.divf %659, %660 : vector<8x128xf32>
    %662 = arith.mulf %653, %632 : vector<8x128xf32>
    %663 = arith.mulf %647, %655 : vector<8x128xf32>
    %664 = arith.addf %662, %663 : vector<8x128xf32>
    %665 = math.tanh %664 : vector<8x128xf32>
    %666 = arith.mulf %661, %665 : vector<8x128xf32>
    %c3_216 = arith.constant 3 : index
    %c0_217 = arith.constant 0 : index
    %c0_218 = arith.constant 0 : index
    %667 = vector.load %arg7[%c3_216, %c0_217, %c0_218] : memref<16x8x128xf32, #tpu.memory_space<vmem>>, vector<1x8x128xf32>
    %668 = vector.shape_cast %667 : vector<1x8x128xf32> to vector<8x128xf32>
    %669 = vector.shape_cast %666 : vector<8x128xf32> to vector<1x8x128xf32>
    tpu.vector_store %arg7[%c3_216, %c0_217, %c0_218], %669 {strides = array<i32>} : memref<16x8x128xf32, #tpu.memory_space<vmem>>, vector<1x8x128xf32>,
    %c4_219 = arith.constant 4 : index
    %c0_220 = arith.constant 0 : index
    %c0_221 = arith.constant 0 : index
    %670 = vector.load %arg6[%c4_219, %c0_220, %c0_221] : memref<16x8x512xf32, #tpu.memory_space<vmem>>, vector<1x8x512xf32>
    %671 = vector.shape_cast %670 : vector<1x8x512xf32> to vector<8x512xf32>
    %cst_222 = arith.constant dense<0.000000e+00> : vector<8x512xf32>
    %672 = tpu.matmul %666, %530, %cst_222 {dimension_numbers = #tpu.dot_dimension_numbers<[1], [0], [0], [1], [0, 0, 1, 1], [], []>} : vector<8x128xf32>, vector<128x512xf32>, vector<8x512xf32> -> vector<8x512xf32>
    %673 = arith.addf %671, %672 : vector<8x512xf32>
    %674 = vector.extract_strided_slice %673 {offsets = [0, 0], sizes = [8, 128], strides = [1, 1]} : vector<8x512xf32> to vector<8x128xf32>
    %675 = arith.negf %674 : vector<8x128xf32>
    %676 = math.exp %675 : vector<8x128xf32>
    %cst_223 = arith.constant 1.000000e+00 : f32
    %677 = vector.broadcast %cst_223 : f32 to vector<8x128xf32>
    %678 = arith.addf %677, %676 : vector<8x128xf32>
    %679 = arith.divf %677, %678 : vector<8x128xf32>
    %680 = vector.extract_strided_slice %673 {offsets = [0, 128], sizes = [8, 128], strides = [1, 1]} : vector<8x512xf32> to vector<8x128xf32>
    %681 = arith.negf %680 : vector<8x128xf32>
    %682 = math.exp %681 : vector<8x128xf32>
    %cst_224 = arith.constant 1.000000e+00 : f32
    %683 = vector.broadcast %cst_224 : f32 to vector<8x128xf32>
    %684 = arith.addf %683, %682 : vector<8x128xf32>
    %685 = arith.divf %683, %684 : vector<8x128xf32>
    %686 = vector.extract_strided_slice %673 {offsets = [0, 256], sizes = [8, 128], strides = [1, 1]} : vector<8x512xf32> to vector<8x128xf32>
    %687 = math.tanh %686 : vector<8x128xf32>
    %688 = vector.extract_strided_slice %673 {offsets = [0, 384], sizes = [8, 128], strides = [1, 1]} : vector<8x512xf32> to vector<8x128xf32>
    %689 = arith.negf %688 : vector<8x128xf32>
    %690 = math.exp %689 : vector<8x128xf32>
    %cst_225 = arith.constant 1.000000e+00 : f32
    %691 = vector.broadcast %cst_225 : f32 to vector<8x128xf32>
    %692 = arith.addf %691, %690 : vector<8x128xf32>
    %693 = arith.divf %691, %692 : vector<8x128xf32>
    %694 = arith.mulf %685, %664 : vector<8x128xf32>
    %695 = arith.mulf %679, %687 : vector<8x128xf32>
    %696 = arith.addf %694, %695 : vector<8x128xf32>
    %697 = math.tanh %696 : vector<8x128xf32>
    %698 = arith.mulf %693, %697 : vector<8x128xf32>
    %c4_226 = arith.constant 4 : index
    %c0_227 = arith.constant 0 : index
    %c0_228 = arith.constant 0 : index
    %699 = vector.load %arg7[%c4_226, %c0_227, %c0_228] : memref<16x8x128xf32, #tpu.memory_space<vmem>>, vector<1x8x128xf32>
    %700 = vector.shape_cast %699 : vector<1x8x128xf32> to vector<8x128xf32>
    %701 = vector.shape_cast %698 : vector<8x128xf32> to vector<1x8x128xf32>
    tpu.vector_store %arg7[%c4_226, %c0_227, %c0_228], %701 {strides = array<i32>} : memref<16x8x128xf32, #tpu.memory_space<vmem>>, vector<1x8x128xf32>,
    %c5_229 = arith.constant 5 : index
    %c0_230 = arith.constant 0 : index
    %c0_231 = arith.constant 0 : index
    %702 = vector.load %arg6[%c5_229, %c0_230, %c0_231] : memref<16x8x512xf32, #tpu.memory_space<vmem>>, vector<1x8x512xf32>
    %703 = vector.shape_cast %702 : vector<1x8x512xf32> to vector<8x512xf32>
    %cst_232 = arith.constant dense<0.000000e+00> : vector<8x512xf32>
    %704 = tpu.matmul %698, %530, %cst_232 {dimension_numbers = #tpu.dot_dimension_numbers<[1], [0], [0], [1], [0, 0, 1, 1], [], []>} : vector<8x128xf32>, vector<128x512xf32>, vector<8x512xf32> -> vector<8x512xf32>
    %705 = arith.addf %703, %704 : vector<8x512xf32>
    %706 = vector.extract_strided_slice %705 {offsets = [0, 0], sizes = [8, 128], strides = [1, 1]} : vector<8x512xf32> to vector<8x128xf32>
    %707 = arith.negf %706 : vector<8x128xf32>
    %708 = math.exp %707 : vector<8x128xf32>
    %cst_233 = arith.constant 1.000000e+00 : f32
    %709 = vector.broadcast %cst_233 : f32 to vector<8x128xf32>
    %710 = arith.addf %709, %708 : vector<8x128xf32>
    %711 = arith.divf %709, %710 : vector<8x128xf32>
    %712 = vector.extract_strided_slice %705 {offsets = [0, 128], sizes = [8, 128], strides = [1, 1]} : vector<8x512xf32> to vector<8x128xf32>
    %713 = arith.negf %712 : vector<8x128xf32>
    %714 = math.exp %713 : vector<8x128xf32>
    %cst_234 = arith.constant 1.000000e+00 : f32
    %715 = vector.broadcast %cst_234 : f32 to vector<8x128xf32>
    %716 = arith.addf %715, %714 : vector<8x128xf32>
    %717 = arith.divf %715, %716 : vector<8x128xf32>
    %718 = vector.extract_strided_slice %705 {offsets = [0, 256], sizes = [8, 128], strides = [1, 1]} : vector<8x512xf32> to vector<8x128xf32>
    %719 = math.tanh %718 : vector<8x128xf32>
    %720 = vector.extract_strided_slice %705 {offsets = [0, 384], sizes = [8, 128], strides = [1, 1]} : vector<8x512xf32> to vector<8x128xf32>
    %721 = arith.negf %720 : vector<8x128xf32>
    %722 = math.exp %721 : vector<8x128xf32>
    %cst_235 = arith.constant 1.000000e+00 : f32
    %723 = vector.broadcast %cst_235 : f32 to vector<8x128xf32>
    %724 = arith.addf %723, %722 : vector<8x128xf32>
    %725 = arith.divf %723, %724 : vector<8x128xf32>
    %726 = arith.mulf %717, %696 : vector<8x128xf32>
    %727 = arith.mulf %711, %719 : vector<8x128xf32>
    %728 = arith.addf %726, %727 : vector<8x128xf32>
    %729 = math.tanh %728 : vector<8x128xf32>
    %730 = arith.mulf %725, %729 : vector<8x128xf32>
    %c5_236 = arith.constant 5 : index
    %c0_237 = arith.constant 0 : index
    %c0_238 = arith.constant 0 : index
    %731 = vector.load %arg7[%c5_236, %c0_237, %c0_238] : memref<16x8x128xf32, #tpu.memory_space<vmem>>, vector<1x8x128xf32>
    %732 = vector.shape_cast %731 : vector<1x8x128xf32> to vector<8x128xf32>
    %733 = vector.shape_cast %730 : vector<8x128xf32> to vector<1x8x128xf32>
    tpu.vector_store %arg7[%c5_236, %c0_237, %c0_238], %733 {strides = array<i32>} : memref<16x8x128xf32, #tpu.memory_space<vmem>>, vector<1x8x128xf32>,
    %c6_239 = arith.constant 6 : index
    %c0_240 = arith.constant 0 : index
    %c0_241 = arith.constant 0 : index
    %734 = vector.load %arg6[%c6_239, %c0_240, %c0_241] : memref<16x8x512xf32, #tpu.memory_space<vmem>>, vector<1x8x512xf32>
    %735 = vector.shape_cast %734 : vector<1x8x512xf32> to vector<8x512xf32>
    %cst_242 = arith.constant dense<0.000000e+00> : vector<8x512xf32>
    %736 = tpu.matmul %730, %530, %cst_242 {dimension_numbers = #tpu.dot_dimension_numbers<[1], [0], [0], [1], [0, 0, 1, 1], [], []>} : vector<8x128xf32>, vector<128x512xf32>, vector<8x512xf32> -> vector<8x512xf32>
    %737 = arith.addf %735, %736 : vector<8x512xf32>
    %738 = vector.extract_strided_slice %737 {offsets = [0, 0], sizes = [8, 128], strides = [1, 1]} : vector<8x512xf32> to vector<8x128xf32>
    %739 = arith.negf %738 : vector<8x128xf32>
    %740 = math.exp %739 : vector<8x128xf32>
    %cst_243 = arith.constant 1.000000e+00 : f32
    %741 = vector.broadcast %cst_243 : f32 to vector<8x128xf32>
    %742 = arith.addf %741, %740 : vector<8x128xf32>
    %743 = arith.divf %741, %742 : vector<8x128xf32>
    %744 = vector.extract_strided_slice %737 {offsets = [0, 128], sizes = [8, 128], strides = [1, 1]} : vector<8x512xf32> to vector<8x128xf32>
    %745 = arith.negf %744 : vector<8x128xf32>
    %746 = math.exp %745 : vector<8x128xf32>
    %cst_244 = arith.constant 1.000000e+00 : f32
    %747 = vector.broadcast %cst_244 : f32 to vector<8x128xf32>
    %748 = arith.addf %747, %746 : vector<8x128xf32>
    %749 = arith.divf %747, %748 : vector<8x128xf32>
    %750 = vector.extract_strided_slice %737 {offsets = [0, 256], sizes = [8, 128], strides = [1, 1]} : vector<8x512xf32> to vector<8x128xf32>
    %751 = math.tanh %750 : vector<8x128xf32>
    %752 = vector.extract_strided_slice %737 {offsets = [0, 384], sizes = [8, 128], strides = [1, 1]} : vector<8x512xf32> to vector<8x128xf32>
    %753 = arith.negf %752 : vector<8x128xf32>
    %754 = math.exp %753 : vector<8x128xf32>
    %cst_245 = arith.constant 1.000000e+00 : f32
    %755 = vector.broadcast %cst_245 : f32 to vector<8x128xf32>
    %756 = arith.addf %755, %754 : vector<8x128xf32>
    %757 = arith.divf %755, %756 : vector<8x128xf32>
    %758 = arith.mulf %749, %728 : vector<8x128xf32>
    %759 = arith.mulf %743, %751 : vector<8x128xf32>
    %760 = arith.addf %758, %759 : vector<8x128xf32>
    %761 = math.tanh %760 : vector<8x128xf32>
    %762 = arith.mulf %757, %761 : vector<8x128xf32>
    %c6_246 = arith.constant 6 : index
    %c0_247 = arith.constant 0 : index
    %c0_248 = arith.constant 0 : index
    %763 = vector.load %arg7[%c6_246, %c0_247, %c0_248] : memref<16x8x128xf32, #tpu.memory_space<vmem>>, vector<1x8x128xf32>
    %764 = vector.shape_cast %763 : vector<1x8x128xf32> to vector<8x128xf32>
    %765 = vector.shape_cast %762 : vector<8x128xf32> to vector<1x8x128xf32>
    tpu.vector_store %arg7[%c6_246, %c0_247, %c0_248], %765 {strides = array<i32>} : memref<16x8x128xf32, #tpu.memory_space<vmem>>, vector<1x8x128xf32>,
    %c7_249 = arith.constant 7 : index
    %c0_250 = arith.constant 0 : index
    %c0_251 = arith.constant 0 : index
    %766 = vector.load %arg6[%c7_249, %c0_250, %c0_251] : memref<16x8x512xf32, #tpu.memory_space<vmem>>, vector<1x8x512xf32>
    %767 = vector.shape_cast %766 : vector<1x8x512xf32> to vector<8x512xf32>
    %cst_252 = arith.constant dense<0.000000e+00> : vector<8x512xf32>
    %768 = tpu.matmul %762, %530, %cst_252 {dimension_numbers = #tpu.dot_dimension_numbers<[1], [0], [0], [1], [0, 0, 1, 1], [], []>} : vector<8x128xf32>, vector<128x512xf32>, vector<8x512xf32> -> vector<8x512xf32>
    %769 = arith.addf %767, %768 : vector<8x512xf32>
    %770 = vector.extract_strided_slice %769 {offsets = [0, 0], sizes = [8, 128], strides = [1, 1]} : vector<8x512xf32> to vector<8x128xf32>
    %771 = arith.negf %770 : vector<8x128xf32>
    %772 = math.exp %771 : vector<8x128xf32>
    %cst_253 = arith.constant 1.000000e+00 : f32
    %773 = vector.broadcast %cst_253 : f32 to vector<8x128xf32>
    %774 = arith.addf %773, %772 : vector<8x128xf32>
    %775 = arith.divf %773, %774 : vector<8x128xf32>
    %776 = vector.extract_strided_slice %769 {offsets = [0, 128], sizes = [8, 128], strides = [1, 1]} : vector<8x512xf32> to vector<8x128xf32>
    %777 = arith.negf %776 : vector<8x128xf32>
    %778 = math.exp %777 : vector<8x128xf32>
    %cst_254 = arith.constant 1.000000e+00 : f32
    %779 = vector.broadcast %cst_254 : f32 to vector<8x128xf32>
    %780 = arith.addf %779, %778 : vector<8x128xf32>
    %781 = arith.divf %779, %780 : vector<8x128xf32>
    %782 = vector.extract_strided_slice %769 {offsets = [0, 256], sizes = [8, 128], strides = [1, 1]} : vector<8x512xf32> to vector<8x128xf32>
    %783 = math.tanh %782 : vector<8x128xf32>
    %784 = vector.extract_strided_slice %769 {offsets = [0, 384], sizes = [8, 128], strides = [1, 1]} : vector<8x512xf32> to vector<8x128xf32>
    %785 = arith.negf %784 : vector<8x128xf32>
    %786 = math.exp %785 : vector<8x128xf32>
    %cst_255 = arith.constant 1.000000e+00 : f32
    %787 = vector.broadcast %cst_255 : f32 to vector<8x128xf32>
    %788 = arith.addf %787, %786 : vector<8x128xf32>
    %789 = arith.divf %787, %788 : vector<8x128xf32>
    %790 = arith.mulf %781, %760 : vector<8x128xf32>
    %791 = arith.mulf %775, %783 : vector<8x128xf32>
    %792 = arith.addf %790, %791 : vector<8x128xf32>
    %793 = math.tanh %792 : vector<8x128xf32>
    %794 = arith.mulf %789, %793 : vector<8x128xf32>
    %c7_256 = arith.constant 7 : index
    %c0_257 = arith.constant 0 : index
    %c0_258 = arith.constant 0 : index
    %795 = vector.load %arg7[%c7_256, %c0_257, %c0_258] : memref<16x8x128xf32, #tpu.memory_space<vmem>>, vector<1x8x128xf32>
    %796 = vector.shape_cast %795 : vector<1x8x128xf32> to vector<8x128xf32>
    %797 = vector.shape_cast %794 : vector<8x128xf32> to vector<1x8x128xf32>
    tpu.vector_store %arg7[%c7_256, %c0_257, %c0_258], %797 {strides = array<i32>} : memref<16x8x128xf32, #tpu.memory_space<vmem>>, vector<1x8x128xf32>,
    %c8_259 = arith.constant 8 : index
    %c0_260 = arith.constant 0 : index
    %c0_261 = arith.constant 0 : index
    %798 = vector.load %arg6[%c8_259, %c0_260, %c0_261] : memref<16x8x512xf32, #tpu.memory_space<vmem>>, vector<1x8x512xf32>
    %799 = vector.shape_cast %798 : vector<1x8x512xf32> to vector<8x512xf32>
    %cst_262 = arith.constant dense<0.000000e+00> : vector<8x512xf32>
    %800 = tpu.matmul %794, %530, %cst_262 {dimension_numbers = #tpu.dot_dimension_numbers<[1], [0], [0], [1], [0, 0, 1, 1], [], []>} : vector<8x128xf32>, vector<128x512xf32>, vector<8x512xf32> -> vector<8x512xf32>
    %801 = arith.addf %799, %800 : vector<8x512xf32>
    %802 = vector.extract_strided_slice %801 {offsets = [0, 0], sizes = [8, 128], strides = [1, 1]} : vector<8x512xf32> to vector<8x128xf32>
    %803 = arith.negf %802 : vector<8x128xf32>
    %804 = math.exp %803 : vector<8x128xf32>
    %cst_263 = arith.constant 1.000000e+00 : f32
    %805 = vector.broadcast %cst_263 : f32 to vector<8x128xf32>
    %806 = arith.addf %805, %804 : vector<8x128xf32>
    %807 = arith.divf %805, %806 : vector<8x128xf32>
    %808 = vector.extract_strided_slice %801 {offsets = [0, 128], sizes = [8, 128], strides = [1, 1]} : vector<8x512xf32> to vector<8x128xf32>
    %809 = arith.negf %808 : vector<8x128xf32>
    %810 = math.exp %809 : vector<8x128xf32>
    %cst_264 = arith.constant 1.000000e+00 : f32
    %811 = vector.broadcast %cst_264 : f32 to vector<8x128xf32>
    %812 = arith.addf %811, %810 : vector<8x128xf32>
    %813 = arith.divf %811, %812 : vector<8x128xf32>
    %814 = vector.extract_strided_slice %801 {offsets = [0, 256], sizes = [8, 128], strides = [1, 1]} : vector<8x512xf32> to vector<8x128xf32>
    %815 = math.tanh %814 : vector<8x128xf32>
    %816 = vector.extract_strided_slice %801 {offsets = [0, 384], sizes = [8, 128], strides = [1, 1]} : vector<8x512xf32> to vector<8x128xf32>
    %817 = arith.negf %816 : vector<8x128xf32>
    %818 = math.exp %817 : vector<8x128xf32>
    %cst_265 = arith.constant 1.000000e+00 : f32
    %819 = vector.broadcast %cst_265 : f32 to vector<8x128xf32>
    %820 = arith.addf %819, %818 : vector<8x128xf32>
    %821 = arith.divf %819, %820 : vector<8x128xf32>
    %822 = arith.mulf %813, %792 : vector<8x128xf32>
    %823 = arith.mulf %807, %815 : vector<8x128xf32>
    %824 = arith.addf %822, %823 : vector<8x128xf32>
    %825 = math.tanh %824 : vector<8x128xf32>
    %826 = arith.mulf %821, %825 : vector<8x128xf32>
    %c8_266 = arith.constant 8 : index
    %c0_267 = arith.constant 0 : index
    %c0_268 = arith.constant 0 : index
    %827 = vector.load %arg7[%c8_266, %c0_267, %c0_268] : memref<16x8x128xf32, #tpu.memory_space<vmem>>, vector<1x8x128xf32>
    %828 = vector.shape_cast %827 : vector<1x8x128xf32> to vector<8x128xf32>
    %829 = vector.shape_cast %826 : vector<8x128xf32> to vector<1x8x128xf32>
    tpu.vector_store %arg7[%c8_266, %c0_267, %c0_268], %829 {strides = array<i32>} : memref<16x8x128xf32, #tpu.memory_space<vmem>>, vector<1x8x128xf32>,
    %c9_269 = arith.constant 9 : index
    %c0_270 = arith.constant 0 : index
    %c0_271 = arith.constant 0 : index
    %830 = vector.load %arg6[%c9_269, %c0_270, %c0_271] : memref<16x8x512xf32, #tpu.memory_space<vmem>>, vector<1x8x512xf32>
    %831 = vector.shape_cast %830 : vector<1x8x512xf32> to vector<8x512xf32>
    %cst_272 = arith.constant dense<0.000000e+00> : vector<8x512xf32>
    %832 = tpu.matmul %826, %530, %cst_272 {dimension_numbers = #tpu.dot_dimension_numbers<[1], [0], [0], [1], [0, 0, 1, 1], [], []>} : vector<8x128xf32>, vector<128x512xf32>, vector<8x512xf32> -> vector<8x512xf32>
    %833 = arith.addf %831, %832 : vector<8x512xf32>
    %834 = vector.extract_strided_slice %833 {offsets = [0, 0], sizes = [8, 128], strides = [1, 1]} : vector<8x512xf32> to vector<8x128xf32>
    %835 = arith.negf %834 : vector<8x128xf32>
    %836 = math.exp %835 : vector<8x128xf32>
    %cst_273 = arith.constant 1.000000e+00 : f32
    %837 = vector.broadcast %cst_273 : f32 to vector<8x128xf32>
    %838 = arith.addf %837, %836 : vector<8x128xf32>
    %839 = arith.divf %837, %838 : vector<8x128xf32>
    %840 = vector.extract_strided_slice %833 {offsets = [0, 128], sizes = [8, 128], strides = [1, 1]} : vector<8x512xf32> to vector<8x128xf32>
    %841 = arith.negf %840 : vector<8x128xf32>
    %842 = math.exp %841 : vector<8x128xf32>
    %cst_274 = arith.constant 1.000000e+00 : f32
    %843 = vector.broadcast %cst_274 : f32 to vector<8x128xf32>
    %844 = arith.addf %843, %842 : vector<8x128xf32>
    %845 = arith.divf %843, %844 : vector<8x128xf32>
    %846 = vector.extract_strided_slice %833 {offsets = [0, 256], sizes = [8, 128], strides = [1, 1]} : vector<8x512xf32> to vector<8x128xf32>
    %847 = math.tanh %846 : vector<8x128xf32>
    %848 = vector.extract_strided_slice %833 {offsets = [0, 384], sizes = [8, 128], strides = [1, 1]} : vector<8x512xf32> to vector<8x128xf32>
    %849 = arith.negf %848 : vector<8x128xf32>
    %850 = math.exp %849 : vector<8x128xf32>
    %cst_275 = arith.constant 1.000000e+00 : f32
    %851 = vector.broadcast %cst_275 : f32 to vector<8x128xf32>
    %852 = arith.addf %851, %850 : vector<8x128xf32>
    %853 = arith.divf %851, %852 : vector<8x128xf32>
    %854 = arith.mulf %845, %824 : vector<8x128xf32>
    %855 = arith.mulf %839, %847 : vector<8x128xf32>
    %856 = arith.addf %854, %855 : vector<8x128xf32>
    %857 = math.tanh %856 : vector<8x128xf32>
    %858 = arith.mulf %853, %857 : vector<8x128xf32>
    %c9_276 = arith.constant 9 : index
    %c0_277 = arith.constant 0 : index
    %c0_278 = arith.constant 0 : index
    %859 = vector.load %arg7[%c9_276, %c0_277, %c0_278] : memref<16x8x128xf32, #tpu.memory_space<vmem>>, vector<1x8x128xf32>
    %860 = vector.shape_cast %859 : vector<1x8x128xf32> to vector<8x128xf32>
    %861 = vector.shape_cast %858 : vector<8x128xf32> to vector<1x8x128xf32>
    tpu.vector_store %arg7[%c9_276, %c0_277, %c0_278], %861 {strides = array<i32>} : memref<16x8x128xf32, #tpu.memory_space<vmem>>, vector<1x8x128xf32>,
    %c10_279 = arith.constant 10 : index
    %c0_280 = arith.constant 0 : index
    %c0_281 = arith.constant 0 : index
    %862 = vector.load %arg6[%c10_279, %c0_280, %c0_281] : memref<16x8x512xf32, #tpu.memory_space<vmem>>, vector<1x8x512xf32>
    %863 = vector.shape_cast %862 : vector<1x8x512xf32> to vector<8x512xf32>
    %cst_282 = arith.constant dense<0.000000e+00> : vector<8x512xf32>
    %864 = tpu.matmul %858, %530, %cst_282 {dimension_numbers = #tpu.dot_dimension_numbers<[1], [0], [0], [1], [0, 0, 1, 1], [], []>} : vector<8x128xf32>, vector<128x512xf32>, vector<8x512xf32> -> vector<8x512xf32>
    %865 = arith.addf %863, %864 : vector<8x512xf32>
    %866 = vector.extract_strided_slice %865 {offsets = [0, 0], sizes = [8, 128], strides = [1, 1]} : vector<8x512xf32> to vector<8x128xf32>
    %867 = arith.negf %866 : vector<8x128xf32>
    %868 = math.exp %867 : vector<8x128xf32>
    %cst_283 = arith.constant 1.000000e+00 : f32
    %869 = vector.broadcast %cst_283 : f32 to vector<8x128xf32>
    %870 = arith.addf %869, %868 : vector<8x128xf32>
    %871 = arith.divf %869, %870 : vector<8x128xf32>
    %872 = vector.extract_strided_slice %865 {offsets = [0, 128], sizes = [8, 128], strides = [1, 1]} : vector<8x512xf32> to vector<8x128xf32>
    %873 = arith.negf %872 : vector<8x128xf32>
    %874 = math.exp %873 : vector<8x128xf32>
    %cst_284 = arith.constant 1.000000e+00 : f32
    %875 = vector.broadcast %cst_284 : f32 to vector<8x128xf32>
    %876 = arith.addf %875, %874 : vector<8x128xf32>
    %877 = arith.divf %875, %876 : vector<8x128xf32>
    %878 = vector.extract_strided_slice %865 {offsets = [0, 256], sizes = [8, 128], strides = [1, 1]} : vector<8x512xf32> to vector<8x128xf32>
    %879 = math.tanh %878 : vector<8x128xf32>
    %880 = vector.extract_strided_slice %865 {offsets = [0, 384], sizes = [8, 128], strides = [1, 1]} : vector<8x512xf32> to vector<8x128xf32>
    %881 = arith.negf %880 : vector<8x128xf32>
    %882 = math.exp %881 : vector<8x128xf32>
    %cst_285 = arith.constant 1.000000e+00 : f32
    %883 = vector.broadcast %cst_285 : f32 to vector<8x128xf32>
    %884 = arith.addf %883, %882 : vector<8x128xf32>
    %885 = arith.divf %883, %884 : vector<8x128xf32>
    %886 = arith.mulf %877, %856 : vector<8x128xf32>
    %887 = arith.mulf %871, %879 : vector<8x128xf32>
    %888 = arith.addf %886, %887 : vector<8x128xf32>
    %889 = math.tanh %888 : vector<8x128xf32>
    %890 = arith.mulf %885, %889 : vector<8x128xf32>
    %c10_286 = arith.constant 10 : index
    %c0_287 = arith.constant 0 : index
    %c0_288 = arith.constant 0 : index
    %891 = vector.load %arg7[%c10_286, %c0_287, %c0_288] : memref<16x8x128xf32, #tpu.memory_space<vmem>>, vector<1x8x128xf32>
    %892 = vector.shape_cast %891 : vector<1x8x128xf32> to vector<8x128xf32>
    %893 = vector.shape_cast %890 : vector<8x128xf32> to vector<1x8x128xf32>
    tpu.vector_store %arg7[%c10_286, %c0_287, %c0_288], %893 {strides = array<i32>} : memref<16x8x128xf32, #tpu.memory_space<vmem>>, vector<1x8x128xf32>,
    %c11_289 = arith.constant 11 : index
    %c0_290 = arith.constant 0 : index
    %c0_291 = arith.constant 0 : index
    %894 = vector.load %arg6[%c11_289, %c0_290, %c0_291] : memref<16x8x512xf32, #tpu.memory_space<vmem>>, vector<1x8x512xf32>
    %895 = vector.shape_cast %894 : vector<1x8x512xf32> to vector<8x512xf32>
    %cst_292 = arith.constant dense<0.000000e+00> : vector<8x512xf32>
    %896 = tpu.matmul %890, %530, %cst_292 {dimension_numbers = #tpu.dot_dimension_numbers<[1], [0], [0], [1], [0, 0, 1, 1], [], []>} : vector<8x128xf32>, vector<128x512xf32>, vector<8x512xf32> -> vector<8x512xf32>
    %897 = arith.addf %895, %896 : vector<8x512xf32>
    %898 = vector.extract_strided_slice %897 {offsets = [0, 0], sizes = [8, 128], strides = [1, 1]} : vector<8x512xf32> to vector<8x128xf32>
    %899 = arith.negf %898 : vector<8x128xf32>
    %900 = math.exp %899 : vector<8x128xf32>
    %cst_293 = arith.constant 1.000000e+00 : f32
    %901 = vector.broadcast %cst_293 : f32 to vector<8x128xf32>
    %902 = arith.addf %901, %900 : vector<8x128xf32>
    %903 = arith.divf %901, %902 : vector<8x128xf32>
    %904 = vector.extract_strided_slice %897 {offsets = [0, 128], sizes = [8, 128], strides = [1, 1]} : vector<8x512xf32> to vector<8x128xf32>
    %905 = arith.negf %904 : vector<8x128xf32>
    %906 = math.exp %905 : vector<8x128xf32>
    %cst_294 = arith.constant 1.000000e+00 : f32
    %907 = vector.broadcast %cst_294 : f32 to vector<8x128xf32>
    %908 = arith.addf %907, %906 : vector<8x128xf32>
    %909 = arith.divf %907, %908 : vector<8x128xf32>
    %910 = vector.extract_strided_slice %897 {offsets = [0, 256], sizes = [8, 128], strides = [1, 1]} : vector<8x512xf32> to vector<8x128xf32>
    %911 = math.tanh %910 : vector<8x128xf32>
    %912 = vector.extract_strided_slice %897 {offsets = [0, 384], sizes = [8, 128], strides = [1, 1]} : vector<8x512xf32> to vector<8x128xf32>
    %913 = arith.negf %912 : vector<8x128xf32>
    %914 = math.exp %913 : vector<8x128xf32>
    %cst_295 = arith.constant 1.000000e+00 : f32
    %915 = vector.broadcast %cst_295 : f32 to vector<8x128xf32>
    %916 = arith.addf %915, %914 : vector<8x128xf32>
    %917 = arith.divf %915, %916 : vector<8x128xf32>
    %918 = arith.mulf %909, %888 : vector<8x128xf32>
    %919 = arith.mulf %903, %911 : vector<8x128xf32>
    %920 = arith.addf %918, %919 : vector<8x128xf32>
    %921 = math.tanh %920 : vector<8x128xf32>
    %922 = arith.mulf %917, %921 : vector<8x128xf32>
    %c11_296 = arith.constant 11 : index
    %c0_297 = arith.constant 0 : index
    %c0_298 = arith.constant 0 : index
    %923 = vector.load %arg7[%c11_296, %c0_297, %c0_298] : memref<16x8x128xf32, #tpu.memory_space<vmem>>, vector<1x8x128xf32>
    %924 = vector.shape_cast %923 : vector<1x8x128xf32> to vector<8x128xf32>
    %925 = vector.shape_cast %922 : vector<8x128xf32> to vector<1x8x128xf32>
    tpu.vector_store %arg7[%c11_296, %c0_297, %c0_298], %925 {strides = array<i32>} : memref<16x8x128xf32, #tpu.memory_space<vmem>>, vector<1x8x128xf32>,
    %c12_299 = arith.constant 12 : index
    %c0_300 = arith.constant 0 : index
    %c0_301 = arith.constant 0 : index
    %926 = vector.load %arg6[%c12_299, %c0_300, %c0_301] : memref<16x8x512xf32, #tpu.memory_space<vmem>>, vector<1x8x512xf32>
    %927 = vector.shape_cast %926 : vector<1x8x512xf32> to vector<8x512xf32>
    %cst_302 = arith.constant dense<0.000000e+00> : vector<8x512xf32>
    %928 = tpu.matmul %922, %530, %cst_302 {dimension_numbers = #tpu.dot_dimension_numbers<[1], [0], [0], [1], [0, 0, 1, 1], [], []>} : vector<8x128xf32>, vector<128x512xf32>, vector<8x512xf32> -> vector<8x512xf32>
    %929 = arith.addf %927, %928 : vector<8x512xf32>
    %930 = vector.extract_strided_slice %929 {offsets = [0, 0], sizes = [8, 128], strides = [1, 1]} : vector<8x512xf32> to vector<8x128xf32>
    %931 = arith.negf %930 : vector<8x128xf32>
    %932 = math.exp %931 : vector<8x128xf32>
    %cst_303 = arith.constant 1.000000e+00 : f32
    %933 = vector.broadcast %cst_303 : f32 to vector<8x128xf32>
    %934 = arith.addf %933, %932 : vector<8x128xf32>
    %935 = arith.divf %933, %934 : vector<8x128xf32>
    %936 = vector.extract_strided_slice %929 {offsets = [0, 128], sizes = [8, 128], strides = [1, 1]} : vector<8x512xf32> to vector<8x128xf32>
    %937 = arith.negf %936 : vector<8x128xf32>
    %938 = math.exp %937 : vector<8x128xf32>
    %cst_304 = arith.constant 1.000000e+00 : f32
    %939 = vector.broadcast %cst_304 : f32 to vector<8x128xf32>
    %940 = arith.addf %939, %938 : vector<8x128xf32>
    %941 = arith.divf %939, %940 : vector<8x128xf32>
    %942 = vector.extract_strided_slice %929 {offsets = [0, 256], sizes = [8, 128], strides = [1, 1]} : vector<8x512xf32> to vector<8x128xf32>
    %943 = math.tanh %942 : vector<8x128xf32>
    %944 = vector.extract_strided_slice %929 {offsets = [0, 384], sizes = [8, 128], strides = [1, 1]} : vector<8x512xf32> to vector<8x128xf32>
    %945 = arith.negf %944 : vector<8x128xf32>
    %946 = math.exp %945 : vector<8x128xf32>
    %cst_305 = arith.constant 1.000000e+00 : f32
    %947 = vector.broadcast %cst_305 : f32 to vector<8x128xf32>
    %948 = arith.addf %947, %946 : vector<8x128xf32>
    %949 = arith.divf %947, %948 : vector<8x128xf32>
    %950 = arith.mulf %941, %920 : vector<8x128xf32>
    %951 = arith.mulf %935, %943 : vector<8x128xf32>
    %952 = arith.addf %950, %951 : vector<8x128xf32>
    %953 = math.tanh %952 : vector<8x128xf32>
    %954 = arith.mulf %949, %953 : vector<8x128xf32>
    %c12_306 = arith.constant 12 : index
    %c0_307 = arith.constant 0 : index
    %c0_308 = arith.constant 0 : index
    %955 = vector.load %arg7[%c12_306, %c0_307, %c0_308] : memref<16x8x128xf32, #tpu.memory_space<vmem>>, vector<1x8x128xf32>
    %956 = vector.shape_cast %955 : vector<1x8x128xf32> to vector<8x128xf32>
    %957 = vector.shape_cast %954 : vector<8x128xf32> to vector<1x8x128xf32>
    tpu.vector_store %arg7[%c12_306, %c0_307, %c0_308], %957 {strides = array<i32>} : memref<16x8x128xf32, #tpu.memory_space<vmem>>, vector<1x8x128xf32>,
    %c13_309 = arith.constant 13 : index
    %c0_310 = arith.constant 0 : index
    %c0_311 = arith.constant 0 : index
    %958 = vector.load %arg6[%c13_309, %c0_310, %c0_311] : memref<16x8x512xf32, #tpu.memory_space<vmem>>, vector<1x8x512xf32>
    %959 = vector.shape_cast %958 : vector<1x8x512xf32> to vector<8x512xf32>
    %cst_312 = arith.constant dense<0.000000e+00> : vector<8x512xf32>
    %960 = tpu.matmul %954, %530, %cst_312 {dimension_numbers = #tpu.dot_dimension_numbers<[1], [0], [0], [1], [0, 0, 1, 1], [], []>} : vector<8x128xf32>, vector<128x512xf32>, vector<8x512xf32> -> vector<8x512xf32>
    %961 = arith.addf %959, %960 : vector<8x512xf32>
    %962 = vector.extract_strided_slice %961 {offsets = [0, 0], sizes = [8, 128], strides = [1, 1]} : vector<8x512xf32> to vector<8x128xf32>
    %963 = arith.negf %962 : vector<8x128xf32>
    %964 = math.exp %963 : vector<8x128xf32>
    %cst_313 = arith.constant 1.000000e+00 : f32
    %965 = vector.broadcast %cst_313 : f32 to vector<8x128xf32>
    %966 = arith.addf %965, %964 : vector<8x128xf32>
    %967 = arith.divf %965, %966 : vector<8x128xf32>
    %968 = vector.extract_strided_slice %961 {offsets = [0, 128], sizes = [8, 128], strides = [1, 1]} : vector<8x512xf32> to vector<8x128xf32>
    %969 = arith.negf %968 : vector<8x128xf32>
    %970 = math.exp %969 : vector<8x128xf32>
    %cst_314 = arith.constant 1.000000e+00 : f32
    %971 = vector.broadcast %cst_314 : f32 to vector<8x128xf32>
    %972 = arith.addf %971, %970 : vector<8x128xf32>
    %973 = arith.divf %971, %972 : vector<8x128xf32>
    %974 = vector.extract_strided_slice %961 {offsets = [0, 256], sizes = [8, 128], strides = [1, 1]} : vector<8x512xf32> to vector<8x128xf32>
    %975 = math.tanh %974 : vector<8x128xf32>
    %976 = vector.extract_strided_slice %961 {offsets = [0, 384], sizes = [8, 128], strides = [1, 1]} : vector<8x512xf32> to vector<8x128xf32>
    %977 = arith.negf %976 : vector<8x128xf32>
    %978 = math.exp %977 : vector<8x128xf32>
    %cst_315 = arith.constant 1.000000e+00 : f32
    %979 = vector.broadcast %cst_315 : f32 to vector<8x128xf32>
    %980 = arith.addf %979, %978 : vector<8x128xf32>
    %981 = arith.divf %979, %980 : vector<8x128xf32>
    %982 = arith.mulf %973, %952 : vector<8x128xf32>
    %983 = arith.mulf %967, %975 : vector<8x128xf32>
    %984 = arith.addf %982, %983 : vector<8x128xf32>
    %985 = math.tanh %984 : vector<8x128xf32>
    %986 = arith.mulf %981, %985 : vector<8x128xf32>
    %c13_316 = arith.constant 13 : index
    %c0_317 = arith.constant 0 : index
    %c0_318 = arith.constant 0 : index
    %987 = vector.load %arg7[%c13_316, %c0_317, %c0_318] : memref<16x8x128xf32, #tpu.memory_space<vmem>>, vector<1x8x128xf32>
    %988 = vector.shape_cast %987 : vector<1x8x128xf32> to vector<8x128xf32>
    %989 = vector.shape_cast %986 : vector<8x128xf32> to vector<1x8x128xf32>
    tpu.vector_store %arg7[%c13_316, %c0_317, %c0_318], %989 {strides = array<i32>} : memref<16x8x128xf32, #tpu.memory_space<vmem>>, vector<1x8x128xf32>,
    %c14_319 = arith.constant 14 : index
    %c0_320 = arith.constant 0 : index
    %c0_321 = arith.constant 0 : index
    %990 = vector.load %arg6[%c14_319, %c0_320, %c0_321] : memref<16x8x512xf32, #tpu.memory_space<vmem>>, vector<1x8x512xf32>
    %991 = vector.shape_cast %990 : vector<1x8x512xf32> to vector<8x512xf32>
    %cst_322 = arith.constant dense<0.000000e+00> : vector<8x512xf32>
    %992 = tpu.matmul %986, %530, %cst_322 {dimension_numbers = #tpu.dot_dimension_numbers<[1], [0], [0], [1], [0, 0, 1, 1], [], []>} : vector<8x128xf32>, vector<128x512xf32>, vector<8x512xf32> -> vector<8x512xf32>
    %993 = arith.addf %991, %992 : vector<8x512xf32>
    %994 = vector.extract_strided_slice %993 {offsets = [0, 0], sizes = [8, 128], strides = [1, 1]} : vector<8x512xf32> to vector<8x128xf32>
    %995 = arith.negf %994 : vector<8x128xf32>
    %996 = math.exp %995 : vector<8x128xf32>
    %cst_323 = arith.constant 1.000000e+00 : f32
    %997 = vector.broadcast %cst_323 : f32 to vector<8x128xf32>
    %998 = arith.addf %997, %996 : vector<8x128xf32>
    %999 = arith.divf %997, %998 : vector<8x128xf32>
    %1000 = vector.extract_strided_slice %993 {offsets = [0, 128], sizes = [8, 128], strides = [1, 1]} : vector<8x512xf32> to vector<8x128xf32>
    %1001 = arith.negf %1000 : vector<8x128xf32>
    %1002 = math.exp %1001 : vector<8x128xf32>
    %cst_324 = arith.constant 1.000000e+00 : f32
    %1003 = vector.broadcast %cst_324 : f32 to vector<8x128xf32>
    %1004 = arith.addf %1003, %1002 : vector<8x128xf32>
    %1005 = arith.divf %1003, %1004 : vector<8x128xf32>
    %1006 = vector.extract_strided_slice %993 {offsets = [0, 256], sizes = [8, 128], strides = [1, 1]} : vector<8x512xf32> to vector<8x128xf32>
    %1007 = math.tanh %1006 : vector<8x128xf32>
    %1008 = vector.extract_strided_slice %993 {offsets = [0, 384], sizes = [8, 128], strides = [1, 1]} : vector<8x512xf32> to vector<8x128xf32>
    %1009 = arith.negf %1008 : vector<8x128xf32>
    %1010 = math.exp %1009 : vector<8x128xf32>
    %cst_325 = arith.constant 1.000000e+00 : f32
    %1011 = vector.broadcast %cst_325 : f32 to vector<8x128xf32>
    %1012 = arith.addf %1011, %1010 : vector<8x128xf32>
    %1013 = arith.divf %1011, %1012 : vector<8x128xf32>
    %1014 = arith.mulf %1005, %984 : vector<8x128xf32>
    %1015 = arith.mulf %999, %1007 : vector<8x128xf32>
    %1016 = arith.addf %1014, %1015 : vector<8x128xf32>
    %1017 = math.tanh %1016 : vector<8x128xf32>
    %1018 = arith.mulf %1013, %1017 : vector<8x128xf32>
    %c14_326 = arith.constant 14 : index
    %c0_327 = arith.constant 0 : index
    %c0_328 = arith.constant 0 : index
    %1019 = vector.load %arg7[%c14_326, %c0_327, %c0_328] : memref<16x8x128xf32, #tpu.memory_space<vmem>>, vector<1x8x128xf32>
    %1020 = vector.shape_cast %1019 : vector<1x8x128xf32> to vector<8x128xf32>
    %1021 = vector.shape_cast %1018 : vector<8x128xf32> to vector<1x8x128xf32>
    tpu.vector_store %arg7[%c14_326, %c0_327, %c0_328], %1021 {strides = array<i32>} : memref<16x8x128xf32, #tpu.memory_space<vmem>>, vector<1x8x128xf32>,
    %c15_329 = arith.constant 15 : index
    %c0_330 = arith.constant 0 : index
    %c0_331 = arith.constant 0 : index
    %1022 = vector.load %arg6[%c15_329, %c0_330, %c0_331] : memref<16x8x512xf32, #tpu.memory_space<vmem>>, vector<1x8x512xf32>
    %1023 = vector.shape_cast %1022 : vector<1x8x512xf32> to vector<8x512xf32>
    %cst_332 = arith.constant dense<0.000000e+00> : vector<8x512xf32>
    %1024 = tpu.matmul %1018, %530, %cst_332 {dimension_numbers = #tpu.dot_dimension_numbers<[1], [0], [0], [1], [0, 0, 1, 1], [], []>} : vector<8x128xf32>, vector<128x512xf32>, vector<8x512xf32> -> vector<8x512xf32>
    %1025 = arith.addf %1023, %1024 : vector<8x512xf32>
    %1026 = vector.extract_strided_slice %1025 {offsets = [0, 0], sizes = [8, 128], strides = [1, 1]} : vector<8x512xf32> to vector<8x128xf32>
    %1027 = arith.negf %1026 : vector<8x128xf32>
    %1028 = math.exp %1027 : vector<8x128xf32>
    %cst_333 = arith.constant 1.000000e+00 : f32
    %1029 = vector.broadcast %cst_333 : f32 to vector<8x128xf32>
    %1030 = arith.addf %1029, %1028 : vector<8x128xf32>
    %1031 = arith.divf %1029, %1030 : vector<8x128xf32>
    %1032 = vector.extract_strided_slice %1025 {offsets = [0, 128], sizes = [8, 128], strides = [1, 1]} : vector<8x512xf32> to vector<8x128xf32>
    %1033 = arith.negf %1032 : vector<8x128xf32>
    %1034 = math.exp %1033 : vector<8x128xf32>
    %cst_334 = arith.constant 1.000000e+00 : f32
    %1035 = vector.broadcast %cst_334 : f32 to vector<8x128xf32>
    %1036 = arith.addf %1035, %1034 : vector<8x128xf32>
    %1037 = arith.divf %1035, %1036 : vector<8x128xf32>
    %1038 = vector.extract_strided_slice %1025 {offsets = [0, 256], sizes = [8, 128], strides = [1, 1]} : vector<8x512xf32> to vector<8x128xf32>
    %1039 = math.tanh %1038 : vector<8x128xf32>
    %1040 = vector.extract_strided_slice %1025 {offsets = [0, 384], sizes = [8, 128], strides = [1, 1]} : vector<8x512xf32> to vector<8x128xf32>
    %1041 = arith.negf %1040 : vector<8x128xf32>
    %1042 = math.exp %1041 : vector<8x128xf32>
    %cst_335 = arith.constant 1.000000e+00 : f32
    %1043 = vector.broadcast %cst_335 : f32 to vector<8x128xf32>
    %1044 = arith.addf %1043, %1042 : vector<8x128xf32>
    %1045 = arith.divf %1043, %1044 : vector<8x128xf32>
    %1046 = arith.mulf %1037, %1016 : vector<8x128xf32>
    %1047 = arith.mulf %1031, %1039 : vector<8x128xf32>
    %1048 = arith.addf %1046, %1047 : vector<8x128xf32>
    %1049 = math.tanh %1048 : vector<8x128xf32>
    %1050 = arith.mulf %1045, %1049 : vector<8x128xf32>
    %c15_336 = arith.constant 15 : index
    %c0_337 = arith.constant 0 : index
    %c0_338 = arith.constant 0 : index
    %1051 = vector.load %arg7[%c15_336, %c0_337, %c0_338] : memref<16x8x128xf32, #tpu.memory_space<vmem>>, vector<1x8x128xf32>
    %1052 = vector.shape_cast %1051 : vector<1x8x128xf32> to vector<8x128xf32>
    %1053 = vector.shape_cast %1050 : vector<8x128xf32> to vector<1x8x128xf32>
    tpu.vector_store %arg7[%c15_336, %c0_337, %c0_338], %1053 {strides = array<i32>} : memref<16x8x128xf32, #tpu.memory_space<vmem>>, vector<1x8x128xf32>,
    %c0_339 = arith.constant 0 : index
    %c0_340 = arith.constant 0 : index
    %c0_341 = arith.constant 0 : index
    %1054 = vector.load %arg7[%c0_339, %c0_340, %c0_341] : memref<16x8x128xf32, #tpu.memory_space<vmem>>, vector<16x8x128xf32>
    %1055 = vector.shape_cast %1054 : vector<16x8x128xf32> to vector<8x2x8x128xf32>
    %1056 = vector.extract_strided_slice %1055 {offsets = [0, 0, 0, 0], sizes = [8, 1, 8, 128], strides = [1, 1, 1, 1]} : vector<8x2x8x128xf32> to vector<8x1x8x128xf32>
    %1057 = vector.shape_cast %1056 : vector<8x1x8x128xf32> to vector<8x8x128xf32>
    %1058 = vector.shape_cast %1057 : vector<8x8x128xf32> to vector<64x128xf32>
    %c0_342 = arith.constant 0 : index
    %c0_343 = arith.constant 0 : index
    %1059 = vector.load %arg3[%c0_342, %c0_343] : memref<128x128xf32, #tpu.memory_space<vmem>>, vector<128x128xf32>
    %cst_344 = arith.constant dense<0.000000e+00> : vector<64x128xf32>
    %1060 = tpu.matmul %1058, %1059, %cst_344 {dimension_numbers = #tpu.dot_dimension_numbers<[1], [0], [0], [1], [0, 0, 1, 1], [], []>} : vector<64x128xf32>, vector<128x128xf32>, vector<64x128xf32> -> vector<64x128xf32>
    %c0_345 = arith.constant 0 : index
    %c0_346 = arith.constant 0 : index
    %1061 = vector.load %arg4[%c0_345, %c0_346] : memref<1x128xf32, #tpu.memory_space<vmem>>, vector<1x128xf32>
    %1062 = vector.broadcast %1061 : vector<1x128xf32> to vector<64x128xf32>
    %1063 = arith.addf %1060, %1062 : vector<64x128xf32>
    %c0_347 = arith.constant 0 : index
    %c0_348 = arith.constant 0 : index
    %1064 = vector.load %arg5[%c0_347, %c0_348] : memref<64x128xf32, #tpu.memory_space<vmem>>, vector<64x128xf32>
    tpu.vector_store %arg5[%c0_347, %c0_348], %1063 {strides = array<i32>} : memref<64x128xf32, #tpu.memory_space<vmem>>, vector<64x128xf32>,
    return
  }
}

</mosaic_0001>

<llo_original>
// kernel: tpu_custom_call.1
$region0: #{tpu_custom_call.1}
  #allocation0 [shape = 'u32[]', space=smem, size = 0x4, offset = 0x4, fixed_abs, tag = 'smem constant byte address 0x4 - core index']
  #allocation1 [shape = 'u32[144,128]{1,0:T(1,128)}', space=vmem, size = 0x12000, scoped, tag = 'internal scratch']
  #allocation2 [shape = 'f32[16,8,512]{2,1,0:T(8,128)}', space=vmem, size = 0x40000, scoped, tag = 'scratch operand']
  #allocation3 [shape = 'f32[16,8,128]{2,1,0:T(8,128)}', space=vmem, size = 0x10000, scoped, tag = 'scratch operand']
  %s0 = inlined_call_operand.hbm [shape: f32[16,8,128], index: 0, kind: input, shape index: {}]
  %s1 = inlined_call_operand.hbm [shape: f32[4,128,512], index: 1, kind: input, shape index: {}]
  %s2 = inlined_call_operand.hbm [shape: f32[2,1,512], index: 2, kind: input, shape index: {}]
  %s3 = inlined_call_operand.hbm [shape: f32[128,128], index: 3, kind: input, shape index: {}]
  %s4 = inlined_call_operand.vmem [shape: f32[1,128], index: 4, kind: input, shape index: {}]
  %s5 = inlined_call_operand.hbm [shape: f32[64,128], index: 5, kind: output, shape index: {}]
  %s6 = sld [smem:[#allocation0]]
  $region46: #{tpu_custom_call.1} parent=0
    _
  %s8 = ssub.s32 1, %s6
  %s9 = scalar_select 0, %s8, %s6
  $region1: #{tpu_custom_call.1} parent=0
    #allocation4 [shape = 'u8[65536]{0}', space=vmem, size = 0x10000, scoped, tag = 'input window, operand 0, single buffered']
    #allocation5 [shape = 's32[1]{0}', space=sflag, size = 0x4, scoped, tag = 'scoped memory for tpu_custom_call.1']
    #allocation6 [shape = 's32[1]{0}', space=sflag, size = 0x4, scoped, tag = 'scoped memory for tpu_custom_call.1']
    #allocation7 [shape = 'u8[1048576]{0}', space=vmem, size = 0x100000, scoped, tag = 'input window, operand 1, single buffered']
    #allocation8 [shape = 's32[1]{0}', space=sflag, size = 0x4, scoped, tag = 'scoped memory for tpu_custom_call.1']
    #allocation9 [shape = 'u8[4096]{0}', space=vmem, size = 0x1000, scoped, tag = 'input window, operand 2, single buffered']
    #allocation10 [shape = 'u8[65536]{0}', space=vmem, size = 0x10000, scoped, tag = 'input window, operand 3, single buffered']
    #allocation11 [shape = 's32[1]{0}', space=sflag, size = 0x4, scoped, tag = 'scoped memory for tpu_custom_call.1']
    #allocation12 [shape = 'u8[32768]{0}', space=vmem, size = 0x8000, scoped, tag = 'output window, operand 0, single buffered']
    %10 = vsyncpa [#allocation5], 0
    %11 = vsyncpa [#allocation8], 0
    %12 = vsyncpa [#allocation11], 0
    %13 = vsyncpa [#allocation6], 0
    // Predicated region
    $region2: #{tpu_custom_call.1} parent=1 // pred_check
      _
    $region3: #{tpu_custom_call.1} parent=1 // pred_check_branch
      %15 = sbr.rel (0) target = $region5
    $region4: #{tpu_custom_call.1} parent=1 // pred_region
      %s17 = ssub.s32 2048, 2048
      %18 = vsyncadd [#allocation5], %s17
      %s19 = sshll.u32 [#allocation4], 4
      %s20 = int_to_ptr.vmem [resolvable:$true] %s19
      %25 = dma.hbm_to_vmem [thread:$0]  %s0, 2048, %s20, [#allocation5], 128, 128, 8
    $region5: #{tpu_custom_call.1} parent=1 // pred_fallthru
      _
    // Predicated region
    $region6: #{tpu_custom_call.1} parent=1 // pred_check
      _
    $region7: #{tpu_custom_call.1} parent=1 // pred_check_branch
      %27 = sbr.rel (0) target = $region9
    $region8: #{tpu_custom_call.1} parent=1 // pred_region
      %s29 = ssub.s32 32768, 32768
      %30 = vsyncadd [#allocation8], %s29
      %s31 = sshll.u32 [#allocation7], 4
      %s32 = int_to_ptr.vmem [resolvable:$true] %s31
      %37 = dma.hbm_to_vmem [thread:$0]  %s1, 32768, %s32, [#allocation8], 512, 512, 32
    $region9: #{tpu_custom_call.1} parent=1 // pred_fallthru
      _
    // Predicated region
    $region10: #{tpu_custom_call.1} parent=1 // pred_check
      _
    $region11: #{tpu_custom_call.1} parent=1 // pred_check_branch
      %39 = sbr.rel (0) target = $region13
    $region12: #{tpu_custom_call.1} parent=1 // pred_region
      %s41 = ssub.s32 128, 128
      %42 = vsyncadd [#allocation8], %s41
      %s43 = sshll.u32 [#allocation9], 4
      %s44 = int_to_ptr.vmem [resolvable:$true] %s43
      %49 = dma.hbm_to_vmem [thread:$0]  %s2, 128, %s44, [#allocation8], 64, 64, 4
    $region13: #{tpu_custom_call.1} parent=1 // pred_fallthru
      _
    // Predicated region
    $region14: #{tpu_custom_call.1} parent=1 // pred_check
      _
    $region15: #{tpu_custom_call.1} parent=1 // pred_check_branch
      %51 = sbr.rel (0) target = $region17
    $region16: #{tpu_custom_call.1} parent=1 // pred_region
      %s53 = ssub.s32 2048, 2048
      %54 = vsyncadd [#allocation11], %s53
      %s55 = sshll.u32 [#allocation10], 4
      %s56 = int_to_ptr.vmem [resolvable:$true] %s55
      %61 = dma.hbm_to_vmem [thread:$0]  %s3, 2048, %s56, [#allocation11], 128, 128, 8
    $region17: #{tpu_custom_call.1} parent=1 // pred_fallthru
      _
    // Predicated region
    $region18: #{tpu_custom_call.1} parent=1 // pred_check
      _
    $region19: #{tpu_custom_call.1} parent=1 // pred_check_branch
      %63 = sbr.rel (0) target = $region21
    $region20: #{tpu_custom_call.1} parent=1 // pred_region
      _
    $region21: #{tpu_custom_call.1} parent=1 // pred_fallthru
      _
    // Predicated region
    $region22: #{tpu_custom_call.1} parent=1 // pred_check
      _
    $region23: #{tpu_custom_call.1} parent=1 // pred_check_branch
      %65 = sbr.rel (0) target = $region25
    $region24: #{tpu_custom_call.1} parent=1 // pred_region
      %66 = dma.done [#allocation5], 2048
    $region25: #{tpu_custom_call.1} parent=1 // pred_fallthru
      _
    // Predicated region
    $region26: #{tpu_custom_call.1} parent=1 // pred_check
      _
    $region27: #{tpu_custom_call.1} parent=1 // pred_check_branch
      %68 = sbr.rel (0) target = $region29
    $region28: #{tpu_custom_call.1} parent=1 // pred_region
      %69 = dma.done [#allocation8], 32768
    $region29: #{tpu_custom_call.1} parent=1 // pred_fallthru
      _
    // Predicated region
    $region30: #{tpu_custom_call.1} parent=1 // pred_check
      _
    $region31: #{tpu_custom_call.1} parent=1 // pred_check_branch
      %71 = sbr.rel (0) target = $region33
    $region32: #{tpu_custom_call.1} parent=1 // pred_region
      %72 = dma.done [#allocation8], 128
    $region33: #{tpu_custom_call.1} parent=1 // pred_fallthru
      _
    // Predicated region
    $region34: #{tpu_custom_call.1} parent=1 // pred_check
      _
    $region35: #{tpu_custom_call.1} parent=1 // pred_check_branch
      %74 = sbr.rel (0) target = $region37
    $region36: #{tpu_custom_call.1} parent=1 // pred_region
      %75 = dma.done [#allocation11], 2048
    $region37: #{tpu_custom_call.1} parent=1 // pred_fallthru
      _
    %v76 = vld [vmem:[#allocation7] sm:$0xff]
    %v77 = vld [vmem:[#allocation7 + $0x8] sm:$0xff]
    %v78 = vld [vmem:[#allocation7 + $0x10] sm:$0xff]
    %v79 = vld [vmem:[#allocation7 + $0x18] sm:$0xff]
    %v80 = vld [vmem:[#allocation7 + $0x20] sm:$0xff]
    %v81 = vld [vmem:[#allocation7 + $0x28] sm:$0xff]
    %v82 = vld [vmem:[#allocation7 + $0x30] sm:$0xff]
    %v83 = vld [vmem:[#allocation7 + $0x38] sm:$0xff]
    %v84 = vld [vmem:[#allocation7 + $0x40] sm:$0xff]
    %v85 = vld [vmem:[#allocation7 + $0x48] sm:$0xff]
    %v86 = vld [vmem:[#allocation7 + $0x50] sm:$0xff]
    %v87 = vld [vmem:[#allocation7 + $0x58] sm:$0xff]
    %v88 = vld [vmem:[#allocation7 + $0x60] sm:$0xff]
    %v89 = vld [vmem:[#allocation7 + $0x68] sm:$0xff]
    %v90 = vld [vmem:[#allocation7 + $0x70] sm:$0xff]
    %v91 = vld [vmem:[#allocation7 + $0x78] sm:$0xff]
    %v92 = vld [vmem:[#allocation7 + $0x80] sm:$0xff]
    %v93 = vld [vmem:[#allocation7 + $0x88] sm:$0xff]
    %v94 = vld [vmem:[#allocation7 + $0x90] sm:$0xff]
    %v95 = vld [vmem:[#allocation7 + $0x98] sm:$0xff]
    %v96 = vld [vmem:[#allocation7 + $0xa0] sm:$0xff]
    %v97 = vld [vmem:[#allocation7 + $0xa8] sm:$0xff]
    %v98 = vld [vmem:[#allocation7 + $0xb0] sm:$0xff]
    %v99 = vld [vmem:[#allocation7 + $0xb8] sm:$0xff]
    %v100 = vld [vmem:[#allocation7 + $0xc0] sm:$0xff]
    %v101 = vld [vmem:[#allocation7 + $0xc8] sm:$0xff]
    %v102 = vld [vmem:[#allocation7 + $0xd0] sm:$0xff]
    %v103 = vld [vmem:[#allocation7 + $0xd8] sm:$0xff]
    %v104 = vld [vmem:[#allocation7 + $0xe0] sm:$0xff]
    %v105 = vld [vmem:[#allocation7 + $0xe8] sm:$0xff]
    %v106 = vld [vmem:[#allocation7 + $0xf0] sm:$0xff]
    %v107 = vld [vmem:[#allocation7 + $0xf8] sm:$0xff]
    %v108 = vld [vmem:[#allocation7 + $0x100] sm:$0xff]
    %v109 = vld [vmem:[#allocation7 + $0x108] sm:$0xff]
    %v110 = vld [vmem:[#allocation7 + $0x110] sm:$0xff]
    %v111 = vld [vmem:[#allocation7 + $0x118] sm:$0xff]
    %v112 = vld [vmem:[#allocation7 + $0x120] sm:$0xff]
    %v113 = vld [vmem:[#allocation7 + $0x128] sm:$0xff]
    %v114 = vld [vmem:[#allocation7 + $0x130] sm:$0xff]
    %v115 = vld [vmem:[#allocation7 + $0x138] sm:$0xff]
    %v116 = vld [vmem:[#allocation7 + $0x140] sm:$0xff]
    %v117 = vld [vmem:[#allocation7 + $0x148] sm:$0xff]
    %v118 = vld [vmem:[#allocation7 + $0x150] sm:$0xff]
    %v119 = vld [vmem:[#allocation7 + $0x158] sm:$0xff]
    %v120 = vld [vmem:[#allocation7 + $0x160] sm:$0xff]
    %v121 = vld [vmem:[#allocation7 + $0x168] sm:$0xff]
    %v122 = vld [vmem:[#allocation7 + $0x170] sm:$0xff]
    %v123 = vld [vmem:[#allocation7 + $0x178] sm:$0xff]
    %v124 = vld [vmem:[#allocation7 + $0x180] sm:$0xff]
    %v125 = vld [vmem:[#allocation7 + $0x188] sm:$0xff]
    %v126 = vld [vmem:[#allocation7 + $0x190] sm:$0xff]
    %v127 = vld [vmem:[#allocation7 + $0x198] sm:$0xff]
    %v128 = vld [vmem:[#allocation7 + $0x1a0] sm:$0xff]
    %v129 = vld [vmem:[#allocation7 + $0x1a8] sm:$0xff]
    %v130 = vld [vmem:[#allocation7 + $0x1b0] sm:$0xff]
    %v131 = vld [vmem:[#allocation7 + $0x1b8] sm:$0xff]
    %v132 = vld [vmem:[#allocation7 + $0x1c0] sm:$0xff]
    %v133 = vld [vmem:[#allocation7 + $0x1c8] sm:$0xff]
    %v134 = vld [vmem:[#allocation7 + $0x1d0] sm:$0xff]
    %v135 = vld [vmem:[#allocation7 + $0x1d8] sm:$0xff]
    %v136 = vld [vmem:[#allocation7 + $0x1e0] sm:$0xff]
    %v137 = vld [vmem:[#allocation7 + $0x1e8] sm:$0xff]
    %v138 = vld [vmem:[#allocation7 + $0x1f0] sm:$0xff]
    %v139 = vld [vmem:[#allocation7 + $0x1f8] sm:$0xff]
    %s140 = scalar_lea.vmem [#allocation7], 512
    %v141 = vld [vmem:[%s140] sm:$0xff]
    %v142 = vld [vmem:[%s140 + $0x8] sm:$0xff]
    %v143 = vld [vmem:[%s140 + $0x10] sm:$0xff]
    %v144 = vld [vmem:[%s140 + $0x18] sm:$0xff]
    %v145 = vld [vmem:[%s140 + $0x20] sm:$0xff]
    %v146 = vld [vmem:[%s140 + $0x28] sm:$0xff]
    %v147 = vld [vmem:[%s140 + $0x30] sm:$0xff]
    %v148 = vld [vmem:[%s140 + $0x38] sm:$0xff]
    %v149 = vld [vmem:[%s140 + $0x40] sm:$0xff]
    %v150 = vld [vmem:[%s140 + $0x48] sm:$0xff]
    %v151 = vld [vmem:[%s140 + $0x50] sm:$0xff]
    %v152 = vld [vmem:[%s140 + $0x58] sm:$0xff]
    %v153 = vld [vmem:[%s140 + $0x60] sm:$0xff]
    %v154 = vld [vmem:[%s140 + $0x68] sm:$0xff]
    %v155 = vld [vmem:[%s140 + $0x70] sm:$0xff]
    %v156 = vld [vmem:[%s140 + $0x78] sm:$0xff]
    %v157 = vld [vmem:[%s140 + $0x80] sm:$0xff]
    %v158 = vld [vmem:[%s140 + $0x88] sm:$0xff]
    %v159 = vld [vmem:[%s140 + $0x90] sm:$0xff]
    %v160 = vld [vmem:[%s140 + $0x98] sm:$0xff]
    %v161 = vld [vmem:[%s140 + $0xa0] sm:$0xff]
    %v162 = vld [vmem:[%s140 + $0xa8] sm:$0xff]
    %v163 = vld [vmem:[%s140 + $0xb0] sm:$0xff]
    %v164 = vld [vmem:[%s140 + $0xb8] sm:$0xff]
    %v165 = vld [vmem:[%s140 + $0xc0] sm:$0xff]
    %v166 = vld [vmem:[%s140 + $0xc8] sm:$0xff]
    %v167 = vld [vmem:[%s140 + $0xd0] sm:$0xff]
    %v168 = vld [vmem:[%s140 + $0xd8] sm:$0xff]
    %v169 = vld [vmem:[%s140 + $0xe0] sm:$0xff]
    %v170 = vld [vmem:[%s140 + $0xe8] sm:$0xff]
    %v171 = vld [vmem:[%s140 + $0xf0] sm:$0xff]
    %v172 = vld [vmem:[%s140 + $0xf8] sm:$0xff]
    %v173 = vld [vmem:[%s140 + $0x100] sm:$0xff]
    %v174 = vld [vmem:[%s140 + $0x108] sm:$0xff]
    %v175 = vld [vmem:[%s140 + $0x110] sm:$0xff]
    %v176 = vld [vmem:[%s140 + $0x118] sm:$0xff]
    %v177 = vld [vmem:[%s140 + $0x120] sm:$0xff]
    %v178 = vld [vmem:[%s140 + $0x128] sm:$0xff]
    %v179 = vld [vmem:[%s140 + $0x130] sm:$0xff]
    %v180 = vld [vmem:[%s140 + $0x138] sm:$0xff]
    %v181 = vld [vmem:[%s140 + $0x140] sm:$0xff]
    %v182 = vld [vmem:[%s140 + $0x148] sm:$0xff]
    %v183 = vld [vmem:[%s140 + $0x150] sm:$0xff]
    %v184 = vld [vmem:[%s140 + $0x158] sm:$0xff]
    %v185 = vld [vmem:[%s140 + $0x160] sm:$0xff]
    %v186 = vld [vmem:[%s140 + $0x168] sm:$0xff]
    %v187 = vld [vmem:[%s140 + $0x170] sm:$0xff]
    %v188 = vld [vmem:[%s140 + $0x178] sm:$0xff]
    %v189 = vld [vmem:[%s140 + $0x180] sm:$0xff]
    %v190 = vld [vmem:[%s140 + $0x188] sm:$0xff]
    %v191 = vld [vmem:[%s140 + $0x190] sm:$0xff]
    %v192 = vld [vmem:[%s140 + $0x198] sm:$0xff]
    %v193 = vld [vmem:[%s140 + $0x1a0] sm:$0xff]
    %v194 = vld [vmem:[%s140 + $0x1a8] sm:$0xff]
    %v195 = vld [vmem:[%s140 + $0x1b0] sm:$0xff]
    %v196 = vld [vmem:[%s140 + $0x1b8] sm:$0xff]
    %v197 = vld [vmem:[%s140 + $0x1c0] sm:$0xff]
    %v198 = vld [vmem:[%s140 + $0x1c8] sm:$0xff]
    %v199 = vld [vmem:[%s140 + $0x1d0] sm:$0xff]
    %v200 = vld [vmem:[%s140 + $0x1d8] sm:$0xff]
    %v201 = vld [vmem:[%s140 + $0x1e0] sm:$0xff]
    %v202 = vld [vmem:[%s140 + $0x1e8] sm:$0xff]
    %v203 = vld [vmem:[%s140 + $0x1f0] sm:$0xff]
    %v204 = vld [vmem:[%s140 + $0x1f8] sm:$0xff]
    %v205 = vld [vmem:[#allocation9] sm:$0xf]
    %v206 = vld [vmem:[#allocation4] sm:$0xff]
    %v207 = vld [vmem:[#allocation4 + $0x8] sm:$0xff]
    %v208 = vld [vmem:[#allocation4 + $0x10] sm:$0xff]
    %v209 = vld [vmem:[#allocation4 + $0x18] sm:$0xff]
    %v210 = vld [vmem:[#allocation4 + $0x20] sm:$0xff]
    %v211 = vld [vmem:[#allocation4 + $0x28] sm:$0xff]
    %v212 = vld [vmem:[#allocation4 + $0x30] sm:$0xff]
    %v213 = vld [vmem:[#allocation4 + $0x38] sm:$0xff]
    %v214 = vld [vmem:[#allocation4 + $0x40] sm:$0xff]
    %v215 = vld [vmem:[#allocation4 + $0x48] sm:$0xff]
    %v216 = vld [vmem:[#allocation4 + $0x50] sm:$0xff]
    %v217 = vld [vmem:[#allocation4 + $0x58] sm:$0xff]
    %v218 = vld [vmem:[#allocation4 + $0x60] sm:$0xff]
    %v219 = vld [vmem:[#allocation4 + $0x68] sm:$0xff]
    %v220 = vld [vmem:[#allocation4 + $0x70] sm:$0xff]
    %v221 = vld [vmem:[#allocation4 + $0x78] sm:$0xff]
    %v223 = vlaneseq
    %v224 = vshrl.u32 %v223, 7
    %v225 = vsub.s32 0, %v224
    %v226 = vrot.slane %v205, %v225
    %v227 = vlaneseq
    %v228 = vshrl.u32 %v227, 7
    %v229 = vsub.s32 1, %v228
    %v230 = vrot.slane %v205, %v229
    %v231 = vlaneseq
    %v232 = vshrl.u32 %v231, 7
    %v233 = vsub.s32 2, %v232
    %v234 = vrot.slane %v205, %v233
    %v235 = vlaneseq
    %v236 = vshrl.u32 %v235, 7
    %v237 = vsub.s32 3, %v236
    %v238 = vrot.slane %v205, %v237
    %243 = vmatprep.subr.mxu0 %v77
    %244 = vmatpush1.msra.mxu0 %v76
    %245 = vmatprep.subr.mxu0 %v81
    %246 = vmatpush1.msra.mxu0 %v80
    %247 = vmatprep.subr.mxu0 %v85
    %248 = vmatpush1.msra.mxu0 %v84
    %249 = vmatprep.subr.mxu0 %v89
    %250 = vmatpush1.msra.mxu0 %v88
    %251 = vmatprep.subr.mxu0 %v93
    %252 = vmatpush1.msra.mxu0 %v92
    %253 = vmatprep.subr.mxu0 %v97
    %254 = vmatpush1.msra.mxu0 %v96
    %255 = vmatprep.subr.mxu0 %v101
    %256 = vmatpush1.msra.mxu0 %v100
    %257 = vmatprep.subr.mxu0 %v105
    %258 = vmatpush1.msra.mxu0 %v104
    %259 = vmatprep.subr.mxu0 %v109
    %260 = vmatpush1.msra.mxu0 %v108
    %261 = vmatprep.subr.mxu0 %v113
    %262 = vmatpush1.msra.mxu0 %v112
    %263 = vmatprep.subr.mxu0 %v117
    %264 = vmatpush1.msra.mxu0 %v116
    %265 = vmatprep.subr.mxu0 %v121
    %266 = vmatpush1.msra.mxu0 %v120
    %267 = vmatprep.subr.mxu0 %v125
    %268 = vmatpush1.msra.mxu0 %v124
    %269 = vmatprep.subr.mxu0 %v129
    %270 = vmatpush1.msra.mxu0 %v128
    %271 = vmatprep.subr.mxu0 %v133
    %272 = vmatpush1.msra.mxu0 %v132
    %273 = vmatprep.subr.mxu0 %v137
    %274 = vmatpush1.msra.mxu0 %v136
    %275 = vmatprep.subr.mxu0 0.0
    %276 = vmatpush1.msra.mxu0 0.0
    %277 = vmatprep.subr.mxu0 0.0
    %278 = vmatpush1.msra.mxu0 0.0
    %279 = vmatprep.subr.mxu0 0.0
    %280 = vmatpush1.msra.mxu0 0.0
    %281 = vmatprep.subr.mxu0 0.0
    %282 = vmatpush1.msra.mxu0 0.0
    %283 = vmatprep.subr.mxu0 0.0
    %284 = vmatpush1.msra.mxu0 0.0
    %285 = vmatprep.subr.mxu0 0.0
    %286 = vmatpush1.msra.mxu0 0.0
    %287 = vmatprep.subr.mxu0 0.0
    %288 = vmatpush1.msra.mxu0 0.0
    %289 = vmatprep.subr.mxu0 0.0
    %290 = vmatpush1.msra.mxu0 0.0
    %291 = vmatprep.subr.mxu0 0.0
    %292 = vmatpush1.msra.mxu0 0.0
    %293 = vmatprep.subr.mxu0 0.0
    %294 = vmatpush1.msra.mxu0 0.0
    %295 = vmatprep.subr.mxu0 0.0
    %296 = vmatpush1.msra.mxu0 0.0
    %297 = vmatprep.subr.mxu0 0.0
    %298 = vmatpush1.msra.mxu0 0.0
    %299 = vmatprep.subr.mxu0 0.0
    %300 = vmatpush1.msra.mxu0 0.0
    %301 = vmatprep.subr.mxu0 0.0
    %302 = vmatpush1.msra.mxu0 0.0
    %303 = vmatprep.subr.mxu0 0.0
    %304 = vmatpush1.msra.mxu0 0.0
    %305 = vmatprep.subr.mxu0 0.0
    %306 = vmatpush1.msra.mxu0 0.0
    %307 = vmatprep.mubr.f32.mxu0 0.0
    %308 = vmatmul.mubr.f32.gmra.mrb[0].mxu0 %v206
    %v309 = vpop.f32.mrb[0].mxu0
    %v310 = vadd.f32 %v226, %v309
    %v311 = vpop.f32.mrb[0].mxu0
    %v312 = vadd.f32 %v230, %v311
    %313 = vmatprep.mubr.f32.mxu0 0.0
    %314 = vmatmul.mubr.f32.gmra.mrb[0].mxu0 %v207
    %v315 = vpop.f32.mrb[0].mxu0
    %v316 = vadd.f32 %v226, %v315
    %v317 = vpop.f32.mrb[0].mxu0
    %v318 = vadd.f32 %v230, %v317
    %319 = vmatprep.mubr.f32.mxu0 0.0
    %320 = vmatmul.mubr.f32.gmra.mrb[0].mxu0 %v208
    %v321 = vpop.f32.mrb[0].mxu0
    %v322 = vadd.f32 %v226, %v321
    %v323 = vpop.f32.mrb[0].mxu0
    %v324 = vadd.f32 %v230, %v323
    %325 = vmatprep.mubr.f32.mxu0 0.0
    %326 = vmatmul.mubr.f32.gmra.mrb[0].mxu0 %v209
    %v327 = vpop.f32.mrb[0].mxu0
    %v328 = vadd.f32 %v226, %v327
    %v329 = vpop.f32.mrb[0].mxu0
    %v330 = vadd.f32 %v230, %v329
    %331 = vmatprep.mubr.f32.mxu0 0.0
    %332 = vmatmul.mubr.f32.gmra.mrb[0].mxu0 %v210
    %v333 = vpop.f32.mrb[0].mxu0
    %v334 = vadd.f32 %v226, %v333
    %v335 = vpop.f32.mrb[0].mxu0
    %v336 = vadd.f32 %v230, %v335
    %337 = vmatprep.mubr.f32.mxu0 0.0
    %338 = vmatmul.mubr.f32.gmra.mrb[0].mxu0 %v211
    %v339 = vpop.f32.mrb[0].mxu0
    %v340 = vadd.f32 %v226, %v339
    %v341 = vpop.f32.mrb[0].mxu0
    %v342 = vadd.f32 %v230, %v341
    %343 = vmatprep.mubr.f32.mxu0 0.0
    %344 = vmatmul.mubr.f32.gmra.mrb[0].mxu0 %v212
    %v345 = vpop.f32.mrb[0].mxu0
    %v346 = vadd.f32 %v226, %v345
    %v347 = vpop.f32.mrb[0].mxu0
    %v348 = vadd.f32 %v230, %v347
    %349 = vmatprep.mubr.f32.mxu0 0.0
    %350 = vmatmul.mubr.f32.gmra.mrb[0].mxu0 %v213
    %v351 = vpop.f32.mrb[0].mxu0
    %v352 = vadd.f32 %v226, %v351
    %v353 = vpop.f32.mrb[0].mxu0
    %v354 = vadd.f32 %v230, %v353
    %355 = vmatprep.mubr.f32.mxu0 0.0
    %356 = vmatmul.mubr.f32.gmra.mrb[0].mxu0 %v214
    %v357 = vpop.f32.mrb[0].mxu0
    %v358 = vadd.f32 %v226, %v357
    %v359 = vpop.f32.mrb[0].mxu0
    %v360 = vadd.f32 %v230, %v359
    %361 = vmatprep.mubr.f32.mxu0 0.0
    %362 = vmatmul.mubr.f32.gmra.mrb[0].mxu0 %v215
    %v363 = vpop.f32.mrb[0].mxu0
    %v364 = vadd.f32 %v226, %v363
    %v365 = vpop.f32.mrb[0].mxu0
    %v366 = vadd.f32 %v230, %v365
    %367 = vmatprep.mubr.f32.mxu0 0.0
    %368 = vmatmul.mubr.f32.gmra.mrb[0].mxu0 %v216
    %v369 = vpop.f32.mrb[0].mxu0
    %v370 = vadd.f32 %v226, %v369
    %v371 = vpop.f32.mrb[0].mxu0
    %v372 = vadd.f32 %v230, %v371
    %373 = vmatprep.mubr.f32.mxu0 0.0
    %374 = vmatmul.mubr.f32.gmra.mrb[0].mxu0 %v217
    %v375 = vpop.f32.mrb[0].mxu0
    %v376 = vadd.f32 %v226, %v375
    %v377 = vpop.f32.mrb[0].mxu0
    %v378 = vadd.f32 %v230, %v377
    %379 = vmatprep.mubr.f32.mxu0 0.0
    %380 = vmatmul.mubr.f32.gmra.mrb[0].mxu0 %v218
    %v381 = vpop.f32.mrb[0].mxu0
    %v382 = vadd.f32 %v226, %v381
    %v383 = vpop.f32.mrb[0].mxu0
    %v384 = vadd.f32 %v230, %v383
    %385 = vmatprep.mubr.f32.mxu0 0.0
    %386 = vmatmul.mubr.f32.gmra.mrb[0].mxu0 %v219
    %v387 = vpop.f32.mrb[0].mxu0
    %v388 = vadd.f32 %v226, %v387
    %v389 = vpop.f32.mrb[0].mxu0
    %v390 = vadd.f32 %v230, %v389
    %391 = vmatprep.mubr.f32.mxu0 0.0
    %392 = vmatmul.mubr.f32.gmra.mrb[0].mxu0 %v220
    %v393 = vpop.f32.mrb[0].mxu0
    %v394 = vadd.f32 %v226, %v393
    %v395 = vpop.f32.mrb[0].mxu0
    %v396 = vadd.f32 %v230, %v395
    %397 = vmatprep.mubr.f32.mxu0 0.0
    %398 = vmatmul.mubr.f32.gmra.mrb[0].mxu0 %v221
    %v399 = vpop.f32.mrb[0].mxu0
    %v400 = vadd.f32 %v226, %v399
    %v401 = vpop.f32.mrb[0].mxu0
    %v402 = vadd.f32 %v230, %v401
    %403 = vdwg.mxu0
    %404 = vmatprep.subr.mxu0 %v79
    %405 = vmatpush1.msra.mxu0 %v78
    %406 = vmatprep.subr.mxu0 %v83
    %407 = vmatpush1.msra.mxu0 %v82
    %408 = vmatprep.subr.mxu0 %v87
    %409 = vmatpush1.msra.mxu0 %v86
    %410 = vmatprep.subr.mxu0 %v91
    %411 = vmatpush1.msra.mxu0 %v90
    %412 = vmatprep.subr.mxu0 %v95
    %413 = vmatpush1.msra.mxu0 %v94
    %414 = vmatprep.subr.mxu0 %v99
    %415 = vmatpush1.msra.mxu0 %v98
    %416 = vmatprep.subr.mxu0 %v103
    %417 = vmatpush1.msra.mxu0 %v102
    %418 = vmatprep.subr.mxu0 %v107
    %419 = vmatpush1.msra.mxu0 %v106
    %420 = vmatprep.subr.mxu0 %v111
    %421 = vmatpush1.msra.mxu0 %v110
    %422 = vmatprep.subr.mxu0 %v115
    %423 = vmatpush1.msra.mxu0 %v114
    %424 = vmatprep.subr.mxu0 %v119
    %425 = vmatpush1.msra.mxu0 %v118
    %426 = vmatprep.subr.mxu0 %v123
    %427 = vmatpush1.msra.mxu0 %v122
    %428 = vmatprep.subr.mxu0 %v127
    %429 = vmatpush1.msra.mxu0 %v126
    %430 = vmatprep.subr.mxu0 %v131
    %431 = vmatpush1.msra.mxu0 %v130
    %432 = vmatprep.subr.mxu0 %v135
    %433 = vmatpush1.msra.mxu0 %v134
    %434 = vmatprep.subr.mxu0 %v139
    %435 = vmatpush1.msra.mxu0 %v138
    %436 = vmatprep.subr.mxu0 0.0
    %437 = vmatpush1.msra.mxu0 0.0
    %438 = vmatprep.subr.mxu0 0.0
    %439 = vmatpush1.msra.mxu0 0.0
    %440 = vmatprep.subr.mxu0 0.0
    %441 = vmatpush1.msra.mxu0 0.0
    %442 = vmatprep.subr.mxu0 0.0
    %443 = vmatpush1.msra.mxu0 0.0
    %444 = vmatprep.subr.mxu0 0.0
    %445 = vmatpush1.msra.mxu0 0.0
    %446 = vmatprep.subr.mxu0 0.0
    %447 = vmatpush1.msra.mxu0 0.0
    %448 = vmatprep.subr.mxu0 0.0
    %449 = vmatpush1.msra.mxu0 0.0
    %450 = vmatprep.subr.mxu0 0.0
    %451 = vmatpush1.msra.mxu0 0.0
    %452 = vmatprep.subr.mxu0 0.0
    %453 = vmatpush1.msra.mxu0 0.0
    %454 = vmatprep.subr.mxu0 0.0
    %455 = vmatpush1.msra.mxu0 0.0
    %456 = vmatprep.subr.mxu0 0.0
    %457 = vmatpush1.msra.mxu0 0.0
    %458 = vmatprep.subr.mxu0 0.0
    %459 = vmatpush1.msra.mxu0 0.0
    %460 = vmatprep.subr.mxu0 0.0
    %461 = vmatpush1.msra.mxu0 0.0
    %462 = vmatprep.subr.mxu0 0.0
    %463 = vmatpush1.msra.mxu0 0.0
    %464 = vmatprep.subr.mxu0 0.0
    %465 = vmatpush1.msra.mxu0 0.0
    %466 = vmatprep.subr.mxu0 0.0
    %467 = vmatpush1.msra.mxu0 0.0
    %468 = vmatprep.mubr.f32.mxu0 0.0
    %469 = vmatmul.mubr.f32.gmra.mrb[0].mxu0 %v206
    %v470 = vpop.f32.mrb[0].mxu0
    %v471 = vadd.f32 %v234, %v470
    %v472 = vpop.f32.mrb[0].mxu0
    %v473 = vadd.f32 %v238, %v472
    %474 = vmatprep.mubr.f32.mxu0 0.0
    %475 = vmatmul.mubr.f32.gmra.mrb[0].mxu0 %v207
    %v476 = vpop.f32.mrb[0].mxu0
    %v477 = vadd.f32 %v234, %v476
    %v478 = vpop.f32.mrb[0].mxu0
    %v479 = vadd.f32 %v238, %v478
    %480 = vmatprep.mubr.f32.mxu0 0.0
    %481 = vmatmul.mubr.f32.gmra.mrb[0].mxu0 %v208
    %v482 = vpop.f32.mrb[0].mxu0
    %v483 = vadd.f32 %v234, %v482
    %v484 = vpop.f32.mrb[0].mxu0
    %v485 = vadd.f32 %v238, %v484
    %486 = vmatprep.mubr.f32.mxu0 0.0
    %487 = vmatmul.mubr.f32.gmra.mrb[0].mxu0 %v209
    %v488 = vpop.f32.mrb[0].mxu0
    %v489 = vadd.f32 %v234, %v488
    %v490 = vpop.f32.mrb[0].mxu0
    %v491 = vadd.f32 %v238, %v490
    %492 = vmatprep.mubr.f32.mxu0 0.0
    %493 = vmatmul.mubr.f32.gmra.mrb[0].mxu0 %v210
    %v494 = vpop.f32.mrb[0].mxu0
    %v495 = vadd.f32 %v234, %v494
    %v496 = vpop.f32.mrb[0].mxu0
    %v497 = vadd.f32 %v238, %v496
    %498 = vmatprep.mubr.f32.mxu0 0.0
    %499 = vmatmul.mubr.f32.gmra.mrb[0].mxu0 %v211
    %v500 = vpop.f32.mrb[0].mxu0
    %v501 = vadd.f32 %v234, %v500
    %v502 = vpop.f32.mrb[0].mxu0
    %v503 = vadd.f32 %v238, %v502
    %504 = vmatprep.mubr.f32.mxu0 0.0
    %505 = vmatmul.mubr.f32.gmra.mrb[0].mxu0 %v212
    %v506 = vpop.f32.mrb[0].mxu0
    %v507 = vadd.f32 %v234, %v506
    %v508 = vpop.f32.mrb[0].mxu0
    %v509 = vadd.f32 %v238, %v508
    %510 = vmatprep.mubr.f32.mxu0 0.0
    %511 = vmatmul.mubr.f32.gmra.mrb[0].mxu0 %v213
    %v512 = vpop.f32.mrb[0].mxu0
    %v513 = vadd.f32 %v234, %v512
    %v514 = vpop.f32.mrb[0].mxu0
    %v515 = vadd.f32 %v238, %v514
    %516 = vmatprep.mubr.f32.mxu0 0.0
    %517 = vmatmul.mubr.f32.gmra.mrb[0].mxu0 %v214
    %v518 = vpop.f32.mrb[0].mxu0
    %v519 = vadd.f32 %v234, %v518
    %v520 = vpop.f32.mrb[0].mxu0
    %v521 = vadd.f32 %v238, %v520
    %522 = vmatprep.mubr.f32.mxu0 0.0
    %523 = vmatmul.mubr.f32.gmra.mrb[0].mxu0 %v215
    %v524 = vpop.f32.mrb[0].mxu0
    %v525 = vadd.f32 %v234, %v524
    %v526 = vpop.f32.mrb[0].mxu0
    %v527 = vadd.f32 %v238, %v526
    %528 = vmatprep.mubr.f32.mxu0 0.0
    %529 = vmatmul.mubr.f32.gmra.mrb[0].mxu0 %v216
    %v530 = vpop.f32.mrb[0].mxu0
    %v531 = vadd.f32 %v234, %v530
    %v532 = vpop.f32.mrb[0].mxu0
    %v533 = vadd.f32 %v238, %v532
    %534 = vmatprep.mubr.f32.mxu0 0.0
    %535 = vmatmul.mubr.f32.gmra.mrb[0].mxu0 %v217
    %v536 = vpop.f32.mrb[0].mxu0
    %v537 = vadd.f32 %v234, %v536
    %v538 = vpop.f32.mrb[0].mxu0
    %v539 = vadd.f32 %v238, %v538
    %540 = vmatprep.mubr.f32.mxu0 0.0
    %541 = vmatmul.mubr.f32.gmra.mrb[0].mxu0 %v218
    %v542 = vpop.f32.mrb[0].mxu0
    %v543 = vadd.f32 %v234, %v542
    %v544 = vpop.f32.mrb[0].mxu0
    %v545 = vadd.f32 %v238, %v544
    %546 = vmatprep.mubr.f32.mxu0 0.0
    %547 = vmatmul.mubr.f32.gmra.mrb[0].mxu0 %v219
    %v548 = vpop.f32.mrb[0].mxu0
    %v549 = vadd.f32 %v234, %v548
    %v550 = vpop.f32.mrb[0].mxu0
    %v551 = vadd.f32 %v238, %v550
    %552 = vmatprep.mubr.f32.mxu0 0.0
    %553 = vmatmul.mubr.f32.gmra.mrb[0].mxu0 %v220
    %v554 = vpop.f32.mrb[0].mxu0
    %v555 = vadd.f32 %v234, %v554
    %v556 = vpop.f32.mrb[0].mxu0
    %v557 = vadd.f32 %v238, %v556
    %558 = vmatprep.mubr.f32.mxu0 0.0
    %559 = vmatmul.mubr.f32.gmra.mrb[0].mxu0 %v221
    %v560 = vpop.f32.mrb[0].mxu0
    %v561 = vadd.f32 %v234, %v560
    %v562 = vpop.f32.mrb[0].mxu0
    %v563 = vadd.f32 %v238, %v562
    %564 = vdwg.mxu0
    %565 = vst [vmem:[#allocation2] sm:$0xff] %v310
    %566 = vst [vmem:[#allocation2 + $0x8] sm:$0xff] %v312
    %567 = vst [vmem:[#allocation2 + $0x10] sm:$0xff] %v471
    %568 = vst [vmem:[#allocation2 + $0x18] sm:$0xff] %v473
    %569 = vst [vmem:[#allocation2 + $0x20] sm:$0xff] %v316
    %570 = vst [vmem:[#allocation2 + $0x28] sm:$0xff] %v318
    %571 = vst [vmem:[#allocation2 + $0x30] sm:$0xff] %v477
    %572 = vst [vmem:[#allocation2 + $0x38] sm:$0xff] %v479
    %573 = vst [vmem:[#allocation2 + $0x40] sm:$0xff] %v322
    %574 = vst [vmem:[#allocation2 + $0x48] sm:$0xff] %v324
    %575 = vst [vmem:[#allocation2 + $0x50] sm:$0xff] %v483
    %576 = vst [vmem:[#allocation2 + $0x58] sm:$0xff] %v485
    %577 = vst [vmem:[#allocation2 + $0x60] sm:$0xff] %v328
    %578 = vst [vmem:[#allocation2 + $0x68] sm:$0xff] %v330
    %579 = vst [vmem:[#allocation2 + $0x70] sm:$0xff] %v489
    %580 = vst [vmem:[#allocation2 + $0x78] sm:$0xff] %v491
    %581 = vst [vmem:[#allocation2 + $0x80] sm:$0xff] %v334
    %582 = vst [vmem:[#allocation2 + $0x88] sm:$0xff] %v336
    %583 = vst [vmem:[#allocation2 + $0x90] sm:$0xff] %v495
    %584 = vst [vmem:[#allocation2 + $0x98] sm:$0xff] %v497
    %585 = vst [vmem:[#allocation2 + $0xa0] sm:$0xff] %v340
    %586 = vst [vmem:[#allocation2 + $0xa8] sm:$0xff] %v342
    %587 = vst [vmem:[#allocation2 + $0xb0] sm:$0xff] %v501
    %588 = vst [vmem:[#allocation2 + $0xb8] sm:$0xff] %v503
    %589 = vst [vmem:[#allocation2 + $0xc0] sm:$0xff] %v346
    %590 = vst [vmem:[#allocation2 + $0xc8] sm:$0xff] %v348
    %591 = vst [vmem:[#allocation2 + $0xd0] sm:$0xff] %v507
    %592 = vst [vmem:[#allocation2 + $0xd8] sm:$0xff] %v509
    %593 = vst [vmem:[#allocation2 + $0xe0] sm:$0xff] %v352
    %594 = vst [vmem:[#allocation2 + $0xe8] sm:$0xff] %v354
    %595 = vst [vmem:[#allocation2 + $0xf0] sm:$0xff] %v513
    %596 = vst [vmem:[#allocation2 + $0xf8] sm:$0xff] %v515
    %597 = vst [vmem:[#allocation2 + $0x100] sm:$0xff] %v358
    %598 = vst [vmem:[#allocation2 + $0x108] sm:$0xff] %v360
    %599 = vst [vmem:[#allocation2 + $0x110] sm:$0xff] %v519
    %600 = vst [vmem:[#allocation2 + $0x118] sm:$0xff] %v521
    %601 = vst [vmem:[#allocation2 + $0x120] sm:$0xff] %v364
    %602 = vst [vmem:[#allocation2 + $0x128] sm:$0xff] %v366
    %603 = vst [vmem:[#allocation2 + $0x130] sm:$0xff] %v525
    %604 = vst [vmem:[#allocation2 + $0x138] sm:$0xff] %v527
    %605 = vst [vmem:[#allocation2 + $0x140] sm:$0xff] %v370
    %606 = vst [vmem:[#allocation2 + $0x148] sm:$0xff] %v372
    %607 = vst [vmem:[#allocation2 + $0x150] sm:$0xff] %v531
    %608 = vst [vmem:[#allocation2 + $0x158] sm:$0xff] %v533
    %609 = vst [vmem:[#allocation2 + $0x160] sm:$0xff] %v376
    %610 = vst [vmem:[#allocation2 + $0x168] sm:$0xff] %v378
    %611 = vst [vmem:[#allocation2 + $0x170] sm:$0xff] %v537
    %612 = vst [vmem:[#allocation2 + $0x178] sm:$0xff] %v539
    %613 = vst [vmem:[#allocation2 + $0x180] sm:$0xff] %v382
    %614 = vst [vmem:[#allocation2 + $0x188] sm:$0xff] %v384
    %615 = vst [vmem:[#allocation2 + $0x190] sm:$0xff] %v543
    %616 = vst [vmem:[#allocation2 + $0x198] sm:$0xff] %v545
    %617 = vst [vmem:[#allocation2 + $0x1a0] sm:$0xff] %v388
    %618 = vst [vmem:[#allocation2 + $0x1a8] sm:$0xff] %v390
    %619 = vst [vmem:[#allocation2 + $0x1b0] sm:$0xff] %v549
    %620 = vst [vmem:[#allocation2 + $0x1b8] sm:$0xff] %v551
    %621 = vst [vmem:[#allocation2 + $0x1c0] sm:$0xff] %v394
    %622 = vst [vmem:[#allocation2 + $0x1c8] sm:$0xff] %v396
    %623 = vst [vmem:[#allocation2 + $0x1d0] sm:$0xff] %v555
    %624 = vst [vmem:[#allocation2 + $0x1d8] sm:$0xff] %v557
    %625 = vst [vmem:[#allocation2 + $0x1e0] sm:$0xff] %v400
    %626 = vst [vmem:[#allocation2 + $0x1e8] sm:$0xff] %v402
    %627 = vst [vmem:[#allocation2 + $0x1f0] sm:$0xff] %v561
    %628 = vst [vmem:[#allocation2 + $0x1f8] sm:$0xff] %v563
    %v629 = vld [vmem:[#allocation2] sm:$0xff]
    %v630 = vld [vmem:[#allocation2 + $0x8] sm:$0xff]
    %v631 = vld [vmem:[#allocation2 + $0x10] sm:$0xff]
    %v632 = vld [vmem:[#allocation2 + $0x18] sm:$0xff]
    %633 = vmatprep.subr.mxu0 %v142
    %634 = vmatpush1.msra.mxu0 %v141
    %635 = vmatprep.subr.mxu0 %v146
    %636 = vmatpush1.msra.mxu0 %v145
    %637 = vmatprep.subr.mxu0 %v150
    %638 = vmatpush1.msra.mxu0 %v149
    %639 = vmatprep.subr.mxu0 %v154
    %640 = vmatpush1.msra.mxu0 %v153
    %641 = vmatprep.subr.mxu0 %v158
    %642 = vmatpush1.msra.mxu0 %v157
    %643 = vmatprep.subr.mxu0 %v162
    %644 = vmatpush1.msra.mxu0 %v161
    %645 = vmatprep.subr.mxu0 %v166
    %646 = vmatpush1.msra.mxu0 %v165
    %647 = vmatprep.subr.mxu0 %v170
    %648 = vmatpush1.msra.mxu0 %v169
    %649 = vmatprep.subr.mxu0 %v174
    %650 = vmatpush1.msra.mxu0 %v173
    %651 = vmatprep.subr.mxu0 %v178
    %652 = vmatpush1.msra.mxu0 %v177
    %653 = vmatprep.subr.mxu0 %v182
    %654 = vmatpush1.msra.mxu0 %v181
    %655 = vmatprep.subr.mxu0 %v186
    %656 = vmatpush1.msra.mxu0 %v185
    %657 = vmatprep.subr.mxu0 %v190
    %658 = vmatpush1.msra.mxu0 %v189
    %659 = vmatprep.subr.mxu0 %v194
    %660 = vmatpush1.msra.mxu0 %v193
    %661 = vmatprep.subr.mxu0 %v198
    %662 = vmatpush1.msra.mxu0 %v197
    %663 = vmatprep.subr.mxu0 %v202
    %664 = vmatpush1.msra.mxu0 %v201
    %665 = vmatprep.subr.mxu0 0.0
    %666 = vmatpush1.msra.mxu0 0.0
    %667 = vmatprep.subr.mxu0 0.0
    %668 = vmatpush1.msra.mxu0 0.0
    %669 = vmatprep.subr.mxu0 0.0
    %670 = vmatpush1.msra.mxu0 0.0
    %671 = vmatprep.subr.mxu0 0.0
    %672 = vmatpush1.msra.mxu0 0.0
    %673 = vmatprep.subr.mxu0 0.0
    %674 = vmatpush1.msra.mxu0 0.0
    %675 = vmatprep.subr.mxu0 0.0
    %676 = vmatpush1.msra.mxu0 0.0
    %677 = vmatprep.subr.mxu0 0.0
    %678 = vmatpush1.msra.mxu0 0.0
    %679 = vmatprep.subr.mxu0 0.0
    %680 = vmatpush1.msra.mxu0 0.0
    %681 = vmatprep.subr.mxu0 0.0
    %682 = vmatpush1.msra.mxu0 0.0
    %683 = vmatprep.subr.mxu0 0.0
    %684 = vmatpush1.msra.mxu0 0.0
    %685 = vmatprep.subr.mxu0 0.0
    %686 = vmatpush1.msra.mxu0 0.0
    %687 = vmatprep.subr.mxu0 0.0
    %688 = vmatpush1.msra.mxu0 0.0
    %689 = vmatprep.subr.mxu0 0.0
    %690 = vmatpush1.msra.mxu0 0.0
    %691 = vmatprep.subr.mxu0 0.0
    %692 = vmatpush1.msra.mxu0 0.0
    %693 = vmatprep.subr.mxu0 0.0
    %694 = vmatpush1.msra.mxu0 0.0
    %695 = vmatprep.subr.mxu0 0.0
    %696 = vmatpush1.msra.mxu0 0.0
    %697 = vmatprep.mubr.f32.mxu0 0.0
    %698 = vmatmul.mubr.f32.gmra.mrb[0].mxu0 0.0
    %v699 = vpop.f32.mrb[0].mxu0
    %v700 = vadd.f32 0.0, %v699
    %v701 = vpop.f32.mrb[0].mxu0
    %v702 = vadd.f32 0.0, %v701
    %703 = vdwg.mxu0
    %704 = vmatprep.subr.mxu0 %v144
    %705 = vmatpush1.msra.mxu0 %v143
    %706 = vmatprep.subr.mxu0 %v148
    %707 = vmatpush1.msra.mxu0 %v147
    %708 = vmatprep.subr.mxu0 %v152
    %709 = vmatpush1.msra.mxu0 %v151
    %710 = vmatprep.subr.mxu0 %v156
    %711 = vmatpush1.msra.mxu0 %v155
    %712 = vmatprep.subr.mxu0 %v160
    %713 = vmatpush1.msra.mxu0 %v159
    %714 = vmatprep.subr.mxu0 %v164
    %715 = vmatpush1.msra.mxu0 %v163
    %716 = vmatprep.subr.mxu0 %v168
    %717 = vmatpush1.msra.mxu0 %v167
    %718 = vmatprep.subr.mxu0 %v172
    %719 = vmatpush1.msra.mxu0 %v171
    %720 = vmatprep.subr.mxu0 %v176
    %721 = vmatpush1.msra.mxu0 %v175
    %722 = vmatprep.subr.mxu0 %v180
    %723 = vmatpush1.msra.mxu0 %v179
    %724 = vmatprep.subr.mxu0 %v184
    %725 = vmatpush1.msra.mxu0 %v183
    %726 = vmatprep.subr.mxu0 %v188
    %727 = vmatpush1.msra.mxu0 %v187
    %728 = vmatprep.subr.mxu0 %v192
    %729 = vmatpush1.msra.mxu0 %v191
    %730 = vmatprep.subr.mxu0 %v196
    %731 = vmatpush1.msra.mxu0 %v195
    %732 = vmatprep.subr.mxu0 %v200
    %733 = vmatpush1.msra.mxu0 %v199
    %734 = vmatprep.subr.mxu0 %v204
    %735 = vmatpush1.msra.mxu0 %v203
    %736 = vmatprep.subr.mxu0 0.0
    %737 = vmatpush1.msra.mxu0 0.0
    %738 = vmatprep.subr.mxu0 0.0
    %739 = vmatpush1.msra.mxu0 0.0
    %740 = vmatprep.subr.mxu0 0.0
    %741 = vmatpush1.msra.mxu0 0.0
    %742 = vmatprep.subr.mxu0 0.0
    %743 = vmatpush1.msra.mxu0 0.0
    %744 = vmatprep.subr.mxu0 0.0
    %745 = vmatpush1.msra.mxu0 0.0
    %746 = vmatprep.subr.mxu0 0.0
    %747 = vmatpush1.msra.mxu0 0.0
    %748 = vmatprep.subr.mxu0 0.0
    %749 = vmatpush1.msra.mxu0 0.0
    %750 = vmatprep.subr.mxu0 0.0
    %751 = vmatpush1.msra.mxu0 0.0
    %752 = vmatprep.subr.mxu0 0.0
    %753 = vmatpush1.msra.mxu0 0.0
    %754 = vmatprep.subr.mxu0 0.0
    %755 = vmatpush1.msra.mxu0 0.0
    %756 = vmatprep.subr.mxu0 0.0
    %757 = vmatpush1.msra.mxu0 0.0
    %758 = vmatprep.subr.mxu0 0.0
    %759 = vmatpush1.msra.mxu0 0.0
    %760 = vmatprep.subr.mxu0 0.0
    %761 = vmatpush1.msra.mxu0 0.0
    %762 = vmatprep.subr.mxu0 0.0
    %763 = vmatpush1.msra.mxu0 0.0
    %764 = vmatprep.subr.mxu0 0.0
    %765 = vmatpush1.msra.mxu0 0.0
    %766 = vmatprep.subr.mxu0 0.0
    %767 = vmatpush1.msra.mxu0 0.0
    %768 = vmatprep.mubr.f32.mxu0 0.0
    %769 = vmatmul.mubr.f32.gmra.mrb[0].mxu0 0.0
    %v770 = vpop.f32.mrb[0].mxu0
    %v771 = vadd.f32 0.0, %v770
    %v772 = vpop.f32.mrb[0].mxu0
    %v773 = vadd.f32 0.0, %v772
    %774 = vdwg.mxu0
    %v775 = vadd.f32 %v629, %v700
    %v776 = vadd.f32 %v630, %v702
    %v777 = vadd.f32 %v631, %v771
    %v778 = vadd.f32 %v632, %v773
    %v779 = vxor.u32 %v775, 2147483648
    %v780 = vmul.f32 %v779, 1.442695
    %v781 = vpow.pop %v780
    %v782 = vadd.f32 %v781, 1.0
    %v783 = vrcp.pop %v782
    %v784 = vmul.f32 1.0, %v783
    %v785 = vxor.u32 %v776, 2147483648
    %v786 = vmul.f32 %v785, 1.442695
    %v787 = vpow.pop %v786
    %v788 = vadd.f32 %v787, 1.0
    %v789 = vrcp.pop %v788
    %v790 = vmul.f32 1.0, %v789
    %v791 = vtanh.pop %v777
    %v792 = vxor.u32 %v778, 2147483648
    %v793 = vmul.f32 %v792, 1.442695
    %v794 = vpow.pop %v793
    %v795 = vadd.f32 %v794, 1.0
    %v796 = vrcp.pop %v795
    %v797 = vmul.f32 1.0, %v796
    %v798 = vmul.f32 %v790, 0.0
    %v799 = vmul.f32 %v784, %v791
    %v800 = vadd.f32 %v798, %v799
    %v801 = vtanh.pop %v800
    %v802 = vmul.f32 %v797, %v801
    %803 = vst [vmem:[#allocation3] sm:$0xff] %v802
    %s804 = scalar_lea.vmem [#allocation2], 32
    %v805 = vld [vmem:[%s804] sm:$0xff]
    %v806 = vld [vmem:[%s804 + $0x8] sm:$0xff]
    %v807 = vld [vmem:[%s804 + $0x10] sm:$0xff]
    %v808 = vld [vmem:[%s804 + $0x18] sm:$0xff]
    %809 = vmatprep.subr.mxu0 %v142
    %810 = vmatpush1.msra.mxu0 %v141
    %811 = vmatprep.subr.mxu0 %v146
    %812 = vmatpush1.msra.mxu0 %v145
    %813 = vmatprep.subr.mxu0 %v150
    %814 = vmatpush1.msra.mxu0 %v149
    %815 = vmatprep.subr.mxu0 %v154
    %816 = vmatpush1.msra.mxu0 %v153
    %817 = vmatprep.subr.mxu0 %v158
    %818 = vmatpush1.msra.mxu0 %v157
    %819 = vmatprep.subr.mxu0 %v162
    %820 = vmatpush1.msra.mxu0 %v161
    %821 = vmatprep.subr.mxu0 %v166
    %822 = vmatpush1.msra.mxu0 %v165
    %823 = vmatprep.subr.mxu0 %v170
    %824 = vmatpush1.msra.mxu0 %v169
    %825 = vmatprep.subr.mxu0 %v174
    %826 = vmatpush1.msra.mxu0 %v173
    %827 = vmatprep.subr.mxu0 %v178
    %828 = vmatpush1.msra.mxu0 %v177
    %829 = vmatprep.subr.mxu0 %v182
    %830 = vmatpush1.msra.mxu0 %v181
    %831 = vmatprep.subr.mxu0 %v186
    %832 = vmatpush1.msra.mxu0 %v185
    %833 = vmatprep.subr.mxu0 %v190
    %834 = vmatpush1.msra.mxu0 %v189
    %835 = vmatprep.subr.mxu0 %v194
    %836 = vmatpush1.msra.mxu0 %v193
    %837 = vmatprep.subr.mxu0 %v198
    %838 = vmatpush1.msra.mxu0 %v197
    %839 = vmatprep.subr.mxu0 %v202
    %840 = vmatpush1.msra.mxu0 %v201
    %841 = vmatprep.subr.mxu0 0.0
    %842 = vmatpush1.msra.mxu0 0.0
    %843 = vmatprep.subr.mxu0 0.0
    %844 = vmatpush1.msra.mxu0 0.0
    %845 = vmatprep.subr.mxu0 0.0
    %846 = vmatpush1.msra.mxu0 0.0
    %847 = vmatprep.subr.mxu0 0.0
    %848 = vmatpush1.msra.mxu0 0.0
    %849 = vmatprep.subr.mxu0 0.0
    %850 = vmatpush1.msra.mxu0 0.0
    %851 = vmatprep.subr.mxu0 0.0
    %852 = vmatpush1.msra.mxu0 0.0
    %853 = vmatprep.subr.mxu0 0.0
    %854 = vmatpush1.msra.mxu0 0.0
    %855 = vmatprep.subr.mxu0 0.0
    %856 = vmatpush1.msra.mxu0 0.0
    %857 = vmatprep.subr.mxu0 0.0
    %858 = vmatpush1.msra.mxu0 0.0
    %859 = vmatprep.subr.mxu0 0.0
    %860 = vmatpush1.msra.mxu0 0.0
    %861 = vmatprep.subr.mxu0 0.0
    %862 = vmatpush1.msra.mxu0 0.0
    %863 = vmatprep.subr.mxu0 0.0
    %864 = vmatpush1.msra.mxu0 0.0
    %865 = vmatprep.subr.mxu0 0.0
    %866 = vmatpush1.msra.mxu0 0.0
    %867 = vmatprep.subr.mxu0 0.0
    %868 = vmatpush1.msra.mxu0 0.0
    %869 = vmatprep.subr.mxu0 0.0
    %870 = vmatpush1.msra.mxu0 0.0
    %871 = vmatprep.subr.mxu0 0.0
    %872 = vmatpush1.msra.mxu0 0.0
    %873 = vmatprep.mubr.f32.mxu0 0.0
    %874 = vmatmul.mubr.f32.gmra.mrb[0].mxu0 %v802
    %v875 = vpop.f32.mrb[0].mxu0
    %v876 = vadd.f32 0.0, %v875
    %v877 = vpop.f32.mrb[0].mxu0
    %v878 = vadd.f32 0.0, %v877
    %879 = vdwg.mxu0
    %880 = vmatprep.subr.mxu0 %v144
    %881 = vmatpush1.msra.mxu0 %v143
    %882 = vmatprep.subr.mxu0 %v148
    %883 = vmatpush1.msra.mxu0 %v147
    %884 = vmatprep.subr.mxu0 %v152
    %885 = vmatpush1.msra.mxu0 %v151
    %886 = vmatprep.subr.mxu0 %v156
    %887 = vmatpush1.msra.mxu0 %v155
    %888 = vmatprep.subr.mxu0 %v160
    %889 = vmatpush1.msra.mxu0 %v159
    %890 = vmatprep.subr.mxu0 %v164
    %891 = vmatpush1.msra.mxu0 %v163
    %892 = vmatprep.subr.mxu0 %v168
    %893 = vmatpush1.msra.mxu0 %v167
    %894 = vmatprep.subr.mxu0 %v172
    %895 = vmatpush1.msra.mxu0 %v171
    %896 = vmatprep.subr.mxu0 %v176
    %897 = vmatpush1.msra.mxu0 %v175
    %898 = vmatprep.subr.mxu0 %v180
    %899 = vmatpush1.msra.mxu0 %v179
    %900 = vmatprep.subr.mxu0 %v184
    %901 = vmatpush1.msra.mxu0 %v183
    %902 = vmatprep.subr.mxu0 %v188
    %903 = vmatpush1.msra.mxu0 %v187
    %904 = vmatprep.subr.mxu0 %v192
    %905 = vmatpush1.msra.mxu0 %v191
    %906 = vmatprep.subr.mxu0 %v196
    %907 = vmatpush1.msra.mxu0 %v195
    %908 = vmatprep.subr.mxu0 %v200
    %909 = vmatpush1.msra.mxu0 %v199
    %910 = vmatprep.subr.mxu0 %v204
    %911 = vmatpush1.msra.mxu0 %v203
    %912 = vmatprep.subr.mxu0 0.0
    %913 = vmatpush1.msra.mxu0 0.0
    %914 = vmatprep.subr.mxu0 0.0
    %915 = vmatpush1.msra.mxu0 0.0
    %916 = vmatprep.subr.mxu0 0.0
    %917 = vmatpush1.msra.mxu0 0.0
    %918 = vmatprep.subr.mxu0 0.0
    %919 = vmatpush1.msra.mxu0 0.0
    %920 = vmatprep.subr.mxu0 0.0
    %921 = vmatpush1.msra.mxu0 0.0
    %922 = vmatprep.subr.mxu0 0.0
    %923 = vmatpush1.msra.mxu0 0.0
    %924 = vmatprep.subr.mxu0 0.0
    %925 = vmatpush1.msra.mxu0 0.0
    %926 = vmatprep.subr.mxu0 0.0
    %927 = vmatpush1.msra.mxu0 0.0
    %928 = vmatprep.subr.mxu0 0.0
    %929 = vmatpush1.msra.mxu0 0.0
    %930 = vmatprep.subr.mxu0 0.0
    %931 = vmatpush1.msra.mxu0 0.0
    %932 = vmatprep.subr.mxu0 0.0
    %933 = vmatpush1.msra.mxu0 0.0
    %934 = vmatprep.subr.mxu0 0.0
    %935 = vmatpush1.msra.mxu0 0.0
    %936 = vmatprep.subr.mxu0 0.0
    %937 = vmatpush1.msra.mxu0 0.0
    %938 = vmatprep.subr.mxu0 0.0
    %939 = vmatpush1.msra.mxu0 0.0
    %940 = vmatprep.subr.mxu0 0.0
    %941 = vmatpush1.msra.mxu0 0.0
    %942 = vmatprep.subr.mxu0 0.0
    %943 = vmatpush1.msra.mxu0 0.0
    %944 = vmatprep.mubr.f32.mxu0 0.0
    %945 = vmatmul.mubr.f32.gmra.mrb[0].mxu0 %v802
    %v946 = vpop.f32.mrb[0].mxu0
    %v947 = vadd.f32 0.0, %v946
    %v948 = vpop.f32.mrb[0].mxu0
    %v949 = vadd.f32 0.0, %v948
    %950 = vdwg.mxu0
    %v951 = vadd.f32 %v805, %v876
    %v952 = vadd.f32 %v806, %v878
    %v953 = vadd.f32 %v807, %v947
    %v954 = vadd.f32 %v808, %v949
    %v955 = vxor.u32 %v951, 2147483648
    %v956 = vmul.f32 %v955, 1.442695
    %v957 = vpow.pop %v956
    %v958 = vadd.f32 %v957, 1.0
    %v959 = vrcp.pop %v958
    %v960 = vmul.f32 1.0, %v959
    %v961 = vxor.u32 %v952, 2147483648
    %v962 = vmul.f32 %v961, 1.442695
    %v963 = vpow.pop %v962
    %v964 = vadd.f32 %v963, 1.0
    %v965 = vrcp.pop %v964
    %v966 = vmul.f32 1.0, %v965
    %v967 = vtanh.pop %v953
    %v968 = vxor.u32 %v954, 2147483648
    %v969 = vmul.f32 %v968, 1.442695
    %v970 = vpow.pop %v969
    %v971 = vadd.f32 %v970, 1.0
    %v972 = vrcp.pop %v971
    %v973 = vmul.f32 1.0, %v972
    %v974 = vmul.f32 %v966, %v800
    %v975 = vmul.f32 %v960, %v967
    %v976 = vadd.f32 %v974, %v975
    %v977 = vtanh.pop %v976
    %v978 = vmul.f32 %v973, %v977
    %s979 = scalar_lea.vmem [#allocation3], 8
    %980 = vst [vmem:[%s979] sm:$0xff] %v978
    %s981 = scalar_lea.vmem [#allocation2], 64
    %v982 = vld [vmem:[%s981] sm:$0xff]
    %v983 = vld [vmem:[%s981 + $0x8] sm:$0xff]
    %v984 = vld [vmem:[%s981 + $0x10] sm:$0xff]
    %v985 = vld [vmem:[%s981 + $0x18] sm:$0xff]
    %986 = vmatprep.subr.mxu0 %v142
    %987 = vmatpush1.msra.mxu0 %v141
    %988 = vmatprep.subr.mxu0 %v146
    %989 = vmatpush1.msra.mxu0 %v145
    %990 = vmatprep.subr.mxu0 %v150
    %991 = vmatpush1.msra.mxu0 %v149
    %992 = vmatprep.subr.mxu0 %v154
    %993 = vmatpush1.msra.mxu0 %v153
    %994 = vmatprep.subr.mxu0 %v158
    %995 = vmatpush1.msra.mxu0 %v157
    %996 = vmatprep.subr.mxu0 %v162
    %997 = vmatpush1.msra.mxu0 %v161
    %998 = vmatprep.subr.mxu0 %v166
    %999 = vmatpush1.msra.mxu0 %v165
    %1000 = vmatprep.subr.mxu0 %v170
    %1001 = vmatpush1.msra.mxu0 %v169
    %1002 = vmatprep.subr.mxu0 %v174
    %1003 = vmatpush1.msra.mxu0 %v173
    %1004 = vmatprep.subr.mxu0 %v178
    %1005 = vmatpush1.msra.mxu0 %v177
    %1006 = vmatprep.subr.mxu0 %v182
    %1007 = vmatpush1.msra.mxu0 %v181
    %1008 = vmatprep.subr.mxu0 %v186
    %1009 = vmatpush1.msra.mxu0 %v185
    %1010 = vmatprep.subr.mxu0 %v190
    %1011 = vmatpush1.msra.mxu0 %v189
    %1012 = vmatprep.subr.mxu0 %v194
    %1013 = vmatpush1.msra.mxu0 %v193
    %1014 = vmatprep.subr.mxu0 %v198
    %1015 = vmatpush1.msra.mxu0 %v197
    %1016 = vmatprep.subr.mxu0 %v202
    %1017 = vmatpush1.msra.mxu0 %v201
    %1018 = vmatprep.subr.mxu0 0.0
    %1019 = vmatpush1.msra.mxu0 0.0
    %1020 = vmatprep.subr.mxu0 0.0
    %1021 = vmatpush1.msra.mxu0 0.0
    %1022 = vmatprep.subr.mxu0 0.0
    %1023 = vmatpush1.msra.mxu0 0.0
    %1024 = vmatprep.subr.mxu0 0.0
    %1025 = vmatpush1.msra.mxu0 0.0
    %1026 = vmatprep.subr.mxu0 0.0
    %1027 = vmatpush1.msra.mxu0 0.0
    %1028 = vmatprep.subr.mxu0 0.0
    %1029 = vmatpush1.msra.mxu0 0.0
    %1030 = vmatprep.subr.mxu0 0.0
    %1031 = vmatpush1.msra.mxu0 0.0
    %1032 = vmatprep.subr.mxu0 0.0
    %1033 = vmatpush1.msra.mxu0 0.0
    %1034 = vmatprep.subr.mxu0 0.0
    %1035 = vmatpush1.msra.mxu0 0.0
    %1036 = vmatprep.subr.mxu0 0.0
    %1037 = vmatpush1.msra.mxu0 0.0
    %1038 = vmatprep.subr.mxu0 0.0
    %1039 = vmatpush1.msra.mxu0 0.0
    %1040 = vmatprep.subr.mxu0 0.0
    %1041 = vmatpush1.msra.mxu0 0.0
    %1042 = vmatprep.subr.mxu0 0.0
    %1043 = vmatpush1.msra.mxu0 0.0
    %1044 = vmatprep.subr.mxu0 0.0
    %1045 = vmatpush1.msra.mxu0 0.0
    %1046 = vmatprep.subr.mxu0 0.0
    %1047 = vmatpush1.msra.mxu0 0.0
    %1048 = vmatprep.subr.mxu0 0.0
    %1049 = vmatpush1.msra.mxu0 0.0
    %1050 = vmatprep.mubr.f32.mxu0 0.0
    %1051 = vmatmul.mubr.f32.gmra.mrb[0].mxu0 %v978
    %v1052 = vpop.f32.mrb[0].mxu0
    %v1053 = vadd.f32 0.0, %v1052
    %v1054 = vpop.f32.mrb[0].mxu0
    %v1055 = vadd.f32 0.0, %v1054
    %1056 = vdwg.mxu0
    %1057 = vmatprep.subr.mxu0 %v144
    %1058 = vmatpush1.msra.mxu0 %v143
    %1059 = vmatprep.subr.mxu0 %v148
    %1060 = vmatpush1.msra.mxu0 %v147
    %1061 = vmatprep.subr.mxu0 %v152
    %1062 = vmatpush1.msra.mxu0 %v151
    %1063 = vmatprep.subr.mxu0 %v156
    %1064 = vmatpush1.msra.mxu0 %v155
    %1065 = vmatprep.subr.mxu0 %v160
    %1066 = vmatpush1.msra.mxu0 %v159
    %1067 = vmatprep.subr.mxu0 %v164
    %1068 = vmatpush1.msra.mxu0 %v163
    %1069 = vmatprep.subr.mxu0 %v168
    %1070 = vmatpush1.msra.mxu0 %v167
    %1071 = vmatprep.subr.mxu0 %v172
    %1072 = vmatpush1.msra.mxu0 %v171
    %1073 = vmatprep.subr.mxu0 %v176
    %1074 = vmatpush1.msra.mxu0 %v175
    %1075 = vmatprep.subr.mxu0 %v180
    %1076 = vmatpush1.msra.mxu0 %v179
    %1077 = vmatprep.subr.mxu0 %v184
    %1078 = vmatpush1.msra.mxu0 %v183
    %1079 = vmatprep.subr.mxu0 %v188
    %1080 = vmatpush1.msra.mxu0 %v187
    %1081 = vmatprep.subr.mxu0 %v192
    %1082 = vmatpush1.msra.mxu0 %v191
    %1083 = vmatprep.subr.mxu0 %v196
    %1084 = vmatpush1.msra.mxu0 %v195
    %1085 = vmatprep.subr.mxu0 %v200
    %1086 = vmatpush1.msra.mxu0 %v199
    %1087 = vmatprep.subr.mxu0 %v204
    %1088 = vmatpush1.msra.mxu0 %v203
    %1089 = vmatprep.subr.mxu0 0.0
    %1090 = vmatpush1.msra.mxu0 0.0
    %1091 = vmatprep.subr.mxu0 0.0
    %1092 = vmatpush1.msra.mxu0 0.0
    %1093 = vmatprep.subr.mxu0 0.0
    %1094 = vmatpush1.msra.mxu0 0.0
    %1095 = vmatprep.subr.mxu0 0.0
    %1096 = vmatpush1.msra.mxu0 0.0
    %1097 = vmatprep.subr.mxu0 0.0
    %1098 = vmatpush1.msra.mxu0 0.0
    %1099 = vmatprep.subr.mxu0 0.0
    %1100 = vmatpush1.msra.mxu0 0.0
    %1101 = vmatprep.subr.mxu0 0.0
    %1102 = vmatpush1.msra.mxu0 0.0
    %1103 = vmatprep.subr.mxu0 0.0
    %1104 = vmatpush1.msra.mxu0 0.0
    %1105 = vmatprep.subr.mxu0 0.0
    %1106 = vmatpush1.msra.mxu0 0.0
    %1107 = vmatprep.subr.mxu0 0.0
    %1108 = vmatpush1.msra.mxu0 0.0
    %1109 = vmatprep.subr.mxu0 0.0
    %1110 = vmatpush1.msra.mxu0 0.0
    %1111 = vmatprep.subr.mxu0 0.0
    %1112 = vmatpush1.msra.mxu0 0.0
    %1113 = vmatprep.subr.mxu0 0.0
    %1114 = vmatpush1.msra.mxu0 0.0
    %1115 = vmatprep.subr.mxu0 0.0
    %1116 = vmatpush1.msra.mxu0 0.0
    %1117 = vmatprep.subr.mxu0 0.0
    %1118 = vmatpush1.msra.mxu0 0.0
    %1119 = vmatprep.subr.mxu0 0.0
    %1120 = vmatpush1.msra.mxu0 0.0
    %1121 = vmatprep.mubr.f32.mxu0 0.0
    %1122 = vmatmul.mubr.f32.gmra.mrb[0].mxu0 %v978
    %v1123 = vpop.f32.mrb[0].mxu0
    %v1124 = vadd.f32 0.0, %v1123
    %v1125 = vpop.f32.mrb[0].mxu0
    %v1126 = vadd.f32 0.0, %v1125
    %1127 = vdwg.mxu0
    %v1128 = vadd.f32 %v982, %v1053
    %v1129 = vadd.f32 %v983, %v1055
    %v1130 = vadd.f32 %v984, %v1124
    %v1131 = vadd.f32 %v985, %v1126
    %v1132 = vxor.u32 %v1128, 2147483648
    %v1133 = vmul.f32 %v1132, 1.442695
    %v1134 = vpow.pop %v1133
    %v1135 = vadd.f32 %v1134, 1.0
    %v1136 = vrcp.pop %v1135
    %v1137 = vmul.f32 1.0, %v1136
    %v1138 = vxor.u32 %v1129, 2147483648
    %v1139 = vmul.f32 %v1138, 1.442695
    %v1140 = vpow.pop %v1139
    %v1141 = vadd.f32 %v1140, 1.0
    %v1142 = vrcp.pop %v1141
    %v1143 = vmul.f32 1.0, %v1142
    %v1144 = vtanh.pop %v1130
    %v1145 = vxor.u32 %v1131, 2147483648
    %v1146 = vmul.f32 %v1145, 1.442695
    %v1147 = vpow.pop %v1146
    %v1148 = vadd.f32 %v1147, 1.0
    %v1149 = vrcp.pop %v1148
    %v1150 = vmul.f32 1.0, %v1149
    %v1151 = vmul.f32 %v1143, %v976
    %v1152 = vmul.f32 %v1137, %v1144
    %v1153 = vadd.f32 %v1151, %v1152
    %v1154 = vtanh.pop %v1153
    %v1155 = vmul.f32 %v1150, %v1154
    %s1156 = scalar_lea.vmem [#allocation3], 16
    %1157 = vst [vmem:[%s1156] sm:$0xff] %v1155
    %s1158 = scalar_lea.vmem [#allocation2], 96
    %v1159 = vld [vmem:[%s1158] sm:$0xff]
    %v1160 = vld [vmem:[%s1158 + $0x8] sm:$0xff]
    %v1161 = vld [vmem:[%s1158 + $0x10] sm:$0xff]
    %v1162 = vld [vmem:[%s1158 + $0x18] sm:$0xff]
    %1163 = vmatprep.subr.mxu0 %v142
    %1164 = vmatpush1.msra.mxu0 %v141
    %1165 = vmatprep.subr.mxu0 %v146
    %1166 = vmatpush1.msra.mxu0 %v145
    %1167 = vmatprep.subr.mxu0 %v150
    %1168 = vmatpush1.msra.mxu0 %v149
    %1169 = vmatprep.subr.mxu0 %v154
    %1170 = vmatpush1.msra.mxu0 %v153
    %1171 = vmatprep.subr.mxu0 %v158
    %1172 = vmatpush1.msra.mxu0 %v157
    %1173 = vmatprep.subr.mxu0 %v162
    %1174 = vmatpush1.msra.mxu0 %v161
    %1175 = vmatprep.subr.mxu0 %v166
    %1176 = vmatpush1.msra.mxu0 %v165
    %1177 = vmatprep.subr.mxu0 %v170
    %1178 = vmatpush1.msra.mxu0 %v169
    %1179 = vmatprep.subr.mxu0 %v174
    %1180 = vmatpush1.msra.mxu0 %v173
    %1181 = vmatprep.subr.mxu0 %v178
    %1182 = vmatpush1.msra.mxu0 %v177
    %1183 = vmatprep.subr.mxu0 %v182
    %1184 = vmatpush1.msra.mxu0 %v181
    %1185 = vmatprep.subr.mxu0 %v186
    %1186 = vmatpush1.msra.mxu0 %v185
    %1187 = vmatprep.subr.mxu0 %v190
    %1188 = vmatpush1.msra.mxu0 %v189
    %1189 = vmatprep.subr.mxu0 %v194
    %1190 = vmatpush1.msra.mxu0 %v193
    %1191 = vmatprep.subr.mxu0 %v198
    %1192 = vmatpush1.msra.mxu0 %v197
    %1193 = vmatprep.subr.mxu0 %v202
    %1194 = vmatpush1.msra.mxu0 %v201
    %1195 = vmatprep.subr.mxu0 0.0
    %1196 = vmatpush1.msra.mxu0 0.0
    %1197 = vmatprep.subr.mxu0 0.0
    %1198 = vmatpush1.msra.mxu0 0.0
    %1199 = vmatprep.subr.mxu0 0.0
    %1200 = vmatpush1.msra.mxu0 0.0
    %1201 = vmatprep.subr.mxu0 0.0
    %1202 = vmatpush1.msra.mxu0 0.0
    %1203 = vmatprep.subr.mxu0 0.0
    %1204 = vmatpush1.msra.mxu0 0.0
    %1205 = vmatprep.subr.mxu0 0.0
    %1206 = vmatpush1.msra.mxu0 0.0
    %1207 = vmatprep.subr.mxu0 0.0
    %1208 = vmatpush1.msra.mxu0 0.0
    %1209 = vmatprep.subr.mxu0 0.0
    %1210 = vmatpush1.msra.mxu0 0.0
    %1211 = vmatprep.subr.mxu0 0.0
    %1212 = vmatpush1.msra.mxu0 0.0
    %1213 = vmatprep.subr.mxu0 0.0
    %1214 = vmatpush1.msra.mxu0 0.0
    %1215 = vmatprep.subr.mxu0 0.0
    %1216 = vmatpush1.msra.mxu0 0.0
    %1217 = vmatprep.subr.mxu0 0.0
    %1218 = vmatpush1.msra.mxu0 0.0
    %1219 = vmatprep.subr.mxu0 0.0
    %1220 = vmatpush1.msra.mxu0 0.0
    %1221 = vmatprep.subr.mxu0 0.0
    %1222 = vmatpush1.msra.mxu0 0.0
    %1223 = vmatprep.subr.mxu0 0.0
    %1224 = vmatpush1.msra.mxu0 0.0
    %1225 = vmatprep.subr.mxu0 0.0
    %1226 = vmatpush1.msra.mxu0 0.0
    %1227 = vmatprep.mubr.f32.mxu0 0.0
    %1228 = vmatmul.mubr.f32.gmra.mrb[0].mxu0 %v1155
    %v1229 = vpop.f32.mrb[0].mxu0
    %v1230 = vadd.f32 0.0, %v1229
    %v1231 = vpop.f32.mrb[0].mxu0
    %v1232 = vadd.f32 0.0, %v1231
    %1233 = vdwg.mxu0
    %1234 = vmatprep.subr.mxu0 %v144
    %1235 = vmatpush1.msra.mxu0 %v143
    %1236 = vmatprep.subr.mxu0 %v148
    %1237 = vmatpush1.msra.mxu0 %v147
    %1238 = vmatprep.subr.mxu0 %v152
    %1239 = vmatpush1.msra.mxu0 %v151
    %1240 = vmatprep.subr.mxu0 %v156
    %1241 = vmatpush1.msra.mxu0 %v155
    %1242 = vmatprep.subr.mxu0 %v160
    %1243 = vmatpush1.msra.mxu0 %v159
    %1244 = vmatprep.subr.mxu0 %v164
    %1245 = vmatpush1.msra.mxu0 %v163
    %1246 = vmatprep.subr.mxu0 %v168
    %1247 = vmatpush1.msra.mxu0 %v167
    %1248 = vmatprep.subr.mxu0 %v172
    %1249 = vmatpush1.msra.mxu0 %v171
    %1250 = vmatprep.subr.mxu0 %v176
    %1251 = vmatpush1.msra.mxu0 %v175
    %1252 = vmatprep.subr.mxu0 %v180
    %1253 = vmatpush1.msra.mxu0 %v179
    %1254 = vmatprep.subr.mxu0 %v184
    %1255 = vmatpush1.msra.mxu0 %v183
    %1256 = vmatprep.subr.mxu0 %v188
    %1257 = vmatpush1.msra.mxu0 %v187
    %1258 = vmatprep.subr.mxu0 %v192
    %1259 = vmatpush1.msra.mxu0 %v191
    %1260 = vmatprep.subr.mxu0 %v196
    %1261 = vmatpush1.msra.mxu0 %v195
    %1262 = vmatprep.subr.mxu0 %v200
    %1263 = vmatpush1.msra.mxu0 %v199
    %1264 = vmatprep.subr.mxu0 %v204
    %1265 = vmatpush1.msra.mxu0 %v203
    %1266 = vmatprep.subr.mxu0 0.0
    %1267 = vmatpush1.msra.mxu0 0.0
    %1268 = vmatprep.subr.mxu0 0.0
    %1269 = vmatpush1.msra.mxu0 0.0
    %1270 = vmatprep.subr.mxu0 0.0
    %1271 = vmatpush1.msra.mxu0 0.0
    %1272 = vmatprep.subr.mxu0 0.0
    %1273 = vmatpush1.msra.mxu0 0.0
    %1274 = vmatprep.subr.mxu0 0.0
    %1275 = vmatpush1.msra.mxu0 0.0
    %1276 = vmatprep.subr.mxu0 0.0
    %1277 = vmatpush1.msra.mxu0 0.0
    %1278 = vmatprep.subr.mxu0 0.0
    %1279 = vmatpush1.msra.mxu0 0.0
    %1280 = vmatprep.subr.mxu0 0.0
    %1281 = vmatpush1.msra.mxu0 0.0
    %1282 = vmatprep.subr.mxu0 0.0
    %1283 = vmatpush1.msra.mxu0 0.0
    %1284 = vmatprep.subr.mxu0 0.0
    %1285 = vmatpush1.msra.mxu0 0.0
    %1286 = vmatprep.subr.mxu0 0.0
    %1287 = vmatpush1.msra.mxu0 0.0
    %1288 = vmatprep.subr.mxu0 0.0
    %1289 = vmatpush1.msra.mxu0 0.0
    %1290 = vmatprep.subr.mxu0 0.0
    %1291 = vmatpush1.msra.mxu0 0.0
    %1292 = vmatprep.subr.mxu0 0.0
    %1293 = vmatpush1.msra.mxu0 0.0
    %1294 = vmatprep.subr.mxu0 0.0
    %1295 = vmatpush1.msra.mxu0 0.0
    %1296 = vmatprep.subr.mxu0 0.0
    %1297 = vmatpush1.msra.mxu0 0.0
    %1298 = vmatprep.mubr.f32.mxu0 0.0
    %1299 = vmatmul.mubr.f32.gmra.mrb[0].mxu0 %v1155
    %v1300 = vpop.f32.mrb[0].mxu0
    %v1301 = vadd.f32 0.0, %v1300
    %v1302 = vpop.f32.mrb[0].mxu0
    %v1303 = vadd.f32 0.0, %v1302
    %1304 = vdwg.mxu0
    %v1305 = vadd.f32 %v1159, %v1230
    %v1306 = vadd.f32 %v1160, %v1232
    %v1307 = vadd.f32 %v1161, %v1301
    %v1308 = vadd.f32 %v1162, %v1303
    %v1309 = vxor.u32 %v1305, 2147483648
    %v1310 = vmul.f32 %v1309, 1.442695
    %v1311 = vpow.pop %v1310
    %v1312 = vadd.f32 %v1311, 1.0
    %v1313 = vrcp.pop %v1312
    %v1314 = vmul.f32 1.0, %v1313
    %v1315 = vxor.u32 %v1306, 2147483648
    %v1316 = vmul.f32 %v1315, 1.442695
    %v1317 = vpow.pop %v1316
    %v1318 = vadd.f32 %v1317, 1.0
    %v1319 = vrcp.pop %v1318
    %v1320 = vmul.f32 1.0, %v1319
    %v1321 = vtanh.pop %v1307
    %v1322 = vxor.u32 %v1308, 2147483648
    %v1323 = vmul.f32 %v1322, 1.442695
    %v1324 = vpow.pop %v1323
    %v1325 = vadd.f32 %v1324, 1.0
    %v1326 = vrcp.pop %v1325
    %v1327 = vmul.f32 1.0, %v1326
    %v1328 = vmul.f32 %v1320, %v1153
    %v1329 = vmul.f32 %v1314, %v1321
    %v1330 = vadd.f32 %v1328, %v1329
    %v1331 = vtanh.pop %v1330
    %v1332 = vmul.f32 %v1327, %v1331
    %s1333 = scalar_lea.vmem [#allocation3], 24
    %1334 = vst [vmem:[%s1333] sm:$0xff] %v1332
    %s1335 = scalar_lea.vmem [#allocation2], 128
    %v1336 = vld [vmem:[%s1335] sm:$0xff]
    %v1337 = vld [vmem:[%s1335 + $0x8] sm:$0xff]
    %v1338 = vld [vmem:[%s1335 + $0x10] sm:$0xff]
    %v1339 = vld [vmem:[%s1335 + $0x18] sm:$0xff]
    %1340 = vmatprep.subr.mxu0 %v142
    %1341 = vmatpush1.msra.mxu0 %v141
    %1342 = vmatprep.subr.mxu0 %v146
    %1343 = vmatpush1.msra.mxu0 %v145
    %1344 = vmatprep.subr.mxu0 %v150
    %1345 = vmatpush1.msra.mxu0 %v149
    %1346 = vmatprep.subr.mxu0 %v154
    %1347 = vmatpush1.msra.mxu0 %v153
    %1348 = vmatprep.subr.mxu0 %v158
    %1349 = vmatpush1.msra.mxu0 %v157
    %1350 = vmatprep.subr.mxu0 %v162
    %1351 = vmatpush1.msra.mxu0 %v161
    %1352 = vmatprep.subr.mxu0 %v166
    %1353 = vmatpush1.msra.mxu0 %v165
    %1354 = vmatprep.subr.mxu0 %v170
    %1355 = vmatpush1.msra.mxu0 %v169
    %1356 = vmatprep.subr.mxu0 %v174
    %1357 = vmatpush1.msra.mxu0 %v173
    %1358 = vmatprep.subr.mxu0 %v178
    %1359 = vmatpush1.msra.mxu0 %v177
    %1360 = vmatprep.subr.mxu0 %v182
    %1361 = vmatpush1.msra.mxu0 %v181
    %1362 = vmatprep.subr.mxu0 %v186
    %1363 = vmatpush1.msra.mxu0 %v185
    %1364 = vmatprep.subr.mxu0 %v190
    %1365 = vmatpush1.msra.mxu0 %v189
    %1366 = vmatprep.subr.mxu0 %v194
    %1367 = vmatpush1.msra.mxu0 %v193
    %1368 = vmatprep.subr.mxu0 %v198
    %1369 = vmatpush1.msra.mxu0 %v197
    %1370 = vmatprep.subr.mxu0 %v202
    %1371 = vmatpush1.msra.mxu0 %v201
    %1372 = vmatprep.subr.mxu0 0.0
    %1373 = vmatpush1.msra.mxu0 0.0
    %1374 = vmatprep.subr.mxu0 0.0
    %1375 = vmatpush1.msra.mxu0 0.0
    %1376 = vmatprep.subr.mxu0 0.0
    %1377 = vmatpush1.msra.mxu0 0.0
    %1378 = vmatprep.subr.mxu0 0.0
    %1379 = vmatpush1.msra.mxu0 0.0
    %1380 = vmatprep.subr.mxu0 0.0
    %1381 = vmatpush1.msra.mxu0 0.0
    %1382 = vmatprep.subr.mxu0 0.0
    %1383 = vmatpush1.msra.mxu0 0.0
    %1384 = vmatprep.subr.mxu0 0.0
    %1385 = vmatpush1.msra.mxu0 0.0
    %1386 = vmatprep.subr.mxu0 0.0
    %1387 = vmatpush1.msra.mxu0 0.0
    %1388 = vmatprep.subr.mxu0 0.0
    %1389 = vmatpush1.msra.mxu0 0.0
    %1390 = vmatprep.subr.mxu0 0.0
    %1391 = vmatpush1.msra.mxu0 0.0
    %1392 = vmatprep.subr.mxu0 0.0
    %1393 = vmatpush1.msra.mxu0 0.0
    %1394 = vmatprep.subr.mxu0 0.0
    %1395 = vmatpush1.msra.mxu0 0.0
    %1396 = vmatprep.subr.mxu0 0.0
    %1397 = vmatpush1.msra.mxu0 0.0
    %1398 = vmatprep.subr.mxu0 0.0
    %1399 = vmatpush1.msra.mxu0 0.0
    %1400 = vmatprep.subr.mxu0 0.0
    %1401 = vmatpush1.msra.mxu0 0.0
    %1402 = vmatprep.subr.mxu0 0.0
    %1403 = vmatpush1.msra.mxu0 0.0
    %1404 = vmatprep.mubr.f32.mxu0 0.0
    %1405 = vmatmul.mubr.f32.gmra.mrb[0].mxu0 %v1332
    %v1406 = vpop.f32.mrb[0].mxu0
    %v1407 = vadd.f32 0.0, %v1406
    %v1408 = vpop.f32.mrb[0].mxu0
    %v1409 = vadd.f32 0.0, %v1408
    %1410 = vdwg.mxu0
    %1411 = vmatprep.subr.mxu0 %v144
    %1412 = vmatpush1.msra.mxu0 %v143
    %1413 = vmatprep.subr.mxu0 %v148
    %1414 = vmatpush1.msra.mxu0 %v147
    %1415 = vmatprep.subr.mxu0 %v152
    %1416 = vmatpush1.msra.mxu0 %v151
    %1417 = vmatprep.subr.mxu0 %v156
    %1418 = vmatpush1.msra.mxu0 %v155
    %1419 = vmatprep.subr.mxu0 %v160
    %1420 = vmatpush1.msra.mxu0 %v159
    %1421 = vmatprep.subr.mxu0 %v164
    %1422 = vmatpush1.msra.mxu0 %v163
    %1423 = vmatprep.subr.mxu0 %v168
    %1424 = vmatpush1.msra.mxu0 %v167
    %1425 = vmatprep.subr.mxu0 %v172
    %1426 = vmatpush1.msra.mxu0 %v171
    %1427 = vmatprep.subr.mxu0 %v176
    %1428 = vmatpush1.msra.mxu0 %v175
    %1429 = vmatprep.subr.mxu0 %v180
    %1430 = vmatpush1.msra.mxu0 %v179
    %1431 = vmatprep.subr.mxu0 %v184
    %1432 = vmatpush1.msra.mxu0 %v183
    %1433 = vmatprep.subr.mxu0 %v188
    %1434 = vmatpush1.msra.mxu0 %v187
    %1435 = vmatprep.subr.mxu0 %v192
    %1436 = vmatpush1.msra.mxu0 %v191
    %1437 = vmatprep.subr.mxu0 %v196
    %1438 = vmatpush1.msra.mxu0 %v195
    %1439 = vmatprep.subr.mxu0 %v200
    %1440 = vmatpush1.msra.mxu0 %v199
    %1441 = vmatprep.subr.mxu0 %v204
    %1442 = vmatpush1.msra.mxu0 %v203
    %1443 = vmatprep.subr.mxu0 0.0
    %1444 = vmatpush1.msra.mxu0 0.0
    %1445 = vmatprep.subr.mxu0 0.0
    %1446 = vmatpush1.msra.mxu0 0.0
    %1447 = vmatprep.subr.mxu0 0.0
    %1448 = vmatpush1.msra.mxu0 0.0
    %1449 = vmatprep.subr.mxu0 0.0
    %1450 = vmatpush1.msra.mxu0 0.0
    %1451 = vmatprep.subr.mxu0 0.0
    %1452 = vmatpush1.msra.mxu0 0.0
    %1453 = vmatprep.subr.mxu0 0.0
    %1454 = vmatpush1.msra.mxu0 0.0
    %1455 = vmatprep.subr.mxu0 0.0
    %1456 = vmatpush1.msra.mxu0 0.0
    %1457 = vmatprep.subr.mxu0 0.0
    %1458 = vmatpush1.msra.mxu0 0.0
    %1459 = vmatprep.subr.mxu0 0.0
    %1460 = vmatpush1.msra.mxu0 0.0
    %1461 = vmatprep.subr.mxu0 0.0
    %1462 = vmatpush1.msra.mxu0 0.0
    %1463 = vmatprep.subr.mxu0 0.0
    %1464 = vmatpush1.msra.mxu0 0.0
    %1465 = vmatprep.subr.mxu0 0.0
    %1466 = vmatpush1.msra.mxu0 0.0
    %1467 = vmatprep.subr.mxu0 0.0
    %1468 = vmatpush1.msra.mxu0 0.0
    %1469 = vmatprep.subr.mxu0 0.0
    %1470 = vmatpush1.msra.mxu0 0.0
    %1471 = vmatprep.subr.mxu0 0.0
    %1472 = vmatpush1.msra.mxu0 0.0
    %1473 = vmatprep.subr.mxu0 0.0
    %1474 = vmatpush1.msra.mxu0 0.0
    %1475 = vmatprep.mubr.f32.mxu0 0.0
    %1476 = vmatmul.mubr.f32.gmra.mrb[0].mxu0 %v1332
    %v1477 = vpop.f32.mrb[0].mxu0
    %v1478 = vadd.f32 0.0, %v1477
    %v1479 = vpop.f32.mrb[0].mxu0
    %v1480 = vadd.f32 0.0, %v1479
    %1481 = vdwg.mxu0
    %v1482 = vadd.f32 %v1336, %v1407
    %v1483 = vadd.f32 %v1337, %v1409
    %v1484 = vadd.f32 %v1338, %v1478
    %v1485 = vadd.f32 %v1339, %v1480
    %v1486 = vxor.u32 %v1482, 2147483648
    %v1487 = vmul.f32 %v1486, 1.442695
    %v1488 = vpow.pop %v1487
    %v1489 = vadd.f32 %v1488, 1.0
    %v1490 = vrcp.pop %v1489
    %v1491 = vmul.f32 1.0, %v1490
    %v1492 = vxor.u32 %v1483, 2147483648
    %v1493 = vmul.f32 %v1492, 1.442695
    %v1494 = vpow.pop %v1493
    %v1495 = vadd.f32 %v1494, 1.0
    %v1496 = vrcp.pop %v1495
    %v1497 = vmul.f32 1.0, %v1496
    %v1498 = vtanh.pop %v1484
    %v1499 = vxor.u32 %v1485, 2147483648
    %v1500 = vmul.f32 %v1499, 1.442695
    %v1501 = vpow.pop %v1500
    %v1502 = vadd.f32 %v1501, 1.0
    %v1503 = vrcp.pop %v1502
    %v1504 = vmul.f32 1.0, %v1503
    %v1505 = vmul.f32 %v1497, %v1330
    %v1506 = vmul.f32 %v1491, %v1498
    %v1507 = vadd.f32 %v1505, %v1506
    %v1508 = vtanh.pop %v1507
    %v1509 = vmul.f32 %v1504, %v1508
    %s1510 = scalar_lea.vmem [#allocation3], 32
    %1511 = vst [vmem:[%s1510] sm:$0xff] %v1509
    %s1512 = scalar_lea.vmem [#allocation2], 160
    %v1513 = vld [vmem:[%s1512] sm:$0xff]
    %v1514 = vld [vmem:[%s1512 + $0x8] sm:$0xff]
    %v1515 = vld [vmem:[%s1512 + $0x10] sm:$0xff]
    %v1516 = vld [vmem:[%s1512 + $0x18] sm:$0xff]
    %1517 = vmatprep.subr.mxu0 %v142
    %1518 = vmatpush1.msra.mxu0 %v141
    %1519 = vmatprep.subr.mxu0 %v146
    %1520 = vmatpush1.msra.mxu0 %v145
    %1521 = vmatprep.subr.mxu0 %v150
    %1522 = vmatpush1.msra.mxu0 %v149
    %1523 = vmatprep.subr.mxu0 %v154
    %1524 = vmatpush1.msra.mxu0 %v153
    %1525 = vmatprep.subr.mxu0 %v158
    %1526 = vmatpush1.msra.mxu0 %v157
    %1527 = vmatprep.subr.mxu0 %v162
    %1528 = vmatpush1.msra.mxu0 %v161
    %1529 = vmatprep.subr.mxu0 %v166
    %1530 = vmatpush1.msra.mxu0 %v165
    %1531 = vmatprep.subr.mxu0 %v170
    %1532 = vmatpush1.msra.mxu0 %v169
    %1533 = vmatprep.subr.mxu0 %v174
    %1534 = vmatpush1.msra.mxu0 %v173
    %1535 = vmatprep.subr.mxu0 %v178
    %1536 = vmatpush1.msra.mxu0 %v177
    %1537 = vmatprep.subr.mxu0 %v182
    %1538 = vmatpush1.msra.mxu0 %v181
    %1539 = vmatprep.subr.mxu0 %v186
    %1540 = vmatpush1.msra.mxu0 %v185
    %1541 = vmatprep.subr.mxu0 %v190
    %1542 = vmatpush1.msra.mxu0 %v189
    %1543 = vmatprep.subr.mxu0 %v194
    %1544 = vmatpush1.msra.mxu0 %v193
    %1545 = vmatprep.subr.mxu0 %v198
    %1546 = vmatpush1.msra.mxu0 %v197
    %1547 = vmatprep.subr.mxu0 %v202
    %1548 = vmatpush1.msra.mxu0 %v201
    %1549 = vmatprep.subr.mxu0 0.0
    %1550 = vmatpush1.msra.mxu0 0.0
    %1551 = vmatprep.subr.mxu0 0.0
    %1552 = vmatpush1.msra.mxu0 0.0
    %1553 = vmatprep.subr.mxu0 0.0
    %1554 = vmatpush1.msra.mxu0 0.0
    %1555 = vmatprep.subr.mxu0 0.0
    %1556 = vmatpush1.msra.mxu0 0.0
    %1557 = vmatprep.subr.mxu0 0.0
    %1558 = vmatpush1.msra.mxu0 0.0
    %1559 = vmatprep.subr.mxu0 0.0
    %1560 = vmatpush1.msra.mxu0 0.0
    %1561 = vmatprep.subr.mxu0 0.0
    %1562 = vmatpush1.msra.mxu0 0.0
    %1563 = vmatprep.subr.mxu0 0.0
    %1564 = vmatpush1.msra.mxu0 0.0
    %1565 = vmatprep.subr.mxu0 0.0
    %1566 = vmatpush1.msra.mxu0 0.0
    %1567 = vmatprep.subr.mxu0 0.0
    %1568 = vmatpush1.msra.mxu0 0.0
    %1569 = vmatprep.subr.mxu0 0.0
    %1570 = vmatpush1.msra.mxu0 0.0
    %1571 = vmatprep.subr.mxu0 0.0
    %1572 = vmatpush1.msra.mxu0 0.0
    %1573 = vmatprep.subr.mxu0 0.0
    %1574 = vmatpush1.msra.mxu0 0.0
    %1575 = vmatprep.subr.mxu0 0.0
    %1576 = vmatpush1.msra.mxu0 0.0
    %1577 = vmatprep.subr.mxu0 0.0
    %1578 = vmatpush1.msra.mxu0 0.0
    %1579 = vmatprep.subr.mxu0 0.0
    %1580 = vmatpush1.msra.mxu0 0.0
    %1581 = vmatprep.mubr.f32.mxu0 0.0
    %1582 = vmatmul.mubr.f32.gmra.mrb[0].mxu0 %v1509
    %v1583 = vpop.f32.mrb[0].mxu0
    %v1584 = vadd.f32 0.0, %v1583
    %v1585 = vpop.f32.mrb[0].mxu0
    %v1586 = vadd.f32 0.0, %v1585
    %1587 = vdwg.mxu0
    %1588 = vmatprep.subr.mxu0 %v144
    %1589 = vmatpush1.msra.mxu0 %v143
    %1590 = vmatprep.subr.mxu0 %v148
    %1591 = vmatpush1.msra.mxu0 %v147
    %1592 = vmatprep.subr.mxu0 %v152
    %1593 = vmatpush1.msra.mxu0 %v151
    %1594 = vmatprep.subr.mxu0 %v156
    %1595 = vmatpush1.msra.mxu0 %v155
    %1596 = vmatprep.subr.mxu0 %v160
    %1597 = vmatpush1.msra.mxu0 %v159
    %1598 = vmatprep.subr.mxu0 %v164
    %1599 = vmatpush1.msra.mxu0 %v163
    %1600 = vmatprep.subr.mxu0 %v168
    %1601 = vmatpush1.msra.mxu0 %v167
    %1602 = vmatprep.subr.mxu0 %v172
    %1603 = vmatpush1.msra.mxu0 %v171
    %1604 = vmatprep.subr.mxu0 %v176
    %1605 = vmatpush1.msra.mxu0 %v175
    %1606 = vmatprep.subr.mxu0 %v180
    %1607 = vmatpush1.msra.mxu0 %v179
    %1608 = vmatprep.subr.mxu0 %v184
    %1609 = vmatpush1.msra.mxu0 %v183
    %1610 = vmatprep.subr.mxu0 %v188
    %1611 = vmatpush1.msra.mxu0 %v187
    %1612 = vmatprep.subr.mxu0 %v192
    %1613 = vmatpush1.msra.mxu0 %v191
    %1614 = vmatprep.subr.mxu0 %v196
    %1615 = vmatpush1.msra.mxu0 %v195
    %1616 = vmatprep.subr.mxu0 %v200
    %1617 = vmatpush1.msra.mxu0 %v199
    %1618 = vmatprep.subr.mxu0 %v204
    %1619 = vmatpush1.msra.mxu0 %v203
    %1620 = vmatprep.subr.mxu0 0.0
    %1621 = vmatpush1.msra.mxu0 0.0
    %1622 = vmatprep.subr.mxu0 0.0
    %1623 = vmatpush1.msra.mxu0 0.0
    %1624 = vmatprep.subr.mxu0 0.0
    %1625 = vmatpush1.msra.mxu0 0.0
    %1626 = vmatprep.subr.mxu0 0.0
    %1627 = vmatpush1.msra.mxu0 0.0
    %1628 = vmatprep.subr.mxu0 0.0
    %1629 = vmatpush1.msra.mxu0 0.0
    %1630 = vmatprep.subr.mxu0 0.0
    %1631 = vmatpush1.msra.mxu0 0.0
    %1632 = vmatprep.subr.mxu0 0.0
    %1633 = vmatpush1.msra.mxu0 0.0
    %1634 = vmatprep.subr.mxu0 0.0
    %1635 = vmatpush1.msra.mxu0 0.0
    %1636 = vmatprep.subr.mxu0 0.0
    %1637 = vmatpush1.msra.mxu0 0.0
    %1638 = vmatprep.subr.mxu0 0.0
    %1639 = vmatpush1.msra.mxu0 0.0
    %1640 = vmatprep.subr.mxu0 0.0
    %1641 = vmatpush1.msra.mxu0 0.0
    %1642 = vmatprep.subr.mxu0 0.0
    %1643 = vmatpush1.msra.mxu0 0.0
    %1644 = vmatprep.subr.mxu0 0.0
    %1645 = vmatpush1.msra.mxu0 0.0
    %1646 = vmatprep.subr.mxu0 0.0
    %1647 = vmatpush1.msra.mxu0 0.0
    %1648 = vmatprep.subr.mxu0 0.0
    %1649 = vmatpush1.msra.mxu0 0.0
    %1650 = vmatprep.subr.mxu0 0.0
    %1651 = vmatpush1.msra.mxu0 0.0
    %1652 = vmatprep.mubr.f32.mxu0 0.0
    %1653 = vmatmul.mubr.f32.gmra.mrb[0].mxu0 %v1509
    %v1654 = vpop.f32.mrb[0].mxu0
    %v1655 = vadd.f32 0.0, %v1654
    %v1656 = vpop.f32.mrb[0].mxu0
    %v1657 = vadd.f32 0.0, %v1656
    %1658 = vdwg.mxu0
    %v1659 = vadd.f32 %v1513, %v1584
    %v1660 = vadd.f32 %v1514, %v1586
    %v1661 = vadd.f32 %v1515, %v1655
    %v1662 = vadd.f32 %v1516, %v1657
    %v1663 = vxor.u32 %v1659, 2147483648
    %v1664 = vmul.f32 %v1663, 1.442695
    %v1665 = vpow.pop %v1664
    %v1666 = vadd.f32 %v1665, 1.0
    %v1667 = vrcp.pop %v1666
    %v1668 = vmul.f32 1.0, %v1667
    %v1669 = vxor.u32 %v1660, 2147483648
    %v1670 = vmul.f32 %v1669, 1.442695
    %v1671 = vpow.pop %v1670
    %v1672 = vadd.f32 %v1671, 1.0
    %v1673 = vrcp.pop %v1672
    %v1674 = vmul.f32 1.0, %v1673
    %v1675 = vtanh.pop %v1661
    %v1676 = vxor.u32 %v1662, 2147483648
    %v1677 = vmul.f32 %v1676, 1.442695
    %v1678 = vpow.pop %v1677
    %v1679 = vadd.f32 %v1678, 1.0
    %v1680 = vrcp.pop %v1679
    %v1681 = vmul.f32 1.0, %v1680
    %v1682 = vmul.f32 %v1674, %v1507
    %v1683 = vmul.f32 %v1668, %v1675
    %v1684 = vadd.f32 %v1682, %v1683
    %v1685 = vtanh.pop %v1684
    %v1686 = vmul.f32 %v1681, %v1685
    %s1687 = scalar_lea.vmem [#allocation3], 40
    %1688 = vst [vmem:[%s1687] sm:$0xff] %v1686
    %s1689 = scalar_lea.vmem [#allocation2], 192
    %v1690 = vld [vmem:[%s1689] sm:$0xff]
    %v1691 = vld [vmem:[%s1689 + $0x8] sm:$0xff]
    %v1692 = vld [vmem:[%s1689 + $0x10] sm:$0xff]
    %v1693 = vld [vmem:[%s1689 + $0x18] sm:$0xff]
    %1694 = vmatprep.subr.mxu0 %v142
    %1695 = vmatpush1.msra.mxu0 %v141
    %1696 = vmatprep.subr.mxu0 %v146
    %1697 = vmatpush1.msra.mxu0 %v145
    %1698 = vmatprep.subr.mxu0 %v150
    %1699 = vmatpush1.msra.mxu0 %v149
    %1700 = vmatprep.subr.mxu0 %v154
    %1701 = vmatpush1.msra.mxu0 %v153
    %1702 = vmatprep.subr.mxu0 %v158
    %1703 = vmatpush1.msra.mxu0 %v157
    %1704 = vmatprep.subr.mxu0 %v162
    %1705 = vmatpush1.msra.mxu0 %v161
    %1706 = vmatprep.subr.mxu0 %v166
    %1707 = vmatpush1.msra.mxu0 %v165
    %1708 = vmatprep.subr.mxu0 %v170
    %1709 = vmatpush1.msra.mxu0 %v169
    %1710 = vmatprep.subr.mxu0 %v174
    %1711 = vmatpush1.msra.mxu0 %v173
    %1712 = vmatprep.subr.mxu0 %v178
    %1713 = vmatpush1.msra.mxu0 %v177
    %1714 = vmatprep.subr.mxu0 %v182
    %1715 = vmatpush1.msra.mxu0 %v181
    %1716 = vmatprep.subr.mxu0 %v186
    %1717 = vmatpush1.msra.mxu0 %v185
    %1718 = vmatprep.subr.mxu0 %v190
    %1719 = vmatpush1.msra.mxu0 %v189
    %1720 = vmatprep.subr.mxu0 %v194
    %1721 = vmatpush1.msra.mxu0 %v193
    %1722 = vmatprep.subr.mxu0 %v198
    %1723 = vmatpush1.msra.mxu0 %v197
    %1724 = vmatprep.subr.mxu0 %v202
    %1725 = vmatpush1.msra.mxu0 %v201
    %1726 = vmatprep.subr.mxu0 0.0
    %1727 = vmatpush1.msra.mxu0 0.0
    %1728 = vmatprep.subr.mxu0 0.0
    %1729 = vmatpush1.msra.mxu0 0.0
    %1730 = vmatprep.subr.mxu0 0.0
    %1731 = vmatpush1.msra.mxu0 0.0
    %1732 = vmatprep.subr.mxu0 0.0
    %1733 = vmatpush1.msra.mxu0 0.0
    %1734 = vmatprep.subr.mxu0 0.0
    %1735 = vmatpush1.msra.mxu0 0.0
    %1736 = vmatprep.subr.mxu0 0.0
    %1737 = vmatpush1.msra.mxu0 0.0
    %1738 = vmatprep.subr.mxu0 0.0
    %1739 = vmatpush1.msra.mxu0 0.0
    %1740 = vmatprep.subr.mxu0 0.0
    %1741 = vmatpush1.msra.mxu0 0.0
    %1742 = vmatprep.subr.mxu0 0.0
    %1743 = vmatpush1.msra.mxu0 0.0
    %1744 = vmatprep.subr.mxu0 0.0
    %1745 = vmatpush1.msra.mxu0 0.0
    %1746 = vmatprep.subr.mxu0 0.0
    %1747 = vmatpush1.msra.mxu0 0.0
    %1748 = vmatprep.subr.mxu0 0.0
    %1749 = vmatpush1.msra.mxu0 0.0
    %1750 = vmatprep.subr.mxu0 0.0
    %1751 = vmatpush1.msra.mxu0 0.0
    %1752 = vmatprep.subr.mxu0 0.0
    %1753 = vmatpush1.msra.mxu0 0.0
    %1754 = vmatprep.subr.mxu0 0.0
    %1755 = vmatpush1.msra.mxu0 0.0
    %1756 = vmatprep.subr.mxu0 0.0
    %1757 = vmatpush1.msra.mxu0 0.0
    %1758 = vmatprep.mubr.f32.mxu0 0.0
    %1759 = vmatmul.mubr.f32.gmra.mrb[0].mxu0 %v1686
    %v1760 = vpop.f32.mrb[0].mxu0
    %v1761 = vadd.f32 0.0, %v1760
    %v1762 = vpop.f32.mrb[0].mxu0
    %v1763 = vadd.f32 0.0, %v1762
    %1764 = vdwg.mxu0
    %1765 = vmatprep.subr.mxu0 %v144
    %1766 = vmatpush1.msra.mxu0 %v143
    %1767 = vmatprep.subr.mxu0 %v148
    %1768 = vmatpush1.msra.mxu0 %v147
    %1769 = vmatprep.subr.mxu0 %v152
    %1770 = vmatpush1.msra.mxu0 %v151
    %1771 = vmatprep.subr.mxu0 %v156
    %1772 = vmatpush1.msra.mxu0 %v155
    %1773 = vmatprep.subr.mxu0 %v160
    %1774 = vmatpush1.msra.mxu0 %v159
    %1775 = vmatprep.subr.mxu0 %v164
    %1776 = vmatpush1.msra.mxu0 %v163
    %1777 = vmatprep.subr.mxu0 %v168
    %1778 = vmatpush1.msra.mxu0 %v167
    %1779 = vmatprep.subr.mxu0 %v172
    %1780 = vmatpush1.msra.mxu0 %v171
    %1781 = vmatprep.subr.mxu0 %v176
    %1782 = vmatpush1.msra.mxu0 %v175
    %1783 = vmatprep.subr.mxu0 %v180
    %1784 = vmatpush1.msra.mxu0 %v179
    %1785 = vmatprep.subr.mxu0 %v184
    %1786 = vmatpush1.msra.mxu0 %v183
    %1787 = vmatprep.subr.mxu0 %v188
    %1788 = vmatpush1.msra.mxu0 %v187
    %1789 = vmatprep.subr.mxu0 %v192
    %1790 = vmatpush1.msra.mxu0 %v191
    %1791 = vmatprep.subr.mxu0 %v196
    %1792 = vmatpush1.msra.mxu0 %v195
    %1793 = vmatprep.subr.mxu0 %v200
    %1794 = vmatpush1.msra.mxu0 %v199
    %1795 = vmatprep.subr.mxu0 %v204
    %1796 = vmatpush1.msra.mxu0 %v203
    %1797 = vmatprep.subr.mxu0 0.0
    %1798 = vmatpush1.msra.mxu0 0.0
    %1799 = vmatprep.subr.mxu0 0.0
    %1800 = vmatpush1.msra.mxu0 0.0
    %1801 = vmatprep.subr.mxu0 0.0
    %1802 = vmatpush1.msra.mxu0 0.0
    %1803 = vmatprep.subr.mxu0 0.0
    %1804 = vmatpush1.msra.mxu0 0.0
    %1805 = vmatprep.subr.mxu0 0.0
    %1806 = vmatpush1.msra.mxu0 0.0
    %1807 = vmatprep.subr.mxu0 0.0
    %1808 = vmatpush1.msra.mxu0 0.0
    %1809 = vmatprep.subr.mxu0 0.0
    %1810 = vmatpush1.msra.mxu0 0.0
    %1811 = vmatprep.subr.mxu0 0.0
    %1812 = vmatpush1.msra.mxu0 0.0
    %1813 = vmatprep.subr.mxu0 0.0
    %1814 = vmatpush1.msra.mxu0 0.0
    %1815 = vmatprep.subr.mxu0 0.0
    %1816 = vmatpush1.msra.mxu0 0.0
    %1817 = vmatprep.subr.mxu0 0.0
    %1818 = vmatpush1.msra.mxu0 0.0
    %1819 = vmatprep.subr.mxu0 0.0
    %1820 = vmatpush1.msra.mxu0 0.0
    %1821 = vmatprep.subr.mxu0 0.0
    %1822 = vmatpush1.msra.mxu0 0.0
    %1823 = vmatprep.subr.mxu0 0.0
    %1824 = vmatpush1.msra.mxu0 0.0
    %1825 = vmatprep.subr.mxu0 0.0
    %1826 = vmatpush1.msra.mxu0 0.0
    %1827 = vmatprep.subr.mxu0 0.0
    %1828 = vmatpush1.msra.mxu0 0.0
    %1829 = vmatprep.mubr.f32.mxu0 0.0
    %1830 = vmatmul.mubr.f32.gmra.mrb[0].mxu0 %v1686
    %v1831 = vpop.f32.mrb[0].mxu0
    %v1832 = vadd.f32 0.0, %v1831
    %v1833 = vpop.f32.mrb[0].mxu0
    %v1834 = vadd.f32 0.0, %v1833
    %1835 = vdwg.mxu0
    %v1836 = vadd.f32 %v1690, %v1761
    %v1837 = vadd.f32 %v1691, %v1763
    %v1838 = vadd.f32 %v1692, %v1832
    %v1839 = vadd.f32 %v1693, %v1834
    %v1840 = vxor.u32 %v1836, 2147483648
    %v1841 = vmul.f32 %v1840, 1.442695
    %v1842 = vpow.pop %v1841
    %v1843 = vadd.f32 %v1842, 1.0
    %v1844 = vrcp.pop %v1843
    %v1845 = vmul.f32 1.0, %v1844
    %v1846 = vxor.u32 %v1837, 2147483648
    %v1847 = vmul.f32 %v1846, 1.442695
    %v1848 = vpow.pop %v1847
    %v1849 = vadd.f32 %v1848, 1.0
    %v1850 = vrcp.pop %v1849
    %v1851 = vmul.f32 1.0, %v1850
    %v1852 = vtanh.pop %v1838
    %v1853 = vxor.u32 %v1839, 2147483648
    %v1854 = vmul.f32 %v1853, 1.442695
    %v1855 = vpow.pop %v1854
    %v1856 = vadd.f32 %v1855, 1.0
    %v1857 = vrcp.pop %v1856
    %v1858 = vmul.f32 1.0, %v1857
    %v1859 = vmul.f32 %v1851, %v1684
    %v1860 = vmul.f32 %v1845, %v1852
    %v1861 = vadd.f32 %v1859, %v1860
    %v1862 = vtanh.pop %v1861
    %v1863 = vmul.f32 %v1858, %v1862
    %s1864 = scalar_lea.vmem [#allocation3], 48
    %1865 = vst [vmem:[%s1864] sm:$0xff] %v1863
    %s1866 = scalar_lea.vmem [#allocation2], 224
    %v1867 = vld [vmem:[%s1866] sm:$0xff]
    %v1868 = vld [vmem:[%s1866 + $0x8] sm:$0xff]
    %v1869 = vld [vmem:[%s1866 + $0x10] sm:$0xff]
    %v1870 = vld [vmem:[%s1866 + $0x18] sm:$0xff]
    %1871 = vmatprep.subr.mxu0 %v142
    %1872 = vmatpush1.msra.mxu0 %v141
    %1873 = vmatprep.subr.mxu0 %v146
    %1874 = vmatpush1.msra.mxu0 %v145
    %1875 = vmatprep.subr.mxu0 %v150
    %1876 = vmatpush1.msra.mxu0 %v149
    %1877 = vmatprep.subr.mxu0 %v154
    %1878 = vmatpush1.msra.mxu0 %v153
    %1879 = vmatprep.subr.mxu0 %v158
    %1880 = vmatpush1.msra.mxu0 %v157
    %1881 = vmatprep.subr.mxu0 %v162
    %1882 = vmatpush1.msra.mxu0 %v161
    %1883 = vmatprep.subr.mxu0 %v166
    %1884 = vmatpush1.msra.mxu0 %v165
    %1885 = vmatprep.subr.mxu0 %v170
    %1886 = vmatpush1.msra.mxu0 %v169
    %1887 = vmatprep.subr.mxu0 %v174
    %1888 = vmatpush1.msra.mxu0 %v173
    %1889 = vmatprep.subr.mxu0 %v178
    %1890 = vmatpush1.msra.mxu0 %v177
    %1891 = vmatprep.subr.mxu0 %v182
    %1892 = vmatpush1.msra.mxu0 %v181
    %1893 = vmatprep.subr.mxu0 %v186
    %1894 = vmatpush1.msra.mxu0 %v185
    %1895 = vmatprep.subr.mxu0 %v190
    %1896 = vmatpush1.msra.mxu0 %v189
    %1897 = vmatprep.subr.mxu0 %v194
    %1898 = vmatpush1.msra.mxu0 %v193
    %1899 = vmatprep.subr.mxu0 %v198
    %1900 = vmatpush1.msra.mxu0 %v197
    %1901 = vmatprep.subr.mxu0 %v202
    %1902 = vmatpush1.msra.mxu0 %v201
    %1903 = vmatprep.subr.mxu0 0.0
    %1904 = vmatpush1.msra.mxu0 0.0
    %1905 = vmatprep.subr.mxu0 0.0
    %1906 = vmatpush1.msra.mxu0 0.0
    %1907 = vmatprep.subr.mxu0 0.0
    %1908 = vmatpush1.msra.mxu0 0.0
    %1909 = vmatprep.subr.mxu0 0.0
    %1910 = vmatpush1.msra.mxu0 0.0
    %1911 = vmatprep.subr.mxu0 0.0
    %1912 = vmatpush1.msra.mxu0 0.0
    %1913 = vmatprep.subr.mxu0 0.0
    %1914 = vmatpush1.msra.mxu0 0.0
    %1915 = vmatprep.subr.mxu0 0.0
    %1916 = vmatpush1.msra.mxu0 0.0
    %1917 = vmatprep.subr.mxu0 0.0
    %1918 = vmatpush1.msra.mxu0 0.0
    %1919 = vmatprep.subr.mxu0 0.0
    %1920 = vmatpush1.msra.mxu0 0.0
    %1921 = vmatprep.subr.mxu0 0.0
    %1922 = vmatpush1.msra.mxu0 0.0
    %1923 = vmatprep.subr.mxu0 0.0
    %1924 = vmatpush1.msra.mxu0 0.0
    %1925 = vmatprep.subr.mxu0 0.0
    %1926 = vmatpush1.msra.mxu0 0.0
    %1927 = vmatprep.subr.mxu0 0.0
    %1928 = vmatpush1.msra.mxu0 0.0
    %1929 = vmatprep.subr.mxu0 0.0
    %1930 = vmatpush1.msra.mxu0 0.0
    %1931 = vmatprep.subr.mxu0 0.0
    %1932 = vmatpush1.msra.mxu0 0.0
    %1933 = vmatprep.subr.mxu0 0.0
    %1934 = vmatpush1.msra.mxu0 0.0
    %1935 = vmatprep.mubr.f32.mxu0 0.0
    %1936 = vmatmul.mubr.f32.gmra.mrb[0].mxu0 %v1863
    %v1937 = vpop.f32.mrb[0].mxu0
    %v1938 = vadd.f32 0.0, %v1937
    %v1939 = vpop.f32.mrb[0].mxu0
    %v1940 = vadd.f32 0.0, %v1939
    %1941 = vdwg.mxu0
    %1942 = vmatprep.subr.mxu0 %v144
    %1943 = vmatpush1.msra.mxu0 %v143
    %1944 = vmatprep.subr.mxu0 %v148
    %1945 = vmatpush1.msra.mxu0 %v147
    %1946 = vmatprep.subr.mxu0 %v152
    %1947 = vmatpush1.msra.mxu0 %v151
    %1948 = vmatprep.subr.mxu0 %v156
    %1949 = vmatpush1.msra.mxu0 %v155
    %1950 = vmatprep.subr.mxu0 %v160
    %1951 = vmatpush1.msra.mxu0 %v159
    %1952 = vmatprep.subr.mxu0 %v164
    %1953 = vmatpush1.msra.mxu0 %v163
    %1954 = vmatprep.subr.mxu0 %v168
    %1955 = vmatpush1.msra.mxu0 %v167
    %1956 = vmatprep.subr.mxu0 %v172
    %1957 = vmatpush1.msra.mxu0 %v171
    %1958 = vmatprep.subr.mxu0 %v176
    %1959 = vmatpush1.msra.mxu0 %v175
    %1960 = vmatprep.subr.mxu0 %v180
    %1961 = vmatpush1.msra.mxu0 %v179
    %1962 = vmatprep.subr.mxu0 %v184
    %1963 = vmatpush1.msra.mxu0 %v183
    %1964 = vmatprep.subr.mxu0 %v188
    %1965 = vmatpush1.msra.mxu0 %v187
    %1966 = vmatprep.subr.mxu0 %v192
    %1967 = vmatpush1.msra.mxu0 %v191
    %1968 = vmatprep.subr.mxu0 %v196
    %1969 = vmatpush1.msra.mxu0 %v195
    %1970 = vmatprep.subr.mxu0 %v200
    %1971 = vmatpush1.msra.mxu0 %v199
    %1972 = vmatprep.subr.mxu0 %v204
    %1973 = vmatpush1.msra.mxu0 %v203
    %1974 = vmatprep.subr.mxu0 0.0
    %1975 = vmatpush1.msra.mxu0 0.0
    %1976 = vmatprep.subr.mxu0 0.0
    %1977 = vmatpush1.msra.mxu0 0.0
    %1978 = vmatprep.subr.mxu0 0.0
    %1979 = vmatpush1.msra.mxu0 0.0
    %1980 = vmatprep.subr.mxu0 0.0
    %1981 = vmatpush1.msra.mxu0 0.0
    %1982 = vmatprep.subr.mxu0 0.0
    %1983 = vmatpush1.msra.mxu0 0.0
    %1984 = vmatprep.subr.mxu0 0.0
    %1985 = vmatpush1.msra.mxu0 0.0
    %1986 = vmatprep.subr.mxu0 0.0
    %1987 = vmatpush1.msra.mxu0 0.0
    %1988 = vmatprep.subr.mxu0 0.0
    %1989 = vmatpush1.msra.mxu0 0.0
    %1990 = vmatprep.subr.mxu0 0.0
    %1991 = vmatpush1.msra.mxu0 0.0
    %1992 = vmatprep.subr.mxu0 0.0
    %1993 = vmatpush1.msra.mxu0 0.0
    %1994 = vmatprep.subr.mxu0 0.0
    %1995 = vmatpush1.msra.mxu0 0.0
    %1996 = vmatprep.subr.mxu0 0.0
    %1997 = vmatpush1.msra.mxu0 0.0
    %1998 = vmatprep.subr.mxu0 0.0
    %1999 = vmatpush1.msra.mxu0 0.0
    %2000 = vmatprep.subr.mxu0 0.0
    %2001 = vmatpush1.msra.mxu0 0.0
    %2002 = vmatprep.subr.mxu0 0.0
    %2003 = vmatpush1.msra.mxu0 0.0
    %2004 = vmatprep.subr.mxu0 0.0
    %2005 = vmatpush1.msra.mxu0 0.0
    %2006 = vmatprep.mubr.f32.mxu0 0.0
    %2007 = vmatmul.mubr.f32.gmra.mrb[0].mxu0 %v1863
    %v2008 = vpop.f32.mrb[0].mxu0
    %v2009 = vadd.f32 0.0, %v2008
    %v2010 = vpop.f32.mrb[0].mxu0
    %v2011 = vadd.f32 0.0, %v2010
    %2012 = vdwg.mxu0
    %v2013 = vadd.f32 %v1867, %v1938
    %v2014 = vadd.f32 %v1868, %v1940
    %v2015 = vadd.f32 %v1869, %v2009
    %v2016 = vadd.f32 %v1870, %v2011
    %v2017 = vxor.u32 %v2013, 2147483648
    %v2018 = vmul.f32 %v2017, 1.442695
    %v2019 = vpow.pop %v2018
    %v2020 = vadd.f32 %v2019, 1.0
    %v2021 = vrcp.pop %v2020
    %v2022 = vmul.f32 1.0, %v2021
    %v2023 = vxor.u32 %v2014, 2147483648
    %v2024 = vmul.f32 %v2023, 1.442695
    %v2025 = vpow.pop %v2024
    %v2026 = vadd.f32 %v2025, 1.0
    %v2027 = vrcp.pop %v2026
    %v2028 = vmul.f32 1.0, %v2027
    %v2029 = vtanh.pop %v2015
    %v2030 = vxor.u32 %v2016, 2147483648
    %v2031 = vmul.f32 %v2030, 1.442695
    %v2032 = vpow.pop %v2031
    %v2033 = vadd.f32 %v2032, 1.0
    %v2034 = vrcp.pop %v2033
    %v2035 = vmul.f32 1.0, %v2034
    %v2036 = vmul.f32 %v2028, %v1861
    %v2037 = vmul.f32 %v2022, %v2029
    %v2038 = vadd.f32 %v2036, %v2037
    %v2039 = vtanh.pop %v2038
    %v2040 = vmul.f32 %v2035, %v2039
    %s2041 = scalar_lea.vmem [#allocation3], 56
    %2042 = vst [vmem:[%s2041] sm:$0xff] %v2040
    %s2043 = scalar_lea.vmem [#allocation2], 256
    %v2044 = vld [vmem:[%s2043] sm:$0xff]
    %v2045 = vld [vmem:[%s2043 + $0x8] sm:$0xff]
    %v2046 = vld [vmem:[%s2043 + $0x10] sm:$0xff]
    %v2047 = vld [vmem:[%s2043 + $0x18] sm:$0xff]
    %2048 = vmatprep.subr.mxu0 %v142
    %2049 = vmatpush1.msra.mxu0 %v141
    %2050 = vmatprep.subr.mxu0 %v146
    %2051 = vmatpush1.msra.mxu0 %v145
    %2052 = vmatprep.subr.mxu0 %v150
    %2053 = vmatpush1.msra.mxu0 %v149
    %2054 = vmatprep.subr.mxu0 %v154
    %2055 = vmatpush1.msra.mxu0 %v153
    %2056 = vmatprep.subr.mxu0 %v158
    %2057 = vmatpush1.msra.mxu0 %v157
    %2058 = vmatprep.subr.mxu0 %v162
    %2059 = vmatpush1.msra.mxu0 %v161
    %2060 = vmatprep.subr.mxu0 %v166
    %2061 = vmatpush1.msra.mxu0 %v165
    %2062 = vmatprep.subr.mxu0 %v170
    %2063 = vmatpush1.msra.mxu0 %v169
    %2064 = vmatprep.subr.mxu0 %v174
    %2065 = vmatpush1.msra.mxu0 %v173
    %2066 = vmatprep.subr.mxu0 %v178
    %2067 = vmatpush1.msra.mxu0 %v177
    %2068 = vmatprep.subr.mxu0 %v182
    %2069 = vmatpush1.msra.mxu0 %v181
    %2070 = vmatprep.subr.mxu0 %v186
    %2071 = vmatpush1.msra.mxu0 %v185
    %2072 = vmatprep.subr.mxu0 %v190
    %2073 = vmatpush1.msra.mxu0 %v189
    %2074 = vmatprep.subr.mxu0 %v194
    %2075 = vmatpush1.msra.mxu0 %v193
    %2076 = vmatprep.subr.mxu0 %v198
    %2077 = vmatpush1.msra.mxu0 %v197
    %2078 = vmatprep.subr.mxu0 %v202
    %2079 = vmatpush1.msra.mxu0 %v201
    %2080 = vmatprep.subr.mxu0 0.0
    %2081 = vmatpush1.msra.mxu0 0.0
    %2082 = vmatprep.subr.mxu0 0.0
    %2083 = vmatpush1.msra.mxu0 0.0
    %2084 = vmatprep.subr.mxu0 0.0
    %2085 = vmatpush1.msra.mxu0 0.0
    %2086 = vmatprep.subr.mxu0 0.0
    %2087 = vmatpush1.msra.mxu0 0.0
    %2088 = vmatprep.subr.mxu0 0.0
    %2089 = vmatpush1.msra.mxu0 0.0
    %2090 = vmatprep.subr.mxu0 0.0
    %2091 = vmatpush1.msra.mxu0 0.0
    %2092 = vmatprep.subr.mxu0 0.0
    %2093 = vmatpush1.msra.mxu0 0.0
    %2094 = vmatprep.subr.mxu0 0.0
    %2095 = vmatpush1.msra.mxu0 0.0
    %2096 = vmatprep.subr.mxu0 0.0
    %2097 = vmatpush1.msra.mxu0 0.0
    %2098 = vmatprep.subr.mxu0 0.0
    %2099 = vmatpush1.msra.mxu0 0.0
    %2100 = vmatprep.subr.mxu0 0.0
    %2101 = vmatpush1.msra.mxu0 0.0
    %2102 = vmatprep.subr.mxu0 0.0
    %2103 = vmatpush1.msra.mxu0 0.0
    %2104 = vmatprep.subr.mxu0 0.0
    %2105 = vmatpush1.msra.mxu0 0.0
    %2106 = vmatprep.subr.mxu0 0.0
    %2107 = vmatpush1.msra.mxu0 0.0
    %2108 = vmatprep.subr.mxu0 0.0
    %2109 = vmatpush1.msra.mxu0 0.0
    %2110 = vmatprep.subr.mxu0 0.0
    %2111 = vmatpush1.msra.mxu0 0.0
    %2112 = vmatprep.mubr.f32.mxu0 0.0
    %2113 = vmatmul.mubr.f32.gmra.mrb[0].mxu0 %v2040
    %v2114 = vpop.f32.mrb[0].mxu0
    %v2115 = vadd.f32 0.0, %v2114
    %v2116 = vpop.f32.mrb[0].mxu0
    %v2117 = vadd.f32 0.0, %v2116
    %2118 = vdwg.mxu0
    %2119 = vmatprep.subr.mxu0 %v144
    %2120 = vmatpush1.msra.mxu0 %v143
    %2121 = vmatprep.subr.mxu0 %v148
    %2122 = vmatpush1.msra.mxu0 %v147
    %2123 = vmatprep.subr.mxu0 %v152
    %2124 = vmatpush1.msra.mxu0 %v151
    %2125 = vmatprep.subr.mxu0 %v156
    %2126 = vmatpush1.msra.mxu0 %v155
    %2127 = vmatprep.subr.mxu0 %v160
    %2128 = vmatpush1.msra.mxu0 %v159
    %2129 = vmatprep.subr.mxu0 %v164
    %2130 = vmatpush1.msra.mxu0 %v163
    %2131 = vmatprep.subr.mxu0 %v168
    %2132 = vmatpush1.msra.mxu0 %v167
    %2133 = vmatprep.subr.mxu0 %v172
    %2134 = vmatpush1.msra.mxu0 %v171
    %2135 = vmatprep.subr.mxu0 %v176
    %2136 = vmatpush1.msra.mxu0 %v175
    %2137 = vmatprep.subr.mxu0 %v180
    %2138 = vmatpush1.msra.mxu0 %v179
    %2139 = vmatprep.subr.mxu0 %v184
    %2140 = vmatpush1.msra.mxu0 %v183
    %2141 = vmatprep.subr.mxu0 %v188
    %2142 = vmatpush1.msra.mxu0 %v187
    %2143 = vmatprep.subr.mxu0 %v192
    %2144 = vmatpush1.msra.mxu0 %v191
    %2145 = vmatprep.subr.mxu0 %v196
    %2146 = vmatpush1.msra.mxu0 %v195
    %2147 = vmatprep.subr.mxu0 %v200
    %2148 = vmatpush1.msra.mxu0 %v199
    %2149 = vmatprep.subr.mxu0 %v204
    %2150 = vmatpush1.msra.mxu0 %v203
    %2151 = vmatprep.subr.mxu0 0.0
    %2152 = vmatpush1.msra.mxu0 0.0
    %2153 = vmatprep.subr.mxu0 0.0
    %2154 = vmatpush1.msra.mxu0 0.0
    %2155 = vmatprep.subr.mxu0 0.0
    %2156 = vmatpush1.msra.mxu0 0.0
    %2157 = vmatprep.subr.mxu0 0.0
    %2158 = vmatpush1.msra.mxu0 0.0
    %2159 = vmatprep.subr.mxu0 0.0
    %2160 = vmatpush1.msra.mxu0 0.0
    %2161 = vmatprep.subr.mxu0 0.0
    %2162 = vmatpush1.msra.mxu0 0.0
    %2163 = vmatprep.subr.mxu0 0.0
    %2164 = vmatpush1.msra.mxu0 0.0
    %2165 = vmatprep.subr.mxu0 0.0
    %2166 = vmatpush1.msra.mxu0 0.0
    %2167 = vmatprep.subr.mxu0 0.0
    %2168 = vmatpush1.msra.mxu0 0.0
    %2169 = vmatprep.subr.mxu0 0.0
    %2170 = vmatpush1.msra.mxu0 0.0
    %2171 = vmatprep.subr.mxu0 0.0
    %2172 = vmatpush1.msra.mxu0 0.0
    %2173 = vmatprep.subr.mxu0 0.0
    %2174 = vmatpush1.msra.mxu0 0.0
    %2175 = vmatprep.subr.mxu0 0.0
    %2176 = vmatpush1.msra.mxu0 0.0
    %2177 = vmatprep.subr.mxu0 0.0
    %2178 = vmatpush1.msra.mxu0 0.0
    %2179 = vmatprep.subr.mxu0 0.0
    %2180 = vmatpush1.msra.mxu0 0.0
    %2181 = vmatprep.subr.mxu0 0.0
    %2182 = vmatpush1.msra.mxu0 0.0
    %2183 = vmatprep.mubr.f32.mxu0 0.0
    %2184 = vmatmul.mubr.f32.gmra.mrb[0].mxu0 %v2040
    %v2185 = vpop.f32.mrb[0].mxu0
    %v2186 = vadd.f32 0.0, %v2185
    %v2187 = vpop.f32.mrb[0].mxu0
    %v2188 = vadd.f32 0.0, %v2187
    %2189 = vdwg.mxu0
    %v2190 = vadd.f32 %v2044, %v2115
    %v2191 = vadd.f32 %v2045, %v2117
    %v2192 = vadd.f32 %v2046, %v2186
    %v2193 = vadd.f32 %v2047, %v2188
    %v2194 = vxor.u32 %v2190, 2147483648
    %v2195 = vmul.f32 %v2194, 1.442695
    %v2196 = vpow.pop %v2195
    %v2197 = vadd.f32 %v2196, 1.0
    %v2198 = vrcp.pop %v2197
    %v2199 = vmul.f32 1.0, %v2198
    %v2200 = vxor.u32 %v2191, 2147483648
    %v2201 = vmul.f32 %v2200, 1.442695
    %v2202 = vpow.pop %v2201
    %v2203 = vadd.f32 %v2202, 1.0
    %v2204 = vrcp.pop %v2203
    %v2205 = vmul.f32 1.0, %v2204
    %v2206 = vtanh.pop %v2192
    %v2207 = vxor.u32 %v2193, 2147483648
    %v2208 = vmul.f32 %v2207, 1.442695
    %v2209 = vpow.pop %v2208
    %v2210 = vadd.f32 %v2209, 1.0
    %v2211 = vrcp.pop %v2210
    %v2212 = vmul.f32 1.0, %v2211
    %v2213 = vmul.f32 %v2205, %v2038
    %v2214 = vmul.f32 %v2199, %v2206
    %v2215 = vadd.f32 %v2213, %v2214
    %v2216 = vtanh.pop %v2215
    %v2217 = vmul.f32 %v2212, %v2216
    %s2218 = scalar_lea.vmem [#allocation3], 64
    %2219 = vst [vmem:[%s2218] sm:$0xff] %v2217
    %s2220 = scalar_lea.vmem [#allocation2], 288
    %v2221 = vld [vmem:[%s2220] sm:$0xff]
    %v2222 = vld [vmem:[%s2220 + $0x8] sm:$0xff]
    %v2223 = vld [vmem:[%s2220 + $0x10] sm:$0xff]
    %v2224 = vld [vmem:[%s2220 + $0x18] sm:$0xff]
    %2225 = vmatprep.subr.mxu0 %v142
    %2226 = vmatpush1.msra.mxu0 %v141
    %2227 = vmatprep.subr.mxu0 %v146
    %2228 = vmatpush1.msra.mxu0 %v145
    %2229 = vmatprep.subr.mxu0 %v150
    %2230 = vmatpush1.msra.mxu0 %v149
    %2231 = vmatprep.subr.mxu0 %v154
    %2232 = vmatpush1.msra.mxu0 %v153
    %2233 = vmatprep.subr.mxu0 %v158
    %2234 = vmatpush1.msra.mxu0 %v157
    %2235 = vmatprep.subr.mxu0 %v162
    %2236 = vmatpush1.msra.mxu0 %v161
    %2237 = vmatprep.subr.mxu0 %v166
    %2238 = vmatpush1.msra.mxu0 %v165
    %2239 = vmatprep.subr.mxu0 %v170
    %2240 = vmatpush1.msra.mxu0 %v169
    %2241 = vmatprep.subr.mxu0 %v174
    %2242 = vmatpush1.msra.mxu0 %v173
    %2243 = vmatprep.subr.mxu0 %v178
    %2244 = vmatpush1.msra.mxu0 %v177
    %2245 = vmatprep.subr.mxu0 %v182
    %2246 = vmatpush1.msra.mxu0 %v181
    %2247 = vmatprep.subr.mxu0 %v186
    %2248 = vmatpush1.msra.mxu0 %v185
    %2249 = vmatprep.subr.mxu0 %v190
    %2250 = vmatpush1.msra.mxu0 %v189
    %2251 = vmatprep.subr.mxu0 %v194
    %2252 = vmatpush1.msra.mxu0 %v193
    %2253 = vmatprep.subr.mxu0 %v198
    %2254 = vmatpush1.msra.mxu0 %v197
    %2255 = vmatprep.subr.mxu0 %v202
    %2256 = vmatpush1.msra.mxu0 %v201
    %2257 = vmatprep.subr.mxu0 0.0
    %2258 = vmatpush1.msra.mxu0 0.0
    %2259 = vmatprep.subr.mxu0 0.0
    %2260 = vmatpush1.msra.mxu0 0.0
    %2261 = vmatprep.subr.mxu0 0.0
    %2262 = vmatpush1.msra.mxu0 0.0
    %2263 = vmatprep.subr.mxu0 0.0
    %2264 = vmatpush1.msra.mxu0 0.0
    %2265 = vmatprep.subr.mxu0 0.0
    %2266 = vmatpush1.msra.mxu0 0.0
    %2267 = vmatprep.subr.mxu0 0.0
    %2268 = vmatpush1.msra.mxu0 0.0
    %2269 = vmatprep.subr.mxu0 0.0
    %2270 = vmatpush1.msra.mxu0 0.0
    %2271 = vmatprep.subr.mxu0 0.0
    %2272 = vmatpush1.msra.mxu0 0.0
    %2273 = vmatprep.subr.mxu0 0.0
    %2274 = vmatpush1.msra.mxu0 0.0
    %2275 = vmatprep.subr.mxu0 0.0
    %2276 = vmatpush1.msra.mxu0 0.0
    %2277 = vmatprep.subr.mxu0 0.0
    %2278 = vmatpush1.msra.mxu0 0.0
    %2279 = vmatprep.subr.mxu0 0.0
    %2280 = vmatpush1.msra.mxu0 0.0
    %2281 = vmatprep.subr.mxu0 0.0
    %2282 = vmatpush1.msra.mxu0 0.0
    %2283 = vmatprep.subr.mxu0 0.0
    %2284 = vmatpush1.msra.mxu0 0.0
    %2285 = vmatprep.subr.mxu0 0.0
    %2286 = vmatpush1.msra.mxu0 0.0
    %2287 = vmatprep.subr.mxu0 0.0
    %2288 = vmatpush1.msra.mxu0 0.0
    %2289 = vmatprep.mubr.f32.mxu0 0.0
    %2290 = vmatmul.mubr.f32.gmra.mrb[0].mxu0 %v2217
    %v2291 = vpop.f32.mrb[0].mxu0
    %v2292 = vadd.f32 0.0, %v2291
    %v2293 = vpop.f32.mrb[0].mxu0
    %v2294 = vadd.f32 0.0, %v2293
    %2295 = vdwg.mxu0
    %2296 = vmatprep.subr.mxu0 %v144
    %2297 = vmatpush1.msra.mxu0 %v143
    %2298 = vmatprep.subr.mxu0 %v148
    %2299 = vmatpush1.msra.mxu0 %v147
    %2300 = vmatprep.subr.mxu0 %v152
    %2301 = vmatpush1.msra.mxu0 %v151
    %2302 = vmatprep.subr.mxu0 %v156
    %2303 = vmatpush1.msra.mxu0 %v155
    %2304 = vmatprep.subr.mxu0 %v160
    %2305 = vmatpush1.msra.mxu0 %v159
    %2306 = vmatprep.subr.mxu0 %v164
    %2307 = vmatpush1.msra.mxu0 %v163
    %2308 = vmatprep.subr.mxu0 %v168
    %2309 = vmatpush1.msra.mxu0 %v167
    %2310 = vmatprep.subr.mxu0 %v172
    %2311 = vmatpush1.msra.mxu0 %v171
    %2312 = vmatprep.subr.mxu0 %v176
    %2313 = vmatpush1.msra.mxu0 %v175
    %2314 = vmatprep.subr.mxu0 %v180
    %2315 = vmatpush1.msra.mxu0 %v179
    %2316 = vmatprep.subr.mxu0 %v184
    %2317 = vmatpush1.msra.mxu0 %v183
    %2318 = vmatprep.subr.mxu0 %v188
    %2319 = vmatpush1.msra.mxu0 %v187
    %2320 = vmatprep.subr.mxu0 %v192
    %2321 = vmatpush1.msra.mxu0 %v191
    %2322 = vmatprep.subr.mxu0 %v196
    %2323 = vmatpush1.msra.mxu0 %v195
    %2324 = vmatprep.subr.mxu0 %v200
    %2325 = vmatpush1.msra.mxu0 %v199
    %2326 = vmatprep.subr.mxu0 %v204
    %2327 = vmatpush1.msra.mxu0 %v203
    %2328 = vmatprep.subr.mxu0 0.0
    %2329 = vmatpush1.msra.mxu0 0.0
    %2330 = vmatprep.subr.mxu0 0.0
    %2331 = vmatpush1.msra.mxu0 0.0
    %2332 = vmatprep.subr.mxu0 0.0
    %2333 = vmatpush1.msra.mxu0 0.0
    %2334 = vmatprep.subr.mxu0 0.0
    %2335 = vmatpush1.msra.mxu0 0.0
    %2336 = vmatprep.subr.mxu0 0.0
    %2337 = vmatpush1.msra.mxu0 0.0
    %2338 = vmatprep.subr.mxu0 0.0
    %2339 = vmatpush1.msra.mxu0 0.0
    %2340 = vmatprep.subr.mxu0 0.0
    %2341 = vmatpush1.msra.mxu0 0.0
    %2342 = vmatprep.subr.mxu0 0.0
    %2343 = vmatpush1.msra.mxu0 0.0
    %2344 = vmatprep.subr.mxu0 0.0
    %2345 = vmatpush1.msra.mxu0 0.0
    %2346 = vmatprep.subr.mxu0 0.0
    %2347 = vmatpush1.msra.mxu0 0.0
    %2348 = vmatprep.subr.mxu0 0.0
    %2349 = vmatpush1.msra.mxu0 0.0
    %2350 = vmatprep.subr.mxu0 0.0
    %2351 = vmatpush1.msra.mxu0 0.0
    %2352 = vmatprep.subr.mxu0 0.0
    %2353 = vmatpush1.msra.mxu0 0.0
    %2354 = vmatprep.subr.mxu0 0.0
    %2355 = vmatpush1.msra.mxu0 0.0
    %2356 = vmatprep.subr.mxu0 0.0
    %2357 = vmatpush1.msra.mxu0 0.0
    %2358 = vmatprep.subr.mxu0 0.0
    %2359 = vmatpush1.msra.mxu0 0.0
    %2360 = vmatprep.mubr.f32.mxu0 0.0
    %2361 = vmatmul.mubr.f32.gmra.mrb[0].mxu0 %v2217
    %v2362 = vpop.f32.mrb[0].mxu0
    %v2363 = vadd.f32 0.0, %v2362
    %v2364 = vpop.f32.mrb[0].mxu0
    %v2365 = vadd.f32 0.0, %v2364
    %2366 = vdwg.mxu0
    %v2367 = vadd.f32 %v2221, %v2292
    %v2368 = vadd.f32 %v2222, %v2294
    %v2369 = vadd.f32 %v2223, %v2363
    %v2370 = vadd.f32 %v2224, %v2365
    %v2371 = vxor.u32 %v2367, 2147483648
    %v2372 = vmul.f32 %v2371, 1.442695
    %v2373 = vpow.pop %v2372
    %v2374 = vadd.f32 %v2373, 1.0
    %v2375 = vrcp.pop %v2374
    %v2376 = vmul.f32 1.0, %v2375
    %v2377 = vxor.u32 %v2368, 2147483648
    %v2378 = vmul.f32 %v2377, 1.442695
    %v2379 = vpow.pop %v2378
    %v2380 = vadd.f32 %v2379, 1.0
    %v2381 = vrcp.pop %v2380
    %v2382 = vmul.f32 1.0, %v2381
    %v2383 = vtanh.pop %v2369
    %v2384 = vxor.u32 %v2370, 2147483648
    %v2385 = vmul.f32 %v2384, 1.442695
    %v2386 = vpow.pop %v2385
    %v2387 = vadd.f32 %v2386, 1.0
    %v2388 = vrcp.pop %v2387
    %v2389 = vmul.f32 1.0, %v2388
    %v2390 = vmul.f32 %v2382, %v2215
    %v2391 = vmul.f32 %v2376, %v2383
    %v2392 = vadd.f32 %v2390, %v2391
    %v2393 = vtanh.pop %v2392
    %v2394 = vmul.f32 %v2389, %v2393
    %s2395 = scalar_lea.vmem [#allocation3], 72
    %2396 = vst [vmem:[%s2395] sm:$0xff] %v2394
    %s2397 = scalar_lea.vmem [#allocation2], 320
    %v2398 = vld [vmem:[%s2397] sm:$0xff]
    %v2399 = vld [vmem:[%s2397 + $0x8] sm:$0xff]
    %v2400 = vld [vmem:[%s2397 + $0x10] sm:$0xff]
    %v2401 = vld [vmem:[%s2397 + $0x18] sm:$0xff]
    %2402 = vmatprep.subr.mxu0 %v142
    %2403 = vmatpush1.msra.mxu0 %v141
    %2404 = vmatprep.subr.mxu0 %v146
    %2405 = vmatpush1.msra.mxu0 %v145
    %2406 = vmatprep.subr.mxu0 %v150
    %2407 = vmatpush1.msra.mxu0 %v149
    %2408 = vmatprep.subr.mxu0 %v154
    %2409 = vmatpush1.msra.mxu0 %v153
    %2410 = vmatprep.subr.mxu0 %v158
    %2411 = vmatpush1.msra.mxu0 %v157
    %2412 = vmatprep.subr.mxu0 %v162
    %2413 = vmatpush1.msra.mxu0 %v161
    %2414 = vmatprep.subr.mxu0 %v166
    %2415 = vmatpush1.msra.mxu0 %v165
    %2416 = vmatprep.subr.mxu0 %v170
    %2417 = vmatpush1.msra.mxu0 %v169
    %2418 = vmatprep.subr.mxu0 %v174
    %2419 = vmatpush1.msra.mxu0 %v173
    %2420 = vmatprep.subr.mxu0 %v178
    %2421 = vmatpush1.msra.mxu0 %v177
    %2422 = vmatprep.subr.mxu0 %v182
    %2423 = vmatpush1.msra.mxu0 %v181
    %2424 = vmatprep.subr.mxu0 %v186
    %2425 = vmatpush1.msra.mxu0 %v185
    %2426 = vmatprep.subr.mxu0 %v190
    %2427 = vmatpush1.msra.mxu0 %v189
    %2428 = vmatprep.subr.mxu0 %v194
    %2429 = vmatpush1.msra.mxu0 %v193
    %2430 = vmatprep.subr.mxu0 %v198
    %2431 = vmatpush1.msra.mxu0 %v197
    %2432 = vmatprep.subr.mxu0 %v202
    %2433 = vmatpush1.msra.mxu0 %v201
    %2434 = vmatprep.subr.mxu0 0.0
    %2435 = vmatpush1.msra.mxu0 0.0
    %2436 = vmatprep.subr.mxu0 0.0
    %2437 = vmatpush1.msra.mxu0 0.0
    %2438 = vmatprep.subr.mxu0 0.0
    %2439 = vmatpush1.msra.mxu0 0.0
    %2440 = vmatprep.subr.mxu0 0.0
    %2441 = vmatpush1.msra.mxu0 0.0
    %2442 = vmatprep.subr.mxu0 0.0
    %2443 = vmatpush1.msra.mxu0 0.0
    %2444 = vmatprep.subr.mxu0 0.0
    %2445 = vmatpush1.msra.mxu0 0.0
    %2446 = vmatprep.subr.mxu0 0.0
    %2447 = vmatpush1.msra.mxu0 0.0
    %2448 = vmatprep.subr.mxu0 0.0
    %2449 = vmatpush1.msra.mxu0 0.0
    %2450 = vmatprep.subr.mxu0 0.0
    %2451 = vmatpush1.msra.mxu0 0.0
    %2452 = vmatprep.subr.mxu0 0.0
    %2453 = vmatpush1.msra.mxu0 0.0
    %2454 = vmatprep.subr.mxu0 0.0
    %2455 = vmatpush1.msra.mxu0 0.0
    %2456 = vmatprep.subr.mxu0 0.0
    %2457 = vmatpush1.msra.mxu0 0.0
    %2458 = vmatprep.subr.mxu0 0.0
    %2459 = vmatpush1.msra.mxu0 0.0
    %2460 = vmatprep.subr.mxu0 0.0
    %2461 = vmatpush1.msra.mxu0 0.0
    %2462 = vmatprep.subr.mxu0 0.0
    %2463 = vmatpush1.msra.mxu0 0.0
    %2464 = vmatprep.subr.mxu0 0.0
    %2465 = vmatpush1.msra.mxu0 0.0
    %2466 = vmatprep.mubr.f32.mxu0 0.0
    %2467 = vmatmul.mubr.f32.gmra.mrb[0].mxu0 %v2394
    %v2468 = vpop.f32.mrb[0].mxu0
    %v2469 = vadd.f32 0.0, %v2468
    %v2470 = vpop.f32.mrb[0].mxu0
    %v2471 = vadd.f32 0.0, %v2470
    %2472 = vdwg.mxu0
    %2473 = vmatprep.subr.mxu0 %v144
    %2474 = vmatpush1.msra.mxu0 %v143
    %2475 = vmatprep.subr.mxu0 %v148
    %2476 = vmatpush1.msra.mxu0 %v147
    %2477 = vmatprep.subr.mxu0 %v152
    %2478 = vmatpush1.msra.mxu0 %v151
    %2479 = vmatprep.subr.mxu0 %v156
    %2480 = vmatpush1.msra.mxu0 %v155
    %2481 = vmatprep.subr.mxu0 %v160
    %2482 = vmatpush1.msra.mxu0 %v159
    %2483 = vmatprep.subr.mxu0 %v164
    %2484 = vmatpush1.msra.mxu0 %v163
    %2485 = vmatprep.subr.mxu0 %v168
    %2486 = vmatpush1.msra.mxu0 %v167
    %2487 = vmatprep.subr.mxu0 %v172
    %2488 = vmatpush1.msra.mxu0 %v171
    %2489 = vmatprep.subr.mxu0 %v176
    %2490 = vmatpush1.msra.mxu0 %v175
    %2491 = vmatprep.subr.mxu0 %v180
    %2492 = vmatpush1.msra.mxu0 %v179
    %2493 = vmatprep.subr.mxu0 %v184
    %2494 = vmatpush1.msra.mxu0 %v183
    %2495 = vmatprep.subr.mxu0 %v188
    %2496 = vmatpush1.msra.mxu0 %v187
    %2497 = vmatprep.subr.mxu0 %v192
    %2498 = vmatpush1.msra.mxu0 %v191
    %2499 = vmatprep.subr.mxu0 %v196
    %2500 = vmatpush1.msra.mxu0 %v195
    %2501 = vmatprep.subr.mxu0 %v200
    %2502 = vmatpush1.msra.mxu0 %v199
    %2503 = vmatprep.subr.mxu0 %v204
    %2504 = vmatpush1.msra.mxu0 %v203
    %2505 = vmatprep.subr.mxu0 0.0
    %2506 = vmatpush1.msra.mxu0 0.0
    %2507 = vmatprep.subr.mxu0 0.0
    %2508 = vmatpush1.msra.mxu0 0.0
    %2509 = vmatprep.subr.mxu0 0.0
    %2510 = vmatpush1.msra.mxu0 0.0
    %2511 = vmatprep.subr.mxu0 0.0
    %2512 = vmatpush1.msra.mxu0 0.0
    %2513 = vmatprep.subr.mxu0 0.0
    %2514 = vmatpush1.msra.mxu0 0.0
    %2515 = vmatprep.subr.mxu0 0.0
    %2516 = vmatpush1.msra.mxu0 0.0
    %2517 = vmatprep.subr.mxu0 0.0
    %2518 = vmatpush1.msra.mxu0 0.0
    %2519 = vmatprep.subr.mxu0 0.0
    %2520 = vmatpush1.msra.mxu0 0.0
    %2521 = vmatprep.subr.mxu0 0.0
    %2522 = vmatpush1.msra.mxu0 0.0
    %2523 = vmatprep.subr.mxu0 0.0
    %2524 = vmatpush1.msra.mxu0 0.0
    %2525 = vmatprep.subr.mxu0 0.0
    %2526 = vmatpush1.msra.mxu0 0.0
    %2527 = vmatprep.subr.mxu0 0.0
    %2528 = vmatpush1.msra.mxu0 0.0
    %2529 = vmatprep.subr.mxu0 0.0
    %2530 = vmatpush1.msra.mxu0 0.0
    %2531 = vmatprep.subr.mxu0 0.0
    %2532 = vmatpush1.msra.mxu0 0.0
    %2533 = vmatprep.subr.mxu0 0.0
    %2534 = vmatpush1.msra.mxu0 0.0
    %2535 = vmatprep.subr.mxu0 0.0
    %2536 = vmatpush1.msra.mxu0 0.0
    %2537 = vmatprep.mubr.f32.mxu0 0.0
    %2538 = vmatmul.mubr.f32.gmra.mrb[0].mxu0 %v2394
    %v2539 = vpop.f32.mrb[0].mxu0
    %v2540 = vadd.f32 0.0, %v2539
    %v2541 = vpop.f32.mrb[0].mxu0
    %v2542 = vadd.f32 0.0, %v2541
    %2543 = vdwg.mxu0
    %v2544 = vadd.f32 %v2398, %v2469
    %v2545 = vadd.f32 %v2399, %v2471
    %v2546 = vadd.f32 %v2400, %v2540
    %v2547 = vadd.f32 %v2401, %v2542
    %v2548 = vxor.u32 %v2544, 2147483648
    %v2549 = vmul.f32 %v2548, 1.442695
    %v2550 = vpow.pop %v2549
    %v2551 = vadd.f32 %v2550, 1.0
    %v2552 = vrcp.pop %v2551
    %v2553 = vmul.f32 1.0, %v2552
    %v2554 = vxor.u32 %v2545, 2147483648
    %v2555 = vmul.f32 %v2554, 1.442695
    %v2556 = vpow.pop %v2555
    %v2557 = vadd.f32 %v2556, 1.0
    %v2558 = vrcp.pop %v2557
    %v2559 = vmul.f32 1.0, %v2558
    %v2560 = vtanh.pop %v2546
    %v2561 = vxor.u32 %v2547, 2147483648
    %v2562 = vmul.f32 %v2561, 1.442695
    %v2563 = vpow.pop %v2562
    %v2564 = vadd.f32 %v2563, 1.0
    %v2565 = vrcp.pop %v2564
    %v2566 = vmul.f32 1.0, %v2565
    %v2567 = vmul.f32 %v2559, %v2392
    %v2568 = vmul.f32 %v2553, %v2560
    %v2569 = vadd.f32 %v2567, %v2568
    %v2570 = vtanh.pop %v2569
    %v2571 = vmul.f32 %v2566, %v2570
    %s2572 = scalar_lea.vmem [#allocation3], 80
    %2573 = vst [vmem:[%s2572] sm:$0xff] %v2571
    %s2574 = scalar_lea.vmem [#allocation2], 352
    %v2575 = vld [vmem:[%s2574] sm:$0xff]
    %v2576 = vld [vmem:[%s2574 + $0x8] sm:$0xff]
    %v2577 = vld [vmem:[%s2574 + $0x10] sm:$0xff]
    %v2578 = vld [vmem:[%s2574 + $0x18] sm:$0xff]
    %2579 = vmatprep.subr.mxu0 %v142
    %2580 = vmatpush1.msra.mxu0 %v141
    %2581 = vmatprep.subr.mxu0 %v146
    %2582 = vmatpush1.msra.mxu0 %v145
    %2583 = vmatprep.subr.mxu0 %v150
    %2584 = vmatpush1.msra.mxu0 %v149
    %2585 = vmatprep.subr.mxu0 %v154
    %2586 = vmatpush1.msra.mxu0 %v153
    %2587 = vmatprep.subr.mxu0 %v158
    %2588 = vmatpush1.msra.mxu0 %v157
    %2589 = vmatprep.subr.mxu0 %v162
    %2590 = vmatpush1.msra.mxu0 %v161
    %2591 = vmatprep.subr.mxu0 %v166
    %2592 = vmatpush1.msra.mxu0 %v165
    %2593 = vmatprep.subr.mxu0 %v170
    %2594 = vmatpush1.msra.mxu0 %v169
    %2595 = vmatprep.subr.mxu0 %v174
    %2596 = vmatpush1.msra.mxu0 %v173
    %2597 = vmatprep.subr.mxu0 %v178
    %2598 = vmatpush1.msra.mxu0 %v177
    %2599 = vmatprep.subr.mxu0 %v182
    %2600 = vmatpush1.msra.mxu0 %v181
    %2601 = vmatprep.subr.mxu0 %v186
    %2602 = vmatpush1.msra.mxu0 %v185
    %2603 = vmatprep.subr.mxu0 %v190
    %2604 = vmatpush1.msra.mxu0 %v189
    %2605 = vmatprep.subr.mxu0 %v194
    %2606 = vmatpush1.msra.mxu0 %v193
    %2607 = vmatprep.subr.mxu0 %v198
    %2608 = vmatpush1.msra.mxu0 %v197
    %2609 = vmatprep.subr.mxu0 %v202
    %2610 = vmatpush1.msra.mxu0 %v201
    %2611 = vmatprep.subr.mxu0 0.0
    %2612 = vmatpush1.msra.mxu0 0.0
    %2613 = vmatprep.subr.mxu0 0.0
    %2614 = vmatpush1.msra.mxu0 0.0
    %2615 = vmatprep.subr.mxu0 0.0
    %2616 = vmatpush1.msra.mxu0 0.0
    %2617 = vmatprep.subr.mxu0 0.0
    %2618 = vmatpush1.msra.mxu0 0.0
    %2619 = vmatprep.subr.mxu0 0.0
    %2620 = vmatpush1.msra.mxu0 0.0
    %2621 = vmatprep.subr.mxu0 0.0
    %2622 = vmatpush1.msra.mxu0 0.0
    %2623 = vmatprep.subr.mxu0 0.0
    %2624 = vmatpush1.msra.mxu0 0.0
    %2625 = vmatprep.subr.mxu0 0.0
    %2626 = vmatpush1.msra.mxu0 0.0
    %2627 = vmatprep.subr.mxu0 0.0
    %2628 = vmatpush1.msra.mxu0 0.0
    %2629 = vmatprep.subr.mxu0 0.0
    %2630 = vmatpush1.msra.mxu0 0.0
    %2631 = vmatprep.subr.mxu0 0.0
    %2632 = vmatpush1.msra.mxu0 0.0
    %2633 = vmatprep.subr.mxu0 0.0
    %2634 = vmatpush1.msra.mxu0 0.0
    %2635 = vmatprep.subr.mxu0 0.0
    %2636 = vmatpush1.msra.mxu0 0.0
    %2637 = vmatprep.subr.mxu0 0.0
    %2638 = vmatpush1.msra.mxu0 0.0
    %2639 = vmatprep.subr.mxu0 0.0
    %2640 = vmatpush1.msra.mxu0 0.0
    %2641 = vmatprep.subr.mxu0 0.0
    %2642 = vmatpush1.msra.mxu0 0.0
    %2643 = vmatprep.mubr.f32.mxu0 0.0
    %2644 = vmatmul.mubr.f32.gmra.mrb[0].mxu0 %v2571
    %v2645 = vpop.f32.mrb[0].mxu0
    %v2646 = vadd.f32 0.0, %v2645
    %v2647 = vpop.f32.mrb[0].mxu0
    %v2648 = vadd.f32 0.0, %v2647
    %2649 = vdwg.mxu0
    %2650 = vmatprep.subr.mxu0 %v144
    %2651 = vmatpush1.msra.mxu0 %v143
    %2652 = vmatprep.subr.mxu0 %v148
    %2653 = vmatpush1.msra.mxu0 %v147
    %2654 = vmatprep.subr.mxu0 %v152
    %2655 = vmatpush1.msra.mxu0 %v151
    %2656 = vmatprep.subr.mxu0 %v156
    %2657 = vmatpush1.msra.mxu0 %v155
    %2658 = vmatprep.subr.mxu0 %v160
    %2659 = vmatpush1.msra.mxu0 %v159
    %2660 = vmatprep.subr.mxu0 %v164
    %2661 = vmatpush1.msra.mxu0 %v163
    %2662 = vmatprep.subr.mxu0 %v168
    %2663 = vmatpush1.msra.mxu0 %v167
    %2664 = vmatprep.subr.mxu0 %v172
    %2665 = vmatpush1.msra.mxu0 %v171
    %2666 = vmatprep.subr.mxu0 %v176
    %2667 = vmatpush1.msra.mxu0 %v175
    %2668 = vmatprep.subr.mxu0 %v180
    %2669 = vmatpush1.msra.mxu0 %v179
    %2670 = vmatprep.subr.mxu0 %v184
    %2671 = vmatpush1.msra.mxu0 %v183
    %2672 = vmatprep.subr.mxu0 %v188
    %2673 = vmatpush1.msra.mxu0 %v187
    %2674 = vmatprep.subr.mxu0 %v192
    %2675 = vmatpush1.msra.mxu0 %v191
    %2676 = vmatprep.subr.mxu0 %v196
    %2677 = vmatpush1.msra.mxu0 %v195
    %2678 = vmatprep.subr.mxu0 %v200
    %2679 = vmatpush1.msra.mxu0 %v199
    %2680 = vmatprep.subr.mxu0 %v204
    %2681 = vmatpush1.msra.mxu0 %v203
    %2682 = vmatprep.subr.mxu0 0.0
    %2683 = vmatpush1.msra.mxu0 0.0
    %2684 = vmatprep.subr.mxu0 0.0
    %2685 = vmatpush1.msra.mxu0 0.0
    %2686 = vmatprep.subr.mxu0 0.0
    %2687 = vmatpush1.msra.mxu0 0.0
    %2688 = vmatprep.subr.mxu0 0.0
    %2689 = vmatpush1.msra.mxu0 0.0
    %2690 = vmatprep.subr.mxu0 0.0
    %2691 = vmatpush1.msra.mxu0 0.0
    %2692 = vmatprep.subr.mxu0 0.0
    %2693 = vmatpush1.msra.mxu0 0.0
    %2694 = vmatprep.subr.mxu0 0.0
    %2695 = vmatpush1.msra.mxu0 0.0
    %2696 = vmatprep.subr.mxu0 0.0
    %2697 = vmatpush1.msra.mxu0 0.0
    %2698 = vmatprep.subr.mxu0 0.0
    %2699 = vmatpush1.msra.mxu0 0.0
    %2700 = vmatprep.subr.mxu0 0.0
    %2701 = vmatpush1.msra.mxu0 0.0
    %2702 = vmatprep.subr.mxu0 0.0
    %2703 = vmatpush1.msra.mxu0 0.0
    %2704 = vmatprep.subr.mxu0 0.0
    %2705 = vmatpush1.msra.mxu0 0.0
    %2706 = vmatprep.subr.mxu0 0.0
    %2707 = vmatpush1.msra.mxu0 0.0
    %2708 = vmatprep.subr.mxu0 0.0
    %2709 = vmatpush1.msra.mxu0 0.0
    %2710 = vmatprep.subr.mxu0 0.0
    %2711 = vmatpush1.msra.mxu0 0.0
    %2712 = vmatprep.subr.mxu0 0.0
    %2713 = vmatpush1.msra.mxu0 0.0
    %2714 = vmatprep.mubr.f32.mxu0 0.0
    %2715 = vmatmul.mubr.f32.gmra.mrb[0].mxu0 %v2571
    %v2716 = vpop.f32.mrb[0].mxu0
    %v2717 = vadd.f32 0.0, %v2716
    %v2718 = vpop.f32.mrb[0].mxu0
    %v2719 = vadd.f32 0.0, %v2718
    %2720 = vdwg.mxu0
    %v2721 = vadd.f32 %v2575, %v2646
    %v2722 = vadd.f32 %v2576, %v2648
    %v2723 = vadd.f32 %v2577, %v2717
    %v2724 = vadd.f32 %v2578, %v2719
    %v2725 = vxor.u32 %v2721, 2147483648
    %v2726 = vmul.f32 %v2725, 1.442695
    %v2727 = vpow.pop %v2726
    %v2728 = vadd.f32 %v2727, 1.0
    %v2729 = vrcp.pop %v2728
    %v2730 = vmul.f32 1.0, %v2729
    %v2731 = vxor.u32 %v2722, 2147483648
    %v2732 = vmul.f32 %v2731, 1.442695
    %v2733 = vpow.pop %v2732
    %v2734 = vadd.f32 %v2733, 1.0
    %v2735 = vrcp.pop %v2734
    %v2736 = vmul.f32 1.0, %v2735
    %v2737 = vtanh.pop %v2723
    %v2738 = vxor.u32 %v2724, 2147483648
    %v2739 = vmul.f32 %v2738, 1.442695
    %v2740 = vpow.pop %v2739
    %v2741 = vadd.f32 %v2740, 1.0
    %v2742 = vrcp.pop %v2741
    %v2743 = vmul.f32 1.0, %v2742
    %v2744 = vmul.f32 %v2736, %v2569
    %v2745 = vmul.f32 %v2730, %v2737
    %v2746 = vadd.f32 %v2744, %v2745
    %v2747 = vtanh.pop %v2746
    %v2748 = vmul.f32 %v2743, %v2747
    %s2749 = scalar_lea.vmem [#allocation3], 88
    %2750 = vst [vmem:[%s2749] sm:$0xff] %v2748
    %s2751 = scalar_lea.vmem [#allocation2], 384
    %v2752 = vld [vmem:[%s2751] sm:$0xff]
    %v2753 = vld [vmem:[%s2751 + $0x8] sm:$0xff]
    %v2754 = vld [vmem:[%s2751 + $0x10] sm:$0xff]
    %v2755 = vld [vmem:[%s2751 + $0x18] sm:$0xff]
    %2756 = vmatprep.subr.mxu0 %v142
    %2757 = vmatpush1.msra.mxu0 %v141
    %2758 = vmatprep.subr.mxu0 %v146
    %2759 = vmatpush1.msra.mxu0 %v145
    %2760 = vmatprep.subr.mxu0 %v150
    %2761 = vmatpush1.msra.mxu0 %v149
    %2762 = vmatprep.subr.mxu0 %v154
    %2763 = vmatpush1.msra.mxu0 %v153
    %2764 = vmatprep.subr.mxu0 %v158
    %2765 = vmatpush1.msra.mxu0 %v157
    %2766 = vmatprep.subr.mxu0 %v162
    %2767 = vmatpush1.msra.mxu0 %v161
    %2768 = vmatprep.subr.mxu0 %v166
    %2769 = vmatpush1.msra.mxu0 %v165
    %2770 = vmatprep.subr.mxu0 %v170
    %2771 = vmatpush1.msra.mxu0 %v169
    %2772 = vmatprep.subr.mxu0 %v174
    %2773 = vmatpush1.msra.mxu0 %v173
    %2774 = vmatprep.subr.mxu0 %v178
    %2775 = vmatpush1.msra.mxu0 %v177
    %2776 = vmatprep.subr.mxu0 %v182
    %2777 = vmatpush1.msra.mxu0 %v181
    %2778 = vmatprep.subr.mxu0 %v186
    %2779 = vmatpush1.msra.mxu0 %v185
    %2780 = vmatprep.subr.mxu0 %v190
    %2781 = vmatpush1.msra.mxu0 %v189
    %2782 = vmatprep.subr.mxu0 %v194
    %2783 = vmatpush1.msra.mxu0 %v193
    %2784 = vmatprep.subr.mxu0 %v198
    %2785 = vmatpush1.msra.mxu0 %v197
    %2786 = vmatprep.subr.mxu0 %v202
    %2787 = vmatpush1.msra.mxu0 %v201
    %2788 = vmatprep.subr.mxu0 0.0
    %2789 = vmatpush1.msra.mxu0 0.0
    %2790 = vmatprep.subr.mxu0 0.0
    %2791 = vmatpush1.msra.mxu0 0.0
    %2792 = vmatprep.subr.mxu0 0.0
    %2793 = vmatpush1.msra.mxu0 0.0
    %2794 = vmatprep.subr.mxu0 0.0
    %2795 = vmatpush1.msra.mxu0 0.0
    %2796 = vmatprep.subr.mxu0 0.0
    %2797 = vmatpush1.msra.mxu0 0.0
    %2798 = vmatprep.subr.mxu0 0.0
    %2799 = vmatpush1.msra.mxu0 0.0
    %2800 = vmatprep.subr.mxu0 0.0
    %2801 = vmatpush1.msra.mxu0 0.0
    %2802 = vmatprep.subr.mxu0 0.0
    %2803 = vmatpush1.msra.mxu0 0.0
    %2804 = vmatprep.subr.mxu0 0.0
    %2805 = vmatpush1.msra.mxu0 0.0
    %2806 = vmatprep.subr.mxu0 0.0
    %2807 = vmatpush1.msra.mxu0 0.0
    %2808 = vmatprep.subr.mxu0 0.0
    %2809 = vmatpush1.msra.mxu0 0.0
    %2810 = vmatprep.subr.mxu0 0.0
    %2811 = vmatpush1.msra.mxu0 0.0
    %2812 = vmatprep.subr.mxu0 0.0
    %2813 = vmatpush1.msra.mxu0 0.0
    %2814 = vmatprep.subr.mxu0 0.0
    %2815 = vmatpush1.msra.mxu0 0.0
    %2816 = vmatprep.subr.mxu0 0.0
    %2817 = vmatpush1.msra.mxu0 0.0
    %2818 = vmatprep.subr.mxu0 0.0
    %2819 = vmatpush1.msra.mxu0 0.0
    %2820 = vmatprep.mubr.f32.mxu0 0.0
    %2821 = vmatmul.mubr.f32.gmra.mrb[0].mxu0 %v2748
    %v2822 = vpop.f32.mrb[0].mxu0
    %v2823 = vadd.f32 0.0, %v2822
    %v2824 = vpop.f32.mrb[0].mxu0
    %v2825 = vadd.f32 0.0, %v2824
    %2826 = vdwg.mxu0
    %2827 = vmatprep.subr.mxu0 %v144
    %2828 = vmatpush1.msra.mxu0 %v143
    %2829 = vmatprep.subr.mxu0 %v148
    %2830 = vmatpush1.msra.mxu0 %v147
    %2831 = vmatprep.subr.mxu0 %v152
    %2832 = vmatpush1.msra.mxu0 %v151
    %2833 = vmatprep.subr.mxu0 %v156
    %2834 = vmatpush1.msra.mxu0 %v155
    %2835 = vmatprep.subr.mxu0 %v160
    %2836 = vmatpush1.msra.mxu0 %v159
    %2837 = vmatprep.subr.mxu0 %v164
    %2838 = vmatpush1.msra.mxu0 %v163
    %2839 = vmatprep.subr.mxu0 %v168
    %2840 = vmatpush1.msra.mxu0 %v167
    %2841 = vmatprep.subr.mxu0 %v172
    %2842 = vmatpush1.msra.mxu0 %v171
    %2843 = vmatprep.subr.mxu0 %v176
    %2844 = vmatpush1.msra.mxu0 %v175
    %2845 = vmatprep.subr.mxu0 %v180
    %2846 = vmatpush1.msra.mxu0 %v179
    %2847 = vmatprep.subr.mxu0 %v184
    %2848 = vmatpush1.msra.mxu0 %v183
    %2849 = vmatprep.subr.mxu0 %v188
    %2850 = vmatpush1.msra.mxu0 %v187
    %2851 = vmatprep.subr.mxu0 %v192
    %2852 = vmatpush1.msra.mxu0 %v191
    %2853 = vmatprep.subr.mxu0 %v196
    %2854 = vmatpush1.msra.mxu0 %v195
    %2855 = vmatprep.subr.mxu0 %v200
    %2856 = vmatpush1.msra.mxu0 %v199
    %2857 = vmatprep.subr.mxu0 %v204
    %2858 = vmatpush1.msra.mxu0 %v203
    %2859 = vmatprep.subr.mxu0 0.0
    %2860 = vmatpush1.msra.mxu0 0.0
    %2861 = vmatprep.subr.mxu0 0.0
    %2862 = vmatpush1.msra.mxu0 0.0
    %2863 = vmatprep.subr.mxu0 0.0
    %2864 = vmatpush1.msra.mxu0 0.0
    %2865 = vmatprep.subr.mxu0 0.0
    %2866 = vmatpush1.msra.mxu0 0.0
    %2867 = vmatprep.subr.mxu0 0.0
    %2868 = vmatpush1.msra.mxu0 0.0
    %2869 = vmatprep.subr.mxu0 0.0
    %2870 = vmatpush1.msra.mxu0 0.0
    %2871 = vmatprep.subr.mxu0 0.0
    %2872 = vmatpush1.msra.mxu0 0.0
    %2873 = vmatprep.subr.mxu0 0.0
    %2874 = vmatpush1.msra.mxu0 0.0
    %2875 = vmatprep.subr.mxu0 0.0
    %2876 = vmatpush1.msra.mxu0 0.0
    %2877 = vmatprep.subr.mxu0 0.0
    %2878 = vmatpush1.msra.mxu0 0.0
    %2879 = vmatprep.subr.mxu0 0.0
    %2880 = vmatpush1.msra.mxu0 0.0
    %2881 = vmatprep.subr.mxu0 0.0
    %2882 = vmatpush1.msra.mxu0 0.0
    %2883 = vmatprep.subr.mxu0 0.0
    %2884 = vmatpush1.msra.mxu0 0.0
    %2885 = vmatprep.subr.mxu0 0.0
    %2886 = vmatpush1.msra.mxu0 0.0
    %2887 = vmatprep.subr.mxu0 0.0
    %2888 = vmatpush1.msra.mxu0 0.0
    %2889 = vmatprep.subr.mxu0 0.0
    %2890 = vmatpush1.msra.mxu0 0.0
    %2891 = vmatprep.mubr.f32.mxu0 0.0
    %2892 = vmatmul.mubr.f32.gmra.mrb[0].mxu0 %v2748
    %v2893 = vpop.f32.mrb[0].mxu0
    %v2894 = vadd.f32 0.0, %v2893
    %v2895 = vpop.f32.mrb[0].mxu0
    %v2896 = vadd.f32 0.0, %v2895
    %2897 = vdwg.mxu0
    %v2898 = vadd.f32 %v2752, %v2823
    %v2899 = vadd.f32 %v2753, %v2825
    %v2900 = vadd.f32 %v2754, %v2894
    %v2901 = vadd.f32 %v2755, %v2896
    %v2902 = vxor.u32 %v2898, 2147483648
    %v2903 = vmul.f32 %v2902, 1.442695
    %v2904 = vpow.pop %v2903
    %v2905 = vadd.f32 %v2904, 1.0
    %v2906 = vrcp.pop %v2905
    %v2907 = vmul.f32 1.0, %v2906
    %v2908 = vxor.u32 %v2899, 2147483648
    %v2909 = vmul.f32 %v2908, 1.442695
    %v2910 = vpow.pop %v2909
    %v2911 = vadd.f32 %v2910, 1.0
    %v2912 = vrcp.pop %v2911
    %v2913 = vmul.f32 1.0, %v2912
    %v2914 = vtanh.pop %v2900
    %v2915 = vxor.u32 %v2901, 2147483648
    %v2916 = vmul.f32 %v2915, 1.442695
    %v2917 = vpow.pop %v2916
    %v2918 = vadd.f32 %v2917, 1.0
    %v2919 = vrcp.pop %v2918
    %v2920 = vmul.f32 1.0, %v2919
    %v2921 = vmul.f32 %v2913, %v2746
    %v2922 = vmul.f32 %v2907, %v2914
    %v2923 = vadd.f32 %v2921, %v2922
    %v2924 = vtanh.pop %v2923
    %v2925 = vmul.f32 %v2920, %v2924
    %s2926 = scalar_lea.vmem [#allocation3], 96
    %2927 = vst [vmem:[%s2926] sm:$0xff] %v2925
    %s2928 = scalar_lea.vmem [#allocation2], 416
    %v2929 = vld [vmem:[%s2928] sm:$0xff]
    %v2930 = vld [vmem:[%s2928 + $0x8] sm:$0xff]
    %v2931 = vld [vmem:[%s2928 + $0x10] sm:$0xff]
    %v2932 = vld [vmem:[%s2928 + $0x18] sm:$0xff]
    %2933 = vmatprep.subr.mxu0 %v142
    %2934 = vmatpush1.msra.mxu0 %v141
    %2935 = vmatprep.subr.mxu0 %v146
    %2936 = vmatpush1.msra.mxu0 %v145
    %2937 = vmatprep.subr.mxu0 %v150
    %2938 = vmatpush1.msra.mxu0 %v149
    %2939 = vmatprep.subr.mxu0 %v154
    %2940 = vmatpush1.msra.mxu0 %v153
    %2941 = vmatprep.subr.mxu0 %v158
    %2942 = vmatpush1.msra.mxu0 %v157
    %2943 = vmatprep.subr.mxu0 %v162
    %2944 = vmatpush1.msra.mxu0 %v161
    %2945 = vmatprep.subr.mxu0 %v166
    %2946 = vmatpush1.msra.mxu0 %v165
    %2947 = vmatprep.subr.mxu0 %v170
    %2948 = vmatpush1.msra.mxu0 %v169
    %2949 = vmatprep.subr.mxu0 %v174
    %2950 = vmatpush1.msra.mxu0 %v173
    %2951 = vmatprep.subr.mxu0 %v178
    %2952 = vmatpush1.msra.mxu0 %v177
    %2953 = vmatprep.subr.mxu0 %v182
    %2954 = vmatpush1.msra.mxu0 %v181
    %2955 = vmatprep.subr.mxu0 %v186
    %2956 = vmatpush1.msra.mxu0 %v185
    %2957 = vmatprep.subr.mxu0 %v190
    %2958 = vmatpush1.msra.mxu0 %v189
    %2959 = vmatprep.subr.mxu0 %v194
    %2960 = vmatpush1.msra.mxu0 %v193
    %2961 = vmatprep.subr.mxu0 %v198
    %2962 = vmatpush1.msra.mxu0 %v197
    %2963 = vmatprep.subr.mxu0 %v202
    %2964 = vmatpush1.msra.mxu0 %v201
    %2965 = vmatprep.subr.mxu0 0.0
    %2966 = vmatpush1.msra.mxu0 0.0
    %2967 = vmatprep.subr.mxu0 0.0
    %2968 = vmatpush1.msra.mxu0 0.0
    %2969 = vmatprep.subr.mxu0 0.0
    %2970 = vmatpush1.msra.mxu0 0.0
    %2971 = vmatprep.subr.mxu0 0.0
    %2972 = vmatpush1.msra.mxu0 0.0
    %2973 = vmatprep.subr.mxu0 0.0
    %2974 = vmatpush1.msra.mxu0 0.0
    %2975 = vmatprep.subr.mxu0 0.0
    %2976 = vmatpush1.msra.mxu0 0.0
    %2977 = vmatprep.subr.mxu0 0.0
    %2978 = vmatpush1.msra.mxu0 0.0
    %2979 = vmatprep.subr.mxu0 0.0
    %2980 = vmatpush1.msra.mxu0 0.0
    %2981 = vmatprep.subr.mxu0 0.0
    %2982 = vmatpush1.msra.mxu0 0.0
    %2983 = vmatprep.subr.mxu0 0.0
    %2984 = vmatpush1.msra.mxu0 0.0
    %2985 = vmatprep.subr.mxu0 0.0
    %2986 = vmatpush1.msra.mxu0 0.0
    %2987 = vmatprep.subr.mxu0 0.0
    %2988 = vmatpush1.msra.mxu0 0.0
    %2989 = vmatprep.subr.mxu0 0.0
    %2990 = vmatpush1.msra.mxu0 0.0
    %2991 = vmatprep.subr.mxu0 0.0
    %2992 = vmatpush1.msra.mxu0 0.0
    %2993 = vmatprep.subr.mxu0 0.0
    %2994 = vmatpush1.msra.mxu0 0.0
    %2995 = vmatprep.subr.mxu0 0.0
    %2996 = vmatpush1.msra.mxu0 0.0
    %2997 = vmatprep.mubr.f32.mxu0 0.0
    %2998 = vmatmul.mubr.f32.gmra.mrb[0].mxu0 %v2925
    %v2999 = vpop.f32.mrb[0].mxu0
    %v3000 = vadd.f32 0.0, %v2999
    %v3001 = vpop.f32.mrb[0].mxu0
    %v3002 = vadd.f32 0.0, %v3001
    %3003 = vdwg.mxu0
    %3004 = vmatprep.subr.mxu0 %v144
    %3005 = vmatpush1.msra.mxu0 %v143
    %3006 = vmatprep.subr.mxu0 %v148
    %3007 = vmatpush1.msra.mxu0 %v147
    %3008 = vmatprep.subr.mxu0 %v152
    %3009 = vmatpush1.msra.mxu0 %v151
    %3010 = vmatprep.subr.mxu0 %v156
    %3011 = vmatpush1.msra.mxu0 %v155
    %3012 = vmatprep.subr.mxu0 %v160
    %3013 = vmatpush1.msra.mxu0 %v159
    %3014 = vmatprep.subr.mxu0 %v164
    %3015 = vmatpush1.msra.mxu0 %v163
    %3016 = vmatprep.subr.mxu0 %v168
    %3017 = vmatpush1.msra.mxu0 %v167
    %3018 = vmatprep.subr.mxu0 %v172
    %3019 = vmatpush1.msra.mxu0 %v171
    %3020 = vmatprep.subr.mxu0 %v176
    %3021 = vmatpush1.msra.mxu0 %v175
    %3022 = vmatprep.subr.mxu0 %v180
    %3023 = vmatpush1.msra.mxu0 %v179
    %3024 = vmatprep.subr.mxu0 %v184
    %3025 = vmatpush1.msra.mxu0 %v183
    %3026 = vmatprep.subr.mxu0 %v188
    %3027 = vmatpush1.msra.mxu0 %v187
    %3028 = vmatprep.subr.mxu0 %v192
    %3029 = vmatpush1.msra.mxu0 %v191
    %3030 = vmatprep.subr.mxu0 %v196
    %3031 = vmatpush1.msra.mxu0 %v195
    %3032 = vmatprep.subr.mxu0 %v200
    %3033 = vmatpush1.msra.mxu0 %v199
    %3034 = vmatprep.subr.mxu0 %v204
    %3035 = vmatpush1.msra.mxu0 %v203
    %3036 = vmatprep.subr.mxu0 0.0
    %3037 = vmatpush1.msra.mxu0 0.0
    %3038 = vmatprep.subr.mxu0 0.0
    %3039 = vmatpush1.msra.mxu0 0.0
    %3040 = vmatprep.subr.mxu0 0.0
    %3041 = vmatpush1.msra.mxu0 0.0
    %3042 = vmatprep.subr.mxu0 0.0
    %3043 = vmatpush1.msra.mxu0 0.0
    %3044 = vmatprep.subr.mxu0 0.0
    %3045 = vmatpush1.msra.mxu0 0.0
    %3046 = vmatprep.subr.mxu0 0.0
    %3047 = vmatpush1.msra.mxu0 0.0
    %3048 = vmatprep.subr.mxu0 0.0
    %3049 = vmatpush1.msra.mxu0 0.0
    %3050 = vmatprep.subr.mxu0 0.0
    %3051 = vmatpush1.msra.mxu0 0.0
    %3052 = vmatprep.subr.mxu0 0.0
    %3053 = vmatpush1.msra.mxu0 0.0
    %3054 = vmatprep.subr.mxu0 0.0
    %3055 = vmatpush1.msra.mxu0 0.0
    %3056 = vmatprep.subr.mxu0 0.0
    %3057 = vmatpush1.msra.mxu0 0.0
    %3058 = vmatprep.subr.mxu0 0.0
    %3059 = vmatpush1.msra.mxu0 0.0
    %3060 = vmatprep.subr.mxu0 0.0
    %3061 = vmatpush1.msra.mxu0 0.0
    %3062 = vmatprep.subr.mxu0 0.0
    %3063 = vmatpush1.msra.mxu0 0.0
    %3064 = vmatprep.subr.mxu0 0.0
    %3065 = vmatpush1.msra.mxu0 0.0
    %3066 = vmatprep.subr.mxu0 0.0
    %3067 = vmatpush1.msra.mxu0 0.0
    %3068 = vmatprep.mubr.f32.mxu0 0.0
    %3069 = vmatmul.mubr.f32.gmra.mrb[0].mxu0 %v2925
    %v3070 = vpop.f32.mrb[0].mxu0
    %v3071 = vadd.f32 0.0, %v3070
    %v3072 = vpop.f32.mrb[0].mxu0
    %v3073 = vadd.f32 0.0, %v3072
    %3074 = vdwg.mxu0
    %v3075 = vadd.f32 %v2929, %v3000
    %v3076 = vadd.f32 %v2930, %v3002
    %v3077 = vadd.f32 %v2931, %v3071
    %v3078 = vadd.f32 %v2932, %v3073
    %v3079 = vxor.u32 %v3075, 2147483648
    %v3080 = vmul.f32 %v3079, 1.442695
    %v3081 = vpow.pop %v3080
    %v3082 = vadd.f32 %v3081, 1.0
    %v3083 = vrcp.pop %v3082
    %v3084 = vmul.f32 1.0, %v3083
    %v3085 = vxor.u32 %v3076, 2147483648
    %v3086 = vmul.f32 %v3085, 1.442695
    %v3087 = vpow.pop %v3086
    %v3088 = vadd.f32 %v3087, 1.0
    %v3089 = vrcp.pop %v3088
    %v3090 = vmul.f32 1.0, %v3089
    %v3091 = vtanh.pop %v3077
    %v3092 = vxor.u32 %v3078, 2147483648
    %v3093 = vmul.f32 %v3092, 1.442695
    %v3094 = vpow.pop %v3093
    %v3095 = vadd.f32 %v3094, 1.0
    %v3096 = vrcp.pop %v3095
    %v3097 = vmul.f32 1.0, %v3096
    %v3098 = vmul.f32 %v3090, %v2923
    %v3099 = vmul.f32 %v3084, %v3091
    %v3100 = vadd.f32 %v3098, %v3099
    %v3101 = vtanh.pop %v3100
    %v3102 = vmul.f32 %v3097, %v3101
    %s3103 = scalar_lea.vmem [#allocation3], 104
    %3104 = vst [vmem:[%s3103] sm:$0xff] %v3102
    %s3105 = scalar_lea.vmem [#allocation2], 448
    %v3106 = vld [vmem:[%s3105] sm:$0xff]
    %v3107 = vld [vmem:[%s3105 + $0x8] sm:$0xff]
    %v3108 = vld [vmem:[%s3105 + $0x10] sm:$0xff]
    %v3109 = vld [vmem:[%s3105 + $0x18] sm:$0xff]
    %3110 = vmatprep.subr.mxu0 %v142
    %3111 = vmatpush1.msra.mxu0 %v141
    %3112 = vmatprep.subr.mxu0 %v146
    %3113 = vmatpush1.msra.mxu0 %v145
    %3114 = vmatprep.subr.mxu0 %v150
    %3115 = vmatpush1.msra.mxu0 %v149
    %3116 = vmatprep.subr.mxu0 %v154
    %3117 = vmatpush1.msra.mxu0 %v153
    %3118 = vmatprep.subr.mxu0 %v158
    %3119 = vmatpush1.msra.mxu0 %v157
    %3120 = vmatprep.subr.mxu0 %v162
    %3121 = vmatpush1.msra.mxu0 %v161
    %3122 = vmatprep.subr.mxu0 %v166
    %3123 = vmatpush1.msra.mxu0 %v165
    %3124 = vmatprep.subr.mxu0 %v170
    %3125 = vmatpush1.msra.mxu0 %v169
    %3126 = vmatprep.subr.mxu0 %v174
    %3127 = vmatpush1.msra.mxu0 %v173
    %3128 = vmatprep.subr.mxu0 %v178
    %3129 = vmatpush1.msra.mxu0 %v177
    %3130 = vmatprep.subr.mxu0 %v182
    %3131 = vmatpush1.msra.mxu0 %v181
    %3132 = vmatprep.subr.mxu0 %v186
    %3133 = vmatpush1.msra.mxu0 %v185
    %3134 = vmatprep.subr.mxu0 %v190
    %3135 = vmatpush1.msra.mxu0 %v189
    %3136 = vmatprep.subr.mxu0 %v194
    %3137 = vmatpush1.msra.mxu0 %v193
    %3138 = vmatprep.subr.mxu0 %v198
    %3139 = vmatpush1.msra.mxu0 %v197
    %3140 = vmatprep.subr.mxu0 %v202
    %3141 = vmatpush1.msra.mxu0 %v201
    %3142 = vmatprep.subr.mxu0 0.0
    %3143 = vmatpush1.msra.mxu0 0.0
    %3144 = vmatprep.subr.mxu0 0.0
    %3145 = vmatpush1.msra.mxu0 0.0
    %3146 = vmatprep.subr.mxu0 0.0
    %3147 = vmatpush1.msra.mxu0 0.0
    %3148 = vmatprep.subr.mxu0 0.0
    %3149 = vmatpush1.msra.mxu0 0.0
    %3150 = vmatprep.subr.mxu0 0.0
    %3151 = vmatpush1.msra.mxu0 0.0
    %3152 = vmatprep.subr.mxu0 0.0
    %3153 = vmatpush1.msra.mxu0 0.0
    %3154 = vmatprep.subr.mxu0 0.0
    %3155 = vmatpush1.msra.mxu0 0.0
    %3156 = vmatprep.subr.mxu0 0.0
    %3157 = vmatpush1.msra.mxu0 0.0
    %3158 = vmatprep.subr.mxu0 0.0
    %3159 = vmatpush1.msra.mxu0 0.0
    %3160 = vmatprep.subr.mxu0 0.0
    %3161 = vmatpush1.msra.mxu0 0.0
    %3162 = vmatprep.subr.mxu0 0.0
    %3163 = vmatpush1.msra.mxu0 0.0
    %3164 = vmatprep.subr.mxu0 0.0
    %3165 = vmatpush1.msra.mxu0 0.0
    %3166 = vmatprep.subr.mxu0 0.0
    %3167 = vmatpush1.msra.mxu0 0.0
    %3168 = vmatprep.subr.mxu0 0.0
    %3169 = vmatpush1.msra.mxu0 0.0
    %3170 = vmatprep.subr.mxu0 0.0
    %3171 = vmatpush1.msra.mxu0 0.0
    %3172 = vmatprep.subr.mxu0 0.0
    %3173 = vmatpush1.msra.mxu0 0.0
    %3174 = vmatprep.mubr.f32.mxu0 0.0
    %3175 = vmatmul.mubr.f32.gmra.mrb[0].mxu0 %v3102
    %v3176 = vpop.f32.mrb[0].mxu0
    %v3177 = vadd.f32 0.0, %v3176
    %v3178 = vpop.f32.mrb[0].mxu0
    %v3179 = vadd.f32 0.0, %v3178
    %3180 = vdwg.mxu0
    %3181 = vmatprep.subr.mxu0 %v144
    %3182 = vmatpush1.msra.mxu0 %v143
    %3183 = vmatprep.subr.mxu0 %v148
    %3184 = vmatpush1.msra.mxu0 %v147
    %3185 = vmatprep.subr.mxu0 %v152
    %3186 = vmatpush1.msra.mxu0 %v151
    %3187 = vmatprep.subr.mxu0 %v156
    %3188 = vmatpush1.msra.mxu0 %v155
    %3189 = vmatprep.subr.mxu0 %v160
    %3190 = vmatpush1.msra.mxu0 %v159
    %3191 = vmatprep.subr.mxu0 %v164
    %3192 = vmatpush1.msra.mxu0 %v163
    %3193 = vmatprep.subr.mxu0 %v168
    %3194 = vmatpush1.msra.mxu0 %v167
    %3195 = vmatprep.subr.mxu0 %v172
    %3196 = vmatpush1.msra.mxu0 %v171
    %3197 = vmatprep.subr.mxu0 %v176
    %3198 = vmatpush1.msra.mxu0 %v175
    %3199 = vmatprep.subr.mxu0 %v180
    %3200 = vmatpush1.msra.mxu0 %v179
    %3201 = vmatprep.subr.mxu0 %v184
    %3202 = vmatpush1.msra.mxu0 %v183
    %3203 = vmatprep.subr.mxu0 %v188
    %3204 = vmatpush1.msra.mxu0 %v187
    %3205 = vmatprep.subr.mxu0 %v192
    %3206 = vmatpush1.msra.mxu0 %v191
    %3207 = vmatprep.subr.mxu0 %v196
    %3208 = vmatpush1.msra.mxu0 %v195
    %3209 = vmatprep.subr.mxu0 %v200
    %3210 = vmatpush1.msra.mxu0 %v199
    %3211 = vmatprep.subr.mxu0 %v204
    %3212 = vmatpush1.msra.mxu0 %v203
    %3213 = vmatprep.subr.mxu0 0.0
    %3214 = vmatpush1.msra.mxu0 0.0
    %3215 = vmatprep.subr.mxu0 0.0
    %3216 = vmatpush1.msra.mxu0 0.0
    %3217 = vmatprep.subr.mxu0 0.0
    %3218 = vmatpush1.msra.mxu0 0.0
    %3219 = vmatprep.subr.mxu0 0.0
    %3220 = vmatpush1.msra.mxu0 0.0
    %3221 = vmatprep.subr.mxu0 0.0
    %3222 = vmatpush1.msra.mxu0 0.0
    %3223 = vmatprep.subr.mxu0 0.0
    %3224 = vmatpush1.msra.mxu0 0.0
    %3225 = vmatprep.subr.mxu0 0.0
    %3226 = vmatpush1.msra.mxu0 0.0
    %3227 = vmatprep.subr.mxu0 0.0
    %3228 = vmatpush1.msra.mxu0 0.0
    %3229 = vmatprep.subr.mxu0 0.0
    %3230 = vmatpush1.msra.mxu0 0.0
    %3231 = vmatprep.subr.mxu0 0.0
    %3232 = vmatpush1.msra.mxu0 0.0
    %3233 = vmatprep.subr.mxu0 0.0
    %3234 = vmatpush1.msra.mxu0 0.0
    %3235 = vmatprep.subr.mxu0 0.0
    %3236 = vmatpush1.msra.mxu0 0.0
    %3237 = vmatprep.subr.mxu0 0.0
    %3238 = vmatpush1.msra.mxu0 0.0
    %3239 = vmatprep.subr.mxu0 0.0
    %3240 = vmatpush1.msra.mxu0 0.0
    %3241 = vmatprep.subr.mxu0 0.0
    %3242 = vmatpush1.msra.mxu0 0.0
    %3243 = vmatprep.subr.mxu0 0.0
    %3244 = vmatpush1.msra.mxu0 0.0
    %3245 = vmatprep.mubr.f32.mxu0 0.0
    %3246 = vmatmul.mubr.f32.gmra.mrb[0].mxu0 %v3102
    %v3247 = vpop.f32.mrb[0].mxu0
    %v3248 = vadd.f32 0.0, %v3247
    %v3249 = vpop.f32.mrb[0].mxu0
    %v3250 = vadd.f32 0.0, %v3249
    %3251 = vdwg.mxu0
    %v3252 = vadd.f32 %v3106, %v3177
    %v3253 = vadd.f32 %v3107, %v3179
    %v3254 = vadd.f32 %v3108, %v3248
    %v3255 = vadd.f32 %v3109, %v3250
    %v3256 = vxor.u32 %v3252, 2147483648
    %v3257 = vmul.f32 %v3256, 1.442695
    %v3258 = vpow.pop %v3257
    %v3259 = vadd.f32 %v3258, 1.0
    %v3260 = vrcp.pop %v3259
    %v3261 = vmul.f32 1.0, %v3260
    %v3262 = vxor.u32 %v3253, 2147483648
    %v3263 = vmul.f32 %v3262, 1.442695
    %v3264 = vpow.pop %v3263
    %v3265 = vadd.f32 %v3264, 1.0
    %v3266 = vrcp.pop %v3265
    %v3267 = vmul.f32 1.0, %v3266
    %v3268 = vtanh.pop %v3254
    %v3269 = vxor.u32 %v3255, 2147483648
    %v3270 = vmul.f32 %v3269, 1.442695
    %v3271 = vpow.pop %v3270
    %v3272 = vadd.f32 %v3271, 1.0
    %v3273 = vrcp.pop %v3272
    %v3274 = vmul.f32 1.0, %v3273
    %v3275 = vmul.f32 %v3267, %v3100
    %v3276 = vmul.f32 %v3261, %v3268
    %v3277 = vadd.f32 %v3275, %v3276
    %v3278 = vtanh.pop %v3277
    %v3279 = vmul.f32 %v3274, %v3278
    %s3280 = scalar_lea.vmem [#allocation3], 112
    %3281 = vst [vmem:[%s3280] sm:$0xff] %v3279
    %s3282 = scalar_lea.vmem [#allocation2], 480
    %v3283 = vld [vmem:[%s3282] sm:$0xff]
    %v3284 = vld [vmem:[%s3282 + $0x8] sm:$0xff]
    %v3285 = vld [vmem:[%s3282 + $0x10] sm:$0xff]
    %v3286 = vld [vmem:[%s3282 + $0x18] sm:$0xff]
    %3287 = vmatprep.subr.mxu0 %v142
    %3288 = vmatpush1.msra.mxu0 %v141
    %3289 = vmatprep.subr.mxu0 %v146
    %3290 = vmatpush1.msra.mxu0 %v145
    %3291 = vmatprep.subr.mxu0 %v150
    %3292 = vmatpush1.msra.mxu0 %v149
    %3293 = vmatprep.subr.mxu0 %v154
    %3294 = vmatpush1.msra.mxu0 %v153
    %3295 = vmatprep.subr.mxu0 %v158
    %3296 = vmatpush1.msra.mxu0 %v157
    %3297 = vmatprep.subr.mxu0 %v162
    %3298 = vmatpush1.msra.mxu0 %v161
    %3299 = vmatprep.subr.mxu0 %v166
    %3300 = vmatpush1.msra.mxu0 %v165
    %3301 = vmatprep.subr.mxu0 %v170
    %3302 = vmatpush1.msra.mxu0 %v169
    %3303 = vmatprep.subr.mxu0 %v174
    %3304 = vmatpush1.msra.mxu0 %v173
    %3305 = vmatprep.subr.mxu0 %v178
    %3306 = vmatpush1.msra.mxu0 %v177
    %3307 = vmatprep.subr.mxu0 %v182
    %3308 = vmatpush1.msra.mxu0 %v181
    %3309 = vmatprep.subr.mxu0 %v186
    %3310 = vmatpush1.msra.mxu0 %v185
    %3311 = vmatprep.subr.mxu0 %v190
    %3312 = vmatpush1.msra.mxu0 %v189
    %3313 = vmatprep.subr.mxu0 %v194
    %3314 = vmatpush1.msra.mxu0 %v193
    %3315 = vmatprep.subr.mxu0 %v198
    %3316 = vmatpush1.msra.mxu0 %v197
    %3317 = vmatprep.subr.mxu0 %v202
    %3318 = vmatpush1.msra.mxu0 %v201
    %3319 = vmatprep.subr.mxu0 0.0
    %3320 = vmatpush1.msra.mxu0 0.0
    %3321 = vmatprep.subr.mxu0 0.0
    %3322 = vmatpush1.msra.mxu0 0.0
    %3323 = vmatprep.subr.mxu0 0.0
    %3324 = vmatpush1.msra.mxu0 0.0
    %3325 = vmatprep.subr.mxu0 0.0
    %3326 = vmatpush1.msra.mxu0 0.0
    %3327 = vmatprep.subr.mxu0 0.0
    %3328 = vmatpush1.msra.mxu0 0.0
    %3329 = vmatprep.subr.mxu0 0.0
    %3330 = vmatpush1.msra.mxu0 0.0
    %3331 = vmatprep.subr.mxu0 0.0
    %3332 = vmatpush1.msra.mxu0 0.0
    %3333 = vmatprep.subr.mxu0 0.0
    %3334 = vmatpush1.msra.mxu0 0.0
    %3335 = vmatprep.subr.mxu0 0.0
    %3336 = vmatpush1.msra.mxu0 0.0
    %3337 = vmatprep.subr.mxu0 0.0
    %3338 = vmatpush1.msra.mxu0 0.0
    %3339 = vmatprep.subr.mxu0 0.0
    %3340 = vmatpush1.msra.mxu0 0.0
    %3341 = vmatprep.subr.mxu0 0.0
    %3342 = vmatpush1.msra.mxu0 0.0
    %3343 = vmatprep.subr.mxu0 0.0
    %3344 = vmatpush1.msra.mxu0 0.0
    %3345 = vmatprep.subr.mxu0 0.0
    %3346 = vmatpush1.msra.mxu0 0.0
    %3347 = vmatprep.subr.mxu0 0.0
    %3348 = vmatpush1.msra.mxu0 0.0
    %3349 = vmatprep.subr.mxu0 0.0
    %3350 = vmatpush1.msra.mxu0 0.0
    %3351 = vmatprep.mubr.f32.mxu0 0.0
    %3352 = vmatmul.mubr.f32.gmra.mrb[0].mxu0 %v3279
    %v3353 = vpop.f32.mrb[0].mxu0
    %v3354 = vadd.f32 0.0, %v3353
    %v3355 = vpop.f32.mrb[0].mxu0
    %v3356 = vadd.f32 0.0, %v3355
    %3357 = vdwg.mxu0
    %3358 = vmatprep.subr.mxu0 %v144
    %3359 = vmatpush1.msra.mxu0 %v143
    %3360 = vmatprep.subr.mxu0 %v148
    %3361 = vmatpush1.msra.mxu0 %v147
    %3362 = vmatprep.subr.mxu0 %v152
    %3363 = vmatpush1.msra.mxu0 %v151
    %3364 = vmatprep.subr.mxu0 %v156
    %3365 = vmatpush1.msra.mxu0 %v155
    %3366 = vmatprep.subr.mxu0 %v160
    %3367 = vmatpush1.msra.mxu0 %v159
    %3368 = vmatprep.subr.mxu0 %v164
    %3369 = vmatpush1.msra.mxu0 %v163
    %3370 = vmatprep.subr.mxu0 %v168
    %3371 = vmatpush1.msra.mxu0 %v167
    %3372 = vmatprep.subr.mxu0 %v172
    %3373 = vmatpush1.msra.mxu0 %v171
    %3374 = vmatprep.subr.mxu0 %v176
    %3375 = vmatpush1.msra.mxu0 %v175
    %3376 = vmatprep.subr.mxu0 %v180
    %3377 = vmatpush1.msra.mxu0 %v179
    %3378 = vmatprep.subr.mxu0 %v184
    %3379 = vmatpush1.msra.mxu0 %v183
    %3380 = vmatprep.subr.mxu0 %v188
    %3381 = vmatpush1.msra.mxu0 %v187
    %3382 = vmatprep.subr.mxu0 %v192
    %3383 = vmatpush1.msra.mxu0 %v191
    %3384 = vmatprep.subr.mxu0 %v196
    %3385 = vmatpush1.msra.mxu0 %v195
    %3386 = vmatprep.subr.mxu0 %v200
    %3387 = vmatpush1.msra.mxu0 %v199
    %3388 = vmatprep.subr.mxu0 %v204
    %3389 = vmatpush1.msra.mxu0 %v203
    %3390 = vmatprep.subr.mxu0 0.0
    %3391 = vmatpush1.msra.mxu0 0.0
    %3392 = vmatprep.subr.mxu0 0.0
    %3393 = vmatpush1.msra.mxu0 0.0
    %3394 = vmatprep.subr.mxu0 0.0
    %3395 = vmatpush1.msra.mxu0 0.0
    %3396 = vmatprep.subr.mxu0 0.0
    %3397 = vmatpush1.msra.mxu0 0.0
    %3398 = vmatprep.subr.mxu0 0.0
    %3399 = vmatpush1.msra.mxu0 0.0
    %3400 = vmatprep.subr.mxu0 0.0
    %3401 = vmatpush1.msra.mxu0 0.0
    %3402 = vmatprep.subr.mxu0 0.0
    %3403 = vmatpush1.msra.mxu0 0.0
    %3404 = vmatprep.subr.mxu0 0.0
    %3405 = vmatpush1.msra.mxu0 0.0
    %3406 = vmatprep.subr.mxu0 0.0
    %3407 = vmatpush1.msra.mxu0 0.0
    %3408 = vmatprep.subr.mxu0 0.0
    %3409 = vmatpush1.msra.mxu0 0.0
    %3410 = vmatprep.subr.mxu0 0.0
    %3411 = vmatpush1.msra.mxu0 0.0
    %3412 = vmatprep.subr.mxu0 0.0
    %3413 = vmatpush1.msra.mxu0 0.0
    %3414 = vmatprep.subr.mxu0 0.0
    %3415 = vmatpush1.msra.mxu0 0.0
    %3416 = vmatprep.subr.mxu0 0.0
    %3417 = vmatpush1.msra.mxu0 0.0
    %3418 = vmatprep.subr.mxu0 0.0
    %3419 = vmatpush1.msra.mxu0 0.0
    %3420 = vmatprep.subr.mxu0 0.0
    %3421 = vmatpush1.msra.mxu0 0.0
    %3422 = vmatprep.mubr.f32.mxu0 0.0
    %3423 = vmatmul.mubr.f32.gmra.mrb[0].mxu0 %v3279
    %v3424 = vpop.f32.mrb[0].mxu0
    %v3425 = vadd.f32 0.0, %v3424
    %v3426 = vpop.f32.mrb[0].mxu0
    %v3427 = vadd.f32 0.0, %v3426
    %3428 = vdwg.mxu0
    %v3429 = vadd.f32 %v3283, %v3354
    %v3430 = vadd.f32 %v3284, %v3356
    %v3431 = vadd.f32 %v3285, %v3425
    %v3432 = vadd.f32 %v3286, %v3427
    %v3433 = vxor.u32 %v3429, 2147483648
    %v3434 = vmul.f32 %v3433, 1.442695
    %v3435 = vpow.pop %v3434
    %v3436 = vadd.f32 %v3435, 1.0
    %v3437 = vrcp.pop %v3436
    %v3438 = vmul.f32 1.0, %v3437
    %v3439 = vxor.u32 %v3430, 2147483648
    %v3440 = vmul.f32 %v3439, 1.442695
    %v3441 = vpow.pop %v3440
    %v3442 = vadd.f32 %v3441, 1.0
    %v3443 = vrcp.pop %v3442
    %v3444 = vmul.f32 1.0, %v3443
    %v3445 = vtanh.pop %v3431
    %v3446 = vxor.u32 %v3432, 2147483648
    %v3447 = vmul.f32 %v3446, 1.442695
    %v3448 = vpow.pop %v3447
    %v3449 = vadd.f32 %v3448, 1.0
    %v3450 = vrcp.pop %v3449
    %v3451 = vmul.f32 1.0, %v3450
    %v3452 = vmul.f32 %v3444, %v3277
    %v3453 = vmul.f32 %v3438, %v3445
    %v3454 = vadd.f32 %v3452, %v3453
    %v3455 = vtanh.pop %v3454
    %v3456 = vmul.f32 %v3451, %v3455
    %s3457 = scalar_lea.vmem [#allocation3], 120
    %3458 = vst [vmem:[%s3457] sm:$0xff] %v3456
    %s3459 = scalar_lea.vmem [#allocation7], 1024
    %v3460 = vld [vmem:[%s3459] sm:$0xff]
    %v3461 = vld [vmem:[%s3459 + $0x8] sm:$0xff]
    %v3462 = vld [vmem:[%s3459 + $0x10] sm:$0xff]
    %v3463 = vld [vmem:[%s3459 + $0x18] sm:$0xff]
    %v3464 = vld [vmem:[%s3459 + $0x20] sm:$0xff]
    %v3465 = vld [vmem:[%s3459 + $0x28] sm:$0xff]
    %v3466 = vld [vmem:[%s3459 + $0x30] sm:$0xff]
    %v3467 = vld [vmem:[%s3459 + $0x38] sm:$0xff]
    %v3468 = vld [vmem:[%s3459 + $0x40] sm:$0xff]
    %v3469 = vld [vmem:[%s3459 + $0x48] sm:$0xff]
    %v3470 = vld [vmem:[%s3459 + $0x50] sm:$0xff]
    %v3471 = vld [vmem:[%s3459 + $0x58] sm:$0xff]
    %v3472 = vld [vmem:[%s3459 + $0x60] sm:$0xff]
    %v3473 = vld [vmem:[%s3459 + $0x68] sm:$0xff]
    %v3474 = vld [vmem:[%s3459 + $0x70] sm:$0xff]
    %v3475 = vld [vmem:[%s3459 + $0x78] sm:$0xff]
    %v3476 = vld [vmem:[%s3459 + $0x80] sm:$0xff]
    %v3477 = vld [vmem:[%s3459 + $0x88] sm:$0xff]
    %v3478 = vld [vmem:[%s3459 + $0x90] sm:$0xff]
    %v3479 = vld [vmem:[%s3459 + $0x98] sm:$0xff]
    %v3480 = vld [vmem:[%s3459 + $0xa0] sm:$0xff]
    %v3481 = vld [vmem:[%s3459 + $0xa8] sm:$0xff]
    %v3482 = vld [vmem:[%s3459 + $0xb0] sm:$0xff]
    %v3483 = vld [vmem:[%s3459 + $0xb8] sm:$0xff]
    %v3484 = vld [vmem:[%s3459 + $0xc0] sm:$0xff]
    %v3485 = vld [vmem:[%s3459 + $0xc8] sm:$0xff]
    %v3486 = vld [vmem:[%s3459 + $0xd0] sm:$0xff]
    %v3487 = vld [vmem:[%s3459 + $0xd8] sm:$0xff]
    %v3488 = vld [vmem:[%s3459 + $0xe0] sm:$0xff]
    %v3489 = vld [vmem:[%s3459 + $0xe8] sm:$0xff]
    %v3490 = vld [vmem:[%s3459 + $0xf0] sm:$0xff]
    %v3491 = vld [vmem:[%s3459 + $0xf8] sm:$0xff]
    %v3492 = vld [vmem:[%s3459 + $0x100] sm:$0xff]
    %v3493 = vld [vmem:[%s3459 + $0x108] sm:$0xff]
    %v3494 = vld [vmem:[%s3459 + $0x110] sm:$0xff]
    %v3495 = vld [vmem:[%s3459 + $0x118] sm:$0xff]
    %v3496 = vld [vmem:[%s3459 + $0x120] sm:$0xff]
    %v3497 = vld [vmem:[%s3459 + $0x128] sm:$0xff]
    %v3498 = vld [vmem:[%s3459 + $0x130] sm:$0xff]
    %v3499 = vld [vmem:[%s3459 + $0x138] sm:$0xff]
    %v3500 = vld [vmem:[%s3459 + $0x140] sm:$0xff]
    %v3501 = vld [vmem:[%s3459 + $0x148] sm:$0xff]
    %v3502 = vld [vmem:[%s3459 + $0x150] sm:$0xff]
    %v3503 = vld [vmem:[%s3459 + $0x158] sm:$0xff]
    %v3504 = vld [vmem:[%s3459 + $0x160] sm:$0xff]
    %v3505 = vld [vmem:[%s3459 + $0x168] sm:$0xff]
    %v3506 = vld [vmem:[%s3459 + $0x170] sm:$0xff]
    %v3507 = vld [vmem:[%s3459 + $0x178] sm:$0xff]
    %v3508 = vld [vmem:[%s3459 + $0x180] sm:$0xff]
    %v3509 = vld [vmem:[%s3459 + $0x188] sm:$0xff]
    %v3510 = vld [vmem:[%s3459 + $0x190] sm:$0xff]
    %v3511 = vld [vmem:[%s3459 + $0x198] sm:$0xff]
    %v3512 = vld [vmem:[%s3459 + $0x1a0] sm:$0xff]
    %v3513 = vld [vmem:[%s3459 + $0x1a8] sm:$0xff]
    %v3514 = vld [vmem:[%s3459 + $0x1b0] sm:$0xff]
    %v3515 = vld [vmem:[%s3459 + $0x1b8] sm:$0xff]
    %v3516 = vld [vmem:[%s3459 + $0x1c0] sm:$0xff]
    %v3517 = vld [vmem:[%s3459 + $0x1c8] sm:$0xff]
    %v3518 = vld [vmem:[%s3459 + $0x1d0] sm:$0xff]
    %v3519 = vld [vmem:[%s3459 + $0x1d8] sm:$0xff]
    %v3520 = vld [vmem:[%s3459 + $0x1e0] sm:$0xff]
    %v3521 = vld [vmem:[%s3459 + $0x1e8] sm:$0xff]
    %v3522 = vld [vmem:[%s3459 + $0x1f0] sm:$0xff]
    %v3523 = vld [vmem:[%s3459 + $0x1f8] sm:$0xff]
    %s3524 = scalar_lea.vmem [#allocation7], 1536
    %v3525 = vld [vmem:[%s3524] sm:$0xff]
    %v3526 = vld [vmem:[%s3524 + $0x8] sm:$0xff]
    %v3527 = vld [vmem:[%s3524 + $0x10] sm:$0xff]
    %v3528 = vld [vmem:[%s3524 + $0x18] sm:$0xff]
    %v3529 = vld [vmem:[%s3524 + $0x20] sm:$0xff]
    %v3530 = vld [vmem:[%s3524 + $0x28] sm:$0xff]
    %v3531 = vld [vmem:[%s3524 + $0x30] sm:$0xff]
    %v3532 = vld [vmem:[%s3524 + $0x38] sm:$0xff]
    %v3533 = vld [vmem:[%s3524 + $0x40] sm:$0xff]
    %v3534 = vld [vmem:[%s3524 + $0x48] sm:$0xff]
    %v3535 = vld [vmem:[%s3524 + $0x50] sm:$0xff]
    %v3536 = vld [vmem:[%s3524 + $0x58] sm:$0xff]
    %v3537 = vld [vmem:[%s3524 + $0x60] sm:$0xff]
    %v3538 = vld [vmem:[%s3524 + $0x68] sm:$0xff]
    %v3539 = vld [vmem:[%s3524 + $0x70] sm:$0xff]
    %v3540 = vld [vmem:[%s3524 + $0x78] sm:$0xff]
    %v3541 = vld [vmem:[%s3524 + $0x80] sm:$0xff]
    %v3542 = vld [vmem:[%s3524 + $0x88] sm:$0xff]
    %v3543 = vld [vmem:[%s3524 + $0x90] sm:$0xff]
    %v3544 = vld [vmem:[%s3524 + $0x98] sm:$0xff]
    %v3545 = vld [vmem:[%s3524 + $0xa0] sm:$0xff]
    %v3546 = vld [vmem:[%s3524 + $0xa8] sm:$0xff]
    %v3547 = vld [vmem:[%s3524 + $0xb0] sm:$0xff]
    %v3548 = vld [vmem:[%s3524 + $0xb8] sm:$0xff]
    %v3549 = vld [vmem:[%s3524 + $0xc0] sm:$0xff]
    %v3550 = vld [vmem:[%s3524 + $0xc8] sm:$0xff]
    %v3551 = vld [vmem:[%s3524 + $0xd0] sm:$0xff]
    %v3552 = vld [vmem:[%s3524 + $0xd8] sm:$0xff]
    %v3553 = vld [vmem:[%s3524 + $0xe0] sm:$0xff]
    %v3554 = vld [vmem:[%s3524 + $0xe8] sm:$0xff]
    %v3555 = vld [vmem:[%s3524 + $0xf0] sm:$0xff]
    %v3556 = vld [vmem:[%s3524 + $0xf8] sm:$0xff]
    %v3557 = vld [vmem:[%s3524 + $0x100] sm:$0xff]
    %v3558 = vld [vmem:[%s3524 + $0x108] sm:$0xff]
    %v3559 = vld [vmem:[%s3524 + $0x110] sm:$0xff]
    %v3560 = vld [vmem:[%s3524 + $0x118] sm:$0xff]
    %v3561 = vld [vmem:[%s3524 + $0x120] sm:$0xff]
    %v3562 = vld [vmem:[%s3524 + $0x128] sm:$0xff]
    %v3563 = vld [vmem:[%s3524 + $0x130] sm:$0xff]
    %v3564 = vld [vmem:[%s3524 + $0x138] sm:$0xff]
    %v3565 = vld [vmem:[%s3524 + $0x140] sm:$0xff]
    %v3566 = vld [vmem:[%s3524 + $0x148] sm:$0xff]
    %v3567 = vld [vmem:[%s3524 + $0x150] sm:$0xff]
    %v3568 = vld [vmem:[%s3524 + $0x158] sm:$0xff]
    %v3569 = vld [vmem:[%s3524 + $0x160] sm:$0xff]
    %v3570 = vld [vmem:[%s3524 + $0x168] sm:$0xff]
    %v3571 = vld [vmem:[%s3524 + $0x170] sm:$0xff]
    %v3572 = vld [vmem:[%s3524 + $0x178] sm:$0xff]
    %v3573 = vld [vmem:[%s3524 + $0x180] sm:$0xff]
    %v3574 = vld [vmem:[%s3524 + $0x188] sm:$0xff]
    %v3575 = vld [vmem:[%s3524 + $0x190] sm:$0xff]
    %v3576 = vld [vmem:[%s3524 + $0x198] sm:$0xff]
    %v3577 = vld [vmem:[%s3524 + $0x1a0] sm:$0xff]
    %v3578 = vld [vmem:[%s3524 + $0x1a8] sm:$0xff]
    %v3579 = vld [vmem:[%s3524 + $0x1b0] sm:$0xff]
    %v3580 = vld [vmem:[%s3524 + $0x1b8] sm:$0xff]
    %v3581 = vld [vmem:[%s3524 + $0x1c0] sm:$0xff]
    %v3582 = vld [vmem:[%s3524 + $0x1c8] sm:$0xff]
    %v3583 = vld [vmem:[%s3524 + $0x1d0] sm:$0xff]
    %v3584 = vld [vmem:[%s3524 + $0x1d8] sm:$0xff]
    %v3585 = vld [vmem:[%s3524 + $0x1e0] sm:$0xff]
    %v3586 = vld [vmem:[%s3524 + $0x1e8] sm:$0xff]
    %v3587 = vld [vmem:[%s3524 + $0x1f0] sm:$0xff]
    %v3588 = vld [vmem:[%s3524 + $0x1f8] sm:$0xff]
    %s3589 = scalar_lea.vmem [#allocation9], 4
    %v3590 = vld [vmem:[%s3589] sm:$0xf]
    %v3591 = vld [vmem:[#allocation3] sm:$0xff]
    %v3592 = vld [vmem:[#allocation3 + $0x8] sm:$0xff]
    %v3593 = vld [vmem:[#allocation3 + $0x10] sm:$0xff]
    %v3594 = vld [vmem:[#allocation3 + $0x18] sm:$0xff]
    %v3595 = vld [vmem:[#allocation3 + $0x20] sm:$0xff]
    %v3596 = vld [vmem:[#allocation3 + $0x28] sm:$0xff]
    %v3597 = vld [vmem:[#allocation3 + $0x30] sm:$0xff]
    %v3598 = vld [vmem:[#allocation3 + $0x38] sm:$0xff]
    %v3599 = vld [vmem:[#allocation3 + $0x40] sm:$0xff]
    %v3600 = vld [vmem:[#allocation3 + $0x48] sm:$0xff]
    %v3601 = vld [vmem:[#allocation3 + $0x50] sm:$0xff]
    %v3602 = vld [vmem:[#allocation3 + $0x58] sm:$0xff]
    %v3603 = vld [vmem:[#allocation3 + $0x60] sm:$0xff]
    %v3604 = vld [vmem:[#allocation3 + $0x68] sm:$0xff]
    %v3605 = vld [vmem:[#allocation3 + $0x70] sm:$0xff]
    %v3606 = vld [vmem:[#allocation3 + $0x78] sm:$0xff]
    %v3608 = vlaneseq
    %v3609 = vshrl.u32 %v3608, 7
    %v3610 = vsub.s32 0, %v3609
    %v3611 = vrot.slane %v3590, %v3610
    %v3612 = vlaneseq
    %v3613 = vshrl.u32 %v3612, 7
    %v3614 = vsub.s32 1, %v3613
    %v3615 = vrot.slane %v3590, %v3614
    %v3616 = vlaneseq
    %v3617 = vshrl.u32 %v3616, 7
    %v3618 = vsub.s32 2, %v3617
    %v3619 = vrot.slane %v3590, %v3618
    %v3620 = vlaneseq
    %v3621 = vshrl.u32 %v3620, 7
    %v3622 = vsub.s32 3, %v3621
    %v3623 = vrot.slane %v3590, %v3622
    %3628 = vmatprep.subr.mxu0 %v3461
    %3629 = vmatpush1.msra.mxu0 %v3460
    %3630 = vmatprep.subr.mxu0 %v3465
    %3631 = vmatpush1.msra.mxu0 %v3464
    %3632 = vmatprep.subr.mxu0 %v3469
    %3633 = vmatpush1.msra.mxu0 %v3468
    %3634 = vmatprep.subr.mxu0 %v3473
    %3635 = vmatpush1.msra.mxu0 %v3472
    %3636 = vmatprep.subr.mxu0 %v3477
    %3637 = vmatpush1.msra.mxu0 %v3476
    %3638 = vmatprep.subr.mxu0 %v3481
    %3639 = vmatpush1.msra.mxu0 %v3480
    %3640 = vmatprep.subr.mxu0 %v3485
    %3641 = vmatpush1.msra.mxu0 %v3484
    %3642 = vmatprep.subr.mxu0 %v3489
    %3643 = vmatpush1.msra.mxu0 %v3488
    %3644 = vmatprep.subr.mxu0 %v3493
    %3645 = vmatpush1.msra.mxu0 %v3492
    %3646 = vmatprep.subr.mxu0 %v3497
    %3647 = vmatpush1.msra.mxu0 %v3496
    %3648 = vmatprep.subr.mxu0 %v3501
    %3649 = vmatpush1.msra.mxu0 %v3500
    %3650 = vmatprep.subr.mxu0 %v3505
    %3651 = vmatpush1.msra.mxu0 %v3504
    %3652 = vmatprep.subr.mxu0 %v3509
    %3653 = vmatpush1.msra.mxu0 %v3508
    %3654 = vmatprep.subr.mxu0 %v3513
    %3655 = vmatpush1.msra.mxu0 %v3512
    %3656 = vmatprep.subr.mxu0 %v3517
    %3657 = vmatpush1.msra.mxu0 %v3516
    %3658 = vmatprep.subr.mxu0 %v3521
    %3659 = vmatpush1.msra.mxu0 %v3520
    %3660 = vmatprep.subr.mxu0 0.0
    %3661 = vmatpush1.msra.mxu0 0.0
    %3662 = vmatprep.subr.mxu0 0.0
    %3663 = vmatpush1.msra.mxu0 0.0
    %3664 = vmatprep.subr.mxu0 0.0
    %3665 = vmatpush1.msra.mxu0 0.0
    %3666 = vmatprep.subr.mxu0 0.0
    %3667 = vmatpush1.msra.mxu0 0.0
    %3668 = vmatprep.subr.mxu0 0.0
    %3669 = vmatpush1.msra.mxu0 0.0
    %3670 = vmatprep.subr.mxu0 0.0
    %3671 = vmatpush1.msra.mxu0 0.0
    %3672 = vmatprep.subr.mxu0 0.0
    %3673 = vmatpush1.msra.mxu0 0.0
    %3674 = vmatprep.subr.mxu0 0.0
    %3675 = vmatpush1.msra.mxu0 0.0
    %3676 = vmatprep.subr.mxu0 0.0
    %3677 = vmatpush1.msra.mxu0 0.0
    %3678 = vmatprep.subr.mxu0 0.0
    %3679 = vmatpush1.msra.mxu0 0.0
    %3680 = vmatprep.subr.mxu0 0.0
    %3681 = vmatpush1.msra.mxu0 0.0
    %3682 = vmatprep.subr.mxu0 0.0
    %3683 = vmatpush1.msra.mxu0 0.0
    %3684 = vmatprep.subr.mxu0 0.0
    %3685 = vmatpush1.msra.mxu0 0.0
    %3686 = vmatprep.subr.mxu0 0.0
    %3687 = vmatpush1.msra.mxu0 0.0
    %3688 = vmatprep.subr.mxu0 0.0
    %3689 = vmatpush1.msra.mxu0 0.0
    %3690 = vmatprep.subr.mxu0 0.0
    %3691 = vmatpush1.msra.mxu0 0.0
    %3692 = vmatprep.mubr.f32.mxu0 0.0
    %3693 = vmatmul.mubr.f32.gmra.mrb[0].mxu0 %v3591
    %v3694 = vpop.f32.mrb[0].mxu0
    %v3695 = vadd.f32 %v3611, %v3694
    %v3696 = vpop.f32.mrb[0].mxu0
    %v3697 = vadd.f32 %v3615, %v3696
    %3698 = vmatprep.mubr.f32.mxu0 0.0
    %3699 = vmatmul.mubr.f32.gmra.mrb[0].mxu0 %v3592
    %v3700 = vpop.f32.mrb[0].mxu0
    %v3701 = vadd.f32 %v3611, %v3700
    %v3702 = vpop.f32.mrb[0].mxu0
    %v3703 = vadd.f32 %v3615, %v3702
    %3704 = vmatprep.mubr.f32.mxu0 0.0
    %3705 = vmatmul.mubr.f32.gmra.mrb[0].mxu0 %v3593
    %v3706 = vpop.f32.mrb[0].mxu0
    %v3707 = vadd.f32 %v3611, %v3706
    %v3708 = vpop.f32.mrb[0].mxu0
    %v3709 = vadd.f32 %v3615, %v3708
    %3710 = vmatprep.mubr.f32.mxu0 0.0
    %3711 = vmatmul.mubr.f32.gmra.mrb[0].mxu0 %v3594
    %v3712 = vpop.f32.mrb[0].mxu0
    %v3713 = vadd.f32 %v3611, %v3712
    %v3714 = vpop.f32.mrb[0].mxu0
    %v3715 = vadd.f32 %v3615, %v3714
    %3716 = vmatprep.mubr.f32.mxu0 0.0
    %3717 = vmatmul.mubr.f32.gmra.mrb[0].mxu0 %v3595
    %v3718 = vpop.f32.mrb[0].mxu0
    %v3719 = vadd.f32 %v3611, %v3718
    %v3720 = vpop.f32.mrb[0].mxu0
    %v3721 = vadd.f32 %v3615, %v3720
    %3722 = vmatprep.mubr.f32.mxu0 0.0
    %3723 = vmatmul.mubr.f32.gmra.mrb[0].mxu0 %v3596
    %v3724 = vpop.f32.mrb[0].mxu0
    %v3725 = vadd.f32 %v3611, %v3724
    %v3726 = vpop.f32.mrb[0].mxu0
    %v3727 = vadd.f32 %v3615, %v3726
    %3728 = vmatprep.mubr.f32.mxu0 0.0
    %3729 = vmatmul.mubr.f32.gmra.mrb[0].mxu0 %v3597
    %v3730 = vpop.f32.mrb[0].mxu0
    %v3731 = vadd.f32 %v3611, %v3730
    %v3732 = vpop.f32.mrb[0].mxu0
    %v3733 = vadd.f32 %v3615, %v3732
    %3734 = vmatprep.mubr.f32.mxu0 0.0
    %3735 = vmatmul.mubr.f32.gmra.mrb[0].mxu0 %v3598
    %v3736 = vpop.f32.mrb[0].mxu0
    %v3737 = vadd.f32 %v3611, %v3736
    %v3738 = vpop.f32.mrb[0].mxu0
    %v3739 = vadd.f32 %v3615, %v3738
    %3740 = vmatprep.mubr.f32.mxu0 0.0
    %3741 = vmatmul.mubr.f32.gmra.mrb[0].mxu0 %v3599
    %v3742 = vpop.f32.mrb[0].mxu0
    %v3743 = vadd.f32 %v3611, %v3742
    %v3744 = vpop.f32.mrb[0].mxu0
    %v3745 = vadd.f32 %v3615, %v3744
    %3746 = vmatprep.mubr.f32.mxu0 0.0
    %3747 = vmatmul.mubr.f32.gmra.mrb[0].mxu0 %v3600
    %v3748 = vpop.f32.mrb[0].mxu0
    %v3749 = vadd.f32 %v3611, %v3748
    %v3750 = vpop.f32.mrb[0].mxu0
    %v3751 = vadd.f32 %v3615, %v3750
    %3752 = vmatprep.mubr.f32.mxu0 0.0
    %3753 = vmatmul.mubr.f32.gmra.mrb[0].mxu0 %v3601
    %v3754 = vpop.f32.mrb[0].mxu0
    %v3755 = vadd.f32 %v3611, %v3754
    %v3756 = vpop.f32.mrb[0].mxu0
    %v3757 = vadd.f32 %v3615, %v3756
    %3758 = vmatprep.mubr.f32.mxu0 0.0
    %3759 = vmatmul.mubr.f32.gmra.mrb[0].mxu0 %v3602
    %v3760 = vpop.f32.mrb[0].mxu0
    %v3761 = vadd.f32 %v3611, %v3760
    %v3762 = vpop.f32.mrb[0].mxu0
    %v3763 = vadd.f32 %v3615, %v3762
    %3764 = vmatprep.mubr.f32.mxu0 0.0
    %3765 = vmatmul.mubr.f32.gmra.mrb[0].mxu0 %v3603
    %v3766 = vpop.f32.mrb[0].mxu0
    %v3767 = vadd.f32 %v3611, %v3766
    %v3768 = vpop.f32.mrb[0].mxu0
    %v3769 = vadd.f32 %v3615, %v3768
    %3770 = vmatprep.mubr.f32.mxu0 0.0
    %3771 = vmatmul.mubr.f32.gmra.mrb[0].mxu0 %v3604
    %v3772 = vpop.f32.mrb[0].mxu0
    %v3773 = vadd.f32 %v3611, %v3772
    %v3774 = vpop.f32.mrb[0].mxu0
    %v3775 = vadd.f32 %v3615, %v3774
    %3776 = vmatprep.mubr.f32.mxu0 0.0
    %3777 = vmatmul.mubr.f32.gmra.mrb[0].mxu0 %v3605
    %v3778 = vpop.f32.mrb[0].mxu0
    %v3779 = vadd.f32 %v3611, %v3778
    %v3780 = vpop.f32.mrb[0].mxu0
    %v3781 = vadd.f32 %v3615, %v3780
    %3782 = vmatprep.mubr.f32.mxu0 0.0
    %3783 = vmatmul.mubr.f32.gmra.mrb[0].mxu0 %v3606
    %v3784 = vpop.f32.mrb[0].mxu0
    %v3785 = vadd.f32 %v3611, %v3784
    %v3786 = vpop.f32.mrb[0].mxu0
    %v3787 = vadd.f32 %v3615, %v3786
    %3788 = vdwg.mxu0
    %3789 = vmatprep.subr.mxu0 %v3463
    %3790 = vmatpush1.msra.mxu0 %v3462
    %3791 = vmatprep.subr.mxu0 %v3467
    %3792 = vmatpush1.msra.mxu0 %v3466
    %3793 = vmatprep.subr.mxu0 %v3471
    %3794 = vmatpush1.msra.mxu0 %v3470
    %3795 = vmatprep.subr.mxu0 %v3475
    %3796 = vmatpush1.msra.mxu0 %v3474
    %3797 = vmatprep.subr.mxu0 %v3479
    %3798 = vmatpush1.msra.mxu0 %v3478
    %3799 = vmatprep.subr.mxu0 %v3483
    %3800 = vmatpush1.msra.mxu0 %v3482
    %3801 = vmatprep.subr.mxu0 %v3487
    %3802 = vmatpush1.msra.mxu0 %v3486
    %3803 = vmatprep.subr.mxu0 %v3491
    %3804 = vmatpush1.msra.mxu0 %v3490
    %3805 = vmatprep.subr.mxu0 %v3495
    %3806 = vmatpush1.msra.mxu0 %v3494
    %3807 = vmatprep.subr.mxu0 %v3499
    %3808 = vmatpush1.msra.mxu0 %v3498
    %3809 = vmatprep.subr.mxu0 %v3503
    %3810 = vmatpush1.msra.mxu0 %v3502
    %3811 = vmatprep.subr.mxu0 %v3507
    %3812 = vmatpush1.msra.mxu0 %v3506
    %3813 = vmatprep.subr.mxu0 %v3511
    %3814 = vmatpush1.msra.mxu0 %v3510
    %3815 = vmatprep.subr.mxu0 %v3515
    %3816 = vmatpush1.msra.mxu0 %v3514
    %3817 = vmatprep.subr.mxu0 %v3519
    %3818 = vmatpush1.msra.mxu0 %v3518
    %3819 = vmatprep.subr.mxu0 %v3523
    %3820 = vmatpush1.msra.mxu0 %v3522
    %3821 = vmatprep.subr.mxu0 0.0
    %3822 = vmatpush1.msra.mxu0 0.0
    %3823 = vmatprep.subr.mxu0 0.0
    %3824 = vmatpush1.msra.mxu0 0.0
    %3825 = vmatprep.subr.mxu0 0.0
    %3826 = vmatpush1.msra.mxu0 0.0
    %3827 = vmatprep.subr.mxu0 0.0
    %3828 = vmatpush1.msra.mxu0 0.0
    %3829 = vmatprep.subr.mxu0 0.0
    %3830 = vmatpush1.msra.mxu0 0.0
    %3831 = vmatprep.subr.mxu0 0.0
    %3832 = vmatpush1.msra.mxu0 0.0
    %3833 = vmatprep.subr.mxu0 0.0
    %3834 = vmatpush1.msra.mxu0 0.0
    %3835 = vmatprep.subr.mxu0 0.0
    %3836 = vmatpush1.msra.mxu0 0.0
    %3837 = vmatprep.subr.mxu0 0.0
    %3838 = vmatpush1.msra.mxu0 0.0
    %3839 = vmatprep.subr.mxu0 0.0
    %3840 = vmatpush1.msra.mxu0 0.0
    %3841 = vmatprep.subr.mxu0 0.0
    %3842 = vmatpush1.msra.mxu0 0.0
    %3843 = vmatprep.subr.mxu0 0.0
    %3844 = vmatpush1.msra.mxu0 0.0
    %3845 = vmatprep.subr.mxu0 0.0
    %3846 = vmatpush1.msra.mxu0 0.0
    %3847 = vmatprep.subr.mxu0 0.0
    %3848 = vmatpush1.msra.mxu0 0.0
    %3849 = vmatprep.subr.mxu0 0.0
    %3850 = vmatpush1.msra.mxu0 0.0
    %3851 = vmatprep.subr.mxu0 0.0
    %3852 = vmatpush1.msra.mxu0 0.0
    %3853 = vmatprep.mubr.f32.mxu0 0.0
    %3854 = vmatmul.mubr.f32.gmra.mrb[0].mxu0 %v3591
    %v3855 = vpop.f32.mrb[0].mxu0
    %v3856 = vadd.f32 %v3619, %v3855
    %v3857 = vpop.f32.mrb[0].mxu0
    %v3858 = vadd.f32 %v3623, %v3857
    %3859 = vmatprep.mubr.f32.mxu0 0.0
    %3860 = vmatmul.mubr.f32.gmra.mrb[0].mxu0 %v3592
    %v3861 = vpop.f32.mrb[0].mxu0
    %v3862 = vadd.f32 %v3619, %v3861
    %v3863 = vpop.f32.mrb[0].mxu0
    %v3864 = vadd.f32 %v3623, %v3863
    %3865 = vmatprep.mubr.f32.mxu0 0.0
    %3866 = vmatmul.mubr.f32.gmra.mrb[0].mxu0 %v3593
    %v3867 = vpop.f32.mrb[0].mxu0
    %v3868 = vadd.f32 %v3619, %v3867
    %v3869 = vpop.f32.mrb[0].mxu0
    %v3870 = vadd.f32 %v3623, %v3869
    %3871 = vmatprep.mubr.f32.mxu0 0.0
    %3872 = vmatmul.mubr.f32.gmra.mrb[0].mxu0 %v3594
    %v3873 = vpop.f32.mrb[0].mxu0
    %v3874 = vadd.f32 %v3619, %v3873
    %v3875 = vpop.f32.mrb[0].mxu0
    %v3876 = vadd.f32 %v3623, %v3875
    %3877 = vmatprep.mubr.f32.mxu0 0.0
    %3878 = vmatmul.mubr.f32.gmra.mrb[0].mxu0 %v3595
    %v3879 = vpop.f32.mrb[0].mxu0
    %v3880 = vadd.f32 %v3619, %v3879
    %v3881 = vpop.f32.mrb[0].mxu0
    %v3882 = vadd.f32 %v3623, %v3881
    %3883 = vmatprep.mubr.f32.mxu0 0.0
    %3884 = vmatmul.mubr.f32.gmra.mrb[0].mxu0 %v3596
    %v3885 = vpop.f32.mrb[0].mxu0
    %v3886 = vadd.f32 %v3619, %v3885
    %v3887 = vpop.f32.mrb[0].mxu0
    %v3888 = vadd.f32 %v3623, %v3887
    %3889 = vmatprep.mubr.f32.mxu0 0.0
    %3890 = vmatmul.mubr.f32.gmra.mrb[0].mxu0 %v3597
    %v3891 = vpop.f32.mrb[0].mxu0
    %v3892 = vadd.f32 %v3619, %v3891
    %v3893 = vpop.f32.mrb[0].mxu0
    %v3894 = vadd.f32 %v3623, %v3893
    %3895 = vmatprep.mubr.f32.mxu0 0.0
    %3896 = vmatmul.mubr.f32.gmra.mrb[0].mxu0 %v3598
    %v3897 = vpop.f32.mrb[0].mxu0
    %v3898 = vadd.f32 %v3619, %v3897
    %v3899 = vpop.f32.mrb[0].mxu0
    %v3900 = vadd.f32 %v3623, %v3899
    %3901 = vmatprep.mubr.f32.mxu0 0.0
    %3902 = vmatmul.mubr.f32.gmra.mrb[0].mxu0 %v3599
    %v3903 = vpop.f32.mrb[0].mxu0
    %v3904 = vadd.f32 %v3619, %v3903
    %v3905 = vpop.f32.mrb[0].mxu0
    %v3906 = vadd.f32 %v3623, %v3905
    %3907 = vmatprep.mubr.f32.mxu0 0.0
    %3908 = vmatmul.mubr.f32.gmra.mrb[0].mxu0 %v3600
    %v3909 = vpop.f32.mrb[0].mxu0
    %v3910 = vadd.f32 %v3619, %v3909
    %v3911 = vpop.f32.mrb[0].mxu0
    %v3912 = vadd.f32 %v3623, %v3911
    %3913 = vmatprep.mubr.f32.mxu0 0.0
    %3914 = vmatmul.mubr.f32.gmra.mrb[0].mxu0 %v3601
    %v3915 = vpop.f32.mrb[0].mxu0
    %v3916 = vadd.f32 %v3619, %v3915
    %v3917 = vpop.f32.mrb[0].mxu0
    %v3918 = vadd.f32 %v3623, %v3917
    %3919 = vmatprep.mubr.f32.mxu0 0.0
    %3920 = vmatmul.mubr.f32.gmra.mrb[0].mxu0 %v3602
    %v3921 = vpop.f32.mrb[0].mxu0
    %v3922 = vadd.f32 %v3619, %v3921
    %v3923 = vpop.f32.mrb[0].mxu0
    %v3924 = vadd.f32 %v3623, %v3923
    %3925 = vmatprep.mubr.f32.mxu0 0.0
    %3926 = vmatmul.mubr.f32.gmra.mrb[0].mxu0 %v3603
    %v3927 = vpop.f32.mrb[0].mxu0
    %v3928 = vadd.f32 %v3619, %v3927
    %v3929 = vpop.f32.mrb[0].mxu0
    %v3930 = vadd.f32 %v3623, %v3929
    %3931 = vmatprep.mubr.f32.mxu0 0.0
    %3932 = vmatmul.mubr.f32.gmra.mrb[0].mxu0 %v3604
    %v3933 = vpop.f32.mrb[0].mxu0
    %v3934 = vadd.f32 %v3619, %v3933
    %v3935 = vpop.f32.mrb[0].mxu0
    %v3936 = vadd.f32 %v3623, %v3935
    %3937 = vmatprep.mubr.f32.mxu0 0.0
    %3938 = vmatmul.mubr.f32.gmra.mrb[0].mxu0 %v3605
    %v3939 = vpop.f32.mrb[0].mxu0
    %v3940 = vadd.f32 %v3619, %v3939
    %v3941 = vpop.f32.mrb[0].mxu0
    %v3942 = vadd.f32 %v3623, %v3941
    %3943 = vmatprep.mubr.f32.mxu0 0.0
    %3944 = vmatmul.mubr.f32.gmra.mrb[0].mxu0 %v3606
    %v3945 = vpop.f32.mrb[0].mxu0
    %v3946 = vadd.f32 %v3619, %v3945
    %v3947 = vpop.f32.mrb[0].mxu0
    %v3948 = vadd.f32 %v3623, %v3947
    %3949 = vdwg.mxu0
    %3950 = vst [vmem:[#allocation2] sm:$0xff] %v3695
    %3951 = vst [vmem:[#allocation2 + $0x8] sm:$0xff] %v3697
    %3952 = vst [vmem:[#allocation2 + $0x10] sm:$0xff] %v3856
    %3953 = vst [vmem:[#allocation2 + $0x18] sm:$0xff] %v3858
    %3954 = vst [vmem:[#allocation2 + $0x20] sm:$0xff] %v3701
    %3955 = vst [vmem:[#allocation2 + $0x28] sm:$0xff] %v3703
    %3956 = vst [vmem:[#allocation2 + $0x30] sm:$0xff] %v3862
    %3957 = vst [vmem:[#allocation2 + $0x38] sm:$0xff] %v3864
    %3958 = vst [vmem:[#allocation2 + $0x40] sm:$0xff] %v3707
    %3959 = vst [vmem:[#allocation2 + $0x48] sm:$0xff] %v3709
    %3960 = vst [vmem:[#allocation2 + $0x50] sm:$0xff] %v3868
    %3961 = vst [vmem:[#allocation2 + $0x58] sm:$0xff] %v3870
    %3962 = vst [vmem:[#allocation2 + $0x60] sm:$0xff] %v3713
    %3963 = vst [vmem:[#allocation2 + $0x68] sm:$0xff] %v3715
    %3964 = vst [vmem:[#allocation2 + $0x70] sm:$0xff] %v3874
    %3965 = vst [vmem:[#allocation2 + $0x78] sm:$0xff] %v3876
    %3966 = vst [vmem:[#allocation2 + $0x80] sm:$0xff] %v3719
    %3967 = vst [vmem:[#allocation2 + $0x88] sm:$0xff] %v3721
    %3968 = vst [vmem:[#allocation2 + $0x90] sm:$0xff] %v3880
    %3969 = vst [vmem:[#allocation2 + $0x98] sm:$0xff] %v3882
    %3970 = vst [vmem:[#allocation2 + $0xa0] sm:$0xff] %v3725
    %3971 = vst [vmem:[#allocation2 + $0xa8] sm:$0xff] %v3727
    %3972 = vst [vmem:[#allocation2 + $0xb0] sm:$0xff] %v3886
    %3973 = vst [vmem:[#allocation2 + $0xb8] sm:$0xff] %v3888
    %3974 = vst [vmem:[#allocation2 + $0xc0] sm:$0xff] %v3731
    %3975 = vst [vmem:[#allocation2 + $0xc8] sm:$0xff] %v3733
    %3976 = vst [vmem:[#allocation2 + $0xd0] sm:$0xff] %v3892
    %3977 = vst [vmem:[#allocation2 + $0xd8] sm:$0xff] %v3894
    %3978 = vst [vmem:[#allocation2 + $0xe0] sm:$0xff] %v3737
    %3979 = vst [vmem:[#allocation2 + $0xe8] sm:$0xff] %v3739
    %3980 = vst [vmem:[#allocation2 + $0xf0] sm:$0xff] %v3898
    %3981 = vst [vmem:[#allocation2 + $0xf8] sm:$0xff] %v3900
    %3982 = vst [vmem:[#allocation2 + $0x100] sm:$0xff] %v3743
    %3983 = vst [vmem:[#allocation2 + $0x108] sm:$0xff] %v3745
    %3984 = vst [vmem:[#allocation2 + $0x110] sm:$0xff] %v3904
    %3985 = vst [vmem:[#allocation2 + $0x118] sm:$0xff] %v3906
    %3986 = vst [vmem:[#allocation2 + $0x120] sm:$0xff] %v3749
    %3987 = vst [vmem:[#allocation2 + $0x128] sm:$0xff] %v3751
    %3988 = vst [vmem:[#allocation2 + $0x130] sm:$0xff] %v3910
    %3989 = vst [vmem:[#allocation2 + $0x138] sm:$0xff] %v3912
    %3990 = vst [vmem:[#allocation2 + $0x140] sm:$0xff] %v3755
    %3991 = vst [vmem:[#allocation2 + $0x148] sm:$0xff] %v3757
    %3992 = vst [vmem:[#allocation2 + $0x150] sm:$0xff] %v3916
    %3993 = vst [vmem:[#allocation2 + $0x158] sm:$0xff] %v3918
    %3994 = vst [vmem:[#allocation2 + $0x160] sm:$0xff] %v3761
    %3995 = vst [vmem:[#allocation2 + $0x168] sm:$0xff] %v3763
    %3996 = vst [vmem:[#allocation2 + $0x170] sm:$0xff] %v3922
    %3997 = vst [vmem:[#allocation2 + $0x178] sm:$0xff] %v3924
    %3998 = vst [vmem:[#allocation2 + $0x180] sm:$0xff] %v3767
    %3999 = vst [vmem:[#allocation2 + $0x188] sm:$0xff] %v3769
    %4000 = vst [vmem:[#allocation2 + $0x190] sm:$0xff] %v3928
    %4001 = vst [vmem:[#allocation2 + $0x198] sm:$0xff] %v3930
    %4002 = vst [vmem:[#allocation2 + $0x1a0] sm:$0xff] %v3773
    %4003 = vst [vmem:[#allocation2 + $0x1a8] sm:$0xff] %v3775
    %4004 = vst [vmem:[#allocation2 + $0x1b0] sm:$0xff] %v3934
    %4005 = vst [vmem:[#allocation2 + $0x1b8] sm:$0xff] %v3936
    %4006 = vst [vmem:[#allocation2 + $0x1c0] sm:$0xff] %v3779
    %4007 = vst [vmem:[#allocation2 + $0x1c8] sm:$0xff] %v3781
    %4008 = vst [vmem:[#allocation2 + $0x1d0] sm:$0xff] %v3940
    %4009 = vst [vmem:[#allocation2 + $0x1d8] sm:$0xff] %v3942
    %4010 = vst [vmem:[#allocation2 + $0x1e0] sm:$0xff] %v3785
    %4011 = vst [vmem:[#allocation2 + $0x1e8] sm:$0xff] %v3787
    %4012 = vst [vmem:[#allocation2 + $0x1f0] sm:$0xff] %v3946
    %4013 = vst [vmem:[#allocation2 + $0x1f8] sm:$0xff] %v3948
    %v4014 = vld [vmem:[#allocation2] sm:$0xff]
    %v4015 = vld [vmem:[#allocation2 + $0x8] sm:$0xff]
    %v4016 = vld [vmem:[#allocation2 + $0x10] sm:$0xff]
    %v4017 = vld [vmem:[#allocation2 + $0x18] sm:$0xff]
    %4018 = vmatprep.subr.mxu0 %v3526
    %4019 = vmatpush1.msra.mxu0 %v3525
    %4020 = vmatprep.subr.mxu0 %v3530
    %4021 = vmatpush1.msra.mxu0 %v3529
    %4022 = vmatprep.subr.mxu0 %v3534
    %4023 = vmatpush1.msra.mxu0 %v3533
    %4024 = vmatprep.subr.mxu0 %v3538
    %4025 = vmatpush1.msra.mxu0 %v3537
    %4026 = vmatprep.subr.mxu0 %v3542
    %4027 = vmatpush1.msra.mxu0 %v3541
    %4028 = vmatprep.subr.mxu0 %v3546
    %4029 = vmatpush1.msra.mxu0 %v3545
    %4030 = vmatprep.subr.mxu0 %v3550
    %4031 = vmatpush1.msra.mxu0 %v3549
    %4032 = vmatprep.subr.mxu0 %v3554
    %4033 = vmatpush1.msra.mxu0 %v3553
    %4034 = vmatprep.subr.mxu0 %v3558
    %4035 = vmatpush1.msra.mxu0 %v3557
    %4036 = vmatprep.subr.mxu0 %v3562
    %4037 = vmatpush1.msra.mxu0 %v3561
    %4038 = vmatprep.subr.mxu0 %v3566
    %4039 = vmatpush1.msra.mxu0 %v3565
    %4040 = vmatprep.subr.mxu0 %v3570
    %4041 = vmatpush1.msra.mxu0 %v3569
    %4042 = vmatprep.subr.mxu0 %v3574
    %4043 = vmatpush1.msra.mxu0 %v3573
    %4044 = vmatprep.subr.mxu0 %v3578
    %4045 = vmatpush1.msra.mxu0 %v3577
    %4046 = vmatprep.subr.mxu0 %v3582
    %4047 = vmatpush1.msra.mxu0 %v3581
    %4048 = vmatprep.subr.mxu0 %v3586
    %4049 = vmatpush1.msra.mxu0 %v3585
    %4050 = vmatprep.subr.mxu0 0.0
    %4051 = vmatpush1.msra.mxu0 0.0
    %4052 = vmatprep.subr.mxu0 0.0
    %4053 = vmatpush1.msra.mxu0 0.0
    %4054 = vmatprep.subr.mxu0 0.0
    %4055 = vmatpush1.msra.mxu0 0.0
    %4056 = vmatprep.subr.mxu0 0.0
    %4057 = vmatpush1.msra.mxu0 0.0
    %4058 = vmatprep.subr.mxu0 0.0
    %4059 = vmatpush1.msra.mxu0 0.0
    %4060 = vmatprep.subr.mxu0 0.0
    %4061 = vmatpush1.msra.mxu0 0.0
    %4062 = vmatprep.subr.mxu0 0.0
    %4063 = vmatpush1.msra.mxu0 0.0
    %4064 = vmatprep.subr.mxu0 0.0
    %4065 = vmatpush1.msra.mxu0 0.0
    %4066 = vmatprep.subr.mxu0 0.0
    %4067 = vmatpush1.msra.mxu0 0.0
    %4068 = vmatprep.subr.mxu0 0.0
    %4069 = vmatpush1.msra.mxu0 0.0
    %4070 = vmatprep.subr.mxu0 0.0
    %4071 = vmatpush1.msra.mxu0 0.0
    %4072 = vmatprep.subr.mxu0 0.0
    %4073 = vmatpush1.msra.mxu0 0.0
    %4074 = vmatprep.subr.mxu0 0.0
    %4075 = vmatpush1.msra.mxu0 0.0
    %4076 = vmatprep.subr.mxu0 0.0
    %4077 = vmatpush1.msra.mxu0 0.0
    %4078 = vmatprep.subr.mxu0 0.0
    %4079 = vmatpush1.msra.mxu0 0.0
    %4080 = vmatprep.subr.mxu0 0.0
    %4081 = vmatpush1.msra.mxu0 0.0
    %4082 = vmatprep.mubr.f32.mxu0 0.0
    %4083 = vmatmul.mubr.f32.gmra.mrb[0].mxu0 0.0
    %v4084 = vpop.f32.mrb[0].mxu0
    %v4085 = vadd.f32 0.0, %v4084
    %v4086 = vpop.f32.mrb[0].mxu0
    %v4087 = vadd.f32 0.0, %v4086
    %4088 = vdwg.mxu0
    %4089 = vmatprep.subr.mxu0 %v3528
    %4090 = vmatpush1.msra.mxu0 %v3527
    %4091 = vmatprep.subr.mxu0 %v3532
    %4092 = vmatpush1.msra.mxu0 %v3531
    %4093 = vmatprep.subr.mxu0 %v3536
    %4094 = vmatpush1.msra.mxu0 %v3535
    %4095 = vmatprep.subr.mxu0 %v3540
    %4096 = vmatpush1.msra.mxu0 %v3539
    %4097 = vmatprep.subr.mxu0 %v3544
    %4098 = vmatpush1.msra.mxu0 %v3543
    %4099 = vmatprep.subr.mxu0 %v3548
    %4100 = vmatpush1.msra.mxu0 %v3547
    %4101 = vmatprep.subr.mxu0 %v3552
    %4102 = vmatpush1.msra.mxu0 %v3551
    %4103 = vmatprep.subr.mxu0 %v3556
    %4104 = vmatpush1.msra.mxu0 %v3555
    %4105 = vmatprep.subr.mxu0 %v3560
    %4106 = vmatpush1.msra.mxu0 %v3559
    %4107 = vmatprep.subr.mxu0 %v3564
    %4108 = vmatpush1.msra.mxu0 %v3563
    %4109 = vmatprep.subr.mxu0 %v3568
    %4110 = vmatpush1.msra.mxu0 %v3567
    %4111 = vmatprep.subr.mxu0 %v3572
    %4112 = vmatpush1.msra.mxu0 %v3571
    %4113 = vmatprep.subr.mxu0 %v3576
    %4114 = vmatpush1.msra.mxu0 %v3575
    %4115 = vmatprep.subr.mxu0 %v3580
    %4116 = vmatpush1.msra.mxu0 %v3579
    %4117 = vmatprep.subr.mxu0 %v3584
    %4118 = vmatpush1.msra.mxu0 %v3583
    %4119 = vmatprep.subr.mxu0 %v3588
    %4120 = vmatpush1.msra.mxu0 %v3587
    %4121 = vmatprep.subr.mxu0 0.0
    %4122 = vmatpush1.msra.mxu0 0.0
    %4123 = vmatprep.subr.mxu0 0.0
    %4124 = vmatpush1.msra.mxu0 0.0
    %4125 = vmatprep.subr.mxu0 0.0
    %4126 = vmatpush1.msra.mxu0 0.0
    %4127 = vmatprep.subr.mxu0 0.0
    %4128 = vmatpush1.msra.mxu0 0.0
    %4129 = vmatprep.subr.mxu0 0.0
    %4130 = vmatpush1.msra.mxu0 0.0
    %4131 = vmatprep.subr.mxu0 0.0
    %4132 = vmatpush1.msra.mxu0 0.0
    %4133 = vmatprep.subr.mxu0 0.0
    %4134 = vmatpush1.msra.mxu0 0.0
    %4135 = vmatprep.subr.mxu0 0.0
    %4136 = vmatpush1.msra.mxu0 0.0
    %4137 = vmatprep.subr.mxu0 0.0
    %4138 = vmatpush1.msra.mxu0 0.0
    %4139 = vmatprep.subr.mxu0 0.0
    %4140 = vmatpush1.msra.mxu0 0.0
    %4141 = vmatprep.subr.mxu0 0.0
    %4142 = vmatpush1.msra.mxu0 0.0
    %4143 = vmatprep.subr.mxu0 0.0
    %4144 = vmatpush1.msra.mxu0 0.0
    %4145 = vmatprep.subr.mxu0 0.0
    %4146 = vmatpush1.msra.mxu0 0.0
    %4147 = vmatprep.subr.mxu0 0.0
    %4148 = vmatpush1.msra.mxu0 0.0
    %4149 = vmatprep.subr.mxu0 0.0
    %4150 = vmatpush1.msra.mxu0 0.0
    %4151 = vmatprep.subr.mxu0 0.0
    %4152 = vmatpush1.msra.mxu0 0.0
    %4153 = vmatprep.mubr.f32.mxu0 0.0
    %4154 = vmatmul.mubr.f32.gmra.mrb[0].mxu0 0.0
    %v4155 = vpop.f32.mrb[0].mxu0
    %v4156 = vadd.f32 0.0, %v4155
    %v4157 = vpop.f32.mrb[0].mxu0
    %v4158 = vadd.f32 0.0, %v4157
    %4159 = vdwg.mxu0
    %v4160 = vadd.f32 %v4014, %v4085
    %v4161 = vadd.f32 %v4015, %v4087
    %v4162 = vadd.f32 %v4016, %v4156
    %v4163 = vadd.f32 %v4017, %v4158
    %v4164 = vxor.u32 %v4160, 2147483648
    %v4165 = vmul.f32 %v4164, 1.442695
    %v4166 = vpow.pop %v4165
    %v4167 = vadd.f32 %v4166, 1.0
    %v4168 = vrcp.pop %v4167
    %v4169 = vmul.f32 1.0, %v4168
    %v4170 = vxor.u32 %v4161, 2147483648
    %v4171 = vmul.f32 %v4170, 1.442695
    %v4172 = vpow.pop %v4171
    %v4173 = vadd.f32 %v4172, 1.0
    %v4174 = vrcp.pop %v4173
    %v4175 = vmul.f32 1.0, %v4174
    %v4176 = vtanh.pop %v4162
    %v4177 = vxor.u32 %v4163, 2147483648
    %v4178 = vmul.f32 %v4177, 1.442695
    %v4179 = vpow.pop %v4178
    %v4180 = vadd.f32 %v4179, 1.0
    %v4181 = vrcp.pop %v4180
    %v4182 = vmul.f32 1.0, %v4181
    %v4183 = vmul.f32 %v4175, 0.0
    %v4184 = vmul.f32 %v4169, %v4176
    %v4185 = vadd.f32 %v4183, %v4184
    %v4186 = vtanh.pop %v4185
    %v4187 = vmul.f32 %v4182, %v4186
    %4188 = vst [vmem:[#allocation3] sm:$0xff] %v4187
    %v4189 = vld [vmem:[%s804] sm:$0xff]
    %v4190 = vld [vmem:[%s804 + $0x8] sm:$0xff]
    %v4191 = vld [vmem:[%s804 + $0x10] sm:$0xff]
    %v4192 = vld [vmem:[%s804 + $0x18] sm:$0xff]
    %4193 = vmatprep.subr.mxu0 %v3526
    %4194 = vmatpush1.msra.mxu0 %v3525
    %4195 = vmatprep.subr.mxu0 %v3530
    %4196 = vmatpush1.msra.mxu0 %v3529
    %4197 = vmatprep.subr.mxu0 %v3534
    %4198 = vmatpush1.msra.mxu0 %v3533
    %4199 = vmatprep.subr.mxu0 %v3538
    %4200 = vmatpush1.msra.mxu0 %v3537
    %4201 = vmatprep.subr.mxu0 %v3542
    %4202 = vmatpush1.msra.mxu0 %v3541
    %4203 = vmatprep.subr.mxu0 %v3546
    %4204 = vmatpush1.msra.mxu0 %v3545
    %4205 = vmatprep.subr.mxu0 %v3550
    %4206 = vmatpush1.msra.mxu0 %v3549
    %4207 = vmatprep.subr.mxu0 %v3554
    %4208 = vmatpush1.msra.mxu0 %v3553
    %4209 = vmatprep.subr.mxu0 %v3558
    %4210 = vmatpush1.msra.mxu0 %v3557
    %4211 = vmatprep.subr.mxu0 %v3562
    %4212 = vmatpush1.msra.mxu0 %v3561
    %4213 = vmatprep.subr.mxu0 %v3566
    %4214 = vmatpush1.msra.mxu0 %v3565
    %4215 = vmatprep.subr.mxu0 %v3570
    %4216 = vmatpush1.msra.mxu0 %v3569
    %4217 = vmatprep.subr.mxu0 %v3574
    %4218 = vmatpush1.msra.mxu0 %v3573
    %4219 = vmatprep.subr.mxu0 %v3578
    %4220 = vmatpush1.msra.mxu0 %v3577
    %4221 = vmatprep.subr.mxu0 %v3582
    %4222 = vmatpush1.msra.mxu0 %v3581
    %4223 = vmatprep.subr.mxu0 %v3586
    %4224 = vmatpush1.msra.mxu0 %v3585
    %4225 = vmatprep.subr.mxu0 0.0
    %4226 = vmatpush1.msra.mxu0 0.0
    %4227 = vmatprep.subr.mxu0 0.0
    %4228 = vmatpush1.msra.mxu0 0.0
    %4229 = vmatprep.subr.mxu0 0.0
    %4230 = vmatpush1.msra.mxu0 0.0
    %4231 = vmatprep.subr.mxu0 0.0
    %4232 = vmatpush1.msra.mxu0 0.0
    %4233 = vmatprep.subr.mxu0 0.0
    %4234 = vmatpush1.msra.mxu0 0.0
    %4235 = vmatprep.subr.mxu0 0.0
    %4236 = vmatpush1.msra.mxu0 0.0
    %4237 = vmatprep.subr.mxu0 0.0
    %4238 = vmatpush1.msra.mxu0 0.0
    %4239 = vmatprep.subr.mxu0 0.0
    %4240 = vmatpush1.msra.mxu0 0.0
    %4241 = vmatprep.subr.mxu0 0.0
    %4242 = vmatpush1.msra.mxu0 0.0
    %4243 = vmatprep.subr.mxu0 0.0
    %4244 = vmatpush1.msra.mxu0 0.0
    %4245 = vmatprep.subr.mxu0 0.0
    %4246 = vmatpush1.msra.mxu0 0.0
    %4247 = vmatprep.subr.mxu0 0.0
    %4248 = vmatpush1.msra.mxu0 0.0
    %4249 = vmatprep.subr.mxu0 0.0
    %4250 = vmatpush1.msra.mxu0 0.0
    %4251 = vmatprep.subr.mxu0 0.0
    %4252 = vmatpush1.msra.mxu0 0.0
    %4253 = vmatprep.subr.mxu0 0.0
    %4254 = vmatpush1.msra.mxu0 0.0
    %4255 = vmatprep.subr.mxu0 0.0
    %4256 = vmatpush1.msra.mxu0 0.0
    %4257 = vmatprep.mubr.f32.mxu0 0.0
    %4258 = vmatmul.mubr.f32.gmra.mrb[0].mxu0 %v4187
    %v4259 = vpop.f32.mrb[0].mxu0
    %v4260 = vadd.f32 0.0, %v4259
    %v4261 = vpop.f32.mrb[0].mxu0
    %v4262 = vadd.f32 0.0, %v4261
    %4263 = vdwg.mxu0
    %4264 = vmatprep.subr.mxu0 %v3528
    %4265 = vmatpush1.msra.mxu0 %v3527
    %4266 = vmatprep.subr.mxu0 %v3532
    %4267 = vmatpush1.msra.mxu0 %v3531
    %4268 = vmatprep.subr.mxu0 %v3536
    %4269 = vmatpush1.msra.mxu0 %v3535
    %4270 = vmatprep.subr.mxu0 %v3540
    %4271 = vmatpush1.msra.mxu0 %v3539
    %4272 = vmatprep.subr.mxu0 %v3544
    %4273 = vmatpush1.msra.mxu0 %v3543
    %4274 = vmatprep.subr.mxu0 %v3548
    %4275 = vmatpush1.msra.mxu0 %v3547
    %4276 = vmatprep.subr.mxu0 %v3552
    %4277 = vmatpush1.msra.mxu0 %v3551
    %4278 = vmatprep.subr.mxu0 %v3556
    %4279 = vmatpush1.msra.mxu0 %v3555
    %4280 = vmatprep.subr.mxu0 %v3560
    %4281 = vmatpush1.msra.mxu0 %v3559
    %4282 = vmatprep.subr.mxu0 %v3564
    %4283 = vmatpush1.msra.mxu0 %v3563
    %4284 = vmatprep.subr.mxu0 %v3568
    %4285 = vmatpush1.msra.mxu0 %v3567
    %4286 = vmatprep.subr.mxu0 %v3572
    %4287 = vmatpush1.msra.mxu0 %v3571
    %4288 = vmatprep.subr.mxu0 %v3576
    %4289 = vmatpush1.msra.mxu0 %v3575
    %4290 = vmatprep.subr.mxu0 %v3580
    %4291 = vmatpush1.msra.mxu0 %v3579
    %4292 = vmatprep.subr.mxu0 %v3584
    %4293 = vmatpush1.msra.mxu0 %v3583
    %4294 = vmatprep.subr.mxu0 %v3588
    %4295 = vmatpush1.msra.mxu0 %v3587
    %4296 = vmatprep.subr.mxu0 0.0
    %4297 = vmatpush1.msra.mxu0 0.0
    %4298 = vmatprep.subr.mxu0 0.0
    %4299 = vmatpush1.msra.mxu0 0.0
    %4300 = vmatprep.subr.mxu0 0.0
    %4301 = vmatpush1.msra.mxu0 0.0
    %4302 = vmatprep.subr.mxu0 0.0
    %4303 = vmatpush1.msra.mxu0 0.0
    %4304 = vmatprep.subr.mxu0 0.0
    %4305 = vmatpush1.msra.mxu0 0.0
    %4306 = vmatprep.subr.mxu0 0.0
    %4307 = vmatpush1.msra.mxu0 0.0
    %4308 = vmatprep.subr.mxu0 0.0
    %4309 = vmatpush1.msra.mxu0 0.0
    %4310 = vmatprep.subr.mxu0 0.0
    %4311 = vmatpush1.msra.mxu0 0.0
    %4312 = vmatprep.subr.mxu0 0.0
    %4313 = vmatpush1.msra.mxu0 0.0
    %4314 = vmatprep.subr.mxu0 0.0
    %4315 = vmatpush1.msra.mxu0 0.0
    %4316 = vmatprep.subr.mxu0 0.0
    %4317 = vmatpush1.msra.mxu0 0.0
    %4318 = vmatprep.subr.mxu0 0.0
    %4319 = vmatpush1.msra.mxu0 0.0
    %4320 = vmatprep.subr.mxu0 0.0
    %4321 = vmatpush1.msra.mxu0 0.0
    %4322 = vmatprep.subr.mxu0 0.0
    %4323 = vmatpush1.msra.mxu0 0.0
    %4324 = vmatprep.subr.mxu0 0.0
    %4325 = vmatpush1.msra.mxu0 0.0
    %4326 = vmatprep.subr.mxu0 0.0
    %4327 = vmatpush1.msra.mxu0 0.0
    %4328 = vmatprep.mubr.f32.mxu0 0.0
    %4329 = vmatmul.mubr.f32.gmra.mrb[0].mxu0 %v4187
    %v4330 = vpop.f32.mrb[0].mxu0
    %v4331 = vadd.f32 0.0, %v4330
    %v4332 = vpop.f32.mrb[0].mxu0
    %v4333 = vadd.f32 0.0, %v4332
    %4334 = vdwg.mxu0
    %v4335 = vadd.f32 %v4189, %v4260
    %v4336 = vadd.f32 %v4190, %v4262
    %v4337 = vadd.f32 %v4191, %v4331
    %v4338 = vadd.f32 %v4192, %v4333
    %v4339 = vxor.u32 %v4335, 2147483648
    %v4340 = vmul.f32 %v4339, 1.442695
    %v4341 = vpow.pop %v4340
    %v4342 = vadd.f32 %v4341, 1.0
    %v4343 = vrcp.pop %v4342
    %v4344 = vmul.f32 1.0, %v4343
    %v4345 = vxor.u32 %v4336, 2147483648
    %v4346 = vmul.f32 %v4345, 1.442695
    %v4347 = vpow.pop %v4346
    %v4348 = vadd.f32 %v4347, 1.0
    %v4349 = vrcp.pop %v4348
    %v4350 = vmul.f32 1.0, %v4349
    %v4351 = vtanh.pop %v4337
    %v4352 = vxor.u32 %v4338, 2147483648
    %v4353 = vmul.f32 %v4352, 1.442695
    %v4354 = vpow.pop %v4353
    %v4355 = vadd.f32 %v4354, 1.0
    %v4356 = vrcp.pop %v4355
    %v4357 = vmul.f32 1.0, %v4356
    %v4358 = vmul.f32 %v4350, %v4185
    %v4359 = vmul.f32 %v4344, %v4351
    %v4360 = vadd.f32 %v4358, %v4359
    %v4361 = vtanh.pop %v4360
    %v4362 = vmul.f32 %v4357, %v4361
    %4363 = vst [vmem:[%s979] sm:$0xff] %v4362
    %v4364 = vld [vmem:[%s981] sm:$0xff]
    %v4365 = vld [vmem:[%s981 + $0x8] sm:$0xff]
    %v4366 = vld [vmem:[%s981 + $0x10] sm:$0xff]
    %v4367 = vld [vmem:[%s981 + $0x18] sm:$0xff]
    %4368 = vmatprep.subr.mxu0 %v3526
    %4369 = vmatpush1.msra.mxu0 %v3525
    %4370 = vmatprep.subr.mxu0 %v3530
    %4371 = vmatpush1.msra.mxu0 %v3529
    %4372 = vmatprep.subr.mxu0 %v3534
    %4373 = vmatpush1.msra.mxu0 %v3533
    %4374 = vmatprep.subr.mxu0 %v3538
    %4375 = vmatpush1.msra.mxu0 %v3537
    %4376 = vmatprep.subr.mxu0 %v3542
    %4377 = vmatpush1.msra.mxu0 %v3541
    %4378 = vmatprep.subr.mxu0 %v3546
    %4379 = vmatpush1.msra.mxu0 %v3545
    %4380 = vmatprep.subr.mxu0 %v3550
    %4381 = vmatpush1.msra.mxu0 %v3549
    %4382 = vmatprep.subr.mxu0 %v3554
    %4383 = vmatpush1.msra.mxu0 %v3553
    %4384 = vmatprep.subr.mxu0 %v3558
    %4385 = vmatpush1.msra.mxu0 %v3557
    %4386 = vmatprep.subr.mxu0 %v3562
    %4387 = vmatpush1.msra.mxu0 %v3561
    %4388 = vmatprep.subr.mxu0 %v3566
    %4389 = vmatpush1.msra.mxu0 %v3565
    %4390 = vmatprep.subr.mxu0 %v3570
    %4391 = vmatpush1.msra.mxu0 %v3569
    %4392 = vmatprep.subr.mxu0 %v3574
    %4393 = vmatpush1.msra.mxu0 %v3573
    %4394 = vmatprep.subr.mxu0 %v3578
    %4395 = vmatpush1.msra.mxu0 %v3577
    %4396 = vmatprep.subr.mxu0 %v3582
    %4397 = vmatpush1.msra.mxu0 %v3581
    %4398 = vmatprep.subr.mxu0 %v3586
    %4399 = vmatpush1.msra.mxu0 %v3585
    %4400 = vmatprep.subr.mxu0 0.0
    %4401 = vmatpush1.msra.mxu0 0.0
    %4402 = vmatprep.subr.mxu0 0.0
    %4403 = vmatpush1.msra.mxu0 0.0
    %4404 = vmatprep.subr.mxu0 0.0
    %4405 = vmatpush1.msra.mxu0 0.0
    %4406 = vmatprep.subr.mxu0 0.0
    %4407 = vmatpush1.msra.mxu0 0.0
    %4408 = vmatprep.subr.mxu0 0.0
    %4409 = vmatpush1.msra.mxu0 0.0
    %4410 = vmatprep.subr.mxu0 0.0
    %4411 = vmatpush1.msra.mxu0 0.0
    %4412 = vmatprep.subr.mxu0 0.0
    %4413 = vmatpush1.msra.mxu0 0.0
    %4414 = vmatprep.subr.mxu0 0.0
    %4415 = vmatpush1.msra.mxu0 0.0
    %4416 = vmatprep.subr.mxu0 0.0
    %4417 = vmatpush1.msra.mxu0 0.0
    %4418 = vmatprep.subr.mxu0 0.0
    %4419 = vmatpush1.msra.mxu0 0.0
    %4420 = vmatprep.subr.mxu0 0.0
    %4421 = vmatpush1.msra.mxu0 0.0
    %4422 = vmatprep.subr.mxu0 0.0
    %4423 = vmatpush1.msra.mxu0 0.0
    %4424 = vmatprep.subr.mxu0 0.0
    %4425 = vmatpush1.msra.mxu0 0.0
    %4426 = vmatprep.subr.mxu0 0.0
    %4427 = vmatpush1.msra.mxu0 0.0
    %4428 = vmatprep.subr.mxu0 0.0
    %4429 = vmatpush1.msra.mxu0 0.0
    %4430 = vmatprep.subr.mxu0 0.0
    %4431 = vmatpush1.msra.mxu0 0.0
    %4432 = vmatprep.mubr.f32.mxu0 0.0
    %4433 = vmatmul.mubr.f32.gmra.mrb[0].mxu0 %v4362
    %v4434 = vpop.f32.mrb[0].mxu0
    %v4435 = vadd.f32 0.0, %v4434
    %v4436 = vpop.f32.mrb[0].mxu0
    %v4437 = vadd.f32 0.0, %v4436
    %4438 = vdwg.mxu0
    %4439 = vmatprep.subr.mxu0 %v3528
    %4440 = vmatpush1.msra.mxu0 %v3527
    %4441 = vmatprep.subr.mxu0 %v3532
    %4442 = vmatpush1.msra.mxu0 %v3531
    %4443 = vmatprep.subr.mxu0 %v3536
    %4444 = vmatpush1.msra.mxu0 %v3535
    %4445 = vmatprep.subr.mxu0 %v3540
    %4446 = vmatpush1.msra.mxu0 %v3539
    %4447 = vmatprep.subr.mxu0 %v3544
    %4448 = vmatpush1.msra.mxu0 %v3543
    %4449 = vmatprep.subr.mxu0 %v3548
    %4450 = vmatpush1.msra.mxu0 %v3547
    %4451 = vmatprep.subr.mxu0 %v3552
    %4452 = vmatpush1.msra.mxu0 %v3551
    %4453 = vmatprep.subr.mxu0 %v3556
    %4454 = vmatpush1.msra.mxu0 %v3555
    %4455 = vmatprep.subr.mxu0 %v3560
    %4456 = vmatpush1.msra.mxu0 %v3559
    %4457 = vmatprep.subr.mxu0 %v3564
    %4458 = vmatpush1.msra.mxu0 %v3563
    %4459 = vmatprep.subr.mxu0 %v3568
    %4460 = vmatpush1.msra.mxu0 %v3567
    %4461 = vmatprep.subr.mxu0 %v3572
    %4462 = vmatpush1.msra.mxu0 %v3571
    %4463 = vmatprep.subr.mxu0 %v3576
    %4464 = vmatpush1.msra.mxu0 %v3575
    %4465 = vmatprep.subr.mxu0 %v3580
    %4466 = vmatpush1.msra.mxu0 %v3579
    %4467 = vmatprep.subr.mxu0 %v3584
    %4468 = vmatpush1.msra.mxu0 %v3583
    %4469 = vmatprep.subr.mxu0 %v3588
    %4470 = vmatpush1.msra.mxu0 %v3587
    %4471 = vmatprep.subr.mxu0 0.0
    %4472 = vmatpush1.msra.mxu0 0.0
    %4473 = vmatprep.subr.mxu0 0.0
    %4474 = vmatpush1.msra.mxu0 0.0
    %4475 = vmatprep.subr.mxu0 0.0
    %4476 = vmatpush1.msra.mxu0 0.0
    %4477 = vmatprep.subr.mxu0 0.0
    %4478 = vmatpush1.msra.mxu0 0.0
    %4479 = vmatprep.subr.mxu0 0.0
    %4480 = vmatpush1.msra.mxu0 0.0
    %4481 = vmatprep.subr.mxu0 0.0
    %4482 = vmatpush1.msra.mxu0 0.0
    %4483 = vmatprep.subr.mxu0 0.0
    %4484 = vmatpush1.msra.mxu0 0.0
    %4485 = vmatprep.subr.mxu0 0.0
    %4486 = vmatpush1.msra.mxu0 0.0
    %4487 = vmatprep.subr.mxu0 0.0
    %4488 = vmatpush1.msra.mxu0 0.0
    %4489 = vmatprep.subr.mxu0 0.0
    %4490 = vmatpush1.msra.mxu0 0.0
    %4491 = vmatprep.subr.mxu0 0.0
    %4492 = vmatpush1.msra.mxu0 0.0
    %4493 = vmatprep.subr.mxu0 0.0
    %4494 = vmatpush1.msra.mxu0 0.0
    %4495 = vmatprep.subr.mxu0 0.0
    %4496 = vmatpush1.msra.mxu0 0.0
    %4497 = vmatprep.subr.mxu0 0.0
    %4498 = vmatpush1.msra.mxu0 0.0
    %4499 = vmatprep.subr.mxu0 0.0
    %4500 = vmatpush1.msra.mxu0 0.0
    %4501 = vmatprep.subr.mxu0 0.0
    %4502 = vmatpush1.msra.mxu0 0.0
    %4503 = vmatprep.mubr.f32.mxu0 0.0
    %4504 = vmatmul.mubr.f32.gmra.mrb[0].mxu0 %v4362
    %v4505 = vpop.f32.mrb[0].mxu0
    %v4506 = vadd.f32 0.0, %v4505
    %v4507 = vpop.f32.mrb[0].mxu0
    %v4508 = vadd.f32 0.0, %v4507
    %4509 = vdwg.mxu0
    %v4510 = vadd.f32 %v4364, %v4435
    %v4511 = vadd.f32 %v4365, %v4437
    %v4512 = vadd.f32 %v4366, %v4506
    %v4513 = vadd.f32 %v4367, %v4508
    %v4514 = vxor.u32 %v4510, 2147483648
    %v4515 = vmul.f32 %v4514, 1.442695
    %v4516 = vpow.pop %v4515
    %v4517 = vadd.f32 %v4516, 1.0
    %v4518 = vrcp.pop %v4517
    %v4519 = vmul.f32 1.0, %v4518
    %v4520 = vxor.u32 %v4511, 2147483648
    %v4521 = vmul.f32 %v4520, 1.442695
    %v4522 = vpow.pop %v4521
    %v4523 = vadd.f32 %v4522, 1.0
    %v4524 = vrcp.pop %v4523
    %v4525 = vmul.f32 1.0, %v4524
    %v4526 = vtanh.pop %v4512
    %v4527 = vxor.u32 %v4513, 2147483648
    %v4528 = vmul.f32 %v4527, 1.442695
    %v4529 = vpow.pop %v4528
    %v4530 = vadd.f32 %v4529, 1.0
    %v4531 = vrcp.pop %v4530
    %v4532 = vmul.f32 1.0, %v4531
    %v4533 = vmul.f32 %v4525, %v4360
    %v4534 = vmul.f32 %v4519, %v4526
    %v4535 = vadd.f32 %v4533, %v4534
    %v4536 = vtanh.pop %v4535
    %v4537 = vmul.f32 %v4532, %v4536
    %4538 = vst [vmem:[%s1156] sm:$0xff] %v4537
    %v4539 = vld [vmem:[%s1158] sm:$0xff]
    %v4540 = vld [vmem:[%s1158 + $0x8] sm:$0xff]
    %v4541 = vld [vmem:[%s1158 + $0x10] sm:$0xff]
    %v4542 = vld [vmem:[%s1158 + $0x18] sm:$0xff]
    %4543 = vmatprep.subr.mxu0 %v3526
    %4544 = vmatpush1.msra.mxu0 %v3525
    %4545 = vmatprep.subr.mxu0 %v3530
    %4546 = vmatpush1.msra.mxu0 %v3529
    %4547 = vmatprep.subr.mxu0 %v3534
    %4548 = vmatpush1.msra.mxu0 %v3533
    %4549 = vmatprep.subr.mxu0 %v3538
    %4550 = vmatpush1.msra.mxu0 %v3537
    %4551 = vmatprep.subr.mxu0 %v3542
    %4552 = vmatpush1.msra.mxu0 %v3541
    %4553 = vmatprep.subr.mxu0 %v3546
    %4554 = vmatpush1.msra.mxu0 %v3545
    %4555 = vmatprep.subr.mxu0 %v3550
    %4556 = vmatpush1.msra.mxu0 %v3549
    %4557 = vmatprep.subr.mxu0 %v3554
    %4558 = vmatpush1.msra.mxu0 %v3553
    %4559 = vmatprep.subr.mxu0 %v3558
    %4560 = vmatpush1.msra.mxu0 %v3557
    %4561 = vmatprep.subr.mxu0 %v3562
    %4562 = vmatpush1.msra.mxu0 %v3561
    %4563 = vmatprep.subr.mxu0 %v3566
    %4564 = vmatpush1.msra.mxu0 %v3565
    %4565 = vmatprep.subr.mxu0 %v3570
    %4566 = vmatpush1.msra.mxu0 %v3569
    %4567 = vmatprep.subr.mxu0 %v3574
    %4568 = vmatpush1.msra.mxu0 %v3573
    %4569 = vmatprep.subr.mxu0 %v3578
    %4570 = vmatpush1.msra.mxu0 %v3577
    %4571 = vmatprep.subr.mxu0 %v3582
    %4572 = vmatpush1.msra.mxu0 %v3581
    %4573 = vmatprep.subr.mxu0 %v3586
    %4574 = vmatpush1.msra.mxu0 %v3585
    %4575 = vmatprep.subr.mxu0 0.0
    %4576 = vmatpush1.msra.mxu0 0.0
    %4577 = vmatprep.subr.mxu0 0.0
    %4578 = vmatpush1.msra.mxu0 0.0
    %4579 = vmatprep.subr.mxu0 0.0
    %4580 = vmatpush1.msra.mxu0 0.0
    %4581 = vmatprep.subr.mxu0 0.0
    %4582 = vmatpush1.msra.mxu0 0.0
    %4583 = vmatprep.subr.mxu0 0.0
    %4584 = vmatpush1.msra.mxu0 0.0
    %4585 = vmatprep.subr.mxu0 0.0
    %4586 = vmatpush1.msra.mxu0 0.0
    %4587 = vmatprep.subr.mxu0 0.0
    %4588 = vmatpush1.msra.mxu0 0.0
    %4589 = vmatprep.subr.mxu0 0.0
    %4590 = vmatpush1.msra.mxu0 0.0
    %4591 = vmatprep.subr.mxu0 0.0
    %4592 = vmatpush1.msra.mxu0 0.0
    %4593 = vmatprep.subr.mxu0 0.0
    %4594 = vmatpush1.msra.mxu0 0.0
    %4595 = vmatprep.subr.mxu0 0.0
    %4596 = vmatpush1.msra.mxu0 0.0
    %4597 = vmatprep.subr.mxu0 0.0
    %4598 = vmatpush1.msra.mxu0 0.0
    %4599 = vmatprep.subr.mxu0 0.0
    %4600 = vmatpush1.msra.mxu0 0.0
    %4601 = vmatprep.subr.mxu0 0.0
    %4602 = vmatpush1.msra.mxu0 0.0
    %4603 = vmatprep.subr.mxu0 0.0
    %4604 = vmatpush1.msra.mxu0 0.0
    %4605 = vmatprep.subr.mxu0 0.0
    %4606 = vmatpush1.msra.mxu0 0.0
    %4607 = vmatprep.mubr.f32.mxu0 0.0
    %4608 = vmatmul.mubr.f32.gmra.mrb[0].mxu0 %v4537
    %v4609 = vpop.f32.mrb[0].mxu0
    %v4610 = vadd.f32 0.0, %v4609
    %v4611 = vpop.f32.mrb[0].mxu0
    %v4612 = vadd.f32 0.0, %v4611
    %4613 = vdwg.mxu0
    %4614 = vmatprep.subr.mxu0 %v3528
    %4615 = vmatpush1.msra.mxu0 %v3527
    %4616 = vmatprep.subr.mxu0 %v3532
    %4617 = vmatpush1.msra.mxu0 %v3531
    %4618 = vmatprep.subr.mxu0 %v3536
    %4619 = vmatpush1.msra.mxu0 %v3535
    %4620 = vmatprep.subr.mxu0 %v3540
    %4621 = vmatpush1.msra.mxu0 %v3539
    %4622 = vmatprep.subr.mxu0 %v3544
    %4623 = vmatpush1.msra.mxu0 %v3543
    %4624 = vmatprep.subr.mxu0 %v3548
    %4625 = vmatpush1.msra.mxu0 %v3547
    %4626 = vmatprep.subr.mxu0 %v3552
    %4627 = vmatpush1.msra.mxu0 %v3551
    %4628 = vmatprep.subr.mxu0 %v3556
    %4629 = vmatpush1.msra.mxu0 %v3555
    %4630 = vmatprep.subr.mxu0 %v3560
    %4631 = vmatpush1.msra.mxu0 %v3559
    %4632 = vmatprep.subr.mxu0 %v3564
    %4633 = vmatpush1.msra.mxu0 %v3563
    %4634 = vmatprep.subr.mxu0 %v3568
    %4635 = vmatpush1.msra.mxu0 %v3567
    %4636 = vmatprep.subr.mxu0 %v3572
    %4637 = vmatpush1.msra.mxu0 %v3571
    %4638 = vmatprep.subr.mxu0 %v3576
    %4639 = vmatpush1.msra.mxu0 %v3575
    %4640 = vmatprep.subr.mxu0 %v3580
    %4641 = vmatpush1.msra.mxu0 %v3579
    %4642 = vmatprep.subr.mxu0 %v3584
    %4643 = vmatpush1.msra.mxu0 %v3583
    %4644 = vmatprep.subr.mxu0 %v3588
    %4645 = vmatpush1.msra.mxu0 %v3587
    %4646 = vmatprep.subr.mxu0 0.0
    %4647 = vmatpush1.msra.mxu0 0.0
    %4648 = vmatprep.subr.mxu0 0.0
    %4649 = vmatpush1.msra.mxu0 0.0
    %4650 = vmatprep.subr.mxu0 0.0
    %4651 = vmatpush1.msra.mxu0 0.0
    %4652 = vmatprep.subr.mxu0 0.0
    %4653 = vmatpush1.msra.mxu0 0.0
    %4654 = vmatprep.subr.mxu0 0.0
    %4655 = vmatpush1.msra.mxu0 0.0
    %4656 = vmatprep.subr.mxu0 0.0
    %4657 = vmatpush1.msra.mxu0 0.0
    %4658 = vmatprep.subr.mxu0 0.0
    %4659 = vmatpush1.msra.mxu0 0.0
    %4660 = vmatprep.subr.mxu0 0.0
    %4661 = vmatpush1.msra.mxu0 0.0
    %4662 = vmatprep.subr.mxu0 0.0
    %4663 = vmatpush1.msra.mxu0 0.0
    %4664 = vmatprep.subr.mxu0 0.0
    %4665 = vmatpush1.msra.mxu0 0.0
    %4666 = vmatprep.subr.mxu0 0.0
    %4667 = vmatpush1.msra.mxu0 0.0
    %4668 = vmatprep.subr.mxu0 0.0
    %4669 = vmatpush1.msra.mxu0 0.0
    %4670 = vmatprep.subr.mxu0 0.0
    %4671 = vmatpush1.msra.mxu0 0.0
    %4672 = vmatprep.subr.mxu0 0.0
    %4673 = vmatpush1.msra.mxu0 0.0
    %4674 = vmatprep.subr.mxu0 0.0
    %4675 = vmatpush1.msra.mxu0 0.0
    %4676 = vmatprep.subr.mxu0 0.0
    %4677 = vmatpush1.msra.mxu0 0.0
    %4678 = vmatprep.mubr.f32.mxu0 0.0
    %4679 = vmatmul.mubr.f32.gmra.mrb[0].mxu0 %v4537
    %v4680 = vpop.f32.mrb[0].mxu0
    %v4681 = vadd.f32 0.0, %v4680
    %v4682 = vpop.f32.mrb[0].mxu0
    %v4683 = vadd.f32 0.0, %v4682
    %4684 = vdwg.mxu0
    %v4685 = vadd.f32 %v4539, %v4610
    %v4686 = vadd.f32 %v4540, %v4612
    %v4687 = vadd.f32 %v4541, %v4681
    %v4688 = vadd.f32 %v4542, %v4683
    %v4689 = vxor.u32 %v4685, 2147483648
    %v4690 = vmul.f32 %v4689, 1.442695
    %v4691 = vpow.pop %v4690
    %v4692 = vadd.f32 %v4691, 1.0
    %v4693 = vrcp.pop %v4692
    %v4694 = vmul.f32 1.0, %v4693
    %v4695 = vxor.u32 %v4686, 2147483648
    %v4696 = vmul.f32 %v4695, 1.442695
    %v4697 = vpow.pop %v4696
    %v4698 = vadd.f32 %v4697, 1.0
    %v4699 = vrcp.pop %v4698
    %v4700 = vmul.f32 1.0, %v4699
    %v4701 = vtanh.pop %v4687
    %v4702 = vxor.u32 %v4688, 2147483648
    %v4703 = vmul.f32 %v4702, 1.442695
    %v4704 = vpow.pop %v4703
    %v4705 = vadd.f32 %v4704, 1.0
    %v4706 = vrcp.pop %v4705
    %v4707 = vmul.f32 1.0, %v4706
    %v4708 = vmul.f32 %v4700, %v4535
    %v4709 = vmul.f32 %v4694, %v4701
    %v4710 = vadd.f32 %v4708, %v4709
    %v4711 = vtanh.pop %v4710
    %v4712 = vmul.f32 %v4707, %v4711
    %4713 = vst [vmem:[%s1333] sm:$0xff] %v4712
    %v4714 = vld [vmem:[%s1335] sm:$0xff]
    %v4715 = vld [vmem:[%s1335 + $0x8] sm:$0xff]
    %v4716 = vld [vmem:[%s1335 + $0x10] sm:$0xff]
    %v4717 = vld [vmem:[%s1335 + $0x18] sm:$0xff]
    %4718 = vmatprep.subr.mxu0 %v3526
    %4719 = vmatpush1.msra.mxu0 %v3525
    %4720 = vmatprep.subr.mxu0 %v3530
    %4721 = vmatpush1.msra.mxu0 %v3529
    %4722 = vmatprep.subr.mxu0 %v3534
    %4723 = vmatpush1.msra.mxu0 %v3533
    %4724 = vmatprep.subr.mxu0 %v3538
    %4725 = vmatpush1.msra.mxu0 %v3537
    %4726 = vmatprep.subr.mxu0 %v3542
    %4727 = vmatpush1.msra.mxu0 %v3541
    %4728 = vmatprep.subr.mxu0 %v3546
    %4729 = vmatpush1.msra.mxu0 %v3545
    %4730 = vmatprep.subr.mxu0 %v3550
    %4731 = vmatpush1.msra.mxu0 %v3549
    %4732 = vmatprep.subr.mxu0 %v3554
    %4733 = vmatpush1.msra.mxu0 %v3553
    %4734 = vmatprep.subr.mxu0 %v3558
    %4735 = vmatpush1.msra.mxu0 %v3557
    %4736 = vmatprep.subr.mxu0 %v3562
    %4737 = vmatpush1.msra.mxu0 %v3561
    %4738 = vmatprep.subr.mxu0 %v3566
    %4739 = vmatpush1.msra.mxu0 %v3565
    %4740 = vmatprep.subr.mxu0 %v3570
    %4741 = vmatpush1.msra.mxu0 %v3569
    %4742 = vmatprep.subr.mxu0 %v3574
    %4743 = vmatpush1.msra.mxu0 %v3573
    %4744 = vmatprep.subr.mxu0 %v3578
    %4745 = vmatpush1.msra.mxu0 %v3577
    %4746 = vmatprep.subr.mxu0 %v3582
    %4747 = vmatpush1.msra.mxu0 %v3581
    %4748 = vmatprep.subr.mxu0 %v3586
    %4749 = vmatpush1.msra.mxu0 %v3585
    %4750 = vmatprep.subr.mxu0 0.0
    %4751 = vmatpush1.msra.mxu0 0.0
    %4752 = vmatprep.subr.mxu0 0.0
    %4753 = vmatpush1.msra.mxu0 0.0
    %4754 = vmatprep.subr.mxu0 0.0
    %4755 = vmatpush1.msra.mxu0 0.0
    %4756 = vmatprep.subr.mxu0 0.0
    %4757 = vmatpush1.msra.mxu0 0.0
    %4758 = vmatprep.subr.mxu0 0.0
    %4759 = vmatpush1.msra.mxu0 0.0
    %4760 = vmatprep.subr.mxu0 0.0
    %4761 = vmatpush1.msra.mxu0 0.0
    %4762 = vmatprep.subr.mxu0 0.0
    %4763 = vmatpush1.msra.mxu0 0.0
    %4764 = vmatprep.subr.mxu0 0.0
    %4765 = vmatpush1.msra.mxu0 0.0
    %4766 = vmatprep.subr.mxu0 0.0
    %4767 = vmatpush1.msra.mxu0 0.0
    %4768 = vmatprep.subr.mxu0 0.0
    %4769 = vmatpush1.msra.mxu0 0.0
    %4770 = vmatprep.subr.mxu0 0.0
    %4771 = vmatpush1.msra.mxu0 0.0
    %4772 = vmatprep.subr.mxu0 0.0
    %4773 = vmatpush1.msra.mxu0 0.0
    %4774 = vmatprep.subr.mxu0 0.0
    %4775 = vmatpush1.msra.mxu0 0.0
    %4776 = vmatprep.subr.mxu0 0.0
    %4777 = vmatpush1.msra.mxu0 0.0
    %4778 = vmatprep.subr.mxu0 0.0
    %4779 = vmatpush1.msra.mxu0 0.0
    %4780 = vmatprep.subr.mxu0 0.0
    %4781 = vmatpush1.msra.mxu0 0.0
    %4782 = vmatprep.mubr.f32.mxu0 0.0
    %4783 = vmatmul.mubr.f32.gmra.mrb[0].mxu0 %v4712
    %v4784 = vpop.f32.mrb[0].mxu0
    %v4785 = vadd.f32 0.0, %v4784
    %v4786 = vpop.f32.mrb[0].mxu0
    %v4787 = vadd.f32 0.0, %v4786
    %4788 = vdwg.mxu0
    %4789 = vmatprep.subr.mxu0 %v3528
    %4790 = vmatpush1.msra.mxu0 %v3527
    %4791 = vmatprep.subr.mxu0 %v3532
    %4792 = vmatpush1.msra.mxu0 %v3531
    %4793 = vmatprep.subr.mxu0 %v3536
    %4794 = vmatpush1.msra.mxu0 %v3535
    %4795 = vmatprep.subr.mxu0 %v3540
    %4796 = vmatpush1.msra.mxu0 %v3539
    %4797 = vmatprep.subr.mxu0 %v3544
    %4798 = vmatpush1.msra.mxu0 %v3543
    %4799 = vmatprep.subr.mxu0 %v3548
    %4800 = vmatpush1.msra.mxu0 %v3547
    %4801 = vmatprep.subr.mxu0 %v3552
    %4802 = vmatpush1.msra.mxu0 %v3551
    %4803 = vmatprep.subr.mxu0 %v3556
    %4804 = vmatpush1.msra.mxu0 %v3555
    %4805 = vmatprep.subr.mxu0 %v3560
    %4806 = vmatpush1.msra.mxu0 %v3559
    %4807 = vmatprep.subr.mxu0 %v3564
    %4808 = vmatpush1.msra.mxu0 %v3563
    %4809 = vmatprep.subr.mxu0 %v3568
    %4810 = vmatpush1.msra.mxu0 %v3567
    %4811 = vmatprep.subr.mxu0 %v3572
    %4812 = vmatpush1.msra.mxu0 %v3571
    %4813 = vmatprep.subr.mxu0 %v3576
    %4814 = vmatpush1.msra.mxu0 %v3575
    %4815 = vmatprep.subr.mxu0 %v3580
    %4816 = vmatpush1.msra.mxu0 %v3579
    %4817 = vmatprep.subr.mxu0 %v3584
    %4818 = vmatpush1.msra.mxu0 %v3583
    %4819 = vmatprep.subr.mxu0 %v3588
    %4820 = vmatpush1.msra.mxu0 %v3587
    %4821 = vmatprep.subr.mxu0 0.0
    %4822 = vmatpush1.msra.mxu0 0.0
    %4823 = vmatprep.subr.mxu0 0.0
    %4824 = vmatpush1.msra.mxu0 0.0
    %4825 = vmatprep.subr.mxu0 0.0
    %4826 = vmatpush1.msra.mxu0 0.0
    %4827 = vmatprep.subr.mxu0 0.0
    %4828 = vmatpush1.msra.mxu0 0.0
    %4829 = vmatprep.subr.mxu0 0.0
    %4830 = vmatpush1.msra.mxu0 0.0
    %4831 = vmatprep.subr.mxu0 0.0
    %4832 = vmatpush1.msra.mxu0 0.0
    %4833 = vmatprep.subr.mxu0 0.0
    %4834 = vmatpush1.msra.mxu0 0.0
    %4835 = vmatprep.subr.mxu0 0.0
    %4836 = vmatpush1.msra.mxu0 0.0
    %4837 = vmatprep.subr.mxu0 0.0
    %4838 = vmatpush1.msra.mxu0 0.0
    %4839 = vmatprep.subr.mxu0 0.0
    %4840 = vmatpush1.msra.mxu0 0.0
    %4841 = vmatprep.subr.mxu0 0.0
    %4842 = vmatpush1.msra.mxu0 0.0
    %4843 = vmatprep.subr.mxu0 0.0
    %4844 = vmatpush1.msra.mxu0 0.0
    %4845 = vmatprep.subr.mxu0 0.0
    %4846 = vmatpush1.msra.mxu0 0.0
    %4847 = vmatprep.subr.mxu0 0.0
    %4848 = vmatpush1.msra.mxu0 0.0
    %4849 = vmatprep.subr.mxu0 0.0
    %4850 = vmatpush1.msra.mxu0 0.0
    %4851 = vmatprep.subr.mxu0 0.0
    %4852 = vmatpush1.msra.mxu0 0.0
    %4853 = vmatprep.mubr.f32.mxu0 0.0
    %4854 = vmatmul.mubr.f32.gmra.mrb[0].mxu0 %v4712
    %v4855 = vpop.f32.mrb[0].mxu0
    %v4856 = vadd.f32 0.0, %v4855
    %v4857 = vpop.f32.mrb[0].mxu0
    %v4858 = vadd.f32 0.0, %v4857
    %4859 = vdwg.mxu0
    %v4860 = vadd.f32 %v4714, %v4785
    %v4861 = vadd.f32 %v4715, %v4787
    %v4862 = vadd.f32 %v4716, %v4856
    %v4863 = vadd.f32 %v4717, %v4858
    %v4864 = vxor.u32 %v4860, 2147483648
    %v4865 = vmul.f32 %v4864, 1.442695
    %v4866 = vpow.pop %v4865
    %v4867 = vadd.f32 %v4866, 1.0
    %v4868 = vrcp.pop %v4867
    %v4869 = vmul.f32 1.0, %v4868
    %v4870 = vxor.u32 %v4861, 2147483648
    %v4871 = vmul.f32 %v4870, 1.442695
    %v4872 = vpow.pop %v4871
    %v4873 = vadd.f32 %v4872, 1.0
    %v4874 = vrcp.pop %v4873
    %v4875 = vmul.f32 1.0, %v4874
    %v4876 = vtanh.pop %v4862
    %v4877 = vxor.u32 %v4863, 2147483648
    %v4878 = vmul.f32 %v4877, 1.442695
    %v4879 = vpow.pop %v4878
    %v4880 = vadd.f32 %v4879, 1.0
    %v4881 = vrcp.pop %v4880
    %v4882 = vmul.f32 1.0, %v4881
    %v4883 = vmul.f32 %v4875, %v4710
    %v4884 = vmul.f32 %v4869, %v4876
    %v4885 = vadd.f32 %v4883, %v4884
    %v4886 = vtanh.pop %v4885
    %v4887 = vmul.f32 %v4882, %v4886
    %4888 = vst [vmem:[%s1510] sm:$0xff] %v4887
    %v4889 = vld [vmem:[%s1512] sm:$0xff]
    %v4890 = vld [vmem:[%s1512 + $0x8] sm:$0xff]
    %v4891 = vld [vmem:[%s1512 + $0x10] sm:$0xff]
    %v4892 = vld [vmem:[%s1512 + $0x18] sm:$0xff]
    %4893 = vmatprep.subr.mxu0 %v3526
    %4894 = vmatpush1.msra.mxu0 %v3525
    %4895 = vmatprep.subr.mxu0 %v3530
    %4896 = vmatpush1.msra.mxu0 %v3529
    %4897 = vmatprep.subr.mxu0 %v3534
    %4898 = vmatpush1.msra.mxu0 %v3533
    %4899 = vmatprep.subr.mxu0 %v3538
    %4900 = vmatpush1.msra.mxu0 %v3537
    %4901 = vmatprep.subr.mxu0 %v3542
    %4902 = vmatpush1.msra.mxu0 %v3541
    %4903 = vmatprep.subr.mxu0 %v3546
    %4904 = vmatpush1.msra.mxu0 %v3545
    %4905 = vmatprep.subr.mxu0 %v3550
    %4906 = vmatpush1.msra.mxu0 %v3549
    %4907 = vmatprep.subr.mxu0 %v3554
    %4908 = vmatpush1.msra.mxu0 %v3553
    %4909 = vmatprep.subr.mxu0 %v3558
    %4910 = vmatpush1.msra.mxu0 %v3557
    %4911 = vmatprep.subr.mxu0 %v3562
    %4912 = vmatpush1.msra.mxu0 %v3561
    %4913 = vmatprep.subr.mxu0 %v3566
    %4914 = vmatpush1.msra.mxu0 %v3565
    %4915 = vmatprep.subr.mxu0 %v3570
    %4916 = vmatpush1.msra.mxu0 %v3569
    %4917 = vmatprep.subr.mxu0 %v3574
    %4918 = vmatpush1.msra.mxu0 %v3573
    %4919 = vmatprep.subr.mxu0 %v3578
    %4920 = vmatpush1.msra.mxu0 %v3577
    %4921 = vmatprep.subr.mxu0 %v3582
    %4922 = vmatpush1.msra.mxu0 %v3581
    %4923 = vmatprep.subr.mxu0 %v3586
    %4924 = vmatpush1.msra.mxu0 %v3585
    %4925 = vmatprep.subr.mxu0 0.0
    %4926 = vmatpush1.msra.mxu0 0.0
    %4927 = vmatprep.subr.mxu0 0.0
    %4928 = vmatpush1.msra.mxu0 0.0
    %4929 = vmatprep.subr.mxu0 0.0
    %4930 = vmatpush1.msra.mxu0 0.0
    %4931 = vmatprep.subr.mxu0 0.0
    %4932 = vmatpush1.msra.mxu0 0.0
    %4933 = vmatprep.subr.mxu0 0.0
    %4934 = vmatpush1.msra.mxu0 0.0
    %4935 = vmatprep.subr.mxu0 0.0
    %4936 = vmatpush1.msra.mxu0 0.0
    %4937 = vmatprep.subr.mxu0 0.0
    %4938 = vmatpush1.msra.mxu0 0.0
    %4939 = vmatprep.subr.mxu0 0.0
    %4940 = vmatpush1.msra.mxu0 0.0
    %4941 = vmatprep.subr.mxu0 0.0
    %4942 = vmatpush1.msra.mxu0 0.0
    %4943 = vmatprep.subr.mxu0 0.0
    %4944 = vmatpush1.msra.mxu0 0.0
    %4945 = vmatprep.subr.mxu0 0.0
    %4946 = vmatpush1.msra.mxu0 0.0
    %4947 = vmatprep.subr.mxu0 0.0
    %4948 = vmatpush1.msra.mxu0 0.0
    %4949 = vmatprep.subr.mxu0 0.0
    %4950 = vmatpush1.msra.mxu0 0.0
    %4951 = vmatprep.subr.mxu0 0.0
    %4952 = vmatpush1.msra.mxu0 0.0
    %4953 = vmatprep.subr.mxu0 0.0
    %4954 = vmatpush1.msra.mxu0 0.0
    %4955 = vmatprep.subr.mxu0 0.0
    %4956 = vmatpush1.msra.mxu0 0.0
    %4957 = vmatprep.mubr.f32.mxu0 0.0
    %4958 = vmatmul.mubr.f32.gmra.mrb[0].mxu0 %v4887
    %v4959 = vpop.f32.mrb[0].mxu0
    %v4960 = vadd.f32 0.0, %v4959
    %v4961 = vpop.f32.mrb[0].mxu0
    %v4962 = vadd.f32 0.0, %v4961
    %4963 = vdwg.mxu0
    %4964 = vmatprep.subr.mxu0 %v3528
    %4965 = vmatpush1.msra.mxu0 %v3527
    %4966 = vmatprep.subr.mxu0 %v3532
    %4967 = vmatpush1.msra.mxu0 %v3531
    %4968 = vmatprep.subr.mxu0 %v3536
    %4969 = vmatpush1.msra.mxu0 %v3535
    %4970 = vmatprep.subr.mxu0 %v3540
    %4971 = vmatpush1.msra.mxu0 %v3539
    %4972 = vmatprep.subr.mxu0 %v3544
    %4973 = vmatpush1.msra.mxu0 %v3543
    %4974 = vmatprep.subr.mxu0 %v3548
    %4975 = vmatpush1.msra.mxu0 %v3547
    %4976 = vmatprep.subr.mxu0 %v3552
    %4977 = vmatpush1.msra.mxu0 %v3551
    %4978 = vmatprep.subr.mxu0 %v3556
    %4979 = vmatpush1.msra.mxu0 %v3555
    %4980 = vmatprep.subr.mxu0 %v3560
    %4981 = vmatpush1.msra.mxu0 %v3559
    %4982 = vmatprep.subr.mxu0 %v3564
    %4983 = vmatpush1.msra.mxu0 %v3563
    %4984 = vmatprep.subr.mxu0 %v3568
    %4985 = vmatpush1.msra.mxu0 %v3567
    %4986 = vmatprep.subr.mxu0 %v3572
    %4987 = vmatpush1.msra.mxu0 %v3571
    %4988 = vmatprep.subr.mxu0 %v3576
    %4989 = vmatpush1.msra.mxu0 %v3575
    %4990 = vmatprep.subr.mxu0 %v3580
    %4991 = vmatpush1.msra.mxu0 %v3579
    %4992 = vmatprep.subr.mxu0 %v3584
    %4993 = vmatpush1.msra.mxu0 %v3583
    %4994 = vmatprep.subr.mxu0 %v3588
    %4995 = vmatpush1.msra.mxu0 %v3587
    %4996 = vmatprep.subr.mxu0 0.0
    %4997 = vmatpush1.msra.mxu0 0.0
    %4998 = vmatprep.subr.mxu0 0.0
    %4999 = vmatpush1.msra.mxu0 0.0
    %5000 = vmatprep.subr.mxu0 0.0
    %5001 = vmatpush1.msra.mxu0 0.0
    %5002 = vmatprep.subr.mxu0 0.0
    %5003 = vmatpush1.msra.mxu0 0.0
    %5004 = vmatprep.subr.mxu0 0.0
    %5005 = vmatpush1.msra.mxu0 0.0
    %5006 = vmatprep.subr.mxu0 0.0
    %5007 = vmatpush1.msra.mxu0 0.0
    %5008 = vmatprep.subr.mxu0 0.0
    %5009 = vmatpush1.msra.mxu0 0.0
    %5010 = vmatprep.subr.mxu0 0.0
    %5011 = vmatpush1.msra.mxu0 0.0
    %5012 = vmatprep.subr.mxu0 0.0
    %5013 = vmatpush1.msra.mxu0 0.0
    %5014 = vmatprep.subr.mxu0 0.0
    %5015 = vmatpush1.msra.mxu0 0.0
    %5016 = vmatprep.subr.mxu0 0.0
    %5017 = vmatpush1.msra.mxu0 0.0
    %5018 = vmatprep.subr.mxu0 0.0
    %5019 = vmatpush1.msra.mxu0 0.0
    %5020 = vmatprep.subr.mxu0 0.0
    %5021 = vmatpush1.msra.mxu0 0.0
    %5022 = vmatprep.subr.mxu0 0.0
    %5023 = vmatpush1.msra.mxu0 0.0
    %5024 = vmatprep.subr.mxu0 0.0
    %5025 = vmatpush1.msra.mxu0 0.0
    %5026 = vmatprep.subr.mxu0 0.0
    %5027 = vmatpush1.msra.mxu0 0.0
    %5028 = vmatprep.mubr.f32.mxu0 0.0
    %5029 = vmatmul.mubr.f32.gmra.mrb[0].mxu0 %v4887
    %v5030 = vpop.f32.mrb[0].mxu0
    %v5031 = vadd.f32 0.0, %v5030
    %v5032 = vpop.f32.mrb[0].mxu0
    %v5033 = vadd.f32 0.0, %v5032
    %5034 = vdwg.mxu0
    %v5035 = vadd.f32 %v4889, %v4960
    %v5036 = vadd.f32 %v4890, %v4962
    %v5037 = vadd.f32 %v4891, %v5031
    %v5038 = vadd.f32 %v4892, %v5033
    %v5039 = vxor.u32 %v5035, 2147483648
    %v5040 = vmul.f32 %v5039, 1.442695
    %v5041 = vpow.pop %v5040
    %v5042 = vadd.f32 %v5041, 1.0
    %v5043 = vrcp.pop %v5042
    %v5044 = vmul.f32 1.0, %v5043
    %v5045 = vxor.u32 %v5036, 2147483648
    %v5046 = vmul.f32 %v5045, 1.442695
    %v5047 = vpow.pop %v5046
    %v5048 = vadd.f32 %v5047, 1.0
    %v5049 = vrcp.pop %v5048
    %v5050 = vmul.f32 1.0, %v5049
    %v5051 = vtanh.pop %v5037
    %v5052 = vxor.u32 %v5038, 2147483648
    %v5053 = vmul.f32 %v5052, 1.442695
    %v5054 = vpow.pop %v5053
    %v5055 = vadd.f32 %v5054, 1.0
    %v5056 = vrcp.pop %v5055
    %v5057 = vmul.f32 1.0, %v5056
    %v5058 = vmul.f32 %v5050, %v4885
    %v5059 = vmul.f32 %v5044, %v5051
    %v5060 = vadd.f32 %v5058, %v5059
    %v5061 = vtanh.pop %v5060
    %v5062 = vmul.f32 %v5057, %v5061
    %5063 = vst [vmem:[%s1687] sm:$0xff] %v5062
    %v5064 = vld [vmem:[%s1689] sm:$0xff]
    %v5065 = vld [vmem:[%s1689 + $0x8] sm:$0xff]
    %v5066 = vld [vmem:[%s1689 + $0x10] sm:$0xff]
    %v5067 = vld [vmem:[%s1689 + $0x18] sm:$0xff]
    %5068 = vmatprep.subr.mxu0 %v3526
    %5069 = vmatpush1.msra.mxu0 %v3525
    %5070 = vmatprep.subr.mxu0 %v3530
    %5071 = vmatpush1.msra.mxu0 %v3529
    %5072 = vmatprep.subr.mxu0 %v3534
    %5073 = vmatpush1.msra.mxu0 %v3533
    %5074 = vmatprep.subr.mxu0 %v3538
    %5075 = vmatpush1.msra.mxu0 %v3537
    %5076 = vmatprep.subr.mxu0 %v3542
    %5077 = vmatpush1.msra.mxu0 %v3541
    %5078 = vmatprep.subr.mxu0 %v3546
    %5079 = vmatpush1.msra.mxu0 %v3545
    %5080 = vmatprep.subr.mxu0 %v3550
    %5081 = vmatpush1.msra.mxu0 %v3549
    %5082 = vmatprep.subr.mxu0 %v3554
    %5083 = vmatpush1.msra.mxu0 %v3553
    %5084 = vmatprep.subr.mxu0 %v3558
    %5085 = vmatpush1.msra.mxu0 %v3557
    %5086 = vmatprep.subr.mxu0 %v3562
    %5087 = vmatpush1.msra.mxu0 %v3561
    %5088 = vmatprep.subr.mxu0 %v3566
    %5089 = vmatpush1.msra.mxu0 %v3565
    %5090 = vmatprep.subr.mxu0 %v3570
    %5091 = vmatpush1.msra.mxu0 %v3569
    %5092 = vmatprep.subr.mxu0 %v3574
    %5093 = vmatpush1.msra.mxu0 %v3573
    %5094 = vmatprep.subr.mxu0 %v3578
    %5095 = vmatpush1.msra.mxu0 %v3577
    %5096 = vmatprep.subr.mxu0 %v3582
    %5097 = vmatpush1.msra.mxu0 %v3581
    %5098 = vmatprep.subr.mxu0 %v3586
    %5099 = vmatpush1.msra.mxu0 %v3585
    %5100 = vmatprep.subr.mxu0 0.0
    %5101 = vmatpush1.msra.mxu0 0.0
    %5102 = vmatprep.subr.mxu0 0.0
    %5103 = vmatpush1.msra.mxu0 0.0
    %5104 = vmatprep.subr.mxu0 0.0
    %5105 = vmatpush1.msra.mxu0 0.0
    %5106 = vmatprep.subr.mxu0 0.0
    %5107 = vmatpush1.msra.mxu0 0.0
    %5108 = vmatprep.subr.mxu0 0.0
    %5109 = vmatpush1.msra.mxu0 0.0
    %5110 = vmatprep.subr.mxu0 0.0
    %5111 = vmatpush1.msra.mxu0 0.0
    %5112 = vmatprep.subr.mxu0 0.0
    %5113 = vmatpush1.msra.mxu0 0.0
    %5114 = vmatprep.subr.mxu0 0.0
    %5115 = vmatpush1.msra.mxu0 0.0
    %5116 = vmatprep.subr.mxu0 0.0
    %5117 = vmatpush1.msra.mxu0 0.0
    %5118 = vmatprep.subr.mxu0 0.0
    %5119 = vmatpush1.msra.mxu0 0.0
    %5120 = vmatprep.subr.mxu0 0.0
    %5121 = vmatpush1.msra.mxu0 0.0
    %5122 = vmatprep.subr.mxu0 0.0
    %5123 = vmatpush1.msra.mxu0 0.0
    %5124 = vmatprep.subr.mxu0 0.0
    %5125 = vmatpush1.msra.mxu0 0.0
    %5126 = vmatprep.subr.mxu0 0.0
    %5127 = vmatpush1.msra.mxu0 0.0
    %5128 = vmatprep.subr.mxu0 0.0
    %5129 = vmatpush1.msra.mxu0 0.0
    %5130 = vmatprep.subr.mxu0 0.0
    %5131 = vmatpush1.msra.mxu0 0.0
    %5132 = vmatprep.mubr.f32.mxu0 0.0
    %5133 = vmatmul.mubr.f32.gmra.mrb[0].mxu0 %v5062
    %v5134 = vpop.f32.mrb[0].mxu0
    %v5135 = vadd.f32 0.0, %v5134
    %v5136 = vpop.f32.mrb[0].mxu0
    %v5137 = vadd.f32 0.0, %v5136
    %5138 = vdwg.mxu0
    %5139 = vmatprep.subr.mxu0 %v3528
    %5140 = vmatpush1.msra.mxu0 %v3527
    %5141 = vmatprep.subr.mxu0 %v3532
    %5142 = vmatpush1.msra.mxu0 %v3531
    %5143 = vmatprep.subr.mxu0 %v3536
    %5144 = vmatpush1.msra.mxu0 %v3535
    %5145 = vmatprep.subr.mxu0 %v3540
    %5146 = vmatpush1.msra.mxu0 %v3539
    %5147 = vmatprep.subr.mxu0 %v3544
    %5148 = vmatpush1.msra.mxu0 %v3543
    %5149 = vmatprep.subr.mxu0 %v3548
    %5150 = vmatpush1.msra.mxu0 %v3547
    %5151 = vmatprep.subr.mxu0 %v3552
    %5152 = vmatpush1.msra.mxu0 %v3551
    %5153 = vmatprep.subr.mxu0 %v3556
    %5154 = vmatpush1.msra.mxu0 %v3555
    %5155 = vmatprep.subr.mxu0 %v3560
    %5156 = vmatpush1.msra.mxu0 %v3559
    %5157 = vmatprep.subr.mxu0 %v3564
    %5158 = vmatpush1.msra.mxu0 %v3563
    %5159 = vmatprep.subr.mxu0 %v3568
    %5160 = vmatpush1.msra.mxu0 %v3567
    %5161 = vmatprep.subr.mxu0 %v3572
    %5162 = vmatpush1.msra.mxu0 %v3571
    %5163 = vmatprep.subr.mxu0 %v3576
    %5164 = vmatpush1.msra.mxu0 %v3575
    %5165 = vmatprep.subr.mxu0 %v3580
    %5166 = vmatpush1.msra.mxu0 %v3579
    %5167 = vmatprep.subr.mxu0 %v3584
    %5168 = vmatpush1.msra.mxu0 %v3583
    %5169 = vmatprep.subr.mxu0 %v3588
    %5170 = vmatpush1.msra.mxu0 %v3587
    %5171 = vmatprep.subr.mxu0 0.0
    %5172 = vmatpush1.msra.mxu0 0.0
    %5173 = vmatprep.subr.mxu0 0.0
    %5174 = vmatpush1.msra.mxu0 0.0
    %5175 = vmatprep.subr.mxu0 0.0
    %5176 = vmatpush1.msra.mxu0 0.0
    %5177 = vmatprep.subr.mxu0 0.0
    %5178 = vmatpush1.msra.mxu0 0.0
    %5179 = vmatprep.subr.mxu0 0.0
    %5180 = vmatpush1.msra.mxu0 0.0
    %5181 = vmatprep.subr.mxu0 0.0
    %5182 = vmatpush1.msra.mxu0 0.0
    %5183 = vmatprep.subr.mxu0 0.0
    %5184 = vmatpush1.msra.mxu0 0.0
    %5185 = vmatprep.subr.mxu0 0.0
    %5186 = vmatpush1.msra.mxu0 0.0
    %5187 = vmatprep.subr.mxu0 0.0
    %5188 = vmatpush1.msra.mxu0 0.0
    %5189 = vmatprep.subr.mxu0 0.0
    %5190 = vmatpush1.msra.mxu0 0.0
    %5191 = vmatprep.subr.mxu0 0.0
    %5192 = vmatpush1.msra.mxu0 0.0
    %5193 = vmatprep.subr.mxu0 0.0
    %5194 = vmatpush1.msra.mxu0 0.0
    %5195 = vmatprep.subr.mxu0 0.0
    %5196 = vmatpush1.msra.mxu0 0.0
    %5197 = vmatprep.subr.mxu0 0.0
    %5198 = vmatpush1.msra.mxu0 0.0
    %5199 = vmatprep.subr.mxu0 0.0
    %5200 = vmatpush1.msra.mxu0 0.0
    %5201 = vmatprep.subr.mxu0 0.0
    %5202 = vmatpush1.msra.mxu0 0.0
    %5203 = vmatprep.mubr.f32.mxu0 0.0
    %5204 = vmatmul.mubr.f32.gmra.mrb[0].mxu0 %v5062
    %v5205 = vpop.f32.mrb[0].mxu0
    %v5206 = vadd.f32 0.0, %v5205
    %v5207 = vpop.f32.mrb[0].mxu0
    %v5208 = vadd.f32 0.0, %v5207
    %5209 = vdwg.mxu0
    %v5210 = vadd.f32 %v5064, %v5135
    %v5211 = vadd.f32 %v5065, %v5137
    %v5212 = vadd.f32 %v5066, %v5206
    %v5213 = vadd.f32 %v5067, %v5208
    %v5214 = vxor.u32 %v5210, 2147483648
    %v5215 = vmul.f32 %v5214, 1.442695
    %v5216 = vpow.pop %v5215
    %v5217 = vadd.f32 %v5216, 1.0
    %v5218 = vrcp.pop %v5217
    %v5219 = vmul.f32 1.0, %v5218
    %v5220 = vxor.u32 %v5211, 2147483648
    %v5221 = vmul.f32 %v5220, 1.442695
    %v5222 = vpow.pop %v5221
    %v5223 = vadd.f32 %v5222, 1.0
    %v5224 = vrcp.pop %v5223
    %v5225 = vmul.f32 1.0, %v5224
    %v5226 = vtanh.pop %v5212
    %v5227 = vxor.u32 %v5213, 2147483648
    %v5228 = vmul.f32 %v5227, 1.442695
    %v5229 = vpow.pop %v5228
    %v5230 = vadd.f32 %v5229, 1.0
    %v5231 = vrcp.pop %v5230
    %v5232 = vmul.f32 1.0, %v5231
    %v5233 = vmul.f32 %v5225, %v5060
    %v5234 = vmul.f32 %v5219, %v5226
    %v5235 = vadd.f32 %v5233, %v5234
    %v5236 = vtanh.pop %v5235
    %v5237 = vmul.f32 %v5232, %v5236
    %5238 = vst [vmem:[%s1864] sm:$0xff] %v5237
    %v5239 = vld [vmem:[%s1866] sm:$0xff]
    %v5240 = vld [vmem:[%s1866 + $0x8] sm:$0xff]
    %v5241 = vld [vmem:[%s1866 + $0x10] sm:$0xff]
    %v5242 = vld [vmem:[%s1866 + $0x18] sm:$0xff]
    %5243 = vmatprep.subr.mxu0 %v3526
    %5244 = vmatpush1.msra.mxu0 %v3525
    %5245 = vmatprep.subr.mxu0 %v3530
    %5246 = vmatpush1.msra.mxu0 %v3529
    %5247 = vmatprep.subr.mxu0 %v3534
    %5248 = vmatpush1.msra.mxu0 %v3533
    %5249 = vmatprep.subr.mxu0 %v3538
    %5250 = vmatpush1.msra.mxu0 %v3537
    %5251 = vmatprep.subr.mxu0 %v3542
    %5252 = vmatpush1.msra.mxu0 %v3541
    %5253 = vmatprep.subr.mxu0 %v3546
    %5254 = vmatpush1.msra.mxu0 %v3545
    %5255 = vmatprep.subr.mxu0 %v3550
    %5256 = vmatpush1.msra.mxu0 %v3549
    %5257 = vmatprep.subr.mxu0 %v3554
    %5258 = vmatpush1.msra.mxu0 %v3553
    %5259 = vmatprep.subr.mxu0 %v3558
    %5260 = vmatpush1.msra.mxu0 %v3557
    %5261 = vmatprep.subr.mxu0 %v3562
    %5262 = vmatpush1.msra.mxu0 %v3561
    %5263 = vmatprep.subr.mxu0 %v3566
    %5264 = vmatpush1.msra.mxu0 %v3565
    %5265 = vmatprep.subr.mxu0 %v3570
    %5266 = vmatpush1.msra.mxu0 %v3569
    %5267 = vmatprep.subr.mxu0 %v3574
    %5268 = vmatpush1.msra.mxu0 %v3573
    %5269 = vmatprep.subr.mxu0 %v3578
    %5270 = vmatpush1.msra.mxu0 %v3577
    %5271 = vmatprep.subr.mxu0 %v3582
    %5272 = vmatpush1.msra.mxu0 %v3581
    %5273 = vmatprep.subr.mxu0 %v3586
    %5274 = vmatpush1.msra.mxu0 %v3585
    %5275 = vmatprep.subr.mxu0 0.0
    %5276 = vmatpush1.msra.mxu0 0.0
    %5277 = vmatprep.subr.mxu0 0.0
    %5278 = vmatpush1.msra.mxu0 0.0
    %5279 = vmatprep.subr.mxu0 0.0
    %5280 = vmatpush1.msra.mxu0 0.0
    %5281 = vmatprep.subr.mxu0 0.0
    %5282 = vmatpush1.msra.mxu0 0.0
    %5283 = vmatprep.subr.mxu0 0.0
    %5284 = vmatpush1.msra.mxu0 0.0
    %5285 = vmatprep.subr.mxu0 0.0
    %5286 = vmatpush1.msra.mxu0 0.0
    %5287 = vmatprep.subr.mxu0 0.0
    %5288 = vmatpush1.msra.mxu0 0.0
    %5289 = vmatprep.subr.mxu0 0.0
    %5290 = vmatpush1.msra.mxu0 0.0
    %5291 = vmatprep.subr.mxu0 0.0
    %5292 = vmatpush1.msra.mxu0 0.0
    %5293 = vmatprep.subr.mxu0 0.0
    %5294 = vmatpush1.msra.mxu0 0.0
    %5295 = vmatprep.subr.mxu0 0.0
    %5296 = vmatpush1.msra.mxu0 0.0
    %5297 = vmatprep.subr.mxu0 0.0
    %5298 = vmatpush1.msra.mxu0 0.0
    %5299 = vmatprep.subr.mxu0 0.0
    %5300 = vmatpush1.msra.mxu0 0.0
    %5301 = vmatprep.subr.mxu0 0.0
    %5302 = vmatpush1.msra.mxu0 0.0
    %5303 = vmatprep.subr.mxu0 0.0
    %5304 = vmatpush1.msra.mxu0 0.0
    %5305 = vmatprep.subr.mxu0 0.0
    %5306 = vmatpush1.msra.mxu0 0.0
    %5307 = vmatprep.mubr.f32.mxu0 0.0
    %5308 = vmatmul.mubr.f32.gmra.mrb[0].mxu0 %v5237
    %v5309 = vpop.f32.mrb[0].mxu0
    %v5310 = vadd.f32 0.0, %v5309
    %v5311 = vpop.f32.mrb[0].mxu0
    %v5312 = vadd.f32 0.0, %v5311
    %5313 = vdwg.mxu0
    %5314 = vmatprep.subr.mxu0 %v3528
    %5315 = vmatpush1.msra.mxu0 %v3527
    %5316 = vmatprep.subr.mxu0 %v3532
    %5317 = vmatpush1.msra.mxu0 %v3531
    %5318 = vmatprep.subr.mxu0 %v3536
    %5319 = vmatpush1.msra.mxu0 %v3535
    %5320 = vmatprep.subr.mxu0 %v3540
    %5321 = vmatpush1.msra.mxu0 %v3539
    %5322 = vmatprep.subr.mxu0 %v3544
    %5323 = vmatpush1.msra.mxu0 %v3543
    %5324 = vmatprep.subr.mxu0 %v3548
    %5325 = vmatpush1.msra.mxu0 %v3547
    %5326 = vmatprep.subr.mxu0 %v3552
    %5327 = vmatpush1.msra.mxu0 %v3551
    %5328 = vmatprep.subr.mxu0 %v3556
    %5329 = vmatpush1.msra.mxu0 %v3555
    %5330 = vmatprep.subr.mxu0 %v3560
    %5331 = vmatpush1.msra.mxu0 %v3559
    %5332 = vmatprep.subr.mxu0 %v3564
    %5333 = vmatpush1.msra.mxu0 %v3563
    %5334 = vmatprep.subr.mxu0 %v3568
    %5335 = vmatpush1.msra.mxu0 %v3567
    %5336 = vmatprep.subr.mxu0 %v3572
    %5337 = vmatpush1.msra.mxu0 %v3571
    %5338 = vmatprep.subr.mxu0 %v3576
    %5339 = vmatpush1.msra.mxu0 %v3575
    %5340 = vmatprep.subr.mxu0 %v3580
    %5341 = vmatpush1.msra.mxu0 %v3579
    %5342 = vmatprep.subr.mxu0 %v3584
    %5343 = vmatpush1.msra.mxu0 %v3583
    %5344 = vmatprep.subr.mxu0 %v3588
    %5345 = vmatpush1.msra.mxu0 %v3587
    %5346 = vmatprep.subr.mxu0 0.0
    %5347 = vmatpush1.msra.mxu0 0.0
    %5348 = vmatprep.subr.mxu0 0.0
    %5349 = vmatpush1.msra.mxu0 0.0
    %5350 = vmatprep.subr.mxu0 0.0
    %5351 = vmatpush1.msra.mxu0 0.0
    %5352 = vmatprep.subr.mxu0 0.0
    %5353 = vmatpush1.msra.mxu0 0.0
    %5354 = vmatprep.subr.mxu0 0.0
    %5355 = vmatpush1.msra.mxu0 0.0
    %5356 = vmatprep.subr.mxu0 0.0
    %5357 = vmatpush1.msra.mxu0 0.0
    %5358 = vmatprep.subr.mxu0 0.0
    %5359 = vmatpush1.msra.mxu0 0.0
    %5360 = vmatprep.subr.mxu0 0.0
    %5361 = vmatpush1.msra.mxu0 0.0
    %5362 = vmatprep.subr.mxu0 0.0
    %5363 = vmatpush1.msra.mxu0 0.0
    %5364 = vmatprep.subr.mxu0 0.0
    %5365 = vmatpush1.msra.mxu0 0.0
    %5366 = vmatprep.subr.mxu0 0.0
    %5367 = vmatpush1.msra.mxu0 0.0
    %5368 = vmatprep.subr.mxu0 0.0
    %5369 = vmatpush1.msra.mxu0 0.0
    %5370 = vmatprep.subr.mxu0 0.0
    %5371 = vmatpush1.msra.mxu0 0.0
    %5372 = vmatprep.subr.mxu0 0.0
    %5373 = vmatpush1.msra.mxu0 0.0
    %5374 = vmatprep.subr.mxu0 0.0
    %5375 = vmatpush1.msra.mxu0 0.0
    %5376 = vmatprep.subr.mxu0 0.0
    %5377 = vmatpush1.msra.mxu0 0.0
    %5378 = vmatprep.mubr.f32.mxu0 0.0
    %5379 = vmatmul.mubr.f32.gmra.mrb[0].mxu0 %v5237
    %v5380 = vpop.f32.mrb[0].mxu0
    %v5381 = vadd.f32 0.0, %v5380
    %v5382 = vpop.f32.mrb[0].mxu0
    %v5383 = vadd.f32 0.0, %v5382
    %5384 = vdwg.mxu0
    %v5385 = vadd.f32 %v5239, %v5310
    %v5386 = vadd.f32 %v5240, %v5312
    %v5387 = vadd.f32 %v5241, %v5381
    %v5388 = vadd.f32 %v5242, %v5383
    %v5389 = vxor.u32 %v5385, 2147483648
    %v5390 = vmul.f32 %v5389, 1.442695
    %v5391 = vpow.pop %v5390
    %v5392 = vadd.f32 %v5391, 1.0
    %v5393 = vrcp.pop %v5392
    %v5394 = vmul.f32 1.0, %v5393
    %v5395 = vxor.u32 %v5386, 2147483648
    %v5396 = vmul.f32 %v5395, 1.442695
    %v5397 = vpow.pop %v5396
    %v5398 = vadd.f32 %v5397, 1.0
    %v5399 = vrcp.pop %v5398
    %v5400 = vmul.f32 1.0, %v5399
    %v5401 = vtanh.pop %v5387
    %v5402 = vxor.u32 %v5388, 2147483648
    %v5403 = vmul.f32 %v5402, 1.442695
    %v5404 = vpow.pop %v5403
    %v5405 = vadd.f32 %v5404, 1.0
    %v5406 = vrcp.pop %v5405
    %v5407 = vmul.f32 1.0, %v5406
    %v5408 = vmul.f32 %v5400, %v5235
    %v5409 = vmul.f32 %v5394, %v5401
    %v5410 = vadd.f32 %v5408, %v5409
    %v5411 = vtanh.pop %v5410
    %v5412 = vmul.f32 %v5407, %v5411
    %5413 = vst [vmem:[%s2041] sm:$0xff] %v5412
    %v5414 = vld [vmem:[%s2043] sm:$0xff]
    %v5415 = vld [vmem:[%s2043 + $0x8] sm:$0xff]
    %v5416 = vld [vmem:[%s2043 + $0x10] sm:$0xff]
    %v5417 = vld [vmem:[%s2043 + $0x18] sm:$0xff]
    %5418 = vmatprep.subr.mxu0 %v3526
    %5419 = vmatpush1.msra.mxu0 %v3525
    %5420 = vmatprep.subr.mxu0 %v3530
    %5421 = vmatpush1.msra.mxu0 %v3529
    %5422 = vmatprep.subr.mxu0 %v3534
    %5423 = vmatpush1.msra.mxu0 %v3533
    %5424 = vmatprep.subr.mxu0 %v3538
    %5425 = vmatpush1.msra.mxu0 %v3537
    %5426 = vmatprep.subr.mxu0 %v3542
    %5427 = vmatpush1.msra.mxu0 %v3541
    %5428 = vmatprep.subr.mxu0 %v3546
    %5429 = vmatpush1.msra.mxu0 %v3545
    %5430 = vmatprep.subr.mxu0 %v3550
    %5431 = vmatpush1.msra.mxu0 %v3549
    %5432 = vmatprep.subr.mxu0 %v3554
    %5433 = vmatpush1.msra.mxu0 %v3553
    %5434 = vmatprep.subr.mxu0 %v3558
    %5435 = vmatpush1.msra.mxu0 %v3557
    %5436 = vmatprep.subr.mxu0 %v3562
    %5437 = vmatpush1.msra.mxu0 %v3561
    %5438 = vmatprep.subr.mxu0 %v3566
    %5439 = vmatpush1.msra.mxu0 %v3565
    %5440 = vmatprep.subr.mxu0 %v3570
    %5441 = vmatpush1.msra.mxu0 %v3569
    %5442 = vmatprep.subr.mxu0 %v3574
    %5443 = vmatpush1.msra.mxu0 %v3573
    %5444 = vmatprep.subr.mxu0 %v3578
    %5445 = vmatpush1.msra.mxu0 %v3577
    %5446 = vmatprep.subr.mxu0 %v3582
    %5447 = vmatpush1.msra.mxu0 %v3581
    %5448 = vmatprep.subr.mxu0 %v3586
    %5449 = vmatpush1.msra.mxu0 %v3585
    %5450 = vmatprep.subr.mxu0 0.0
    %5451 = vmatpush1.msra.mxu0 0.0
    %5452 = vmatprep.subr.mxu0 0.0
    %5453 = vmatpush1.msra.mxu0 0.0
    %5454 = vmatprep.subr.mxu0 0.0
    %5455 = vmatpush1.msra.mxu0 0.0
    %5456 = vmatprep.subr.mxu0 0.0
    %5457 = vmatpush1.msra.mxu0 0.0
    %5458 = vmatprep.subr.mxu0 0.0
    %5459 = vmatpush1.msra.mxu0 0.0
    %5460 = vmatprep.subr.mxu0 0.0
    %5461 = vmatpush1.msra.mxu0 0.0
    %5462 = vmatprep.subr.mxu0 0.0
    %5463 = vmatpush1.msra.mxu0 0.0
    %5464 = vmatprep.subr.mxu0 0.0
    %5465 = vmatpush1.msra.mxu0 0.0
    %5466 = vmatprep.subr.mxu0 0.0
    %5467 = vmatpush1.msra.mxu0 0.0
    %5468 = vmatprep.subr.mxu0 0.0
    %5469 = vmatpush1.msra.mxu0 0.0
    %5470 = vmatprep.subr.mxu0 0.0
    %5471 = vmatpush1.msra.mxu0 0.0
    %5472 = vmatprep.subr.mxu0 0.0
    %5473 = vmatpush1.msra.mxu0 0.0
    %5474 = vmatprep.subr.mxu0 0.0
    %5475 = vmatpush1.msra.mxu0 0.0
    %5476 = vmatprep.subr.mxu0 0.0
    %5477 = vmatpush1.msra.mxu0 0.0
    %5478 = vmatprep.subr.mxu0 0.0
    %5479 = vmatpush1.msra.mxu0 0.0
    %5480 = vmatprep.subr.mxu0 0.0
    %5481 = vmatpush1.msra.mxu0 0.0
    %5482 = vmatprep.mubr.f32.mxu0 0.0
    %5483 = vmatmul.mubr.f32.gmra.mrb[0].mxu0 %v5412
    %v5484 = vpop.f32.mrb[0].mxu0
    %v5485 = vadd.f32 0.0, %v5484
    %v5486 = vpop.f32.mrb[0].mxu0
    %v5487 = vadd.f32 0.0, %v5486
    %5488 = vdwg.mxu0
    %5489 = vmatprep.subr.mxu0 %v3528
    %5490 = vmatpush1.msra.mxu0 %v3527
    %5491 = vmatprep.subr.mxu0 %v3532
    %5492 = vmatpush1.msra.mxu0 %v3531
    %5493 = vmatprep.subr.mxu0 %v3536
    %5494 = vmatpush1.msra.mxu0 %v3535
    %5495 = vmatprep.subr.mxu0 %v3540
    %5496 = vmatpush1.msra.mxu0 %v3539
    %5497 = vmatprep.subr.mxu0 %v3544
    %5498 = vmatpush1.msra.mxu0 %v3543
    %5499 = vmatprep.subr.mxu0 %v3548
    %5500 = vmatpush1.msra.mxu0 %v3547
    %5501 = vmatprep.subr.mxu0 %v3552
    %5502 = vmatpush1.msra.mxu0 %v3551
    %5503 = vmatprep.subr.mxu0 %v3556
    %5504 = vmatpush1.msra.mxu0 %v3555
    %5505 = vmatprep.subr.mxu0 %v3560
    %5506 = vmatpush1.msra.mxu0 %v3559
    %5507 = vmatprep.subr.mxu0 %v3564
    %5508 = vmatpush1.msra.mxu0 %v3563
    %5509 = vmatprep.subr.mxu0 %v3568
    %5510 = vmatpush1.msra.mxu0 %v3567
    %5511 = vmatprep.subr.mxu0 %v3572
    %5512 = vmatpush1.msra.mxu0 %v3571
    %5513 = vmatprep.subr.mxu0 %v3576
    %5514 = vmatpush1.msra.mxu0 %v3575
    %5515 = vmatprep.subr.mxu0 %v3580
    %5516 = vmatpush1.msra.mxu0 %v3579
    %5517 = vmatprep.subr.mxu0 %v3584
    %5518 = vmatpush1.msra.mxu0 %v3583
    %5519 = vmatprep.subr.mxu0 %v3588
    %5520 = vmatpush1.msra.mxu0 %v3587
    %5521 = vmatprep.subr.mxu0 0.0
    %5522 = vmatpush1.msra.mxu0 0.0
    %5523 = vmatprep.subr.mxu0 0.0
    %5524 = vmatpush1.msra.mxu0 0.0
    %5525 = vmatprep.subr.mxu0 0.0
    %5526 = vmatpush1.msra.mxu0 0.0
    %5527 = vmatprep.subr.mxu0 0.0
    %5528 = vmatpush1.msra.mxu0 0.0
    %5529 = vmatprep.subr.mxu0 0.0
    %5530 = vmatpush1.msra.mxu0 0.0
    %5531 = vmatprep.subr.mxu0 0.0
    %5532 = vmatpush1.msra.mxu0 0.0
    %5533 = vmatprep.subr.mxu0 0.0
    %5534 = vmatpush1.msra.mxu0 0.0
    %5535 = vmatprep.subr.mxu0 0.0
    %5536 = vmatpush1.msra.mxu0 0.0
    %5537 = vmatprep.subr.mxu0 0.0
    %5538 = vmatpush1.msra.mxu0 0.0
    %5539 = vmatprep.subr.mxu0 0.0
    %5540 = vmatpush1.msra.mxu0 0.0
    %5541 = vmatprep.subr.mxu0 0.0
    %5542 = vmatpush1.msra.mxu0 0.0
    %5543 = vmatprep.subr.mxu0 0.0
    %5544 = vmatpush1.msra.mxu0 0.0
    %5545 = vmatprep.subr.mxu0 0.0
    %5546 = vmatpush1.msra.mxu0 0.0
    %5547 = vmatprep.subr.mxu0 0.0
    %5548 = vmatpush1.msra.mxu0 0.0
    %5549 = vmatprep.subr.mxu0 0.0
    %5550 = vmatpush1.msra.mxu0 0.0
    %5551 = vmatprep.subr.mxu0 0.0
    %5552 = vmatpush1.msra.mxu0 0.0
    %5553 = vmatprep.mubr.f32.mxu0 0.0
    %5554 = vmatmul.mubr.f32.gmra.mrb[0].mxu0 %v5412
    %v5555 = vpop.f32.mrb[0].mxu0
    %v5556 = vadd.f32 0.0, %v5555
    %v5557 = vpop.f32.mrb[0].mxu0
    %v5558 = vadd.f32 0.0, %v5557
    %5559 = vdwg.mxu0
    %v5560 = vadd.f32 %v5414, %v5485
    %v5561 = vadd.f32 %v5415, %v5487
    %v5562 = vadd.f32 %v5416, %v5556
    %v5563 = vadd.f32 %v5417, %v5558
    %v5564 = vxor.u32 %v5560, 2147483648
    %v5565 = vmul.f32 %v5564, 1.442695
    %v5566 = vpow.pop %v5565
    %v5567 = vadd.f32 %v5566, 1.0
    %v5568 = vrcp.pop %v5567
    %v5569 = vmul.f32 1.0, %v5568
    %v5570 = vxor.u32 %v5561, 2147483648
    %v5571 = vmul.f32 %v5570, 1.442695
    %v5572 = vpow.pop %v5571
    %v5573 = vadd.f32 %v5572, 1.0
    %v5574 = vrcp.pop %v5573
    %v5575 = vmul.f32 1.0, %v5574
    %v5576 = vtanh.pop %v5562
    %v5577 = vxor.u32 %v5563, 2147483648
    %v5578 = vmul.f32 %v5577, 1.442695
    %v5579 = vpow.pop %v5578
    %v5580 = vadd.f32 %v5579, 1.0
    %v5581 = vrcp.pop %v5580
    %v5582 = vmul.f32 1.0, %v5581
    %v5583 = vmul.f32 %v5575, %v5410
    %v5584 = vmul.f32 %v5569, %v5576
    %v5585 = vadd.f32 %v5583, %v5584
    %v5586 = vtanh.pop %v5585
    %v5587 = vmul.f32 %v5582, %v5586
    %5588 = vst [vmem:[%s2218] sm:$0xff] %v5587
    %v5589 = vld [vmem:[%s2220] sm:$0xff]
    %v5590 = vld [vmem:[%s2220 + $0x8] sm:$0xff]
    %v5591 = vld [vmem:[%s2220 + $0x10] sm:$0xff]
    %v5592 = vld [vmem:[%s2220 + $0x18] sm:$0xff]
    %5593 = vmatprep.subr.mxu0 %v3526
    %5594 = vmatpush1.msra.mxu0 %v3525
    %5595 = vmatprep.subr.mxu0 %v3530
    %5596 = vmatpush1.msra.mxu0 %v3529
    %5597 = vmatprep.subr.mxu0 %v3534
    %5598 = vmatpush1.msra.mxu0 %v3533
    %5599 = vmatprep.subr.mxu0 %v3538
    %5600 = vmatpush1.msra.mxu0 %v3537
    %5601 = vmatprep.subr.mxu0 %v3542
    %5602 = vmatpush1.msra.mxu0 %v3541
    %5603 = vmatprep.subr.mxu0 %v3546
    %5604 = vmatpush1.msra.mxu0 %v3545
    %5605 = vmatprep.subr.mxu0 %v3550
    %5606 = vmatpush1.msra.mxu0 %v3549
    %5607 = vmatprep.subr.mxu0 %v3554
    %5608 = vmatpush1.msra.mxu0 %v3553
    %5609 = vmatprep.subr.mxu0 %v3558
    %5610 = vmatpush1.msra.mxu0 %v3557
    %5611 = vmatprep.subr.mxu0 %v3562
    %5612 = vmatpush1.msra.mxu0 %v3561
    %5613 = vmatprep.subr.mxu0 %v3566
    %5614 = vmatpush1.msra.mxu0 %v3565
    %5615 = vmatprep.subr.mxu0 %v3570
    %5616 = vmatpush1.msra.mxu0 %v3569
    %5617 = vmatprep.subr.mxu0 %v3574
    %5618 = vmatpush1.msra.mxu0 %v3573
    %5619 = vmatprep.subr.mxu0 %v3578
    %5620 = vmatpush1.msra.mxu0 %v3577
    %5621 = vmatprep.subr.mxu0 %v3582
    %5622 = vmatpush1.msra.mxu0 %v3581
    %5623 = vmatprep.subr.mxu0 %v3586
    %5624 = vmatpush1.msra.mxu0 %v3585
    %5625 = vmatprep.subr.mxu0 0.0
    %5626 = vmatpush1.msra.mxu0 0.0
    %5627 = vmatprep.subr.mxu0 0.0
    %5628 = vmatpush1.msra.mxu0 0.0
    %5629 = vmatprep.subr.mxu0 0.0
    %5630 = vmatpush1.msra.mxu0 0.0
    %5631 = vmatprep.subr.mxu0 0.0
    %5632 = vmatpush1.msra.mxu0 0.0
    %5633 = vmatprep.subr.mxu0 0.0
    %5634 = vmatpush1.msra.mxu0 0.0
    %5635 = vmatprep.subr.mxu0 0.0
    %5636 = vmatpush1.msra.mxu0 0.0
    %5637 = vmatprep.subr.mxu0 0.0
    %5638 = vmatpush1.msra.mxu0 0.0
    %5639 = vmatprep.subr.mxu0 0.0
    %5640 = vmatpush1.msra.mxu0 0.0
    %5641 = vmatprep.subr.mxu0 0.0
    %5642 = vmatpush1.msra.mxu0 0.0
    %5643 = vmatprep.subr.mxu0 0.0
    %5644 = vmatpush1.msra.mxu0 0.0
    %5645 = vmatprep.subr.mxu0 0.0
    %5646 = vmatpush1.msra.mxu0 0.0
    %5647 = vmatprep.subr.mxu0 0.0
    %5648 = vmatpush1.msra.mxu0 0.0
    %5649 = vmatprep.subr.mxu0 0.0
    %5650 = vmatpush1.msra.mxu0 0.0
    %5651 = vmatprep.subr.mxu0 0.0
    %5652 = vmatpush1.msra.mxu0 0.0
    %5653 = vmatprep.subr.mxu0 0.0
    %5654 = vmatpush1.msra.mxu0 0.0
    %5655 = vmatprep.subr.mxu0 0.0
    %5656 = vmatpush1.msra.mxu0 0.0
    %5657 = vmatprep.mubr.f32.mxu0 0.0
    %5658 = vmatmul.mubr.f32.gmra.mrb[0].mxu0 %v5587
    %v5659 = vpop.f32.mrb[0].mxu0
    %v5660 = vadd.f32 0.0, %v5659
    %v5661 = vpop.f32.mrb[0].mxu0
    %v5662 = vadd.f32 0.0, %v5661
    %5663 = vdwg.mxu0
    %5664 = vmatprep.subr.mxu0 %v3528
    %5665 = vmatpush1.msra.mxu0 %v3527
    %5666 = vmatprep.subr.mxu0 %v3532
    %5667 = vmatpush1.msra.mxu0 %v3531
    %5668 = vmatprep.subr.mxu0 %v3536
    %5669 = vmatpush1.msra.mxu0 %v3535
    %5670 = vmatprep.subr.mxu0 %v3540
    %5671 = vmatpush1.msra.mxu0 %v3539
    %5672 = vmatprep.subr.mxu0 %v3544
    %5673 = vmatpush1.msra.mxu0 %v3543
    %5674 = vmatprep.subr.mxu0 %v3548
    %5675 = vmatpush1.msra.mxu0 %v3547
    %5676 = vmatprep.subr.mxu0 %v3552
    %5677 = vmatpush1.msra.mxu0 %v3551
    %5678 = vmatprep.subr.mxu0 %v3556
    %5679 = vmatpush1.msra.mxu0 %v3555
    %5680 = vmatprep.subr.mxu0 %v3560
    %5681 = vmatpush1.msra.mxu0 %v3559
    %5682 = vmatprep.subr.mxu0 %v3564
    %5683 = vmatpush1.msra.mxu0 %v3563
    %5684 = vmatprep.subr.mxu0 %v3568
    %5685 = vmatpush1.msra.mxu0 %v3567
    %5686 = vmatprep.subr.mxu0 %v3572
    %5687 = vmatpush1.msra.mxu0 %v3571
    %5688 = vmatprep.subr.mxu0 %v3576
    %5689 = vmatpush1.msra.mxu0 %v3575
    %5690 = vmatprep.subr.mxu0 %v3580
    %5691 = vmatpush1.msra.mxu0 %v3579
    %5692 = vmatprep.subr.mxu0 %v3584
    %5693 = vmatpush1.msra.mxu0 %v3583
    %5694 = vmatprep.subr.mxu0 %v3588
    %5695 = vmatpush1.msra.mxu0 %v3587
    %5696 = vmatprep.subr.mxu0 0.0
    %5697 = vmatpush1.msra.mxu0 0.0
    %5698 = vmatprep.subr.mxu0 0.0
    %5699 = vmatpush1.msra.mxu0 0.0
    %5700 = vmatprep.subr.mxu0 0.0
    %5701 = vmatpush1.msra.mxu0 0.0
    %5702 = vmatprep.subr.mxu0 0.0
    %5703 = vmatpush1.msra.mxu0 0.0
    %5704 = vmatprep.subr.mxu0 0.0
    %5705 = vmatpush1.msra.mxu0 0.0
    %5706 = vmatprep.subr.mxu0 0.0
    %5707 = vmatpush1.msra.mxu0 0.0
    %5708 = vmatprep.subr.mxu0 0.0
    %5709 = vmatpush1.msra.mxu0 0.0
    %5710 = vmatprep.subr.mxu0 0.0
    %5711 = vmatpush1.msra.mxu0 0.0
    %5712 = vmatprep.subr.mxu0 0.0
    %5713 = vmatpush1.msra.mxu0 0.0
    %5714 = vmatprep.subr.mxu0 0.0
    %5715 = vmatpush1.msra.mxu0 0.0
    %5716 = vmatprep.subr.mxu0 0.0
    %5717 = vmatpush1.msra.mxu0 0.0
    %5718 = vmatprep.subr.mxu0 0.0
    %5719 = vmatpush1.msra.mxu0 0.0
    %5720 = vmatprep.subr.mxu0 0.0
    %5721 = vmatpush1.msra.mxu0 0.0
    %5722 = vmatprep.subr.mxu0 0.0
    %5723 = vmatpush1.msra.mxu0 0.0
    %5724 = vmatprep.subr.mxu0 0.0
    %5725 = vmatpush1.msra.mxu0 0.0
    %5726 = vmatprep.subr.mxu0 0.0
    %5727 = vmatpush1.msra.mxu0 0.0
    %5728 = vmatprep.mubr.f32.mxu0 0.0
    %5729 = vmatmul.mubr.f32.gmra.mrb[0].mxu0 %v5587
    %v5730 = vpop.f32.mrb[0].mxu0
    %v5731 = vadd.f32 0.0, %v5730
    %v5732 = vpop.f32.mrb[0].mxu0
    %v5733 = vadd.f32 0.0, %v5732
    %5734 = vdwg.mxu0
    %v5735 = vadd.f32 %v5589, %v5660
    %v5736 = vadd.f32 %v5590, %v5662
    %v5737 = vadd.f32 %v5591, %v5731
    %v5738 = vadd.f32 %v5592, %v5733
    %v5739 = vxor.u32 %v5735, 2147483648
    %v5740 = vmul.f32 %v5739, 1.442695
    %v5741 = vpow.pop %v5740
    %v5742 = vadd.f32 %v5741, 1.0
    %v5743 = vrcp.pop %v5742
    %v5744 = vmul.f32 1.0, %v5743
    %v5745 = vxor.u32 %v5736, 2147483648
    %v5746 = vmul.f32 %v5745, 1.442695
    %v5747 = vpow.pop %v5746
    %v5748 = vadd.f32 %v5747, 1.0
    %v5749 = vrcp.pop %v5748
    %v5750 = vmul.f32 1.0, %v5749
    %v5751 = vtanh.pop %v5737
    %v5752 = vxor.u32 %v5738, 2147483648
    %v5753 = vmul.f32 %v5752, 1.442695
    %v5754 = vpow.pop %v5753
    %v5755 = vadd.f32 %v5754, 1.0
    %v5756 = vrcp.pop %v5755
    %v5757 = vmul.f32 1.0, %v5756
    %v5758 = vmul.f32 %v5750, %v5585
    %v5759 = vmul.f32 %v5744, %v5751
    %v5760 = vadd.f32 %v5758, %v5759
    %v5761 = vtanh.pop %v5760
    %v5762 = vmul.f32 %v5757, %v5761
    %5763 = vst [vmem:[%s2395] sm:$0xff] %v5762
    %v5764 = vld [vmem:[%s2397] sm:$0xff]
    %v5765 = vld [vmem:[%s2397 + $0x8] sm:$0xff]
    %v5766 = vld [vmem:[%s2397 + $0x10] sm:$0xff]
    %v5767 = vld [vmem:[%s2397 + $0x18] sm:$0xff]
    %5768 = vmatprep.subr.mxu0 %v3526
    %5769 = vmatpush1.msra.mxu0 %v3525
    %5770 = vmatprep.subr.mxu0 %v3530
    %5771 = vmatpush1.msra.mxu0 %v3529
    %5772 = vmatprep.subr.mxu0 %v3534
    %5773 = vmatpush1.msra.mxu0 %v3533
    %5774 = vmatprep.subr.mxu0 %v3538
    %5775 = vmatpush1.msra.mxu0 %v3537
    %5776 = vmatprep.subr.mxu0 %v3542
    %5777 = vmatpush1.msra.mxu0 %v3541
    %5778 = vmatprep.subr.mxu0 %v3546
    %5779 = vmatpush1.msra.mxu0 %v3545
    %5780 = vmatprep.subr.mxu0 %v3550
    %5781 = vmatpush1.msra.mxu0 %v3549
    %5782 = vmatprep.subr.mxu0 %v3554
    %5783 = vmatpush1.msra.mxu0 %v3553
    %5784 = vmatprep.subr.mxu0 %v3558
    %5785 = vmatpush1.msra.mxu0 %v3557
    %5786 = vmatprep.subr.mxu0 %v3562
    %5787 = vmatpush1.msra.mxu0 %v3561
    %5788 = vmatprep.subr.mxu0 %v3566
    %5789 = vmatpush1.msra.mxu0 %v3565
    %5790 = vmatprep.subr.mxu0 %v3570
    %5791 = vmatpush1.msra.mxu0 %v3569
    %5792 = vmatprep.subr.mxu0 %v3574
    %5793 = vmatpush1.msra.mxu0 %v3573
    %5794 = vmatprep.subr.mxu0 %v3578
    %5795 = vmatpush1.msra.mxu0 %v3577
    %5796 = vmatprep.subr.mxu0 %v3582
    %5797 = vmatpush1.msra.mxu0 %v3581
    %5798 = vmatprep.subr.mxu0 %v3586
    %5799 = vmatpush1.msra.mxu0 %v3585
    %5800 = vmatprep.subr.mxu0 0.0
    %5801 = vmatpush1.msra.mxu0 0.0
    %5802 = vmatprep.subr.mxu0 0.0
    %5803 = vmatpush1.msra.mxu0 0.0
    %5804 = vmatprep.subr.mxu0 0.0
    %5805 = vmatpush1.msra.mxu0 0.0
    %5806 = vmatprep.subr.mxu0 0.0
    %5807 = vmatpush1.msra.mxu0 0.0
    %5808 = vmatprep.subr.mxu0 0.0
    %5809 = vmatpush1.msra.mxu0 0.0
    %5810 = vmatprep.subr.mxu0 0.0
    %5811 = vmatpush1.msra.mxu0 0.0
    %5812 = vmatprep.subr.mxu0 0.0
    %5813 = vmatpush1.msra.mxu0 0.0
    %5814 = vmatprep.subr.mxu0 0.0
    %5815 = vmatpush1.msra.mxu0 0.0
    %5816 = vmatprep.subr.mxu0 0.0
    %5817 = vmatpush1.msra.mxu0 0.0
    %5818 = vmatprep.subr.mxu0 0.0
    %5819 = vmatpush1.msra.mxu0 0.0
    %5820 = vmatprep.subr.mxu0 0.0
    %5821 = vmatpush1.msra.mxu0 0.0
    %5822 = vmatprep.subr.mxu0 0.0
    %5823 = vmatpush1.msra.mxu0 0.0
    %5824 = vmatprep.subr.mxu0 0.0
    %5825 = vmatpush1.msra.mxu0 0.0
    %5826 = vmatprep.subr.mxu0 0.0
    %5827 = vmatpush1.msra.mxu0 0.0
    %5828 = vmatprep.subr.mxu0 0.0
    %5829 = vmatpush1.msra.mxu0 0.0
    %5830 = vmatprep.subr.mxu0 0.0
    %5831 = vmatpush1.msra.mxu0 0.0
    %5832 = vmatprep.mubr.f32.mxu0 0.0
    %5833 = vmatmul.mubr.f32.gmra.mrb[0].mxu0 %v5762
    %v5834 = vpop.f32.mrb[0].mxu0
    %v5835 = vadd.f32 0.0, %v5834
    %v5836 = vpop.f32.mrb[0].mxu0
    %v5837 = vadd.f32 0.0, %v5836
    %5838 = vdwg.mxu0
    %5839 = vmatprep.subr.mxu0 %v3528
    %5840 = vmatpush1.msra.mxu0 %v3527
    %5841 = vmatprep.subr.mxu0 %v3532
    %5842 = vmatpush1.msra.mxu0 %v3531
    %5843 = vmatprep.subr.mxu0 %v3536
    %5844 = vmatpush1.msra.mxu0 %v3535
    %5845 = vmatprep.subr.mxu0 %v3540
    %5846 = vmatpush1.msra.mxu0 %v3539
    %5847 = vmatprep.subr.mxu0 %v3544
    %5848 = vmatpush1.msra.mxu0 %v3543
    %5849 = vmatprep.subr.mxu0 %v3548
    %5850 = vmatpush1.msra.mxu0 %v3547
    %5851 = vmatprep.subr.mxu0 %v3552
    %5852 = vmatpush1.msra.mxu0 %v3551
    %5853 = vmatprep.subr.mxu0 %v3556
    %5854 = vmatpush1.msra.mxu0 %v3555
    %5855 = vmatprep.subr.mxu0 %v3560
    %5856 = vmatpush1.msra.mxu0 %v3559
    %5857 = vmatprep.subr.mxu0 %v3564
    %5858 = vmatpush1.msra.mxu0 %v3563
    %5859 = vmatprep.subr.mxu0 %v3568
    %5860 = vmatpush1.msra.mxu0 %v3567
    %5861 = vmatprep.subr.mxu0 %v3572
    %5862 = vmatpush1.msra.mxu0 %v3571
    %5863 = vmatprep.subr.mxu0 %v3576
    %5864 = vmatpush1.msra.mxu0 %v3575
    %5865 = vmatprep.subr.mxu0 %v3580
    %5866 = vmatpush1.msra.mxu0 %v3579
    %5867 = vmatprep.subr.mxu0 %v3584
    %5868 = vmatpush1.msra.mxu0 %v3583
    %5869 = vmatprep.subr.mxu0 %v3588
    %5870 = vmatpush1.msra.mxu0 %v3587
    %5871 = vmatprep.subr.mxu0 0.0
    %5872 = vmatpush1.msra.mxu0 0.0
    %5873 = vmatprep.subr.mxu0 0.0
    %5874 = vmatpush1.msra.mxu0 0.0
    %5875 = vmatprep.subr.mxu0 0.0
    %5876 = vmatpush1.msra.mxu0 0.0
    %5877 = vmatprep.subr.mxu0 0.0
    %5878 = vmatpush1.msra.mxu0 0.0
    %5879 = vmatprep.subr.mxu0 0.0
    %5880 = vmatpush1.msra.mxu0 0.0
    %5881 = vmatprep.subr.mxu0 0.0
    %5882 = vmatpush1.msra.mxu0 0.0
    %5883 = vmatprep.subr.mxu0 0.0
    %5884 = vmatpush1.msra.mxu0 0.0
    %5885 = vmatprep.subr.mxu0 0.0
    %5886 = vmatpush1.msra.mxu0 0.0
    %5887 = vmatprep.subr.mxu0 0.0
    %5888 = vmatpush1.msra.mxu0 0.0
    %5889 = vmatprep.subr.mxu0 0.0
    %5890 = vmatpush1.msra.mxu0 0.0
    %5891 = vmatprep.subr.mxu0 0.0
    %5892 = vmatpush1.msra.mxu0 0.0
    %5893 = vmatprep.subr.mxu0 0.0
    %5894 = vmatpush1.msra.mxu0 0.0
    %5895 = vmatprep.subr.mxu0 0.0
    %5896 = vmatpush1.msra.mxu0 0.0
    %5897 = vmatprep.subr.mxu0 0.0
    %5898 = vmatpush1.msra.mxu0 0.0
    %5899 = vmatprep.subr.mxu0 0.0
    %5900 = vmatpush1.msra.mxu0 0.0
    %5901 = vmatprep.subr.mxu0 0.0
    %5902 = vmatpush1.msra.mxu0 0.0
    %5903 = vmatprep.mubr.f32.mxu0 0.0
    %5904 = vmatmul.mubr.f32.gmra.mrb[0].mxu0 %v5762
    %v5905 = vpop.f32.mrb[0].mxu0
    %v5906 = vadd.f32 0.0, %v5905
    %v5907 = vpop.f32.mrb[0].mxu0
    %v5908 = vadd.f32 0.0, %v5907
    %5909 = vdwg.mxu0
    %v5910 = vadd.f32 %v5764, %v5835
    %v5911 = vadd.f32 %v5765, %v5837
    %v5912 = vadd.f32 %v5766, %v5906
    %v5913 = vadd.f32 %v5767, %v5908
    %v5914 = vxor.u32 %v5910, 2147483648
    %v5915 = vmul.f32 %v5914, 1.442695
    %v5916 = vpow.pop %v5915
    %v5917 = vadd.f32 %v5916, 1.0
    %v5918 = vrcp.pop %v5917
    %v5919 = vmul.f32 1.0, %v5918
    %v5920 = vxor.u32 %v5911, 2147483648
    %v5921 = vmul.f32 %v5920, 1.442695
    %v5922 = vpow.pop %v5921
    %v5923 = vadd.f32 %v5922, 1.0
    %v5924 = vrcp.pop %v5923
    %v5925 = vmul.f32 1.0, %v5924
    %v5926 = vtanh.pop %v5912
    %v5927 = vxor.u32 %v5913, 2147483648
    %v5928 = vmul.f32 %v5927, 1.442695
    %v5929 = vpow.pop %v5928
    %v5930 = vadd.f32 %v5929, 1.0
    %v5931 = vrcp.pop %v5930
    %v5932 = vmul.f32 1.0, %v5931
    %v5933 = vmul.f32 %v5925, %v5760
    %v5934 = vmul.f32 %v5919, %v5926
    %v5935 = vadd.f32 %v5933, %v5934
    %v5936 = vtanh.pop %v5935
    %v5937 = vmul.f32 %v5932, %v5936
    %5938 = vst [vmem:[%s2572] sm:$0xff] %v5937
    %v5939 = vld [vmem:[%s2574] sm:$0xff]
    %v5940 = vld [vmem:[%s2574 + $0x8] sm:$0xff]
    %v5941 = vld [vmem:[%s2574 + $0x10] sm:$0xff]
    %v5942 = vld [vmem:[%s2574 + $0x18] sm:$0xff]
    %5943 = vmatprep.subr.mxu0 %v3526
    %5944 = vmatpush1.msra.mxu0 %v3525
    %5945 = vmatprep.subr.mxu0 %v3530
    %5946 = vmatpush1.msra.mxu0 %v3529
    %5947 = vmatprep.subr.mxu0 %v3534
    %5948 = vmatpush1.msra.mxu0 %v3533
    %5949 = vmatprep.subr.mxu0 %v3538
    %5950 = vmatpush1.msra.mxu0 %v3537
    %5951 = vmatprep.subr.mxu0 %v3542
    %5952 = vmatpush1.msra.mxu0 %v3541
    %5953 = vmatprep.subr.mxu0 %v3546
    %5954 = vmatpush1.msra.mxu0 %v3545
    %5955 = vmatprep.subr.mxu0 %v3550
    %5956 = vmatpush1.msra.mxu0 %v3549
    %5957 = vmatprep.subr.mxu0 %v3554
    %5958 = vmatpush1.msra.mxu0 %v3553
    %5959 = vmatprep.subr.mxu0 %v3558
    %5960 = vmatpush1.msra.mxu0 %v3557
    %5961 = vmatprep.subr.mxu0 %v3562
    %5962 = vmatpush1.msra.mxu0 %v3561
    %5963 = vmatprep.subr.mxu0 %v3566
    %5964 = vmatpush1.msra.mxu0 %v3565
    %5965 = vmatprep.subr.mxu0 %v3570
    %5966 = vmatpush1.msra.mxu0 %v3569
    %5967 = vmatprep.subr.mxu0 %v3574
    %5968 = vmatpush1.msra.mxu0 %v3573
    %5969 = vmatprep.subr.mxu0 %v3578
    %5970 = vmatpush1.msra.mxu0 %v3577
    %5971 = vmatprep.subr.mxu0 %v3582
    %5972 = vmatpush1.msra.mxu0 %v3581
    %5973 = vmatprep.subr.mxu0 %v3586
    %5974 = vmatpush1.msra.mxu0 %v3585
    %5975 = vmatprep.subr.mxu0 0.0
    %5976 = vmatpush1.msra.mxu0 0.0
    %5977 = vmatprep.subr.mxu0 0.0
    %5978 = vmatpush1.msra.mxu0 0.0
    %5979 = vmatprep.subr.mxu0 0.0
    %5980 = vmatpush1.msra.mxu0 0.0
    %5981 = vmatprep.subr.mxu0 0.0
    %5982 = vmatpush1.msra.mxu0 0.0
    %5983 = vmatprep.subr.mxu0 0.0
    %5984 = vmatpush1.msra.mxu0 0.0
    %5985 = vmatprep.subr.mxu0 0.0
    %5986 = vmatpush1.msra.mxu0 0.0
    %5987 = vmatprep.subr.mxu0 0.0
    %5988 = vmatpush1.msra.mxu0 0.0
    %5989 = vmatprep.subr.mxu0 0.0
    %5990 = vmatpush1.msra.mxu0 0.0
    %5991 = vmatprep.subr.mxu0 0.0
    %5992 = vmatpush1.msra.mxu0 0.0
    %5993 = vmatprep.subr.mxu0 0.0
    %5994 = vmatpush1.msra.mxu0 0.0
    %5995 = vmatprep.subr.mxu0 0.0
    %5996 = vmatpush1.msra.mxu0 0.0
    %5997 = vmatprep.subr.mxu0 0.0
    %5998 = vmatpush1.msra.mxu0 0.0
    %5999 = vmatprep.subr.mxu0 0.0
    %6000 = vmatpush1.msra.mxu0 0.0
    %6001 = vmatprep.subr.mxu0 0.0
    %6002 = vmatpush1.msra.mxu0 0.0
    %6003 = vmatprep.subr.mxu0 0.0
    %6004 = vmatpush1.msra.mxu0 0.0
    %6005 = vmatprep.subr.mxu0 0.0
    %6006 = vmatpush1.msra.mxu0 0.0
    %6007 = vmatprep.mubr.f32.mxu0 0.0
    %6008 = vmatmul.mubr.f32.gmra.mrb[0].mxu0 %v5937
    %v6009 = vpop.f32.mrb[0].mxu0
    %v6010 = vadd.f32 0.0, %v6009
    %v6011 = vpop.f32.mrb[0].mxu0
    %v6012 = vadd.f32 0.0, %v6011
    %6013 = vdwg.mxu0
    %6014 = vmatprep.subr.mxu0 %v3528
    %6015 = vmatpush1.msra.mxu0 %v3527
    %6016 = vmatprep.subr.mxu0 %v3532
    %6017 = vmatpush1.msra.mxu0 %v3531
    %6018 = vmatprep.subr.mxu0 %v3536
    %6019 = vmatpush1.msra.mxu0 %v3535
    %6020 = vmatprep.subr.mxu0 %v3540
    %6021 = vmatpush1.msra.mxu0 %v3539
    %6022 = vmatprep.subr.mxu0 %v3544
    %6023 = vmatpush1.msra.mxu0 %v3543
    %6024 = vmatprep.subr.mxu0 %v3548
    %6025 = vmatpush1.msra.mxu0 %v3547
    %6026 = vmatprep.subr.mxu0 %v3552
    %6027 = vmatpush1.msra.mxu0 %v3551
    %6028 = vmatprep.subr.mxu0 %v3556
    %6029 = vmatpush1.msra.mxu0 %v3555
    %6030 = vmatprep.subr.mxu0 %v3560
    %6031 = vmatpush1.msra.mxu0 %v3559
    %6032 = vmatprep.subr.mxu0 %v3564
    %6033 = vmatpush1.msra.mxu0 %v3563
    %6034 = vmatprep.subr.mxu0 %v3568
    %6035 = vmatpush1.msra.mxu0 %v3567
    %6036 = vmatprep.subr.mxu0 %v3572
    %6037 = vmatpush1.msra.mxu0 %v3571
    %6038 = vmatprep.subr.mxu0 %v3576
    %6039 = vmatpush1.msra.mxu0 %v3575
    %6040 = vmatprep.subr.mxu0 %v3580
    %6041 = vmatpush1.msra.mxu0 %v3579
    %6042 = vmatprep.subr.mxu0 %v3584
    %6043 = vmatpush1.msra.mxu0 %v3583
    %6044 = vmatprep.subr.mxu0 %v3588
    %6045 = vmatpush1.msra.mxu0 %v3587
    %6046 = vmatprep.subr.mxu0 0.0
    %6047 = vmatpush1.msra.mxu0 0.0
    %6048 = vmatprep.subr.mxu0 0.0
    %6049 = vmatpush1.msra.mxu0 0.0
    %6050 = vmatprep.subr.mxu0 0.0
    %6051 = vmatpush1.msra.mxu0 0.0
    %6052 = vmatprep.subr.mxu0 0.0
    %6053 = vmatpush1.msra.mxu0 0.0
    %6054 = vmatprep.subr.mxu0 0.0
    %6055 = vmatpush1.msra.mxu0 0.0
    %6056 = vmatprep.subr.mxu0 0.0
    %6057 = vmatpush1.msra.mxu0 0.0
    %6058 = vmatprep.subr.mxu0 0.0
    %6059 = vmatpush1.msra.mxu0 0.0
    %6060 = vmatprep.subr.mxu0 0.0
    %6061 = vmatpush1.msra.mxu0 0.0
    %6062 = vmatprep.subr.mxu0 0.0
    %6063 = vmatpush1.msra.mxu0 0.0
    %6064 = vmatprep.subr.mxu0 0.0
    %6065 = vmatpush1.msra.mxu0 0.0
    %6066 = vmatprep.subr.mxu0 0.0
    %6067 = vmatpush1.msra.mxu0 0.0
    %6068 = vmatprep.subr.mxu0 0.0
    %6069 = vmatpush1.msra.mxu0 0.0
    %6070 = vmatprep.subr.mxu0 0.0
    %6071 = vmatpush1.msra.mxu0 0.0
    %6072 = vmatprep.subr.mxu0 0.0
    %6073 = vmatpush1.msra.mxu0 0.0
    %6074 = vmatprep.subr.mxu0 0.0
    %6075 = vmatpush1.msra.mxu0 0.0
    %6076 = vmatprep.subr.mxu0 0.0
    %6077 = vmatpush1.msra.mxu0 0.0
    %6078 = vmatprep.mubr.f32.mxu0 0.0
    %6079 = vmatmul.mubr.f32.gmra.mrb[0].mxu0 %v5937
    %v6080 = vpop.f32.mrb[0].mxu0
    %v6081 = vadd.f32 0.0, %v6080
    %v6082 = vpop.f32.mrb[0].mxu0
    %v6083 = vadd.f32 0.0, %v6082
    %6084 = vdwg.mxu0
    %v6085 = vadd.f32 %v5939, %v6010
    %v6086 = vadd.f32 %v5940, %v6012
    %v6087 = vadd.f32 %v5941, %v6081
    %v6088 = vadd.f32 %v5942, %v6083
    %v6089 = vxor.u32 %v6085, 2147483648
    %v6090 = vmul.f32 %v6089, 1.442695
    %v6091 = vpow.pop %v6090
    %v6092 = vadd.f32 %v6091, 1.0
    %v6093 = vrcp.pop %v6092
    %v6094 = vmul.f32 1.0, %v6093
    %v6095 = vxor.u32 %v6086, 2147483648
    %v6096 = vmul.f32 %v6095, 1.442695
    %v6097 = vpow.pop %v6096
    %v6098 = vadd.f32 %v6097, 1.0
    %v6099 = vrcp.pop %v6098
    %v6100 = vmul.f32 1.0, %v6099
    %v6101 = vtanh.pop %v6087
    %v6102 = vxor.u32 %v6088, 2147483648
    %v6103 = vmul.f32 %v6102, 1.442695
    %v6104 = vpow.pop %v6103
    %v6105 = vadd.f32 %v6104, 1.0
    %v6106 = vrcp.pop %v6105
    %v6107 = vmul.f32 1.0, %v6106
    %v6108 = vmul.f32 %v6100, %v5935
    %v6109 = vmul.f32 %v6094, %v6101
    %v6110 = vadd.f32 %v6108, %v6109
    %v6111 = vtanh.pop %v6110
    %v6112 = vmul.f32 %v6107, %v6111
    %6113 = vst [vmem:[%s2749] sm:$0xff] %v6112
    %v6114 = vld [vmem:[%s2751] sm:$0xff]
    %v6115 = vld [vmem:[%s2751 + $0x8] sm:$0xff]
    %v6116 = vld [vmem:[%s2751 + $0x10] sm:$0xff]
    %v6117 = vld [vmem:[%s2751 + $0x18] sm:$0xff]
    %6118 = vmatprep.subr.mxu0 %v3526
    %6119 = vmatpush1.msra.mxu0 %v3525
    %6120 = vmatprep.subr.mxu0 %v3530
    %6121 = vmatpush1.msra.mxu0 %v3529
    %6122 = vmatprep.subr.mxu0 %v3534
    %6123 = vmatpush1.msra.mxu0 %v3533
    %6124 = vmatprep.subr.mxu0 %v3538
    %6125 = vmatpush1.msra.mxu0 %v3537
    %6126 = vmatprep.subr.mxu0 %v3542
    %6127 = vmatpush1.msra.mxu0 %v3541
    %6128 = vmatprep.subr.mxu0 %v3546
    %6129 = vmatpush1.msra.mxu0 %v3545
    %6130 = vmatprep.subr.mxu0 %v3550
    %6131 = vmatpush1.msra.mxu0 %v3549
    %6132 = vmatprep.subr.mxu0 %v3554
    %6133 = vmatpush1.msra.mxu0 %v3553
    %6134 = vmatprep.subr.mxu0 %v3558
    %6135 = vmatpush1.msra.mxu0 %v3557
    %6136 = vmatprep.subr.mxu0 %v3562
    %6137 = vmatpush1.msra.mxu0 %v3561
    %6138 = vmatprep.subr.mxu0 %v3566
    %6139 = vmatpush1.msra.mxu0 %v3565
    %6140 = vmatprep.subr.mxu0 %v3570
    %6141 = vmatpush1.msra.mxu0 %v3569
    %6142 = vmatprep.subr.mxu0 %v3574
    %6143 = vmatpush1.msra.mxu0 %v3573
    %6144 = vmatprep.subr.mxu0 %v3578
    %6145 = vmatpush1.msra.mxu0 %v3577
    %6146 = vmatprep.subr.mxu0 %v3582
    %6147 = vmatpush1.msra.mxu0 %v3581
    %6148 = vmatprep.subr.mxu0 %v3586
    %6149 = vmatpush1.msra.mxu0 %v3585
    %6150 = vmatprep.subr.mxu0 0.0
    %6151 = vmatpush1.msra.mxu0 0.0
    %6152 = vmatprep.subr.mxu0 0.0
    %6153 = vmatpush1.msra.mxu0 0.0
    %6154 = vmatprep.subr.mxu0 0.0
    %6155 = vmatpush1.msra.mxu0 0.0
    %6156 = vmatprep.subr.mxu0 0.0
    %6157 = vmatpush1.msra.mxu0 0.0
    %6158 = vmatprep.subr.mxu0 0.0
    %6159 = vmatpush1.msra.mxu0 0.0
    %6160 = vmatprep.subr.mxu0 0.0
    %6161 = vmatpush1.msra.mxu0 0.0
    %6162 = vmatprep.subr.mxu0 0.0
    %6163 = vmatpush1.msra.mxu0 0.0
    %6164 = vmatprep.subr.mxu0 0.0
    %6165 = vmatpush1.msra.mxu0 0.0
    %6166 = vmatprep.subr.mxu0 0.0
    %6167 = vmatpush1.msra.mxu0 0.0
    %6168 = vmatprep.subr.mxu0 0.0
    %6169 = vmatpush1.msra.mxu0 0.0
    %6170 = vmatprep.subr.mxu0 0.0
    %6171 = vmatpush1.msra.mxu0 0.0
    %6172 = vmatprep.subr.mxu0 0.0
    %6173 = vmatpush1.msra.mxu0 0.0
    %6174 = vmatprep.subr.mxu0 0.0
    %6175 = vmatpush1.msra.mxu0 0.0
    %6176 = vmatprep.subr.mxu0 0.0
    %6177 = vmatpush1.msra.mxu0 0.0
    %6178 = vmatprep.subr.mxu0 0.0
    %6179 = vmatpush1.msra.mxu0 0.0
    %6180 = vmatprep.subr.mxu0 0.0
    %6181 = vmatpush1.msra.mxu0 0.0
    %6182 = vmatprep.mubr.f32.mxu0 0.0
    %6183 = vmatmul.mubr.f32.gmra.mrb[0].mxu0 %v6112
    %v6184 = vpop.f32.mrb[0].mxu0
    %v6185 = vadd.f32 0.0, %v6184
    %v6186 = vpop.f32.mrb[0].mxu0
    %v6187 = vadd.f32 0.0, %v6186
    %6188 = vdwg.mxu0
    %6189 = vmatprep.subr.mxu0 %v3528
    %6190 = vmatpush1.msra.mxu0 %v3527
    %6191 = vmatprep.subr.mxu0 %v3532
    %6192 = vmatpush1.msra.mxu0 %v3531
    %6193 = vmatprep.subr.mxu0 %v3536
    %6194 = vmatpush1.msra.mxu0 %v3535
    %6195 = vmatprep.subr.mxu0 %v3540
    %6196 = vmatpush1.msra.mxu0 %v3539
    %6197 = vmatprep.subr.mxu0 %v3544
    %6198 = vmatpush1.msra.mxu0 %v3543
    %6199 = vmatprep.subr.mxu0 %v3548
    %6200 = vmatpush1.msra.mxu0 %v3547
    %6201 = vmatprep.subr.mxu0 %v3552
    %6202 = vmatpush1.msra.mxu0 %v3551
    %6203 = vmatprep.subr.mxu0 %v3556
    %6204 = vmatpush1.msra.mxu0 %v3555
    %6205 = vmatprep.subr.mxu0 %v3560
    %6206 = vmatpush1.msra.mxu0 %v3559
    %6207 = vmatprep.subr.mxu0 %v3564
    %6208 = vmatpush1.msra.mxu0 %v3563
    %6209 = vmatprep.subr.mxu0 %v3568
    %6210 = vmatpush1.msra.mxu0 %v3567
    %6211 = vmatprep.subr.mxu0 %v3572
    %6212 = vmatpush1.msra.mxu0 %v3571
    %6213 = vmatprep.subr.mxu0 %v3576
    %6214 = vmatpush1.msra.mxu0 %v3575
    %6215 = vmatprep.subr.mxu0 %v3580
    %6216 = vmatpush1.msra.mxu0 %v3579
    %6217 = vmatprep.subr.mxu0 %v3584
    %6218 = vmatpush1.msra.mxu0 %v3583
    %6219 = vmatprep.subr.mxu0 %v3588
    %6220 = vmatpush1.msra.mxu0 %v3587
    %6221 = vmatprep.subr.mxu0 0.0
    %6222 = vmatpush1.msra.mxu0 0.0
    %6223 = vmatprep.subr.mxu0 0.0
    %6224 = vmatpush1.msra.mxu0 0.0
    %6225 = vmatprep.subr.mxu0 0.0
    %6226 = vmatpush1.msra.mxu0 0.0
    %6227 = vmatprep.subr.mxu0 0.0
    %6228 = vmatpush1.msra.mxu0 0.0
    %6229 = vmatprep.subr.mxu0 0.0
    %6230 = vmatpush1.msra.mxu0 0.0
    %6231 = vmatprep.subr.mxu0 0.0
    %6232 = vmatpush1.msra.mxu0 0.0
    %6233 = vmatprep.subr.mxu0 0.0
    %6234 = vmatpush1.msra.mxu0 0.0
    %6235 = vmatprep.subr.mxu0 0.0
    %6236 = vmatpush1.msra.mxu0 0.0
    %6237 = vmatprep.subr.mxu0 0.0
    %6238 = vmatpush1.msra.mxu0 0.0
    %6239 = vmatprep.subr.mxu0 0.0
    %6240 = vmatpush1.msra.mxu0 0.0
    %6241 = vmatprep.subr.mxu0 0.0
    %6242 = vmatpush1.msra.mxu0 0.0
    %6243 = vmatprep.subr.mxu0 0.0
    %6244 = vmatpush1.msra.mxu0 0.0
    %6245 = vmatprep.subr.mxu0 0.0
    %6246 = vmatpush1.msra.mxu0 0.0
    %6247 = vmatprep.subr.mxu0 0.0
    %6248 = vmatpush1.msra.mxu0 0.0
    %6249 = vmatprep.subr.mxu0 0.0
    %6250 = vmatpush1.msra.mxu0 0.0
    %6251 = vmatprep.subr.mxu0 0.0
    %6252 = vmatpush1.msra.mxu0 0.0
    %6253 = vmatprep.mubr.f32.mxu0 0.0
    %6254 = vmatmul.mubr.f32.gmra.mrb[0].mxu0 %v6112
    %v6255 = vpop.f32.mrb[0].mxu0
    %v6256 = vadd.f32 0.0, %v6255
    %v6257 = vpop.f32.mrb[0].mxu0
    %v6258 = vadd.f32 0.0, %v6257
    %6259 = vdwg.mxu0
    %v6260 = vadd.f32 %v6114, %v6185
    %v6261 = vadd.f32 %v6115, %v6187
    %v6262 = vadd.f32 %v6116, %v6256
    %v6263 = vadd.f32 %v6117, %v6258
    %v6264 = vxor.u32 %v6260, 2147483648
    %v6265 = vmul.f32 %v6264, 1.442695
    %v6266 = vpow.pop %v6265
    %v6267 = vadd.f32 %v6266, 1.0
    %v6268 = vrcp.pop %v6267
    %v6269 = vmul.f32 1.0, %v6268
    %v6270 = vxor.u32 %v6261, 2147483648
    %v6271 = vmul.f32 %v6270, 1.442695
    %v6272 = vpow.pop %v6271
    %v6273 = vadd.f32 %v6272, 1.0
    %v6274 = vrcp.pop %v6273
    %v6275 = vmul.f32 1.0, %v6274
    %v6276 = vtanh.pop %v6262
    %v6277 = vxor.u32 %v6263, 2147483648
    %v6278 = vmul.f32 %v6277, 1.442695
    %v6279 = vpow.pop %v6278
    %v6280 = vadd.f32 %v6279, 1.0
    %v6281 = vrcp.pop %v6280
    %v6282 = vmul.f32 1.0, %v6281
    %v6283 = vmul.f32 %v6275, %v6110
    %v6284 = vmul.f32 %v6269, %v6276
    %v6285 = vadd.f32 %v6283, %v6284
    %v6286 = vtanh.pop %v6285
    %v6287 = vmul.f32 %v6282, %v6286
    %6288 = vst [vmem:[%s2926] sm:$0xff] %v6287
    %v6289 = vld [vmem:[%s2928] sm:$0xff]
    %v6290 = vld [vmem:[%s2928 + $0x8] sm:$0xff]
    %v6291 = vld [vmem:[%s2928 + $0x10] sm:$0xff]
    %v6292 = vld [vmem:[%s2928 + $0x18] sm:$0xff]
    %6293 = vmatprep.subr.mxu0 %v3526
    %6294 = vmatpush1.msra.mxu0 %v3525
    %6295 = vmatprep.subr.mxu0 %v3530
    %6296 = vmatpush1.msra.mxu0 %v3529
    %6297 = vmatprep.subr.mxu0 %v3534
    %6298 = vmatpush1.msra.mxu0 %v3533
    %6299 = vmatprep.subr.mxu0 %v3538
    %6300 = vmatpush1.msra.mxu0 %v3537
    %6301 = vmatprep.subr.mxu0 %v3542
    %6302 = vmatpush1.msra.mxu0 %v3541
    %6303 = vmatprep.subr.mxu0 %v3546
    %6304 = vmatpush1.msra.mxu0 %v3545
    %6305 = vmatprep.subr.mxu0 %v3550
    %6306 = vmatpush1.msra.mxu0 %v3549
    %6307 = vmatprep.subr.mxu0 %v3554
    %6308 = vmatpush1.msra.mxu0 %v3553
    %6309 = vmatprep.subr.mxu0 %v3558
    %6310 = vmatpush1.msra.mxu0 %v3557
    %6311 = vmatprep.subr.mxu0 %v3562
    %6312 = vmatpush1.msra.mxu0 %v3561
    %6313 = vmatprep.subr.mxu0 %v3566
    %6314 = vmatpush1.msra.mxu0 %v3565
    %6315 = vmatprep.subr.mxu0 %v3570
    %6316 = vmatpush1.msra.mxu0 %v3569
    %6317 = vmatprep.subr.mxu0 %v3574
    %6318 = vmatpush1.msra.mxu0 %v3573
    %6319 = vmatprep.subr.mxu0 %v3578
    %6320 = vmatpush1.msra.mxu0 %v3577
    %6321 = vmatprep.subr.mxu0 %v3582
    %6322 = vmatpush1.msra.mxu0 %v3581
    %6323 = vmatprep.subr.mxu0 %v3586
    %6324 = vmatpush1.msra.mxu0 %v3585
    %6325 = vmatprep.subr.mxu0 0.0
    %6326 = vmatpush1.msra.mxu0 0.0
    %6327 = vmatprep.subr.mxu0 0.0
    %6328 = vmatpush1.msra.mxu0 0.0
    %6329 = vmatprep.subr.mxu0 0.0
    %6330 = vmatpush1.msra.mxu0 0.0
    %6331 = vmatprep.subr.mxu0 0.0
    %6332 = vmatpush1.msra.mxu0 0.0
    %6333 = vmatprep.subr.mxu0 0.0
    %6334 = vmatpush1.msra.mxu0 0.0
    %6335 = vmatprep.subr.mxu0 0.0
    %6336 = vmatpush1.msra.mxu0 0.0
    %6337 = vmatprep.subr.mxu0 0.0
    %6338 = vmatpush1.msra.mxu0 0.0
    %6339 = vmatprep.subr.mxu0 0.0
    %6340 = vmatpush1.msra.mxu0 0.0
    %6341 = vmatprep.subr.mxu0 0.0
    %6342 = vmatpush1.msra.mxu0 0.0
    %6343 = vmatprep.subr.mxu0 0.0
    %6344 = vmatpush1.msra.mxu0 0.0
    %6345 = vmatprep.subr.mxu0 0.0
    %6346 = vmatpush1.msra.mxu0 0.0
    %6347 = vmatprep.subr.mxu0 0.0
    %6348 = vmatpush1.msra.mxu0 0.0
    %6349 = vmatprep.subr.mxu0 0.0
    %6350 = vmatpush1.msra.mxu0 0.0
    %6351 = vmatprep.subr.mxu0 0.0
    %6352 = vmatpush1.msra.mxu0 0.0
    %6353 = vmatprep.subr.mxu0 0.0
    %6354 = vmatpush1.msra.mxu0 0.0
    %6355 = vmatprep.subr.mxu0 0.0
    %6356 = vmatpush1.msra.mxu0 0.0
    %6357 = vmatprep.mubr.f32.mxu0 0.0
    %6358 = vmatmul.mubr.f32.gmra.mrb[0].mxu0 %v6287
    %v6359 = vpop.f32.mrb[0].mxu0
    %v6360 = vadd.f32 0.0, %v6359
    %v6361 = vpop.f32.mrb[0].mxu0
    %v6362 = vadd.f32 0.0, %v6361
    %6363 = vdwg.mxu0
    %6364 = vmatprep.subr.mxu0 %v3528
    %6365 = vmatpush1.msra.mxu0 %v3527
    %6366 = vmatprep.subr.mxu0 %v3532
    %6367 = vmatpush1.msra.mxu0 %v3531
    %6368 = vmatprep.subr.mxu0 %v3536
    %6369 = vmatpush1.msra.mxu0 %v3535
    %6370 = vmatprep.subr.mxu0 %v3540
    %6371 = vmatpush1.msra.mxu0 %v3539
    %6372 = vmatprep.subr.mxu0 %v3544
    %6373 = vmatpush1.msra.mxu0 %v3543
    %6374 = vmatprep.subr.mxu0 %v3548
    %6375 = vmatpush1.msra.mxu0 %v3547
    %6376 = vmatprep.subr.mxu0 %v3552
    %6377 = vmatpush1.msra.mxu0 %v3551
    %6378 = vmatprep.subr.mxu0 %v3556
    %6379 = vmatpush1.msra.mxu0 %v3555
    %6380 = vmatprep.subr.mxu0 %v3560
    %6381 = vmatpush1.msra.mxu0 %v3559
    %6382 = vmatprep.subr.mxu0 %v3564
    %6383 = vmatpush1.msra.mxu0 %v3563
    %6384 = vmatprep.subr.mxu0 %v3568
    %6385 = vmatpush1.msra.mxu0 %v3567
    %6386 = vmatprep.subr.mxu0 %v3572
    %6387 = vmatpush1.msra.mxu0 %v3571
    %6388 = vmatprep.subr.mxu0 %v3576
    %6389 = vmatpush1.msra.mxu0 %v3575
    %6390 = vmatprep.subr.mxu0 %v3580
    %6391 = vmatpush1.msra.mxu0 %v3579
    %6392 = vmatprep.subr.mxu0 %v3584
    %6393 = vmatpush1.msra.mxu0 %v3583
    %6394 = vmatprep.subr.mxu0 %v3588
    %6395 = vmatpush1.msra.mxu0 %v3587
    %6396 = vmatprep.subr.mxu0 0.0
    %6397 = vmatpush1.msra.mxu0 0.0
    %6398 = vmatprep.subr.mxu0 0.0
    %6399 = vmatpush1.msra.mxu0 0.0
    %6400 = vmatprep.subr.mxu0 0.0
    %6401 = vmatpush1.msra.mxu0 0.0
    %6402 = vmatprep.subr.mxu0 0.0
    %6403 = vmatpush1.msra.mxu0 0.0
    %6404 = vmatprep.subr.mxu0 0.0
    %6405 = vmatpush1.msra.mxu0 0.0
    %6406 = vmatprep.subr.mxu0 0.0
    %6407 = vmatpush1.msra.mxu0 0.0
    %6408 = vmatprep.subr.mxu0 0.0
    %6409 = vmatpush1.msra.mxu0 0.0
    %6410 = vmatprep.subr.mxu0 0.0
    %6411 = vmatpush1.msra.mxu0 0.0
    %6412 = vmatprep.subr.mxu0 0.0
    %6413 = vmatpush1.msra.mxu0 0.0
    %6414 = vmatprep.subr.mxu0 0.0
    %6415 = vmatpush1.msra.mxu0 0.0
    %6416 = vmatprep.subr.mxu0 0.0
    %6417 = vmatpush1.msra.mxu0 0.0
    %6418 = vmatprep.subr.mxu0 0.0
    %6419 = vmatpush1.msra.mxu0 0.0
    %6420 = vmatprep.subr.mxu0 0.0
    %6421 = vmatpush1.msra.mxu0 0.0
    %6422 = vmatprep.subr.mxu0 0.0
    %6423 = vmatpush1.msra.mxu0 0.0
    %6424 = vmatprep.subr.mxu0 0.0
    %6425 = vmatpush1.msra.mxu0 0.0
    %6426 = vmatprep.subr.mxu0 0.0
    %6427 = vmatpush1.msra.mxu0 0.0
    %6428 = vmatprep.mubr.f32.mxu0 0.0
    %6429 = vmatmul.mubr.f32.gmra.mrb[0].mxu0 %v6287
    %v6430 = vpop.f32.mrb[0].mxu0
    %v6431 = vadd.f32 0.0, %v6430
    %v6432 = vpop.f32.mrb[0].mxu0
    %v6433 = vadd.f32 0.0, %v6432
    %6434 = vdwg.mxu0
    %v6435 = vadd.f32 %v6289, %v6360
    %v6436 = vadd.f32 %v6290, %v6362
    %v6437 = vadd.f32 %v6291, %v6431
    %v6438 = vadd.f32 %v6292, %v6433
    %v6439 = vxor.u32 %v6435, 2147483648
    %v6440 = vmul.f32 %v6439, 1.442695
    %v6441 = vpow.pop %v6440
    %v6442 = vadd.f32 %v6441, 1.0
    %v6443 = vrcp.pop %v6442
    %v6444 = vmul.f32 1.0, %v6443
    %v6445 = vxor.u32 %v6436, 2147483648
    %v6446 = vmul.f32 %v6445, 1.442695
    %v6447 = vpow.pop %v6446
    %v6448 = vadd.f32 %v6447, 1.0
    %v6449 = vrcp.pop %v6448
    %v6450 = vmul.f32 1.0, %v6449
    %v6451 = vtanh.pop %v6437
    %v6452 = vxor.u32 %v6438, 2147483648
    %v6453 = vmul.f32 %v6452, 1.442695
    %v6454 = vpow.pop %v6453
    %v6455 = vadd.f32 %v6454, 1.0
    %v6456 = vrcp.pop %v6455
    %v6457 = vmul.f32 1.0, %v6456
    %v6458 = vmul.f32 %v6450, %v6285
    %v6459 = vmul.f32 %v6444, %v6451
    %v6460 = vadd.f32 %v6458, %v6459
    %v6461 = vtanh.pop %v6460
    %v6462 = vmul.f32 %v6457, %v6461
    %6463 = vst [vmem:[%s3103] sm:$0xff] %v6462
    %v6464 = vld [vmem:[%s3105] sm:$0xff]
    %v6465 = vld [vmem:[%s3105 + $0x8] sm:$0xff]
    %v6466 = vld [vmem:[%s3105 + $0x10] sm:$0xff]
    %v6467 = vld [vmem:[%s3105 + $0x18] sm:$0xff]
    %6468 = vmatprep.subr.mxu0 %v3526
    %6469 = vmatpush1.msra.mxu0 %v3525
    %6470 = vmatprep.subr.mxu0 %v3530
    %6471 = vmatpush1.msra.mxu0 %v3529
    %6472 = vmatprep.subr.mxu0 %v3534
    %6473 = vmatpush1.msra.mxu0 %v3533
    %6474 = vmatprep.subr.mxu0 %v3538
    %6475 = vmatpush1.msra.mxu0 %v3537
    %6476 = vmatprep.subr.mxu0 %v3542
    %6477 = vmatpush1.msra.mxu0 %v3541
    %6478 = vmatprep.subr.mxu0 %v3546
    %6479 = vmatpush1.msra.mxu0 %v3545
    %6480 = vmatprep.subr.mxu0 %v3550
    %6481 = vmatpush1.msra.mxu0 %v3549
    %6482 = vmatprep.subr.mxu0 %v3554
    %6483 = vmatpush1.msra.mxu0 %v3553
    %6484 = vmatprep.subr.mxu0 %v3558
    %6485 = vmatpush1.msra.mxu0 %v3557
    %6486 = vmatprep.subr.mxu0 %v3562
    %6487 = vmatpush1.msra.mxu0 %v3561
    %6488 = vmatprep.subr.mxu0 %v3566
    %6489 = vmatpush1.msra.mxu0 %v3565
    %6490 = vmatprep.subr.mxu0 %v3570
    %6491 = vmatpush1.msra.mxu0 %v3569
    %6492 = vmatprep.subr.mxu0 %v3574
    %6493 = vmatpush1.msra.mxu0 %v3573
    %6494 = vmatprep.subr.mxu0 %v3578
    %6495 = vmatpush1.msra.mxu0 %v3577
    %6496 = vmatprep.subr.mxu0 %v3582
    %6497 = vmatpush1.msra.mxu0 %v3581
    %6498 = vmatprep.subr.mxu0 %v3586
    %6499 = vmatpush1.msra.mxu0 %v3585
    %6500 = vmatprep.subr.mxu0 0.0
    %6501 = vmatpush1.msra.mxu0 0.0
    %6502 = vmatprep.subr.mxu0 0.0
    %6503 = vmatpush1.msra.mxu0 0.0
    %6504 = vmatprep.subr.mxu0 0.0
    %6505 = vmatpush1.msra.mxu0 0.0
    %6506 = vmatprep.subr.mxu0 0.0
    %6507 = vmatpush1.msra.mxu0 0.0
    %6508 = vmatprep.subr.mxu0 0.0
    %6509 = vmatpush1.msra.mxu0 0.0
    %6510 = vmatprep.subr.mxu0 0.0
    %6511 = vmatpush1.msra.mxu0 0.0
    %6512 = vmatprep.subr.mxu0 0.0
    %6513 = vmatpush1.msra.mxu0 0.0
    %6514 = vmatprep.subr.mxu0 0.0
    %6515 = vmatpush1.msra.mxu0 0.0
    %6516 = vmatprep.subr.mxu0 0.0
    %6517 = vmatpush1.msra.mxu0 0.0
    %6518 = vmatprep.subr.mxu0 0.0
    %6519 = vmatpush1.msra.mxu0 0.0
    %6520 = vmatprep.subr.mxu0 0.0
    %6521 = vmatpush1.msra.mxu0 0.0
    %6522 = vmatprep.subr.mxu0 0.0
    %6523 = vmatpush1.msra.mxu0 0.0
    %6524 = vmatprep.subr.mxu0 0.0
    %6525 = vmatpush1.msra.mxu0 0.0
    %6526 = vmatprep.subr.mxu0 0.0
    %6527 = vmatpush1.msra.mxu0 0.0
    %6528 = vmatprep.subr.mxu0 0.0
    %6529 = vmatpush1.msra.mxu0 0.0
    %6530 = vmatprep.subr.mxu0 0.0
    %6531 = vmatpush1.msra.mxu0 0.0
    %6532 = vmatprep.mubr.f32.mxu0 0.0
    %6533 = vmatmul.mubr.f32.gmra.mrb[0].mxu0 %v6462
    %v6534 = vpop.f32.mrb[0].mxu0
    %v6535 = vadd.f32 0.0, %v6534
    %v6536 = vpop.f32.mrb[0].mxu0
    %v6537 = vadd.f32 0.0, %v6536
    %6538 = vdwg.mxu0
    %6539 = vmatprep.subr.mxu0 %v3528
    %6540 = vmatpush1.msra.mxu0 %v3527
    %6541 = vmatprep.subr.mxu0 %v3532
    %6542 = vmatpush1.msra.mxu0 %v3531
    %6543 = vmatprep.subr.mxu0 %v3536
    %6544 = vmatpush1.msra.mxu0 %v3535
    %6545 = vmatprep.subr.mxu0 %v3540
    %6546 = vmatpush1.msra.mxu0 %v3539
    %6547 = vmatprep.subr.mxu0 %v3544
    %6548 = vmatpush1.msra.mxu0 %v3543
    %6549 = vmatprep.subr.mxu0 %v3548
    %6550 = vmatpush1.msra.mxu0 %v3547
    %6551 = vmatprep.subr.mxu0 %v3552
    %6552 = vmatpush1.msra.mxu0 %v3551
    %6553 = vmatprep.subr.mxu0 %v3556
    %6554 = vmatpush1.msra.mxu0 %v3555
    %6555 = vmatprep.subr.mxu0 %v3560
    %6556 = vmatpush1.msra.mxu0 %v3559
    %6557 = vmatprep.subr.mxu0 %v3564
    %6558 = vmatpush1.msra.mxu0 %v3563
    %6559 = vmatprep.subr.mxu0 %v3568
    %6560 = vmatpush1.msra.mxu0 %v3567
    %6561 = vmatprep.subr.mxu0 %v3572
    %6562 = vmatpush1.msra.mxu0 %v3571
    %6563 = vmatprep.subr.mxu0 %v3576
    %6564 = vmatpush1.msra.mxu0 %v3575
    %6565 = vmatprep.subr.mxu0 %v3580
    %6566 = vmatpush1.msra.mxu0 %v3579
    %6567 = vmatprep.subr.mxu0 %v3584
    %6568 = vmatpush1.msra.mxu0 %v3583
    %6569 = vmatprep.subr.mxu0 %v3588
    %6570 = vmatpush1.msra.mxu0 %v3587
    %6571 = vmatprep.subr.mxu0 0.0
    %6572 = vmatpush1.msra.mxu0 0.0
    %6573 = vmatprep.subr.mxu0 0.0
    %6574 = vmatpush1.msra.mxu0 0.0
    %6575 = vmatprep.subr.mxu0 0.0
    %6576 = vmatpush1.msra.mxu0 0.0
    %6577 = vmatprep.subr.mxu0 0.0
    %6578 = vmatpush1.msra.mxu0 0.0
    %6579 = vmatprep.subr.mxu0 0.0
    %6580 = vmatpush1.msra.mxu0 0.0
    %6581 = vmatprep.subr.mxu0 0.0
    %6582 = vmatpush1.msra.mxu0 0.0
    %6583 = vmatprep.subr.mxu0 0.0
    %6584 = vmatpush1.msra.mxu0 0.0
    %6585 = vmatprep.subr.mxu0 0.0
    %6586 = vmatpush1.msra.mxu0 0.0
    %6587 = vmatprep.subr.mxu0 0.0
    %6588 = vmatpush1.msra.mxu0 0.0
    %6589 = vmatprep.subr.mxu0 0.0
    %6590 = vmatpush1.msra.mxu0 0.0
    %6591 = vmatprep.subr.mxu0 0.0
    %6592 = vmatpush1.msra.mxu0 0.0
    %6593 = vmatprep.subr.mxu0 0.0
    %6594 = vmatpush1.msra.mxu0 0.0
    %6595 = vmatprep.subr.mxu0 0.0
    %6596 = vmatpush1.msra.mxu0 0.0
    %6597 = vmatprep.subr.mxu0 0.0
    %6598 = vmatpush1.msra.mxu0 0.0
    %6599 = vmatprep.subr.mxu0 0.0
    %6600 = vmatpush1.msra.mxu0 0.0
    %6601 = vmatprep.subr.mxu0 0.0
    %6602 = vmatpush1.msra.mxu0 0.0
    %6603 = vmatprep.mubr.f32.mxu0 0.0
    %6604 = vmatmul.mubr.f32.gmra.mrb[0].mxu0 %v6462
    %v6605 = vpop.f32.mrb[0].mxu0
    %v6606 = vadd.f32 0.0, %v6605
    %v6607 = vpop.f32.mrb[0].mxu0
    %v6608 = vadd.f32 0.0, %v6607
    %6609 = vdwg.mxu0
    %v6610 = vadd.f32 %v6464, %v6535
    %v6611 = vadd.f32 %v6465, %v6537
    %v6612 = vadd.f32 %v6466, %v6606
    %v6613 = vadd.f32 %v6467, %v6608
    %v6614 = vxor.u32 %v6610, 2147483648
    %v6615 = vmul.f32 %v6614, 1.442695
    %v6616 = vpow.pop %v6615
    %v6617 = vadd.f32 %v6616, 1.0
    %v6618 = vrcp.pop %v6617
    %v6619 = vmul.f32 1.0, %v6618
    %v6620 = vxor.u32 %v6611, 2147483648
    %v6621 = vmul.f32 %v6620, 1.442695
    %v6622 = vpow.pop %v6621
    %v6623 = vadd.f32 %v6622, 1.0
    %v6624 = vrcp.pop %v6623
    %v6625 = vmul.f32 1.0, %v6624
    %v6626 = vtanh.pop %v6612
    %v6627 = vxor.u32 %v6613, 2147483648
    %v6628 = vmul.f32 %v6627, 1.442695
    %v6629 = vpow.pop %v6628
    %v6630 = vadd.f32 %v6629, 1.0
    %v6631 = vrcp.pop %v6630
    %v6632 = vmul.f32 1.0, %v6631
    %v6633 = vmul.f32 %v6625, %v6460
    %v6634 = vmul.f32 %v6619, %v6626
    %v6635 = vadd.f32 %v6633, %v6634
    %v6636 = vtanh.pop %v6635
    %v6637 = vmul.f32 %v6632, %v6636
    %6638 = vst [vmem:[%s3280] sm:$0xff] %v6637
    %v6639 = vld [vmem:[%s3282] sm:$0xff]
    %v6640 = vld [vmem:[%s3282 + $0x8] sm:$0xff]
    %v6641 = vld [vmem:[%s3282 + $0x10] sm:$0xff]
    %v6642 = vld [vmem:[%s3282 + $0x18] sm:$0xff]
    %6643 = vmatprep.subr.mxu0 %v3526
    %6644 = vmatpush1.msra.mxu0 %v3525
    %6645 = vmatprep.subr.mxu0 %v3530
    %6646 = vmatpush1.msra.mxu0 %v3529
    %6647 = vmatprep.subr.mxu0 %v3534
    %6648 = vmatpush1.msra.mxu0 %v3533
    %6649 = vmatprep.subr.mxu0 %v3538
    %6650 = vmatpush1.msra.mxu0 %v3537
    %6651 = vmatprep.subr.mxu0 %v3542
    %6652 = vmatpush1.msra.mxu0 %v3541
    %6653 = vmatprep.subr.mxu0 %v3546
    %6654 = vmatpush1.msra.mxu0 %v3545
    %6655 = vmatprep.subr.mxu0 %v3550
    %6656 = vmatpush1.msra.mxu0 %v3549
    %6657 = vmatprep.subr.mxu0 %v3554
    %6658 = vmatpush1.msra.mxu0 %v3553
    %6659 = vmatprep.subr.mxu0 %v3558
    %6660 = vmatpush1.msra.mxu0 %v3557
    %6661 = vmatprep.subr.mxu0 %v3562
    %6662 = vmatpush1.msra.mxu0 %v3561
    %6663 = vmatprep.subr.mxu0 %v3566
    %6664 = vmatpush1.msra.mxu0 %v3565
    %6665 = vmatprep.subr.mxu0 %v3570
    %6666 = vmatpush1.msra.mxu0 %v3569
    %6667 = vmatprep.subr.mxu0 %v3574
    %6668 = vmatpush1.msra.mxu0 %v3573
    %6669 = vmatprep.subr.mxu0 %v3578
    %6670 = vmatpush1.msra.mxu0 %v3577
    %6671 = vmatprep.subr.mxu0 %v3582
    %6672 = vmatpush1.msra.mxu0 %v3581
    %6673 = vmatprep.subr.mxu0 %v3586
    %6674 = vmatpush1.msra.mxu0 %v3585
    %6675 = vmatprep.subr.mxu0 0.0
    %6676 = vmatpush1.msra.mxu0 0.0
    %6677 = vmatprep.subr.mxu0 0.0
    %6678 = vmatpush1.msra.mxu0 0.0
    %6679 = vmatprep.subr.mxu0 0.0
    %6680 = vmatpush1.msra.mxu0 0.0
    %6681 = vmatprep.subr.mxu0 0.0
    %6682 = vmatpush1.msra.mxu0 0.0
    %6683 = vmatprep.subr.mxu0 0.0
    %6684 = vmatpush1.msra.mxu0 0.0
    %6685 = vmatprep.subr.mxu0 0.0
    %6686 = vmatpush1.msra.mxu0 0.0
    %6687 = vmatprep.subr.mxu0 0.0
    %6688 = vmatpush1.msra.mxu0 0.0
    %6689 = vmatprep.subr.mxu0 0.0
    %6690 = vmatpush1.msra.mxu0 0.0
    %6691 = vmatprep.subr.mxu0 0.0
    %6692 = vmatpush1.msra.mxu0 0.0
    %6693 = vmatprep.subr.mxu0 0.0
    %6694 = vmatpush1.msra.mxu0 0.0
    %6695 = vmatprep.subr.mxu0 0.0
    %6696 = vmatpush1.msra.mxu0 0.0
    %6697 = vmatprep.subr.mxu0 0.0
    %6698 = vmatpush1.msra.mxu0 0.0
    %6699 = vmatprep.subr.mxu0 0.0
    %6700 = vmatpush1.msra.mxu0 0.0
    %6701 = vmatprep.subr.mxu0 0.0
    %6702 = vmatpush1.msra.mxu0 0.0
    %6703 = vmatprep.subr.mxu0 0.0
    %6704 = vmatpush1.msra.mxu0 0.0
    %6705 = vmatprep.subr.mxu0 0.0
    %6706 = vmatpush1.msra.mxu0 0.0
    %6707 = vmatprep.mubr.f32.mxu0 0.0
    %6708 = vmatmul.mubr.f32.gmra.mrb[0].mxu0 %v6637
    %v6709 = vpop.f32.mrb[0].mxu0
    %v6710 = vadd.f32 0.0, %v6709
    %v6711 = vpop.f32.mrb[0].mxu0
    %v6712 = vadd.f32 0.0, %v6711
    %6713 = vdwg.mxu0
    %6714 = vmatprep.subr.mxu0 %v3528
    %6715 = vmatpush1.msra.mxu0 %v3527
    %6716 = vmatprep.subr.mxu0 %v3532
    %6717 = vmatpush1.msra.mxu0 %v3531
    %6718 = vmatprep.subr.mxu0 %v3536
    %6719 = vmatpush1.msra.mxu0 %v3535
    %6720 = vmatprep.subr.mxu0 %v3540
    %6721 = vmatpush1.msra.mxu0 %v3539
    %6722 = vmatprep.subr.mxu0 %v3544
    %6723 = vmatpush1.msra.mxu0 %v3543
    %6724 = vmatprep.subr.mxu0 %v3548
    %6725 = vmatpush1.msra.mxu0 %v3547
    %6726 = vmatprep.subr.mxu0 %v3552
    %6727 = vmatpush1.msra.mxu0 %v3551
    %6728 = vmatprep.subr.mxu0 %v3556
    %6729 = vmatpush1.msra.mxu0 %v3555
    %6730 = vmatprep.subr.mxu0 %v3560
    %6731 = vmatpush1.msra.mxu0 %v3559
    %6732 = vmatprep.subr.mxu0 %v3564
    %6733 = vmatpush1.msra.mxu0 %v3563
    %6734 = vmatprep.subr.mxu0 %v3568
    %6735 = vmatpush1.msra.mxu0 %v3567
    %6736 = vmatprep.subr.mxu0 %v3572
    %6737 = vmatpush1.msra.mxu0 %v3571
    %6738 = vmatprep.subr.mxu0 %v3576
    %6739 = vmatpush1.msra.mxu0 %v3575
    %6740 = vmatprep.subr.mxu0 %v3580
    %6741 = vmatpush1.msra.mxu0 %v3579
    %6742 = vmatprep.subr.mxu0 %v3584
    %6743 = vmatpush1.msra.mxu0 %v3583
    %6744 = vmatprep.subr.mxu0 %v3588
    %6745 = vmatpush1.msra.mxu0 %v3587
    %6746 = vmatprep.subr.mxu0 0.0
    %6747 = vmatpush1.msra.mxu0 0.0
    %6748 = vmatprep.subr.mxu0 0.0
    %6749 = vmatpush1.msra.mxu0 0.0
    %6750 = vmatprep.subr.mxu0 0.0
    %6751 = vmatpush1.msra.mxu0 0.0
    %6752 = vmatprep.subr.mxu0 0.0
    %6753 = vmatpush1.msra.mxu0 0.0
    %6754 = vmatprep.subr.mxu0 0.0
    %6755 = vmatpush1.msra.mxu0 0.0
    %6756 = vmatprep.subr.mxu0 0.0
    %6757 = vmatpush1.msra.mxu0 0.0
    %6758 = vmatprep.subr.mxu0 0.0
    %6759 = vmatpush1.msra.mxu0 0.0
    %6760 = vmatprep.subr.mxu0 0.0
    %6761 = vmatpush1.msra.mxu0 0.0
    %6762 = vmatprep.subr.mxu0 0.0
    %6763 = vmatpush1.msra.mxu0 0.0
    %6764 = vmatprep.subr.mxu0 0.0
    %6765 = vmatpush1.msra.mxu0 0.0
    %6766 = vmatprep.subr.mxu0 0.0
    %6767 = vmatpush1.msra.mxu0 0.0
    %6768 = vmatprep.subr.mxu0 0.0
    %6769 = vmatpush1.msra.mxu0 0.0
    %6770 = vmatprep.subr.mxu0 0.0
    %6771 = vmatpush1.msra.mxu0 0.0
    %6772 = vmatprep.subr.mxu0 0.0
    %6773 = vmatpush1.msra.mxu0 0.0
    %6774 = vmatprep.subr.mxu0 0.0
    %6775 = vmatpush1.msra.mxu0 0.0
    %6776 = vmatprep.subr.mxu0 0.0
    %6777 = vmatpush1.msra.mxu0 0.0
    %6778 = vmatprep.mubr.f32.mxu0 0.0
    %6779 = vmatmul.mubr.f32.gmra.mrb[0].mxu0 %v6637
    %v6780 = vpop.f32.mrb[0].mxu0
    %v6781 = vadd.f32 0.0, %v6780
    %v6782 = vpop.f32.mrb[0].mxu0
    %v6783 = vadd.f32 0.0, %v6782
    %6784 = vdwg.mxu0
    %v6785 = vadd.f32 %v6639, %v6710
    %v6786 = vadd.f32 %v6640, %v6712
    %v6787 = vadd.f32 %v6641, %v6781
    %v6788 = vadd.f32 %v6642, %v6783
    %v6789 = vxor.u32 %v6785, 2147483648
    %v6790 = vmul.f32 %v6789, 1.442695
    %v6791 = vpow.pop %v6790
    %v6792 = vadd.f32 %v6791, 1.0
    %v6793 = vrcp.pop %v6792
    %v6794 = vmul.f32 1.0, %v6793
    %v6795 = vxor.u32 %v6786, 2147483648
    %v6796 = vmul.f32 %v6795, 1.442695
    %v6797 = vpow.pop %v6796
    %v6798 = vadd.f32 %v6797, 1.0
    %v6799 = vrcp.pop %v6798
    %v6800 = vmul.f32 1.0, %v6799
    %v6801 = vtanh.pop %v6787
    %v6802 = vxor.u32 %v6788, 2147483648
    %v6803 = vmul.f32 %v6802, 1.442695
    %v6804 = vpow.pop %v6803
    %v6805 = vadd.f32 %v6804, 1.0
    %v6806 = vrcp.pop %v6805
    %v6807 = vmul.f32 1.0, %v6806
    %v6808 = vmul.f32 %v6800, %v6635
    %v6809 = vmul.f32 %v6794, %v6801
    %v6810 = vadd.f32 %v6808, %v6809
    %v6811 = vtanh.pop %v6810
    %v6812 = vmul.f32 %v6807, %v6811
    %6813 = vst [vmem:[%s3457] sm:$0xff] %v6812
    %v6814 = vld [vmem:[#allocation3] sm:$0xff]
    %v6815 = vld [vmem:[#allocation3 + $0x10] sm:$0xff]
    %v6816 = vld [vmem:[#allocation3 + $0x20] sm:$0xff]
    %v6817 = vld [vmem:[#allocation3 + $0x30] sm:$0xff]
    %v6818 = vld [vmem:[#allocation3 + $0x40] sm:$0xff]
    %v6819 = vld [vmem:[#allocation3 + $0x50] sm:$0xff]
    %v6820 = vld [vmem:[#allocation3 + $0x60] sm:$0xff]
    %v6821 = vld [vmem:[#allocation3 + $0x70] sm:$0xff]
    %v6822 = vld [vmem:[#allocation10] sm:$0xff]
    %v6823 = vld [vmem:[#allocation10 + $0x8] sm:$0xff]
    %v6824 = vld [vmem:[#allocation10 + $0x10] sm:$0xff]
    %v6825 = vld [vmem:[#allocation10 + $0x18] sm:$0xff]
    %v6826 = vld [vmem:[#allocation10 + $0x20] sm:$0xff]
    %v6827 = vld [vmem:[#allocation10 + $0x28] sm:$0xff]
    %v6828 = vld [vmem:[#allocation10 + $0x30] sm:$0xff]
    %v6829 = vld [vmem:[#allocation10 + $0x38] sm:$0xff]
    %v6830 = vld [vmem:[#allocation10 + $0x40] sm:$0xff]
    %v6831 = vld [vmem:[#allocation10 + $0x48] sm:$0xff]
    %v6832 = vld [vmem:[#allocation10 + $0x50] sm:$0xff]
    %v6833 = vld [vmem:[#allocation10 + $0x58] sm:$0xff]
    %v6834 = vld [vmem:[#allocation10 + $0x60] sm:$0xff]
    %v6835 = vld [vmem:[#allocation10 + $0x68] sm:$0xff]
    %v6836 = vld [vmem:[#allocation10 + $0x70] sm:$0xff]
    %v6837 = vld [vmem:[#allocation10 + $0x78] sm:$0xff]
    %v6838 = vld [vmem:[%s4] sm:$0x1]
    %v6840 = vlaneseq
    %v6841 = vshrl.u32 %v6840, 7
    %v6842 = vsub.s32 0, %v6841
    %v6843 = vrot.slane %v6838, %v6842
    %6845 = vmatprep.subr.mxu0 0.0
    %6846 = vmatpush1.msra.mxu0 %v6822
    %6847 = vmatprep.subr.mxu0 0.0
    %6848 = vmatpush1.msra.mxu0 %v6823
    %6849 = vmatprep.subr.mxu0 0.0
    %6850 = vmatpush1.msra.mxu0 %v6824
    %6851 = vmatprep.subr.mxu0 0.0
    %6852 = vmatpush1.msra.mxu0 %v6825
    %6853 = vmatprep.subr.mxu0 0.0
    %6854 = vmatpush1.msra.mxu0 %v6826
    %6855 = vmatprep.subr.mxu0 0.0
    %6856 = vmatpush1.msra.mxu0 %v6827
    %6857 = vmatprep.subr.mxu0 0.0
    %6858 = vmatpush1.msra.mxu0 %v6828
    %6859 = vmatprep.subr.mxu0 0.0
    %6860 = vmatpush1.msra.mxu0 %v6829
    %6861 = vmatprep.subr.mxu0 0.0
    %6862 = vmatpush1.msra.mxu0 %v6830
    %6863 = vmatprep.subr.mxu0 0.0
    %6864 = vmatpush1.msra.mxu0 %v6831
    %6865 = vmatprep.subr.mxu0 0.0
    %6866 = vmatpush1.msra.mxu0 %v6832
    %6867 = vmatprep.subr.mxu0 0.0
    %6868 = vmatpush1.msra.mxu0 %v6833
    %6869 = vmatprep.subr.mxu0 0.0
    %6870 = vmatpush1.msra.mxu0 %v6834
    %6871 = vmatprep.subr.mxu0 0.0
    %6872 = vmatpush1.msra.mxu0 %v6835
    %6873 = vmatprep.subr.mxu0 0.0
    %6874 = vmatpush1.msra.mxu0 %v6836
    %6875 = vmatprep.subr.mxu0 0.0
    %6876 = vmatpush1.msra.mxu0 %v6837
    %6877 = vmatprep.subr.mxu0 0.0
    %6878 = vmatpush1.msra.mxu0 0.0
    %6879 = vmatprep.subr.mxu0 0.0
    %6880 = vmatpush1.msra.mxu0 0.0
    %6881 = vmatprep.subr.mxu0 0.0
    %6882 = vmatpush1.msra.mxu0 0.0
    %6883 = vmatprep.subr.mxu0 0.0
    %6884 = vmatpush1.msra.mxu0 0.0
    %6885 = vmatprep.subr.mxu0 0.0
    %6886 = vmatpush1.msra.mxu0 0.0
    %6887 = vmatprep.subr.mxu0 0.0
    %6888 = vmatpush1.msra.mxu0 0.0
    %6889 = vmatprep.subr.mxu0 0.0
    %6890 = vmatpush1.msra.mxu0 0.0
    %6891 = vmatprep.subr.mxu0 0.0
    %6892 = vmatpush1.msra.mxu0 0.0
    %6893 = vmatprep.subr.mxu0 0.0
    %6894 = vmatpush1.msra.mxu0 0.0
    %6895 = vmatprep.subr.mxu0 0.0
    %6896 = vmatpush1.msra.mxu0 0.0
    %6897 = vmatprep.subr.mxu0 0.0
    %6898 = vmatpush1.msra.mxu0 0.0
    %6899 = vmatprep.subr.mxu0 0.0
    %6900 = vmatpush1.msra.mxu0 0.0
    %6901 = vmatprep.subr.mxu0 0.0
    %6902 = vmatpush1.msra.mxu0 0.0
    %6903 = vmatprep.subr.mxu0 0.0
    %6904 = vmatpush1.msra.mxu0 0.0
    %6905 = vmatprep.subr.mxu0 0.0
    %6906 = vmatpush1.msra.mxu0 0.0
    %6907 = vmatprep.subr.mxu0 0.0
    %6908 = vmatpush1.msra.mxu0 0.0
    %6909 = vmatprep.mubr.f32.mxu0 0.0
    %6910 = vmatmul.mubr.f32.gmra.mrb[0].mxu0 %v6814
    %v6911 = vpop.f32.mrb[0].mxu0
    %v6912 = vadd.f32 %v6843, %v6911
    %v6913 = vpop.f32.mrb[0].mxu0
    %6914 = vmatprep.mubr.f32.mxu0 0.0
    %6915 = vmatmul.mubr.f32.gmra.mrb[0].mxu0 %v6815
    %v6916 = vpop.f32.mrb[0].mxu0
    %v6917 = vadd.f32 %v6843, %v6916
    %v6918 = vpop.f32.mrb[0].mxu0
    %6919 = vmatprep.mubr.f32.mxu0 0.0
    %6920 = vmatmul.mubr.f32.gmra.mrb[0].mxu0 %v6816
    %v6921 = vpop.f32.mrb[0].mxu0
    %v6922 = vadd.f32 %v6843, %v6921
    %v6923 = vpop.f32.mrb[0].mxu0
    %6924 = vmatprep.mubr.f32.mxu0 0.0
    %6925 = vmatmul.mubr.f32.gmra.mrb[0].mxu0 %v6817
    %v6926 = vpop.f32.mrb[0].mxu0
    %v6927 = vadd.f32 %v6843, %v6926
    %v6928 = vpop.f32.mrb[0].mxu0
    %6929 = vmatprep.mubr.f32.mxu0 0.0
    %6930 = vmatmul.mubr.f32.gmra.mrb[0].mxu0 %v6818
    %v6931 = vpop.f32.mrb[0].mxu0
    %v6932 = vadd.f32 %v6843, %v6931
    %v6933 = vpop.f32.mrb[0].mxu0
    %6934 = vmatprep.mubr.f32.mxu0 0.0
    %6935 = vmatmul.mubr.f32.gmra.mrb[0].mxu0 %v6819
    %v6936 = vpop.f32.mrb[0].mxu0
    %v6937 = vadd.f32 %v6843, %v6936
    %v6938 = vpop.f32.mrb[0].mxu0
    %6939 = vmatprep.mubr.f32.mxu0 0.0
    %6940 = vmatmul.mubr.f32.gmra.mrb[0].mxu0 %v6820
    %v6941 = vpop.f32.mrb[0].mxu0
    %v6942 = vadd.f32 %v6843, %v6941
    %v6943 = vpop.f32.mrb[0].mxu0
    %6944 = vmatprep.mubr.f32.mxu0 0.0
    %6945 = vmatmul.mubr.f32.gmra.mrb[0].mxu0 %v6821
    %v6946 = vpop.f32.mrb[0].mxu0
    %v6947 = vadd.f32 %v6843, %v6946
    %v6948 = vpop.f32.mrb[0].mxu0
    %6949 = vdwg.mxu0
    %6950 = vst [vmem:[#allocation12] sm:$0xff] %v6912
    %6951 = vst [vmem:[#allocation12 + $0x8] sm:$0xff] %v6917
    %6952 = vst [vmem:[#allocation12 + $0x10] sm:$0xff] %v6922
    %6953 = vst [vmem:[#allocation12 + $0x18] sm:$0xff] %v6927
    %6954 = vst [vmem:[#allocation12 + $0x20] sm:$0xff] %v6932
    %6955 = vst [vmem:[#allocation12 + $0x28] sm:$0xff] %v6937
    %6956 = vst [vmem:[#allocation12 + $0x30] sm:$0xff] %v6942
    %6957 = vst [vmem:[#allocation12 + $0x38] sm:$0xff] %v6947
    // Predicated region
    $region38: #{tpu_custom_call.1} parent=1 // pred_check
      _
    $region39: #{tpu_custom_call.1} parent=1 // pred_check_branch
      %6959 = sbr.rel (0) target = $region41
    $region40: #{tpu_custom_call.1} parent=1 // pred_region
      %s6961 = ssub.s32 1024, 1024
      %6962 = vsyncadd [#allocation6], %s6961
      %s6963 = sshll.u32 [#allocation12], 4
      %s6964 = int_to_ptr.vmem [resolvable:$true] %s6963
      %6969 = dma.vmem_to_hbm [thread:$0]  %s6964, 1024, %s5, [#allocation6], 128, 128, 8
    $region41: #{tpu_custom_call.1} parent=1 // pred_fallthru
      _
    // Predicated region
    $region42: #{tpu_custom_call.1} parent=1 // pred_check
      _
    $region43: #{tpu_custom_call.1} parent=1 // pred_check_branch
      %6971 = sbr.rel (0) target = $region45
    $region44: #{tpu_custom_call.1} parent=1 // pred_region
      %6972 = dma.done [#allocation6], 1024
    $region45: #{tpu_custom_call.1} parent=1 // pred_fallthru
      _
    %6973 = vsyncpa [#allocation5], 1
    %6974 = vsyncpa [#allocation8], 1
    %6975 = vsyncpa [#allocation11], 1
    %6976 = vsyncpa [#allocation6], 1

</llo_original>
